<compile_context>
chip_gen: v5e
topology: v5e:2x2
jax: 0.10.0
libtpu: 0.0.40
codegen_flags: <defaults>
</compile_context>

<pallas_src>
import jax
import jax.numpy as jnp
from jax import lax
from jax.experimental import pallas as pl
from jax.experimental.pallas import tpu as pltpu


# ---------------------------------------------------------------------------
# Fused DFE kernel: one batch element per grid step.
# ---------------------------------------------------------------------------
def dfe_kernel(x_ref,
               wA_ref, bA_ref,          # fused first conv of all 3 branches
               w2_ref, b2_ref,          # conv2[1]
               w3a_ref, b3a_ref,        # conv3[1]
               w3b_ref, b3b_ref,        # conv3[2]
               sw1_ref, sb1_ref, sw2_ref, sb2_ref,   # SE
               wc_ref, bc_ref,          # final 1x1 conv
               o_ref,
               xp_ref, patch_ref, cat_ref):
    # x_ref : (1,H,W,C) f32      conv weights: (9*C, Cout) bf16   biases: (1,n) f32
    # o_ref : (1,H,W,C) f32
    # xp_ref    : (H+2, W+2, C) f32  zero-padded conv input (VMEM)
    # patch_ref : (H, W, 9*C)  bf16  im2col buffer          (VMEM)
    # cat_ref   : (H, W, 3*C)  f32   concatenated branches  (VMEM)
    H = o_ref.shape[1]
    W = o_ref.shape[2]
    C = o_ref.shape[3]
    C3 = cat_ref.shape[2]

    # Zero the padded scratch once per grid step; only the interior is written
    # below, so the 1-pixel halo stays zero for every conv in this step.
    xp_ref[...] = jnp.zeros_like(xp_ref)

    def conv3x3_relu(src_hwc, w_ref, b_ref):
        """3x3 'same' conv + bias + ReLU as a single K=9*C im2col matmul."""
        cout = w_ref.shape[1]
        # In-VMEM padding (no jnp.pad / HBM round trip).
        xp_ref[1:H + 1, 1:W + 1, :] = src_hwc
        # im2col: pack the 9 shifted taps along the channel (lane) axis.
        for dh in range(3):
            for dw in range(3):
                t = dh * 3 + dw
                patch_ref[:, :, t * C:(t + 1) * C] = (
                    xp_ref[dh:dh + H, dw:dw + W, :].astype(jnp.bfloat16))
        patches = patch_ref[...].reshape(H * W, 9 * C)       # bf16, K=9*C
        y = jnp.dot(patches, w_ref[...],
                    preferred_element_type=jnp.float32) + b_ref[...]
        return jnp.maximum(y, 0.0).reshape(H, W, cout)

    # ---- branch convs -----------------------------------------------------
    # Fused first layer of all three branches (Cout = 3C); the result is
    # already laid out as [branch1 | branch2-mid | branch3-mid] == cat slices.
    cat_ref[...] = conv3x3_relu(x_ref[0], wA_ref, bA_ref)

    # branch 2: one more CR on its channel slice.
    cat_ref[:, :, C:2 * C] = conv3x3_relu(cat_ref[:, :, C:2 * C],
                                          w2_ref, b2_ref)
    # branch 3: two more CRs on its channel slice.
    cat_ref[:, :, 2 * C:3 * C] = conv3x3_relu(cat_ref[:, :, 2 * C:3 * C],
                                              w3a_ref, b3a_ref)
    cat_ref[:, :, 2 * C:3 * C] = conv3x3_relu(cat_ref[:, :, 2 * C:3 * C],
                                              w3b_ref, b3b_ref)

    # ---- SE + final 1x1 conv -----------------------------------------------
    cat = cat_ref[...].reshape(H * W, C3)                  # f32 (H*W, 3C)
    pooled = jnp.mean(cat, axis=0, keepdims=True)          # (1, 3C)
    hse = jnp.maximum(
        jnp.dot(pooled.astype(jnp.bfloat16), sw1_ref[...],
                preferred_element_type=jnp.float32) + sb1_ref[...], 0.0)
    z = jnp.dot(hse.astype(jnp.bfloat16), sw2_ref[...],
                preferred_element_type=jnp.float32) + sb2_ref[...]
    s = 1.0 / (1.0 + jnp.exp(-z))                          # sigmoid, (1, 3C)

    scaled = (cat * s).astype(jnp.bfloat16)                # channel scale
    out = jnp.dot(scaled, wc_ref[...],
                  preferred_element_type=jnp.float32) + bc_ref[...]
    # TODO(synk): for production H/W/C, tile H into row strips (halo=branch
    # depth) and present a lane-dense (W*C) output slab instead of C=8 lanes.
    o_ref[...] = out.reshape(1, H, W, C)


# ---------------------------------------------------------------------------
# Wrapper: weight repacking (im2col layout, bf16) + pallas_call.
# ---------------------------------------------------------------------------
def dfe_forward(x_nchw, params):
    x = jnp.transpose(x_nchw, (0, 2, 3, 1)).astype(jnp.float32)  # NCHW -> NHWC
    B, H, W, C = x.shape
    C3 = 3 * C

    def w_im2col(w):  # (3,3,Cin,Cout) -> (9*Cin, Cout); row (dh*3+dw)*Cin+ci
        kh, kw, cin, cout = w.shape
        return w.reshape(kh * kw * cin, cout).astype(jnp.bfloat16)

    # Fuse the first conv of each branch along Cout (they share input x).
    w1_0, b1_0 = params["conv1"][0]
    w2_0, b2_0 = params["conv2"][0]
    w3_0, b3_0 = params["conv3"][0]
    wA = w_im2col(jnp.concatenate([w1_0, w2_0, w3_0], axis=-1))   # (9C, 3C)
    bA = jnp.concatenate([b1_0, b2_0, b3_0], axis=-1).reshape(1, C3)

    w2_1, b2_1 = params["conv2"][1]
    w3_1, b3_1 = params["conv3"][1]
    w3_2, b3_2 = params["conv3"][2]
    hid = params["se_w1"].shape[1]

    def full_spec(shape):
        nd = len(shape)
        return pl.BlockSpec(shape, lambda i, _nd=nd: (0,) * _nd)

    out_nhwc = pl.pallas_call(
        dfe_kernel,
        out_shape=jax.ShapeDtypeStruct((B, H, W, C), jnp.float32),
        grid=(B,),
        in_specs=[
            pl.BlockSpec((1, H, W, C), lambda i: (i, 0, 0, 0)),
            full_spec((9 * C, C3)), full_spec((1, C3)),
            full_spec((9 * C, C)), full_spec((1, C)),
            full_spec((9 * C, C)), full_spec((1, C)),
            full_spec((9 * C, C)), full_spec((1, C)),
            full_spec((C3, hid)), full_spec((1, hid)),
            full_spec((hid, C3)), full_spec((1, C3)),
            full_spec((C3, C)), full_spec((1, C)),
        ],
        out_specs=pl.BlockSpec((1, H, W, C), lambda i: (i, 0, 0, 0)),
        scratch_shapes=[
            pltpu.VMEM((H + 2, W + 2, C), jnp.float32),   # padded conv input
            pltpu.VMEM((H, W, 9 * C), jnp.bfloat16),      # im2col buffer
            pltpu.VMEM((H, W, C3), jnp.float32),          # cat (branch outputs)
        ],
        compiler_params=pltpu.CompilerParams(
            dimension_semantics=("parallel",)),
    )(
        x,
        wA, bA,
        w_im2col(w2_1), b2_1.reshape(1, C),
        w_im2col(w3_1), b3_1.reshape(1, C),
        w_im2col(w3_2), b3_2.reshape(1, C),
        params["se_w1"].astype(jnp.bfloat16), params["se_b1"].reshape(1, hid),
        params["se_w2"].astype(jnp.bfloat16), params["se_b2"].reshape(1, C3),
        params["conv_w"].astype(jnp.bfloat16), params["conv_b"].reshape(1, C),
    )
    return jnp.transpose(out_nhwc, (0, 3, 1, 2))   # NHWC -> NCHW


# ---------------------------------------------------------------------------
# Pure-JAX reference (same bf16-operand / f32-accumulate matmul convention).
# ---------------------------------------------------------------------------
def dfe_reference(x_nchw, params):
    x = jnp.transpose(x_nchw, (0, 2, 3, 1)).astype(jnp.float32)

    def cr(h, w, b):
        y = lax.conv_general_dilated(
            h.astype(jnp.bfloat16), w.astype(jnp.bfloat16),
            window_strides=(1, 1), padding="SAME",
            dimension_numbers=("NHWC", "HWIO", "NHWC"),
            preferred_element_type=jnp.float32)
        return jnp.maximum(y + b, 0.0)

    def branch(h, convs):
        for (w, b) in convs:
            h = cr(h, w, b)
        return h

    cat = jnp.concatenate(
        [branch(x, params["conv1"]),
         branch(x, params["conv2"]),
         branch(x, params["conv3"])], axis=-1)                  # (B,H,W,3C)
    B, H, W, C3 = cat.shape
    C = params["conv_w"].shape[1]

    pooled = jnp.mean(cat, axis=(1, 2))                         # (B,3C)
    hse = jnp.maximum(
        jnp.dot(pooled.astype(jnp.bfloat16),
                params["se_w1"].astype(jnp.bfloat16),
                preferred_element_type=jnp.float32) + params["se_b1"], 0.0)
    z = jnp.dot(hse.astype(jnp.bfloat16),
                params["se_w2"].astype(jnp.bfloat16),
                preferred_element_type=jnp.float32) + params["se_b2"]
    s = 1.0 / (1.0 + jnp.exp(-z))
    cat = cat * s[:, None, None, :]

    out = jnp.dot(cat.reshape(-1, C3).astype(jnp.bfloat16),
                  params["conv_w"].astype(jnp.bfloat16),
                  preferred_element_type=jnp.float32).reshape(B, H, W, C)
    out = out + params["conv_b"]
    return jnp.transpose(out, (0, 3, 1, 2))


def init_params(key, in_channels, reduction_ratio):
    C = in_channels
    C3 = 3 * C
    hid = max(1, C3 // reduction_ratio)
    keys = jax.random.split(key, 24)   # 18 tensors below; split with headroom
    k = iter(keys)

    def conv_w(kk, cin, cout, ksz):
        return 0.1 * jax.random.normal(kk, (ksz, ksz, cin, cout), jnp.float32)

    def vec(kk, n):
        return 0.1 * jax.random.normal(kk, (n,), jnp.float32)

    return {
        "conv1": [(conv_w(next(k), C, C, 3), vec(next(k), C))],
        "conv2": [(conv_w(next(k), C, C, 3), vec(next(k), C)) for _ in range(2)],
        "conv3": [(conv_w(next(k), C, C, 3), vec(next(k), C)) for _ in range(3)],
        "se_w1": 0.1 * jax.random.normal(next(k), (C3, hid), jnp.float32),
        "se_b1": vec(next(k), hid),
        "se_w2": 0.1 * jax.random.normal(next(k), (hid, C3), jnp.float32),
        "se_b2": vec(next(k), C3),
        "conv_w": 0.1 * jax.random.normal(next(k), (C3, C), jnp.float32),
        "conv_b": vec(next(k), C),
    }


if __name__ == "__main__":
    B, C, H, W = 2, 8, 16, 16
    reduction_ratio = 4        # hidden = 3*C // 4 = 6

    key = jax.random.PRNGKey(0)
    kx, kp = jax.random.split(key)
    x = jax.random.normal(kx, (B, C, H, W), jnp.float32)   # NCHW like PyTorch
    params = init_params(kp, C, reduction_ratio)

    out = jax.block_until_ready(jax.jit(dfe_forward)(x, params))
    ref = jax.block_until_ready(dfe_reference(x, params))

    assert out.shape == (B, C, H, W), out.shape
    max_err = float(jnp.max(jnp.abs(out - ref)))
    assert jnp.allclose(out, ref, rtol=2e-3, atol=2e-3), max_err
    print("KERNEL_OK")
</pallas_src>

<mosaic_0001>
module attributes {stable_mosaic.version = 11 : i64} {
  func.func @dfe_kernel(%arg0: i32, %arg1: memref<1x16x16x8xf32, #tpu.memory_space<vmem>>, %arg2: memref<72x24xbf16, #tpu.memory_space<vmem>>, %arg3: memref<1x24xf32, #tpu.memory_space<vmem>>, %arg4: memref<72x8xbf16, #tpu.memory_space<vmem>>, %arg5: memref<1x8xf32, #tpu.memory_space<vmem>>, %arg6: memref<72x8xbf16, #tpu.memory_space<vmem>>, %arg7: memref<1x8xf32, #tpu.memory_space<vmem>>, %arg8: memref<72x8xbf16, #tpu.memory_space<vmem>>, %arg9: memref<1x8xf32, #tpu.memory_space<vmem>>, %arg10: memref<24x6xbf16, #tpu.memory_space<vmem>>, %arg11: memref<1x6xf32, #tpu.memory_space<vmem>>, %arg12: memref<6x24xbf16, #tpu.memory_space<vmem>>, %arg13: memref<1x24xf32, #tpu.memory_space<vmem>>, %arg14: memref<24x8xbf16, #tpu.memory_space<vmem>>, %arg15: memref<1x8xf32, #tpu.memory_space<vmem>>, %arg16: memref<1x16x16x8xf32, #tpu.memory_space<vmem>>, %arg17: memref<18x18x8xf32, #tpu.memory_space<vmem>>, %arg18: memref<16x16x72xbf16, #tpu.memory_space<vmem>>, %arg19: memref<16x16x24xf32, #tpu.memory_space<vmem>>) attributes {dimension_semantics = [#tpu.dimension_semantics<parallel>], iteration_bounds = array<i64: 2>, scalar_prefetch = 0 : i64, scratch_operands = 3 : i64, tpu.core_type = #tpu.core_type<tc>, window_params = [{transform_indices = @transform_0, window_bounds = array<i64: 1, 16, 16, 8>}, {pipeline_mode = #tpu.pipeline_mode<synchronous>, transform_indices = @transform_1, window_bounds = array<i64: 72, 24>}, {pipeline_mode = #tpu.pipeline_mode<synchronous>, transform_indices = @transform_2, window_bounds = array<i64: 1, 24>}, {pipeline_mode = #tpu.pipeline_mode<synchronous>, transform_indices = @transform_3, window_bounds = array<i64: 72, 8>}, {pipeline_mode = #tpu.pipeline_mode<synchronous>, transform_indices = @transform_4, window_bounds = array<i64: 1, 8>}, {pipeline_mode = #tpu.pipeline_mode<synchronous>, transform_indices = @transform_5, window_bounds = array<i64: 72, 8>}, {pipeline_mode = #tpu.pipeline_mode<synchronous>, transform_indices = @transform_6, window_bounds = array<i64: 1, 8>}, {pipeline_mode = #tpu.pipeline_mode<synchronous>, transform_indices = @transform_7, window_bounds = array<i64: 72, 8>}, {pipeline_mode = #tpu.pipeline_mode<synchronous>, transform_indices = @transform_8, window_bounds = array<i64: 1, 8>}, {pipeline_mode = #tpu.pipeline_mode<synchronous>, transform_indices = @transform_9, window_bounds = array<i64: 24, 6>}, {pipeline_mode = #tpu.pipeline_mode<synchronous>, transform_indices = @transform_10, window_bounds = array<i64: 1, 6>}, {pipeline_mode = #tpu.pipeline_mode<synchronous>, transform_indices = @transform_11, window_bounds = array<i64: 6, 24>}, {pipeline_mode = #tpu.pipeline_mode<synchronous>, transform_indices = @transform_12, window_bounds = array<i64: 1, 24>}, {pipeline_mode = #tpu.pipeline_mode<synchronous>, transform_indices = @transform_13, window_bounds = array<i64: 24, 8>}, {pipeline_mode = #tpu.pipeline_mode<synchronous>, transform_indices = @transform_14, window_bounds = array<i64: 1, 8>}, {transform_indices = @transform_15, window_bounds = array<i64: 1, 16, 16, 8>}]} {
    %cst = arith.constant 0.000000e+00 : f32
    %0 = vector.broadcast %cst : f32 to vector<18x18x8xf32>
    %c0 = arith.constant 0 : index
    %c0_0 = arith.constant 0 : index
    %c0_1 = arith.constant 0 : index
    %1 = vector.load %arg17[%c0, %c0_0, %c0_1] : memref<18x18x8xf32, #tpu.memory_space<vmem>>, vector<18x18x8xf32>
    tpu.vector_store %arg17[%c0, %c0_0, %c0_1], %0 {strides = array<i32>} : memref<18x18x8xf32, #tpu.memory_space<vmem>>, vector<18x18x8xf32>,
    %c0_2 = arith.constant 0 : index
    %c0_3 = arith.constant 0 : index
    %c0_4 = arith.constant 0 : index
    %c0_5 = arith.constant 0 : index
    %2 = vector.load %arg1[%c0_2, %c0_3, %c0_4, %c0_5] : memref<1x16x16x8xf32, #tpu.memory_space<vmem>>, vector<1x16x16x8xf32>
    %3 = vector.shape_cast %2 : vector<1x16x16x8xf32> to vector<16x16x8xf32>
    %c1 = arith.constant 1 : index
    %c1_6 = arith.constant 1 : index
    %c0_7 = arith.constant 0 : index
    %4 = vector.load %arg17[%c1, %c1_6, %c0_7] : memref<18x18x8xf32, #tpu.memory_space<vmem>>, vector<16x16x8xf32>
    tpu.vector_store %arg17[%c1, %c1_6, %c0_7], %3 {strides = array<i32>} : memref<18x18x8xf32, #tpu.memory_space<vmem>>, vector<16x16x8xf32>,
    %c0_8 = arith.constant 0 : index
    %c0_9 = arith.constant 0 : index
    %c0_10 = arith.constant 0 : index
    %5 = vector.load %arg17[%c0_8, %c0_9, %c0_10] : memref<18x18x8xf32, #tpu.memory_space<vmem>>, vector<16x16x8xf32>
    %6 = arith.truncf %5 : vector<16x16x8xf32> to vector<16x16x8xbf16>
    %c0_11 = arith.constant 0 : index
    %c0_12 = arith.constant 0 : index
    %c0_13 = arith.constant 0 : index
    %7 = vector.load %arg18[%c0_11, %c0_12, %c0_13] : memref<16x16x72xbf16, #tpu.memory_space<vmem>>, vector<16x16x8xbf16>
    tpu.vector_store %arg18[%c0_11, %c0_12, %c0_13], %6 {strides = array<i32>} : memref<16x16x72xbf16, #tpu.memory_space<vmem>>, vector<16x16x8xbf16>,
    %c0_14 = arith.constant 0 : index
    %c1_15 = arith.constant 1 : index
    %c0_16 = arith.constant 0 : index
    %8 = vector.load %arg17[%c0_14, %c1_15, %c0_16] : memref<18x18x8xf32, #tpu.memory_space<vmem>>, vector<16x16x8xf32>
    %9 = arith.truncf %8 : vector<16x16x8xf32> to vector<16x16x8xbf16>
    %c0_17 = arith.constant 0 : index
    %c0_18 = arith.constant 0 : index
    %c8 = arith.constant 8 : index
    %10 = vector.load %arg18[%c0_17, %c0_18, %c8] : memref<16x16x72xbf16, #tpu.memory_space<vmem>>, vector<16x16x8xbf16>
    tpu.vector_store %arg18[%c0_17, %c0_18, %c8], %9 {strides = array<i32>} : memref<16x16x72xbf16, #tpu.memory_space<vmem>>, vector<16x16x8xbf16>,
    %c0_19 = arith.constant 0 : index
    %c2 = arith.constant 2 : index
    %c0_20 = arith.constant 0 : index
    %11 = vector.load %arg17[%c0_19, %c2, %c0_20] : memref<18x18x8xf32, #tpu.memory_space<vmem>>, vector<16x16x8xf32>
    %12 = arith.truncf %11 : vector<16x16x8xf32> to vector<16x16x8xbf16>
    %c0_21 = arith.constant 0 : index
    %c0_22 = arith.constant 0 : index
    %c16 = arith.constant 16 : index
    %13 = vector.load %arg18[%c0_21, %c0_22, %c16] : memref<16x16x72xbf16, #tpu.memory_space<vmem>>, vector<16x16x8xbf16>
    tpu.vector_store %arg18[%c0_21, %c0_22, %c16], %12 {strides = array<i32>} : memref<16x16x72xbf16, #tpu.memory_space<vmem>>, vector<16x16x8xbf16>,
    %c1_23 = arith.constant 1 : index
    %c0_24 = arith.constant 0 : index
    %c0_25 = arith.constant 0 : index
    %14 = vector.load %arg17[%c1_23, %c0_24, %c0_25] : memref<18x18x8xf32, #tpu.memory_space<vmem>>, vector<16x16x8xf32>
    %15 = arith.truncf %14 : vector<16x16x8xf32> to vector<16x16x8xbf16>
    %c0_26 = arith.constant 0 : index
    %c0_27 = arith.constant 0 : index
    %c24 = arith.constant 24 : index
    %16 = vector.load %arg18[%c0_26, %c0_27, %c24] : memref<16x16x72xbf16, #tpu.memory_space<vmem>>, vector<16x16x8xbf16>
    tpu.vector_store %arg18[%c0_26, %c0_27, %c24], %15 {strides = array<i32>} : memref<16x16x72xbf16, #tpu.memory_space<vmem>>, vector<16x16x8xbf16>,
    %c1_28 = arith.constant 1 : index
    %c1_29 = arith.constant 1 : index
    %c0_30 = arith.constant 0 : index
    %17 = vector.load %arg17[%c1_28, %c1_29, %c0_30] : memref<18x18x8xf32, #tpu.memory_space<vmem>>, vector<16x16x8xf32>
    %18 = arith.truncf %17 : vector<16x16x8xf32> to vector<16x16x8xbf16>
    %c0_31 = arith.constant 0 : index
    %c0_32 = arith.constant 0 : index
    %c32 = arith.constant 32 : index
    %19 = vector.load %arg18[%c0_31, %c0_32, %c32] : memref<16x16x72xbf16, #tpu.memory_space<vmem>>, vector<16x16x8xbf16>
    tpu.vector_store %arg18[%c0_31, %c0_32, %c32], %18 {strides = array<i32>} : memref<16x16x72xbf16, #tpu.memory_space<vmem>>, vector<16x16x8xbf16>,
    %c1_33 = arith.constant 1 : index
    %c2_34 = arith.constant 2 : index
    %c0_35 = arith.constant 0 : index
    %20 = vector.load %arg17[%c1_33, %c2_34, %c0_35] : memref<18x18x8xf32, #tpu.memory_space<vmem>>, vector<16x16x8xf32>
    %21 = arith.truncf %20 : vector<16x16x8xf32> to vector<16x16x8xbf16>
    %c0_36 = arith.constant 0 : index
    %c0_37 = arith.constant 0 : index
    %c40 = arith.constant 40 : index
    %22 = vector.load %arg18[%c0_36, %c0_37, %c40] : memref<16x16x72xbf16, #tpu.memory_space<vmem>>, vector<16x16x8xbf16>
    tpu.vector_store %arg18[%c0_36, %c0_37, %c40], %21 {strides = array<i32>} : memref<16x16x72xbf16, #tpu.memory_space<vmem>>, vector<16x16x8xbf16>,
    %c2_38 = arith.constant 2 : index
    %c0_39 = arith.constant 0 : index
    %c0_40 = arith.constant 0 : index
    %23 = vector.load %arg17[%c2_38, %c0_39, %c0_40] : memref<18x18x8xf32, #tpu.memory_space<vmem>>, vector<16x16x8xf32>
    %24 = arith.truncf %23 : vector<16x16x8xf32> to vector<16x16x8xbf16>
    %c0_41 = arith.constant 0 : index
    %c0_42 = arith.constant 0 : index
    %c48 = arith.constant 48 : index
    %25 = vector.load %arg18[%c0_41, %c0_42, %c48] : memref<16x16x72xbf16, #tpu.memory_space<vmem>>, vector<16x16x8xbf16>
    tpu.vector_store %arg18[%c0_41, %c0_42, %c48], %24 {strides = array<i32>} : memref<16x16x72xbf16, #tpu.memory_space<vmem>>, vector<16x16x8xbf16>,
    %c2_43 = arith.constant 2 : index
    %c1_44 = arith.constant 1 : index
    %c0_45 = arith.constant 0 : index
    %26 = vector.load %arg17[%c2_43, %c1_44, %c0_45] : memref<18x18x8xf32, #tpu.memory_space<vmem>>, vector<16x16x8xf32>
    %27 = arith.truncf %26 : vector<16x16x8xf32> to vector<16x16x8xbf16>
    %c0_46 = arith.constant 0 : index
    %c0_47 = arith.constant 0 : index
    %c56 = arith.constant 56 : index
    %28 = vector.load %arg18[%c0_46, %c0_47, %c56] : memref<16x16x72xbf16, #tpu.memory_space<vmem>>, vector<16x16x8xbf16>
    tpu.vector_store %arg18[%c0_46, %c0_47, %c56], %27 {strides = array<i32>} : memref<16x16x72xbf16, #tpu.memory_space<vmem>>, vector<16x16x8xbf16>,
    %c2_48 = arith.constant 2 : index
    %c2_49 = arith.constant 2 : index
    %c0_50 = arith.constant 0 : index
    %29 = vector.load %arg17[%c2_48, %c2_49, %c0_50] : memref<18x18x8xf32, #tpu.memory_space<vmem>>, vector<16x16x8xf32>
    %30 = arith.truncf %29 : vector<16x16x8xf32> to vector<16x16x8xbf16>
    %c0_51 = arith.constant 0 : index
    %c0_52 = arith.constant 0 : index
    %c64 = arith.constant 64 : index
    %31 = vector.load %arg18[%c0_51, %c0_52, %c64] : memref<16x16x72xbf16, #tpu.memory_space<vmem>>, vector<16x16x8xbf16>
    tpu.vector_store %arg18[%c0_51, %c0_52, %c64], %30 {strides = array<i32>} : memref<16x16x72xbf16, #tpu.memory_space<vmem>>, vector<16x16x8xbf16>,
    %c0_53 = arith.constant 0 : index
    %c0_54 = arith.constant 0 : index
    %c0_55 = arith.constant 0 : index
    %32 = vector.load %arg18[%c0_53, %c0_54, %c0_55] : memref<16x16x72xbf16, #tpu.memory_space<vmem>>, vector<16x16x72xbf16>
    %33 = vector.shape_cast %32 : vector<16x16x72xbf16> to vector<256x72xbf16>
    %c0_56 = arith.constant 0 : index
    %c0_57 = arith.constant 0 : index
    %34 = vector.load %arg2[%c0_56, %c0_57] : memref<72x24xbf16, #tpu.memory_space<vmem>>, vector<72x24xbf16>
    %cst_58 = arith.constant dense<0.000000e+00> : vector<256x24xf32>
    %35 = tpu.matmul %33, %34, %cst_58 {dimension_numbers = #tpu.dot_dimension_numbers<[1], [0], [0], [1], [0, 0, 1, 1], [], []>} : vector<256x72xbf16>, vector<72x24xbf16>, vector<256x24xf32> -> vector<256x24xf32>
    %c0_59 = arith.constant 0 : index
    %c0_60 = arith.constant 0 : index
    %36 = vector.load %arg3[%c0_59, %c0_60] : memref<1x24xf32, #tpu.memory_space<vmem>>, vector<1x24xf32>
    %37 = vector.broadcast %36 : vector<1x24xf32> to vector<256x24xf32>
    %38 = arith.addf %35, %37 : vector<256x24xf32>
    %cst_61 = arith.constant 0.000000e+00 : f32
    %39 = vector.broadcast %cst_61 : f32 to vector<256x24xf32>
    %40 = arith.maximumf %38, %39 : vector<256x24xf32>
    %41 = vector.shape_cast %40 : vector<256x24xf32> to vector<16x16x24xf32>
    %c0_62 = arith.constant 0 : index
    %c0_63 = arith.constant 0 : index
    %c0_64 = arith.constant 0 : index
    %42 = vector.load %arg19[%c0_62, %c0_63, %c0_64] : memref<16x16x24xf32, #tpu.memory_space<vmem>>, vector<16x16x24xf32>
    tpu.vector_store %arg19[%c0_62, %c0_63, %c0_64], %41 {strides = array<i32>} : memref<16x16x24xf32, #tpu.memory_space<vmem>>, vector<16x16x24xf32>,
    %c0_65 = arith.constant 0 : index
    %c0_66 = arith.constant 0 : index
    %c8_67 = arith.constant 8 : index
    %43 = vector.load %arg19[%c0_65, %c0_66, %c8_67] : memref<16x16x24xf32, #tpu.memory_space<vmem>>, vector<16x16x8xf32>
    %c1_68 = arith.constant 1 : index
    %c1_69 = arith.constant 1 : index
    %c0_70 = arith.constant 0 : index
    %44 = vector.load %arg17[%c1_68, %c1_69, %c0_70] : memref<18x18x8xf32, #tpu.memory_space<vmem>>, vector<16x16x8xf32>
    tpu.vector_store %arg17[%c1_68, %c1_69, %c0_70], %43 {strides = array<i32>} : memref<18x18x8xf32, #tpu.memory_space<vmem>>, vector<16x16x8xf32>,
    %c0_71 = arith.constant 0 : index
    %c0_72 = arith.constant 0 : index
    %c0_73 = arith.constant 0 : index
    %45 = vector.load %arg17[%c0_71, %c0_72, %c0_73] : memref<18x18x8xf32, #tpu.memory_space<vmem>>, vector<16x16x8xf32>
    %46 = arith.truncf %45 : vector<16x16x8xf32> to vector<16x16x8xbf16>
    %c0_74 = arith.constant 0 : index
    %c0_75 = arith.constant 0 : index
    %c0_76 = arith.constant 0 : index
    %47 = vector.load %arg18[%c0_74, %c0_75, %c0_76] : memref<16x16x72xbf16, #tpu.memory_space<vmem>>, vector<16x16x8xbf16>
    tpu.vector_store %arg18[%c0_74, %c0_75, %c0_76], %46 {strides = array<i32>} : memref<16x16x72xbf16, #tpu.memory_space<vmem>>, vector<16x16x8xbf16>,
    %c0_77 = arith.constant 0 : index
    %c1_78 = arith.constant 1 : index
    %c0_79 = arith.constant 0 : index
    %48 = vector.load %arg17[%c0_77, %c1_78, %c0_79] : memref<18x18x8xf32, #tpu.memory_space<vmem>>, vector<16x16x8xf32>
    %49 = arith.truncf %48 : vector<16x16x8xf32> to vector<16x16x8xbf16>
    %c0_80 = arith.constant 0 : index
    %c0_81 = arith.constant 0 : index
    %c8_82 = arith.constant 8 : index
    %50 = vector.load %arg18[%c0_80, %c0_81, %c8_82] : memref<16x16x72xbf16, #tpu.memory_space<vmem>>, vector<16x16x8xbf16>
    tpu.vector_store %arg18[%c0_80, %c0_81, %c8_82], %49 {strides = array<i32>} : memref<16x16x72xbf16, #tpu.memory_space<vmem>>, vector<16x16x8xbf16>,
    %c0_83 = arith.constant 0 : index
    %c2_84 = arith.constant 2 : index
    %c0_85 = arith.constant 0 : index
    %51 = vector.load %arg17[%c0_83, %c2_84, %c0_85] : memref<18x18x8xf32, #tpu.memory_space<vmem>>, vector<16x16x8xf32>
    %52 = arith.truncf %51 : vector<16x16x8xf32> to vector<16x16x8xbf16>
    %c0_86 = arith.constant 0 : index
    %c0_87 = arith.constant 0 : index
    %c16_88 = arith.constant 16 : index
    %53 = vector.load %arg18[%c0_86, %c0_87, %c16_88] : memref<16x16x72xbf16, #tpu.memory_space<vmem>>, vector<16x16x8xbf16>
    tpu.vector_store %arg18[%c0_86, %c0_87, %c16_88], %52 {strides = array<i32>} : memref<16x16x72xbf16, #tpu.memory_space<vmem>>, vector<16x16x8xbf16>,
    %c1_89 = arith.constant 1 : index
    %c0_90 = arith.constant 0 : index
    %c0_91 = arith.constant 0 : index
    %54 = vector.load %arg17[%c1_89, %c0_90, %c0_91] : memref<18x18x8xf32, #tpu.memory_space<vmem>>, vector<16x16x8xf32>
    %55 = arith.truncf %54 : vector<16x16x8xf32> to vector<16x16x8xbf16>
    %c0_92 = arith.constant 0 : index
    %c0_93 = arith.constant 0 : index
    %c24_94 = arith.constant 24 : index
    %56 = vector.load %arg18[%c0_92, %c0_93, %c24_94] : memref<16x16x72xbf16, #tpu.memory_space<vmem>>, vector<16x16x8xbf16>
    tpu.vector_store %arg18[%c0_92, %c0_93, %c24_94], %55 {strides = array<i32>} : memref<16x16x72xbf16, #tpu.memory_space<vmem>>, vector<16x16x8xbf16>,
    %c1_95 = arith.constant 1 : index
    %c1_96 = arith.constant 1 : index
    %c0_97 = arith.constant 0 : index
    %57 = vector.load %arg17[%c1_95, %c1_96, %c0_97] : memref<18x18x8xf32, #tpu.memory_space<vmem>>, vector<16x16x8xf32>
    %58 = arith.truncf %57 : vector<16x16x8xf32> to vector<16x16x8xbf16>
    %c0_98 = arith.constant 0 : index
    %c0_99 = arith.constant 0 : index
    %c32_100 = arith.constant 32 : index
    %59 = vector.load %arg18[%c0_98, %c0_99, %c32_100] : memref<16x16x72xbf16, #tpu.memory_space<vmem>>, vector<16x16x8xbf16>
    tpu.vector_store %arg18[%c0_98, %c0_99, %c32_100], %58 {strides = array<i32>} : memref<16x16x72xbf16, #tpu.memory_space<vmem>>, vector<16x16x8xbf16>,
    %c1_101 = arith.constant 1 : index
    %c2_102 = arith.constant 2 : index
    %c0_103 = arith.constant 0 : index
    %60 = vector.load %arg17[%c1_101, %c2_102, %c0_103] : memref<18x18x8xf32, #tpu.memory_space<vmem>>, vector<16x16x8xf32>
    %61 = arith.truncf %60 : vector<16x16x8xf32> to vector<16x16x8xbf16>
    %c0_104 = arith.constant 0 : index
    %c0_105 = arith.constant 0 : index
    %c40_106 = arith.constant 40 : index
    %62 = vector.load %arg18[%c0_104, %c0_105, %c40_106] : memref<16x16x72xbf16, #tpu.memory_space<vmem>>, vector<16x16x8xbf16>
    tpu.vector_store %arg18[%c0_104, %c0_105, %c40_106], %61 {strides = array<i32>} : memref<16x16x72xbf16, #tpu.memory_space<vmem>>, vector<16x16x8xbf16>,
    %c2_107 = arith.constant 2 : index
    %c0_108 = arith.constant 0 : index
    %c0_109 = arith.constant 0 : index
    %63 = vector.load %arg17[%c2_107, %c0_108, %c0_109] : memref<18x18x8xf32, #tpu.memory_space<vmem>>, vector<16x16x8xf32>
    %64 = arith.truncf %63 : vector<16x16x8xf32> to vector<16x16x8xbf16>
    %c0_110 = arith.constant 0 : index
    %c0_111 = arith.constant 0 : index
    %c48_112 = arith.constant 48 : index
    %65 = vector.load %arg18[%c0_110, %c0_111, %c48_112] : memref<16x16x72xbf16, #tpu.memory_space<vmem>>, vector<16x16x8xbf16>
    tpu.vector_store %arg18[%c0_110, %c0_111, %c48_112], %64 {strides = array<i32>} : memref<16x16x72xbf16, #tpu.memory_space<vmem>>, vector<16x16x8xbf16>,
    %c2_113 = arith.constant 2 : index
    %c1_114 = arith.constant 1 : index
    %c0_115 = arith.constant 0 : index
    %66 = vector.load %arg17[%c2_113, %c1_114, %c0_115] : memref<18x18x8xf32, #tpu.memory_space<vmem>>, vector<16x16x8xf32>
    %67 = arith.truncf %66 : vector<16x16x8xf32> to vector<16x16x8xbf16>
    %c0_116 = arith.constant 0 : index
    %c0_117 = arith.constant 0 : index
    %c56_118 = arith.constant 56 : index
    %68 = vector.load %arg18[%c0_116, %c0_117, %c56_118] : memref<16x16x72xbf16, #tpu.memory_space<vmem>>, vector<16x16x8xbf16>
    tpu.vector_store %arg18[%c0_116, %c0_117, %c56_118], %67 {strides = array<i32>} : memref<16x16x72xbf16, #tpu.memory_space<vmem>>, vector<16x16x8xbf16>,
    %c2_119 = arith.constant 2 : index
    %c2_120 = arith.constant 2 : index
    %c0_121 = arith.constant 0 : index
    %69 = vector.load %arg17[%c2_119, %c2_120, %c0_121] : memref<18x18x8xf32, #tpu.memory_space<vmem>>, vector<16x16x8xf32>
    %70 = arith.truncf %69 : vector<16x16x8xf32> to vector<16x16x8xbf16>
    %c0_122 = arith.constant 0 : index
    %c0_123 = arith.constant 0 : index
    %c64_124 = arith.constant 64 : index
    %71 = vector.load %arg18[%c0_122, %c0_123, %c64_124] : memref<16x16x72xbf16, #tpu.memory_space<vmem>>, vector<16x16x8xbf16>
    tpu.vector_store %arg18[%c0_122, %c0_123, %c64_124], %70 {strides = array<i32>} : memref<16x16x72xbf16, #tpu.memory_space<vmem>>, vector<16x16x8xbf16>,
    %c0_125 = arith.constant 0 : index
    %c0_126 = arith.constant 0 : index
    %c0_127 = arith.constant 0 : index
    %72 = vector.load %arg18[%c0_125, %c0_126, %c0_127] : memref<16x16x72xbf16, #tpu.memory_space<vmem>>, vector<16x16x72xbf16>
    %73 = vector.shape_cast %72 : vector<16x16x72xbf16> to vector<256x72xbf16>
    %c0_128 = arith.constant 0 : index
    %c0_129 = arith.constant 0 : index
    %74 = vector.load %arg4[%c0_128, %c0_129] : memref<72x8xbf16, #tpu.memory_space<vmem>>, vector<72x8xbf16>
    %cst_130 = arith.constant dense<0.000000e+00> : vector<256x8xf32>
    %75 = tpu.matmul %73, %74, %cst_130 {dimension_numbers = #tpu.dot_dimension_numbers<[1], [0], [0], [1], [0, 0, 1, 1], [], []>} : vector<256x72xbf16>, vector<72x8xbf16>, vector<256x8xf32> -> vector<256x8xf32>
    %c0_131 = arith.constant 0 : index
    %c0_132 = arith.constant 0 : index
    %76 = vector.load %arg5[%c0_131, %c0_132] : memref<1x8xf32, #tpu.memory_space<vmem>>, vector<1x8xf32>
    %77 = vector.broadcast %76 : vector<1x8xf32> to vector<256x8xf32>
    %78 = arith.addf %75, %77 : vector<256x8xf32>
    %cst_133 = arith.constant 0.000000e+00 : f32
    %79 = vector.broadcast %cst_133 : f32 to vector<256x8xf32>
    %80 = arith.maximumf %78, %79 : vector<256x8xf32>
    %81 = vector.shape_cast %80 : vector<256x8xf32> to vector<16x16x8xf32>
    %c0_134 = arith.constant 0 : index
    %c0_135 = arith.constant 0 : index
    %c8_136 = arith.constant 8 : index
    %82 = vector.load %arg19[%c0_134, %c0_135, %c8_136] : memref<16x16x24xf32, #tpu.memory_space<vmem>>, vector<16x16x8xf32>
    tpu.vector_store %arg19[%c0_134, %c0_135, %c8_136], %81 {strides = array<i32>} : memref<16x16x24xf32, #tpu.memory_space<vmem>>, vector<16x16x8xf32>,
    %c0_137 = arith.constant 0 : index
    %c0_138 = arith.constant 0 : index
    %c16_139 = arith.constant 16 : index
    %83 = vector.load %arg19[%c0_137, %c0_138, %c16_139] : memref<16x16x24xf32, #tpu.memory_space<vmem>>, vector<16x16x8xf32>
    %c1_140 = arith.constant 1 : index
    %c1_141 = arith.constant 1 : index
    %c0_142 = arith.constant 0 : index
    %84 = vector.load %arg17[%c1_140, %c1_141, %c0_142] : memref<18x18x8xf32, #tpu.memory_space<vmem>>, vector<16x16x8xf32>
    tpu.vector_store %arg17[%c1_140, %c1_141, %c0_142], %83 {strides = array<i32>} : memref<18x18x8xf32, #tpu.memory_space<vmem>>, vector<16x16x8xf32>,
    %c0_143 = arith.constant 0 : index
    %c0_144 = arith.constant 0 : index
    %c0_145 = arith.constant 0 : index
    %85 = vector.load %arg17[%c0_143, %c0_144, %c0_145] : memref<18x18x8xf32, #tpu.memory_space<vmem>>, vector<16x16x8xf32>
    %86 = arith.truncf %85 : vector<16x16x8xf32> to vector<16x16x8xbf16>
    %c0_146 = arith.constant 0 : index
    %c0_147 = arith.constant 0 : index
    %c0_148 = arith.constant 0 : index
    %87 = vector.load %arg18[%c0_146, %c0_147, %c0_148] : memref<16x16x72xbf16, #tpu.memory_space<vmem>>, vector<16x16x8xbf16>
    tpu.vector_store %arg18[%c0_146, %c0_147, %c0_148], %86 {strides = array<i32>} : memref<16x16x72xbf16, #tpu.memory_space<vmem>>, vector<16x16x8xbf16>,
    %c0_149 = arith.constant 0 : index
    %c1_150 = arith.constant 1 : index
    %c0_151 = arith.constant 0 : index
    %88 = vector.load %arg17[%c0_149, %c1_150, %c0_151] : memref<18x18x8xf32, #tpu.memory_space<vmem>>, vector<16x16x8xf32>
    %89 = arith.truncf %88 : vector<16x16x8xf32> to vector<16x16x8xbf16>
    %c0_152 = arith.constant 0 : index
    %c0_153 = arith.constant 0 : index
    %c8_154 = arith.constant 8 : index
    %90 = vector.load %arg18[%c0_152, %c0_153, %c8_154] : memref<16x16x72xbf16, #tpu.memory_space<vmem>>, vector<16x16x8xbf16>
    tpu.vector_store %arg18[%c0_152, %c0_153, %c8_154], %89 {strides = array<i32>} : memref<16x16x72xbf16, #tpu.memory_space<vmem>>, vector<16x16x8xbf16>,
    %c0_155 = arith.constant 0 : index
    %c2_156 = arith.constant 2 : index
    %c0_157 = arith.constant 0 : index
    %91 = vector.load %arg17[%c0_155, %c2_156, %c0_157] : memref<18x18x8xf32, #tpu.memory_space<vmem>>, vector<16x16x8xf32>
    %92 = arith.truncf %91 : vector<16x16x8xf32> to vector<16x16x8xbf16>
    %c0_158 = arith.constant 0 : index
    %c0_159 = arith.constant 0 : index
    %c16_160 = arith.constant 16 : index
    %93 = vector.load %arg18[%c0_158, %c0_159, %c16_160] : memref<16x16x72xbf16, #tpu.memory_space<vmem>>, vector<16x16x8xbf16>
    tpu.vector_store %arg18[%c0_158, %c0_159, %c16_160], %92 {strides = array<i32>} : memref<16x16x72xbf16, #tpu.memory_space<vmem>>, vector<16x16x8xbf16>,
    %c1_161 = arith.constant 1 : index
    %c0_162 = arith.constant 0 : index
    %c0_163 = arith.constant 0 : index
    %94 = vector.load %arg17[%c1_161, %c0_162, %c0_163] : memref<18x18x8xf32, #tpu.memory_space<vmem>>, vector<16x16x8xf32>
    %95 = arith.truncf %94 : vector<16x16x8xf32> to vector<16x16x8xbf16>
    %c0_164 = arith.constant 0 : index
    %c0_165 = arith.constant 0 : index
    %c24_166 = arith.constant 24 : index
    %96 = vector.load %arg18[%c0_164, %c0_165, %c24_166] : memref<16x16x72xbf16, #tpu.memory_space<vmem>>, vector<16x16x8xbf16>
    tpu.vector_store %arg18[%c0_164, %c0_165, %c24_166], %95 {strides = array<i32>} : memref<16x16x72xbf16, #tpu.memory_space<vmem>>, vector<16x16x8xbf16>,
    %c1_167 = arith.constant 1 : index
    %c1_168 = arith.constant 1 : index
    %c0_169 = arith.constant 0 : index
    %97 = vector.load %arg17[%c1_167, %c1_168, %c0_169] : memref<18x18x8xf32, #tpu.memory_space<vmem>>, vector<16x16x8xf32>
    %98 = arith.truncf %97 : vector<16x16x8xf32> to vector<16x16x8xbf16>
    %c0_170 = arith.constant 0 : index
    %c0_171 = arith.constant 0 : index
    %c32_172 = arith.constant 32 : index
    %99 = vector.load %arg18[%c0_170, %c0_171, %c32_172] : memref<16x16x72xbf16, #tpu.memory_space<vmem>>, vector<16x16x8xbf16>
    tpu.vector_store %arg18[%c0_170, %c0_171, %c32_172], %98 {strides = array<i32>} : memref<16x16x72xbf16, #tpu.memory_space<vmem>>, vector<16x16x8xbf16>,
    %c1_173 = arith.constant 1 : index
    %c2_174 = arith.constant 2 : index
    %c0_175 = arith.constant 0 : index
    %100 = vector.load %arg17[%c1_173, %c2_174, %c0_175] : memref<18x18x8xf32, #tpu.memory_space<vmem>>, vector<16x16x8xf32>
    %101 = arith.truncf %100 : vector<16x16x8xf32> to vector<16x16x8xbf16>
    %c0_176 = arith.constant 0 : index
    %c0_177 = arith.constant 0 : index
    %c40_178 = arith.constant 40 : index
    %102 = vector.load %arg18[%c0_176, %c0_177, %c40_178] : memref<16x16x72xbf16, #tpu.memory_space<vmem>>, vector<16x16x8xbf16>
    tpu.vector_store %arg18[%c0_176, %c0_177, %c40_178], %101 {strides = array<i32>} : memref<16x16x72xbf16, #tpu.memory_space<vmem>>, vector<16x16x8xbf16>,
    %c2_179 = arith.constant 2 : index
    %c0_180 = arith.constant 0 : index
    %c0_181 = arith.constant 0 : index
    %103 = vector.load %arg17[%c2_179, %c0_180, %c0_181] : memref<18x18x8xf32, #tpu.memory_space<vmem>>, vector<16x16x8xf32>
    %104 = arith.truncf %103 : vector<16x16x8xf32> to vector<16x16x8xbf16>
    %c0_182 = arith.constant 0 : index
    %c0_183 = arith.constant 0 : index
    %c48_184 = arith.constant 48 : index
    %105 = vector.load %arg18[%c0_182, %c0_183, %c48_184] : memref<16x16x72xbf16, #tpu.memory_space<vmem>>, vector<16x16x8xbf16>
    tpu.vector_store %arg18[%c0_182, %c0_183, %c48_184], %104 {strides = array<i32>} : memref<16x16x72xbf16, #tpu.memory_space<vmem>>, vector<16x16x8xbf16>,
    %c2_185 = arith.constant 2 : index
    %c1_186 = arith.constant 1 : index
    %c0_187 = arith.constant 0 : index
    %106 = vector.load %arg17[%c2_185, %c1_186, %c0_187] : memref<18x18x8xf32, #tpu.memory_space<vmem>>, vector<16x16x8xf32>
    %107 = arith.truncf %106 : vector<16x16x8xf32> to vector<16x16x8xbf16>
    %c0_188 = arith.constant 0 : index
    %c0_189 = arith.constant 0 : index
    %c56_190 = arith.constant 56 : index
    %108 = vector.load %arg18[%c0_188, %c0_189, %c56_190] : memref<16x16x72xbf16, #tpu.memory_space<vmem>>, vector<16x16x8xbf16>
    tpu.vector_store %arg18[%c0_188, %c0_189, %c56_190], %107 {strides = array<i32>} : memref<16x16x72xbf16, #tpu.memory_space<vmem>>, vector<16x16x8xbf16>,
    %c2_191 = arith.constant 2 : index
    %c2_192 = arith.constant 2 : index
    %c0_193 = arith.constant 0 : index
    %109 = vector.load %arg17[%c2_191, %c2_192, %c0_193] : memref<18x18x8xf32, #tpu.memory_space<vmem>>, vector<16x16x8xf32>
    %110 = arith.truncf %109 : vector<16x16x8xf32> to vector<16x16x8xbf16>
    %c0_194 = arith.constant 0 : index
    %c0_195 = arith.constant 0 : index
    %c64_196 = arith.constant 64 : index
    %111 = vector.load %arg18[%c0_194, %c0_195, %c64_196] : memref<16x16x72xbf16, #tpu.memory_space<vmem>>, vector<16x16x8xbf16>
    tpu.vector_store %arg18[%c0_194, %c0_195, %c64_196], %110 {strides = array<i32>} : memref<16x16x72xbf16, #tpu.memory_space<vmem>>, vector<16x16x8xbf16>,
    %c0_197 = arith.constant 0 : index
    %c0_198 = arith.constant 0 : index
    %c0_199 = arith.constant 0 : index
    %112 = vector.load %arg18[%c0_197, %c0_198, %c0_199] : memref<16x16x72xbf16, #tpu.memory_space<vmem>>, vector<16x16x72xbf16>
    %113 = vector.shape_cast %112 : vector<16x16x72xbf16> to vector<256x72xbf16>
    %c0_200 = arith.constant 0 : index
    %c0_201 = arith.constant 0 : index
    %114 = vector.load %arg6[%c0_200, %c0_201] : memref<72x8xbf16, #tpu.memory_space<vmem>>, vector<72x8xbf16>
    %cst_202 = arith.constant dense<0.000000e+00> : vector<256x8xf32>
    %115 = tpu.matmul %113, %114, %cst_202 {dimension_numbers = #tpu.dot_dimension_numbers<[1], [0], [0], [1], [0, 0, 1, 1], [], []>} : vector<256x72xbf16>, vector<72x8xbf16>, vector<256x8xf32> -> vector<256x8xf32>
    %c0_203 = arith.constant 0 : index
    %c0_204 = arith.constant 0 : index
    %116 = vector.load %arg7[%c0_203, %c0_204] : memref<1x8xf32, #tpu.memory_space<vmem>>, vector<1x8xf32>
    %117 = vector.broadcast %116 : vector<1x8xf32> to vector<256x8xf32>
    %118 = arith.addf %115, %117 : vector<256x8xf32>
    %cst_205 = arith.constant 0.000000e+00 : f32
    %119 = vector.broadcast %cst_205 : f32 to vector<256x8xf32>
    %120 = arith.maximumf %118, %119 : vector<256x8xf32>
    %121 = vector.shape_cast %120 : vector<256x8xf32> to vector<16x16x8xf32>
    %c0_206 = arith.constant 0 : index
    %c0_207 = arith.constant 0 : index
    %c16_208 = arith.constant 16 : index
    %122 = vector.load %arg19[%c0_206, %c0_207, %c16_208] : memref<16x16x24xf32, #tpu.memory_space<vmem>>, vector<16x16x8xf32>
    tpu.vector_store %arg19[%c0_206, %c0_207, %c16_208], %121 {strides = array<i32>} : memref<16x16x24xf32, #tpu.memory_space<vmem>>, vector<16x16x8xf32>,
    %c0_209 = arith.constant 0 : index
    %c0_210 = arith.constant 0 : index
    %c16_211 = arith.constant 16 : index
    %123 = vector.load %arg19[%c0_209, %c0_210, %c16_211] : memref<16x16x24xf32, #tpu.memory_space<vmem>>, vector<16x16x8xf32>
    %c1_212 = arith.constant 1 : index
    %c1_213 = arith.constant 1 : index
    %c0_214 = arith.constant 0 : index
    %124 = vector.load %arg17[%c1_212, %c1_213, %c0_214] : memref<18x18x8xf32, #tpu.memory_space<vmem>>, vector<16x16x8xf32>
    tpu.vector_store %arg17[%c1_212, %c1_213, %c0_214], %123 {strides = array<i32>} : memref<18x18x8xf32, #tpu.memory_space<vmem>>, vector<16x16x8xf32>,
    %c0_215 = arith.constant 0 : index
    %c0_216 = arith.constant 0 : index
    %c0_217 = arith.constant 0 : index
    %125 = vector.load %arg17[%c0_215, %c0_216, %c0_217] : memref<18x18x8xf32, #tpu.memory_space<vmem>>, vector<16x16x8xf32>
    %126 = arith.truncf %125 : vector<16x16x8xf32> to vector<16x16x8xbf16>
    %c0_218 = arith.constant 0 : index
    %c0_219 = arith.constant 0 : index
    %c0_220 = arith.constant 0 : index
    %127 = vector.load %arg18[%c0_218, %c0_219, %c0_220] : memref<16x16x72xbf16, #tpu.memory_space<vmem>>, vector<16x16x8xbf16>
    tpu.vector_store %arg18[%c0_218, %c0_219, %c0_220], %126 {strides = array<i32>} : memref<16x16x72xbf16, #tpu.memory_space<vmem>>, vector<16x16x8xbf16>,
    %c0_221 = arith.constant 0 : index
    %c1_222 = arith.constant 1 : index
    %c0_223 = arith.constant 0 : index
    %128 = vector.load %arg17[%c0_221, %c1_222, %c0_223] : memref<18x18x8xf32, #tpu.memory_space<vmem>>, vector<16x16x8xf32>
    %129 = arith.truncf %128 : vector<16x16x8xf32> to vector<16x16x8xbf16>
    %c0_224 = arith.constant 0 : index
    %c0_225 = arith.constant 0 : index
    %c8_226 = arith.constant 8 : index
    %130 = vector.load %arg18[%c0_224, %c0_225, %c8_226] : memref<16x16x72xbf16, #tpu.memory_space<vmem>>, vector<16x16x8xbf16>
    tpu.vector_store %arg18[%c0_224, %c0_225, %c8_226], %129 {strides = array<i32>} : memref<16x16x72xbf16, #tpu.memory_space<vmem>>, vector<16x16x8xbf16>,
    %c0_227 = arith.constant 0 : index
    %c2_228 = arith.constant 2 : index
    %c0_229 = arith.constant 0 : index
    %131 = vector.load %arg17[%c0_227, %c2_228, %c0_229] : memref<18x18x8xf32, #tpu.memory_space<vmem>>, vector<16x16x8xf32>
    %132 = arith.truncf %131 : vector<16x16x8xf32> to vector<16x16x8xbf16>
    %c0_230 = arith.constant 0 : index
    %c0_231 = arith.constant 0 : index
    %c16_232 = arith.constant 16 : index
    %133 = vector.load %arg18[%c0_230, %c0_231, %c16_232] : memref<16x16x72xbf16, #tpu.memory_space<vmem>>, vector<16x16x8xbf16>
    tpu.vector_store %arg18[%c0_230, %c0_231, %c16_232], %132 {strides = array<i32>} : memref<16x16x72xbf16, #tpu.memory_space<vmem>>, vector<16x16x8xbf16>,
    %c1_233 = arith.constant 1 : index
    %c0_234 = arith.constant 0 : index
    %c0_235 = arith.constant 0 : index
    %134 = vector.load %arg17[%c1_233, %c0_234, %c0_235] : memref<18x18x8xf32, #tpu.memory_space<vmem>>, vector<16x16x8xf32>
    %135 = arith.truncf %134 : vector<16x16x8xf32> to vector<16x16x8xbf16>
    %c0_236 = arith.constant 0 : index
    %c0_237 = arith.constant 0 : index
    %c24_238 = arith.constant 24 : index
    %136 = vector.load %arg18[%c0_236, %c0_237, %c24_238] : memref<16x16x72xbf16, #tpu.memory_space<vmem>>, vector<16x16x8xbf16>
    tpu.vector_store %arg18[%c0_236, %c0_237, %c24_238], %135 {strides = array<i32>} : memref<16x16x72xbf16, #tpu.memory_space<vmem>>, vector<16x16x8xbf16>,
    %c1_239 = arith.constant 1 : index
    %c1_240 = arith.constant 1 : index
    %c0_241 = arith.constant 0 : index
    %137 = vector.load %arg17[%c1_239, %c1_240, %c0_241] : memref<18x18x8xf32, #tpu.memory_space<vmem>>, vector<16x16x8xf32>
    %138 = arith.truncf %137 : vector<16x16x8xf32> to vector<16x16x8xbf16>
    %c0_242 = arith.constant 0 : index
    %c0_243 = arith.constant 0 : index
    %c32_244 = arith.constant 32 : index
    %139 = vector.load %arg18[%c0_242, %c0_243, %c32_244] : memref<16x16x72xbf16, #tpu.memory_space<vmem>>, vector<16x16x8xbf16>
    tpu.vector_store %arg18[%c0_242, %c0_243, %c32_244], %138 {strides = array<i32>} : memref<16x16x72xbf16, #tpu.memory_space<vmem>>, vector<16x16x8xbf16>,
    %c1_245 = arith.constant 1 : index
    %c2_246 = arith.constant 2 : index
    %c0_247 = arith.constant 0 : index
    %140 = vector.load %arg17[%c1_245, %c2_246, %c0_247] : memref<18x18x8xf32, #tpu.memory_space<vmem>>, vector<16x16x8xf32>
    %141 = arith.truncf %140 : vector<16x16x8xf32> to vector<16x16x8xbf16>
    %c0_248 = arith.constant 0 : index
    %c0_249 = arith.constant 0 : index
    %c40_250 = arith.constant 40 : index
    %142 = vector.load %arg18[%c0_248, %c0_249, %c40_250] : memref<16x16x72xbf16, #tpu.memory_space<vmem>>, vector<16x16x8xbf16>
    tpu.vector_store %arg18[%c0_248, %c0_249, %c40_250], %141 {strides = array<i32>} : memref<16x16x72xbf16, #tpu.memory_space<vmem>>, vector<16x16x8xbf16>,
    %c2_251 = arith.constant 2 : index
    %c0_252 = arith.constant 0 : index
    %c0_253 = arith.constant 0 : index
    %143 = vector.load %arg17[%c2_251, %c0_252, %c0_253] : memref<18x18x8xf32, #tpu.memory_space<vmem>>, vector<16x16x8xf32>
    %144 = arith.truncf %143 : vector<16x16x8xf32> to vector<16x16x8xbf16>
    %c0_254 = arith.constant 0 : index
    %c0_255 = arith.constant 0 : index
    %c48_256 = arith.constant 48 : index
    %145 = vector.load %arg18[%c0_254, %c0_255, %c48_256] : memref<16x16x72xbf16, #tpu.memory_space<vmem>>, vector<16x16x8xbf16>
    tpu.vector_store %arg18[%c0_254, %c0_255, %c48_256], %144 {strides = array<i32>} : memref<16x16x72xbf16, #tpu.memory_space<vmem>>, vector<16x16x8xbf16>,
    %c2_257 = arith.constant 2 : index
    %c1_258 = arith.constant 1 : index
    %c0_259 = arith.constant 0 : index
    %146 = vector.load %arg17[%c2_257, %c1_258, %c0_259] : memref<18x18x8xf32, #tpu.memory_space<vmem>>, vector<16x16x8xf32>
    %147 = arith.truncf %146 : vector<16x16x8xf32> to vector<16x16x8xbf16>
    %c0_260 = arith.constant 0 : index
    %c0_261 = arith.constant 0 : index
    %c56_262 = arith.constant 56 : index
    %148 = vector.load %arg18[%c0_260, %c0_261, %c56_262] : memref<16x16x72xbf16, #tpu.memory_space<vmem>>, vector<16x16x8xbf16>
    tpu.vector_store %arg18[%c0_260, %c0_261, %c56_262], %147 {strides = array<i32>} : memref<16x16x72xbf16, #tpu.memory_space<vmem>>, vector<16x16x8xbf16>,
    %c2_263 = arith.constant 2 : index
    %c2_264 = arith.constant 2 : index
    %c0_265 = arith.constant 0 : index
    %149 = vector.load %arg17[%c2_263, %c2_264, %c0_265] : memref<18x18x8xf32, #tpu.memory_space<vmem>>, vector<16x16x8xf32>
    %150 = arith.truncf %149 : vector<16x16x8xf32> to vector<16x16x8xbf16>
    %c0_266 = arith.constant 0 : index
    %c0_267 = arith.constant 0 : index
    %c64_268 = arith.constant 64 : index
    %151 = vector.load %arg18[%c0_266, %c0_267, %c64_268] : memref<16x16x72xbf16, #tpu.memory_space<vmem>>, vector<16x16x8xbf16>
    tpu.vector_store %arg18[%c0_266, %c0_267, %c64_268], %150 {strides = array<i32>} : memref<16x16x72xbf16, #tpu.memory_space<vmem>>, vector<16x16x8xbf16>,
    %c0_269 = arith.constant 0 : index
    %c0_270 = arith.constant 0 : index
    %c0_271 = arith.constant 0 : index
    %152 = vector.load %arg18[%c0_269, %c0_270, %c0_271] : memref<16x16x72xbf16, #tpu.memory_space<vmem>>, vector<16x16x72xbf16>
    %153 = vector.shape_cast %152 : vector<16x16x72xbf16> to vector<256x72xbf16>
    %c0_272 = arith.constant 0 : index
    %c0_273 = arith.constant 0 : index
    %154 = vector.load %arg8[%c0_272, %c0_273] : memref<72x8xbf16, #tpu.memory_space<vmem>>, vector<72x8xbf16>
    %cst_274 = arith.constant dense<0.000000e+00> : vector<256x8xf32>
    %155 = tpu.matmul %153, %154, %cst_274 {dimension_numbers = #tpu.dot_dimension_numbers<[1], [0], [0], [1], [0, 0, 1, 1], [], []>} : vector<256x72xbf16>, vector<72x8xbf16>, vector<256x8xf32> -> vector<256x8xf32>
    %c0_275 = arith.constant 0 : index
    %c0_276 = arith.constant 0 : index
    %156 = vector.load %arg9[%c0_275, %c0_276] : memref<1x8xf32, #tpu.memory_space<vmem>>, vector<1x8xf32>
    %157 = vector.broadcast %156 : vector<1x8xf32> to vector<256x8xf32>
    %158 = arith.addf %155, %157 : vector<256x8xf32>
    %cst_277 = arith.constant 0.000000e+00 : f32
    %159 = vector.broadcast %cst_277 : f32 to vector<256x8xf32>
    %160 = arith.maximumf %158, %159 : vector<256x8xf32>
    %161 = vector.shape_cast %160 : vector<256x8xf32> to vector<16x16x8xf32>
    %c0_278 = arith.constant 0 : index
    %c0_279 = arith.constant 0 : index
    %c16_280 = arith.constant 16 : index
    %162 = vector.load %arg19[%c0_278, %c0_279, %c16_280] : memref<16x16x24xf32, #tpu.memory_space<vmem>>, vector<16x16x8xf32>
    tpu.vector_store %arg19[%c0_278, %c0_279, %c16_280], %161 {strides = array<i32>} : memref<16x16x24xf32, #tpu.memory_space<vmem>>, vector<16x16x8xf32>,
    %c0_281 = arith.constant 0 : index
    %c0_282 = arith.constant 0 : index
    %c0_283 = arith.constant 0 : index
    %163 = vector.load %arg19[%c0_281, %c0_282, %c0_283] : memref<16x16x24xf32, #tpu.memory_space<vmem>>, vector<16x16x24xf32>
    %164 = vector.shape_cast %163 : vector<16x16x24xf32> to vector<256x24xf32>
    %cst_284 = arith.constant dense<0.000000e+00> : vector<24xf32>
    %165 = vector.multi_reduction <add>, %164, %cst_284 [0] : vector<256x24xf32> to vector<24xf32>
    %166 = vector.shape_cast %165 : vector<24xf32> to vector<1x24xf32>
    %cst_285 = arith.constant 2.560000e+02 : f32
    %167 = vector.broadcast %cst_285 : f32 to vector<1x24xf32>
    %168 = arith.divf %166, %167 : vector<1x24xf32>
    %169 = arith.truncf %168 : vector<1x24xf32> to vector<1x24xbf16>
    %c0_286 = arith.constant 0 : index
    %c0_287 = arith.constant 0 : index
    %170 = vector.load %arg10[%c0_286, %c0_287] : memref<24x6xbf16, #tpu.memory_space<vmem>>, vector<24x6xbf16>
    %cst_288 = arith.constant dense<0.000000e+00> : vector<1x6xf32>
    %171 = tpu.matmul %169, %170, %cst_288 {dimension_numbers = #tpu.dot_dimension_numbers<[1], [0], [0], [1], [0, 0, 1, 1], [], []>} : vector<1x24xbf16>, vector<24x6xbf16>, vector<1x6xf32> -> vector<1x6xf32>
    %c0_289 = arith.constant 0 : index
    %c0_290 = arith.constant 0 : index
    %172 = vector.load %arg11[%c0_289, %c0_290] : memref<1x6xf32, #tpu.memory_space<vmem>>, vector<1x6xf32>
    %173 = arith.addf %171, %172 : vector<1x6xf32>
    %cst_291 = arith.constant 0.000000e+00 : f32
    %174 = vector.broadcast %cst_291 : f32 to vector<1x6xf32>
    %175 = arith.maximumf %173, %174 : vector<1x6xf32>
    %176 = arith.truncf %175 : vector<1x6xf32> to vector<1x6xbf16>
    %c0_292 = arith.constant 0 : index
    %c0_293 = arith.constant 0 : index
    %177 = vector.load %arg12[%c0_292, %c0_293] : memref<6x24xbf16, #tpu.memory_space<vmem>>, vector<6x24xbf16>
    %cst_294 = arith.constant dense<0.000000e+00> : vector<1x24xf32>
    %178 = tpu.matmul %176, %177, %cst_294 {dimension_numbers = #tpu.dot_dimension_numbers<[1], [0], [0], [1], [0, 0, 1, 1], [], []>} : vector<1x6xbf16>, vector<6x24xbf16>, vector<1x24xf32> -> vector<1x24xf32>
    %c0_295 = arith.constant 0 : index
    %c0_296 = arith.constant 0 : index
    %179 = vector.load %arg13[%c0_295, %c0_296] : memref<1x24xf32, #tpu.memory_space<vmem>>, vector<1x24xf32>
    %180 = arith.addf %178, %179 : vector<1x24xf32>
    %cst_297 = arith.constant 0.000000e+00 : f32
    %181 = vector.broadcast %cst_297 : f32 to vector<1x24xf32>
    %182 = arith.subf %181, %180 : vector<1x24xf32>
    %183 = math.exp %182 : vector<1x24xf32>
    %cst_298 = arith.constant 1.000000e+00 : f32
    %184 = vector.broadcast %cst_298 : f32 to vector<1x24xf32>
    %185 = arith.addf %184, %183 : vector<1x24xf32>
    %cst_299 = arith.constant 1.000000e+00 : f32
    %186 = vector.broadcast %cst_299 : f32 to vector<1x24xf32>
    %187 = arith.divf %186, %185 : vector<1x24xf32>
    %188 = vector.broadcast %187 : vector<1x24xf32> to vector<256x24xf32>
    %189 = arith.mulf %164, %188 : vector<256x24xf32>
    %190 = arith.truncf %189 : vector<256x24xf32> to vector<256x24xbf16>
    %c0_300 = arith.constant 0 : index
    %c0_301 = arith.constant 0 : index
    %191 = vector.load %arg14[%c0_300, %c0_301] : memref<24x8xbf16, #tpu.memory_space<vmem>>, vector<24x8xbf16>
    %cst_302 = arith.constant dense<0.000000e+00> : vector<256x8xf32>
    %192 = tpu.matmul %190, %191, %cst_302 {dimension_numbers = #tpu.dot_dimension_numbers<[1], [0], [0], [1], [0, 0, 1, 1], [], []>} : vector<256x24xbf16>, vector<24x8xbf16>, vector<256x8xf32> -> vector<256x8xf32>
    %c0_303 = arith.constant 0 : index
    %c0_304 = arith.constant 0 : index
    %193 = vector.load %arg15[%c0_303, %c0_304] : memref<1x8xf32, #tpu.memory_space<vmem>>, vector<1x8xf32>
    %194 = vector.broadcast %193 : vector<1x8xf32> to vector<256x8xf32>
    %195 = arith.addf %192, %194 : vector<256x8xf32>
    %196 = vector.shape_cast %195 : vector<256x8xf32> to vector<1x16x16x8xf32>
    %c0_305 = arith.constant 0 : index
    %c0_306 = arith.constant 0 : index
    %c0_307 = arith.constant 0 : index
    %c0_308 = arith.constant 0 : index
    %197 = vector.load %arg16[%c0_305, %c0_306, %c0_307, %c0_308] : memref<1x16x16x8xf32, #tpu.memory_space<vmem>>, vector<1x16x16x8xf32>
    tpu.vector_store %arg16[%c0_305, %c0_306, %c0_307, %c0_308], %196 {strides = array<i32>} : memref<1x16x16x8xf32, #tpu.memory_space<vmem>>, vector<1x16x16x8xf32>,
    return
  }
  func.func @transform_0(%arg0: i32) -> (i32, i32, i32, i32) {
    %c0_i32 = arith.constant 0 : i32
    %c0_i32_0 = arith.constant 0 : i32
    %c0_i32_1 = arith.constant 0 : i32
    %c0_i32_2 = arith.constant 0 : i32
    return %arg0, %c0_i32, %c0_i32_0, %c0_i32_1 : i32, i32, i32, i32
  }
  func.func @transform_1(%arg0: i32) -> (i32, i32) {
    %c0_i32 = arith.constant 0 : i32
    %c0_i32_0 = arith.constant 0 : i32
    %c0_i32_1 = arith.constant 0 : i32
    return %c0_i32, %c0_i32_0 : i32, i32
  }
  func.func @transform_2(%arg0: i32) -> (i32, i32) {
    %c0_i32 = arith.constant 0 : i32
    %c0_i32_0 = arith.constant 0 : i32
    %c0_i32_1 = arith.constant 0 : i32
    return %c0_i32, %c0_i32_0 : i32, i32
  }
  func.func @transform_3(%arg0: i32) -> (i32, i32) {
    %c0_i32 = arith.constant 0 : i32
    %c0_i32_0 = arith.constant 0 : i32
    %c0_i32_1 = arith.constant 0 : i32
    return %c0_i32, %c0_i32_0 : i32, i32
  }
  func.func @transform_4(%arg0: i32) -> (i32, i32) {
    %c0_i32 = arith.constant 0 : i32
    %c0_i32_0 = arith.constant 0 : i32
    %c0_i32_1 = arith.constant 0 : i32
    return %c0_i32, %c0_i32_0 : i32, i32
  }
  func.func @transform_5(%arg0: i32) -> (i32, i32) {
    %c0_i32 = arith.constant 0 : i32
    %c0_i32_0 = arith.constant 0 : i32
    %c0_i32_1 = arith.constant 0 : i32
    return %c0_i32, %c0_i32_0 : i32, i32
  }
  func.func @transform_6(%arg0: i32) -> (i32, i32) {
    %c0_i32 = arith.constant 0 : i32
    %c0_i32_0 = arith.constant 0 : i32
    %c0_i32_1 = arith.constant 0 : i32
    return %c0_i32, %c0_i32_0 : i32, i32
  }
  func.func @transform_7(%arg0: i32) -> (i32, i32) {
    %c0_i32 = arith.constant 0 : i32
    %c0_i32_0 = arith.constant 0 : i32
    %c0_i32_1 = arith.constant 0 : i32
    return %c0_i32, %c0_i32_0 : i32, i32
  }
  func.func @transform_8(%arg0: i32) -> (i32, i32) {
    %c0_i32 = arith.constant 0 : i32
    %c0_i32_0 = arith.constant 0 : i32
    %c0_i32_1 = arith.constant 0 : i32
    return %c0_i32, %c0_i32_0 : i32, i32
  }
  func.func @transform_9(%arg0: i32) -> (i32, i32) {
    %c0_i32 = arith.constant 0 : i32
    %c0_i32_0 = arith.constant 0 : i32
    %c0_i32_1 = arith.constant 0 : i32
    return %c0_i32, %c0_i32_0 : i32, i32
  }
  func.func @transform_10(%arg0: i32) -> (i32, i32) {
    %c0_i32 = arith.constant 0 : i32
    %c0_i32_0 = arith.constant 0 : i32
    %c0_i32_1 = arith.constant 0 : i32
    return %c0_i32, %c0_i32_0 : i32, i32
  }
  func.func @transform_11(%arg0: i32) -> (i32, i32) {
    %c0_i32 = arith.constant 0 : i32
    %c0_i32_0 = arith.constant 0 : i32
    %c0_i32_1 = arith.constant 0 : i32
    return %c0_i32, %c0_i32_0 : i32, i32
  }
  func.func @transform_12(%arg0: i32) -> (i32, i32) {
    %c0_i32 = arith.constant 0 : i32
    %c0_i32_0 = arith.constant 0 : i32
    %c0_i32_1 = arith.constant 0 : i32
    return %c0_i32, %c0_i32_0 : i32, i32
  }
  func.func @transform_13(%arg0: i32) -> (i32, i32) {
    %c0_i32 = arith.constant 0 : i32
    %c0_i32_0 = arith.constant 0 : i32
    %c0_i32_1 = arith.constant 0 : i32
    return %c0_i32, %c0_i32_0 : i32, i32
  }
  func.func @transform_14(%arg0: i32) -> (i32, i32) {
    %c0_i32 = arith.constant 0 : i32
    %c0_i32_0 = arith.constant 0 : i32
    %c0_i32_1 = arith.constant 0 : i32
    return %c0_i32, %c0_i32_0 : i32, i32
  }
  func.func @transform_15(%arg0: i32) -> (i32, i32, i32, i32) {
    %c0_i32 = arith.constant 0 : i32
    %c0_i32_0 = arith.constant 0 : i32
    %c0_i32_1 = arith.constant 0 : i32
    %c0_i32_2 = arith.constant 0 : i32
    return %arg0, %c0_i32, %c0_i32_0, %c0_i32_1 : i32, i32, i32, i32
  }
}

</mosaic_0001>

<llo_original>
// kernel: dfe_forward.1
$region0: #{dfe_forward.1}
  #allocation0 [shape = 'u32[]', space=smem, size = 0x4, offset = 0x4, fixed_abs, tag = 'smem constant byte address 0x4 - core index']
  #allocation1 [shape = 'u32[72,128]{1,0:T(1,128)}', space=vmem, size = 0x9000, scoped, tag = 'internal scratch']
  #allocation2 [shape = 'f32[18,18,8]{2,1,0:T(8,128)}', space=vmem, size = 0x36000, scoped, tag = 'scratch operand']
  #allocation3 [shape = 'bf16[16,16,72]{2,1,0:T(8,128)(2,1)}', space=vmem, size = 0x10000, scoped, tag = 'scratch operand']
  #allocation4 [shape = 'f32[16,16,24]{2,1,0:T(8,128)}', space=vmem, size = 0x20000, scoped, tag = 'scratch operand']
  %s0 = inlined_call_operand.vmem [shape: f32[2,16,16,8], index: 0, kind: input, shape index: {}]
  %s1 = inlined_call_operand.vmem [shape: bf16[72,24], index: 1, kind: input, shape index: {}]
  %s2 = inlined_call_operand.vmem [shape: f32[1,24], index: 2, kind: input, shape index: {}]
  %s3 = inlined_call_operand.vmem [shape: bf16[72,8], index: 3, kind: input, shape index: {}]
  %s4 = inlined_call_operand.vmem [shape: f32[1,8], index: 4, kind: input, shape index: {}]
  %s5 = inlined_call_operand.vmem [shape: bf16[72,8], index: 5, kind: input, shape index: {}]
  %s6 = inlined_call_operand.vmem [shape: f32[1,8], index: 6, kind: input, shape index: {}]
  %s7 = inlined_call_operand.vmem [shape: bf16[72,8], index: 7, kind: input, shape index: {}]
  %s8 = inlined_call_operand.vmem [shape: f32[1,8], index: 8, kind: input, shape index: {}]
  %s9 = inlined_call_operand.vmem [shape: bf16[24,6], index: 9, kind: input, shape index: {}]
  %s10 = inlined_call_operand.vmem [shape: f32[1,6], index: 10, kind: input, shape index: {}]
  %s11 = inlined_call_operand.vmem [shape: bf16[6,24], index: 11, kind: input, shape index: {}]
  %s12 = inlined_call_operand.vmem [shape: f32[1,24], index: 12, kind: input, shape index: {}]
  %s13 = inlined_call_operand.vmem [shape: bf16[24,8], index: 13, kind: input, shape index: {}]
  %s14 = inlined_call_operand.vmem [shape: f32[1,8], index: 14, kind: input, shape index: {}]
  %s15 = inlined_call_operand.vmem [shape: f32[2,16,16,8], index: 15, kind: output, shape index: {}]
  %s16 = sld [smem:[#allocation0]]
  $region93: #{dfe_forward.1} parent=0
    _
  %s18 = ssub.s32 1, %s16
  %s19 = scalar_select 0, %s18, %s16
  loop: start=0, step=1, limit=4
  $region2: #{dfe_forward.1} parent=0 // loop_pre_header
    _
  $region3: #{dfe_forward.1} parent=0 // loop_header
    %s21 = sphi 0, %s25
    %p22 = scmp.ge.s32.totalorder %s21, 4
    %s31 = sphi 0, %s33
    %s34 = sphi 0, %s31
    %s35 = sphi 0, %s34
    %s51 = sphi 0, %s35
    %s55 = sphi 0, %s55
    %s57 = sphi 0, %s55
    %s58 = sphi 0, %s57
    %s72 = sphi 0, %s58
    %s76 = sphi 0, %s76
    %s78 = sphi 0, %s76
    %s79 = sphi 0, %s78
    %s93 = sphi 0, %s79
    %s97 = sphi 0, %s97
    %s99 = sphi 0, %s97
    %s100 = sphi 0, %s99
    %s114 = sphi 0, %s100
    %s118 = sphi 0, %s118
    %s120 = sphi 0, %s118
    %s121 = sphi 0, %s120
    %s135 = sphi 0, %s121
    %s139 = sphi 0, %s139
    %s141 = sphi 0, %s139
    %s142 = sphi 0, %s141
    %s156 = sphi 0, %s142
    %s160 = sphi 0, %s160
    %s162 = sphi 0, %s160
    %s163 = sphi 0, %s162
    %s177 = sphi 0, %s163
    %s181 = sphi 0, %s181
    %s183 = sphi 0, %s181
    %s184 = sphi 0, %s183
    %s198 = sphi 0, %s184
    %s202 = sphi 0, %s202
    %s204 = sphi 0, %s202
    %s205 = sphi 0, %s204
    %s219 = sphi 0, %s205
    %s223 = sphi 0, %s223
    %s225 = sphi 0, %s223
    %s226 = sphi 0, %s225
    %s240 = sphi 0, %s226
    %s244 = sphi 0, %s244
    %s246 = sphi 0, %s244
    %s247 = sphi 0, %s246
    %s261 = sphi 0, %s247
    %s265 = sphi 0, %s265
    %s267 = sphi 0, %s265
    %s268 = sphi 0, %s267
    %s282 = sphi 0, %s268
    %s286 = sphi 0, %s286
    %s288 = sphi 0, %s286
    %s289 = sphi 0, %s288
    %s303 = sphi 0, %s289
    %s307 = sphi 0, %s307
    %s309 = sphi 0, %s307
    %s310 = sphi 0, %s309
    %s324 = sphi 0, %s310
    %s328 = sphi 0, %s328
    %s330 = sphi 0, %s328
    %s331 = sphi 0, %s330
    %s345 = sphi 0, %s331
    %s351 = sphi 0, %s353
    %s354 = sphi 0, %s351
    %s355 = sphi 0, %s354
    %s371 = sphi 0, %s355
  $region4: #{dfe_forward.1} parent=0 // loop_header_branch
    %24 = sbr.rel (%p22) target = $region8
  $region5: #{dfe_forward.1} parent=0 // loop_body
    %s26 = ssub.s32 %s21, 1
    %s27 = ssub.s32 %s21, 2
    %s28 = sadd.s32 %s21, 1
    %s29 = ssub.s32 %s21, %s28
    %p30 = scmp.eq.s32.totalorder %s29, 0
    %s32 = sadd.s32 %s31, 1
    %s33 = scalar_select %p30, %s31, %s32
    %p36 = pneg %p30
    %p37 = scmp.eq.s32.totalorder %s21, 1
    %p38 = por %p36, %p37
    %p39 = scmp.ne.s32.totalorder %s31, %s34
    %p40 = scmp.eq.s32.totalorder %s21, 0
    %p41 = por %p39, %p40
    %p42 = scmp.ne.s32.totalorder %s31, %s34
    %p43 = scmp.eq.s32.totalorder %s26, 1
    %p44 = por %p42, %p43
    %p45 = scmp.ne.s32.totalorder %s34, %s35
    %p46 = scmp.eq.s32.totalorder %s26, 0
    %p47 = por %p45, %p46
    %p48 = scmp.ne.s32.totalorder %s34, %s35
    %p49 = scmp.eq.s32.totalorder %s27, 1
    %p50 = por %p48, %p49
    %p52 = scmp.ne.s32.totalorder %s35, %s51
    %p53 = scmp.eq.s32.totalorder %s27, 0
    %p54 = por %p52, %p53
    %s56 = sadd.s32 %s55, 1
    %p59 = scmp.eq.s32.totalorder %s21, 1
    %p60 = scmp.ne.s32.totalorder %s55, %s57
    %p61 = scmp.eq.s32.totalorder %s21, 0
    %p62 = por %p60, %p61
    %p63 = scmp.ne.s32.totalorder %s55, %s57
    %p64 = scmp.eq.s32.totalorder %s26, 1
    %p65 = por %p63, %p64
    %p66 = scmp.ne.s32.totalorder %s57, %s58
    %p67 = scmp.eq.s32.totalorder %s26, 0
    %p68 = por %p66, %p67
    %p69 = scmp.ne.s32.totalorder %s57, %s58
    %p70 = scmp.eq.s32.totalorder %s27, 1
    %p71 = por %p69, %p70
    %p73 = scmp.ne.s32.totalorder %s58, %s72
    %p74 = scmp.eq.s32.totalorder %s27, 0
    %p75 = por %p73, %p74
    %s77 = sadd.s32 %s76, 1
    %p80 = scmp.eq.s32.totalorder %s21, 1
    %p81 = scmp.ne.s32.totalorder %s76, %s78
    %p82 = scmp.eq.s32.totalorder %s21, 0
    %p83 = por %p81, %p82
    %p84 = scmp.ne.s32.totalorder %s76, %s78
    %p85 = scmp.eq.s32.totalorder %s26, 1
    %p86 = por %p84, %p85
    %p87 = scmp.ne.s32.totalorder %s78, %s79
    %p88 = scmp.eq.s32.totalorder %s26, 0
    %p89 = por %p87, %p88
    %p90 = scmp.ne.s32.totalorder %s78, %s79
    %p91 = scmp.eq.s32.totalorder %s27, 1
    %p92 = por %p90, %p91
    %p94 = scmp.ne.s32.totalorder %s79, %s93
    %p95 = scmp.eq.s32.totalorder %s27, 0
    %p96 = por %p94, %p95
    %s98 = sadd.s32 %s97, 1
    %p101 = scmp.eq.s32.totalorder %s21, 1
    %p102 = scmp.ne.s32.totalorder %s97, %s99
    %p103 = scmp.eq.s32.totalorder %s21, 0
    %p104 = por %p102, %p103
    %p105 = scmp.ne.s32.totalorder %s97, %s99
    %p106 = scmp.eq.s32.totalorder %s26, 1
    %p107 = por %p105, %p106
    %p108 = scmp.ne.s32.totalorder %s99, %s100
    %p109 = scmp.eq.s32.totalorder %s26, 0
    %p110 = por %p108, %p109
    %p111 = scmp.ne.s32.totalorder %s99, %s100
    %p112 = scmp.eq.s32.totalorder %s27, 1
    %p113 = por %p111, %p112
    %p115 = scmp.ne.s32.totalorder %s100, %s114
    %p116 = scmp.eq.s32.totalorder %s27, 0
    %p117 = por %p115, %p116
    %s119 = sadd.s32 %s118, 1
    %p122 = scmp.eq.s32.totalorder %s21, 1
    %p123 = scmp.ne.s32.totalorder %s118, %s120
    %p124 = scmp.eq.s32.totalorder %s21, 0
    %p125 = por %p123, %p124
    %p126 = scmp.ne.s32.totalorder %s118, %s120
    %p127 = scmp.eq.s32.totalorder %s26, 1
    %p128 = por %p126, %p127
    %p129 = scmp.ne.s32.totalorder %s120, %s121
    %p130 = scmp.eq.s32.totalorder %s26, 0
    %p131 = por %p129, %p130
    %p132 = scmp.ne.s32.totalorder %s120, %s121
    %p133 = scmp.eq.s32.totalorder %s27, 1
    %p134 = por %p132, %p133
    %p136 = scmp.ne.s32.totalorder %s121, %s135
    %p137 = scmp.eq.s32.totalorder %s27, 0
    %p138 = por %p136, %p137
    %s140 = sadd.s32 %s139, 1
    %p143 = scmp.eq.s32.totalorder %s21, 1
    %p144 = scmp.ne.s32.totalorder %s139, %s141
    %p145 = scmp.eq.s32.totalorder %s21, 0
    %p146 = por %p144, %p145
    %p147 = scmp.ne.s32.totalorder %s139, %s141
    %p148 = scmp.eq.s32.totalorder %s26, 1
    %p149 = por %p147, %p148
    %p150 = scmp.ne.s32.totalorder %s141, %s142
    %p151 = scmp.eq.s32.totalorder %s26, 0
    %p152 = por %p150, %p151
    %p153 = scmp.ne.s32.totalorder %s141, %s142
    %p154 = scmp.eq.s32.totalorder %s27, 1
    %p155 = por %p153, %p154
    %p157 = scmp.ne.s32.totalorder %s142, %s156
    %p158 = scmp.eq.s32.totalorder %s27, 0
    %p159 = por %p157, %p158
    %s161 = sadd.s32 %s160, 1
    %p164 = scmp.eq.s32.totalorder %s21, 1
    %p165 = scmp.ne.s32.totalorder %s160, %s162
    %p166 = scmp.eq.s32.totalorder %s21, 0
    %p167 = por %p165, %p166
    %p168 = scmp.ne.s32.totalorder %s160, %s162
    %p169 = scmp.eq.s32.totalorder %s26, 1
    %p170 = por %p168, %p169
    %p171 = scmp.ne.s32.totalorder %s162, %s163
    %p172 = scmp.eq.s32.totalorder %s26, 0
    %p173 = por %p171, %p172
    %p174 = scmp.ne.s32.totalorder %s162, %s163
    %p175 = scmp.eq.s32.totalorder %s27, 1
    %p176 = por %p174, %p175
    %p178 = scmp.ne.s32.totalorder %s163, %s177
    %p179 = scmp.eq.s32.totalorder %s27, 0
    %p180 = por %p178, %p179
    %s182 = sadd.s32 %s181, 1
    %p185 = scmp.eq.s32.totalorder %s21, 1
    %p186 = scmp.ne.s32.totalorder %s181, %s183
    %p187 = scmp.eq.s32.totalorder %s21, 0
    %p188 = por %p186, %p187
    %p189 = scmp.ne.s32.totalorder %s181, %s183
    %p190 = scmp.eq.s32.totalorder %s26, 1
    %p191 = por %p189, %p190
    %p192 = scmp.ne.s32.totalorder %s183, %s184
    %p193 = scmp.eq.s32.totalorder %s26, 0
    %p194 = por %p192, %p193
    %p195 = scmp.ne.s32.totalorder %s183, %s184
    %p196 = scmp.eq.s32.totalorder %s27, 1
    %p197 = por %p195, %p196
    %p199 = scmp.ne.s32.totalorder %s184, %s198
    %p200 = scmp.eq.s32.totalorder %s27, 0
    %p201 = por %p199, %p200
    %s203 = sadd.s32 %s202, 1
    %p206 = scmp.eq.s32.totalorder %s21, 1
    %p207 = scmp.ne.s32.totalorder %s202, %s204
    %p208 = scmp.eq.s32.totalorder %s21, 0
    %p209 = por %p207, %p208
    %p210 = scmp.ne.s32.totalorder %s202, %s204
    %p211 = scmp.eq.s32.totalorder %s26, 1
    %p212 = por %p210, %p211
    %p213 = scmp.ne.s32.totalorder %s204, %s205
    %p214 = scmp.eq.s32.totalorder %s26, 0
    %p215 = por %p213, %p214
    %p216 = scmp.ne.s32.totalorder %s204, %s205
    %p217 = scmp.eq.s32.totalorder %s27, 1
    %p218 = por %p216, %p217
    %p220 = scmp.ne.s32.totalorder %s205, %s219
    %p221 = scmp.eq.s32.totalorder %s27, 0
    %p222 = por %p220, %p221
    %s224 = sadd.s32 %s223, 1
    %p227 = scmp.eq.s32.totalorder %s21, 1
    %p228 = scmp.ne.s32.totalorder %s223, %s225
    %p229 = scmp.eq.s32.totalorder %s21, 0
    %p230 = por %p228, %p229
    %p231 = scmp.ne.s32.totalorder %s223, %s225
    %p232 = scmp.eq.s32.totalorder %s26, 1
    %p233 = por %p231, %p232
    %p234 = scmp.ne.s32.totalorder %s225, %s226
    %p235 = scmp.eq.s32.totalorder %s26, 0
    %p236 = por %p234, %p235
    %p237 = scmp.ne.s32.totalorder %s225, %s226
    %p238 = scmp.eq.s32.totalorder %s27, 1
    %p239 = por %p237, %p238
    %p241 = scmp.ne.s32.totalorder %s226, %s240
    %p242 = scmp.eq.s32.totalorder %s27, 0
    %p243 = por %p241, %p242
    %s245 = sadd.s32 %s244, 1
    %p248 = scmp.eq.s32.totalorder %s21, 1
    %p249 = scmp.ne.s32.totalorder %s244, %s246
    %p250 = scmp.eq.s32.totalorder %s21, 0
    %p251 = por %p249, %p250
    %p252 = scmp.ne.s32.totalorder %s244, %s246
    %p253 = scmp.eq.s32.totalorder %s26, 1
    %p254 = por %p252, %p253
    %p255 = scmp.ne.s32.totalorder %s246, %s247
    %p256 = scmp.eq.s32.totalorder %s26, 0
    %p257 = por %p255, %p256
    %p258 = scmp.ne.s32.totalorder %s246, %s247
    %p259 = scmp.eq.s32.totalorder %s27, 1
    %p260 = por %p258, %p259
    %p262 = scmp.ne.s32.totalorder %s247, %s261
    %p263 = scmp.eq.s32.totalorder %s27, 0
    %p264 = por %p262, %p263
    %s266 = sadd.s32 %s265, 1
    %p269 = scmp.eq.s32.totalorder %s21, 1
    %p270 = scmp.ne.s32.totalorder %s265, %s267
    %p271 = scmp.eq.s32.totalorder %s21, 0
    %p272 = por %p270, %p271
    %p273 = scmp.ne.s32.totalorder %s265, %s267
    %p274 = scmp.eq.s32.totalorder %s26, 1
    %p275 = por %p273, %p274
    %p276 = scmp.ne.s32.totalorder %s267, %s268
    %p277 = scmp.eq.s32.totalorder %s26, 0
    %p278 = por %p276, %p277
    %p279 = scmp.ne.s32.totalorder %s267, %s268
    %p280 = scmp.eq.s32.totalorder %s27, 1
    %p281 = por %p279, %p280
    %p283 = scmp.ne.s32.totalorder %s268, %s282
    %p284 = scmp.eq.s32.totalorder %s27, 0
    %p285 = por %p283, %p284
    %s287 = sadd.s32 %s286, 1
    %p290 = scmp.eq.s32.totalorder %s21, 1
    %p291 = scmp.ne.s32.totalorder %s286, %s288
    %p292 = scmp.eq.s32.totalorder %s21, 0
    %p293 = por %p291, %p292
    %p294 = scmp.ne.s32.totalorder %s286, %s288
    %p295 = scmp.eq.s32.totalorder %s26, 1
    %p296 = por %p294, %p295
    %p297 = scmp.ne.s32.totalorder %s288, %s289
    %p298 = scmp.eq.s32.totalorder %s26, 0
    %p299 = por %p297, %p298
    %p300 = scmp.ne.s32.totalorder %s288, %s289
    %p301 = scmp.eq.s32.totalorder %s27, 1
    %p302 = por %p300, %p301
    %p304 = scmp.ne.s32.totalorder %s289, %s303
    %p305 = scmp.eq.s32.totalorder %s27, 0
    %p306 = por %p304, %p305
    %s308 = sadd.s32 %s307, 1
    %p311 = scmp.eq.s32.totalorder %s21, 1
    %p312 = scmp.ne.s32.totalorder %s307, %s309
    %p313 = scmp.eq.s32.totalorder %s21, 0
    %p314 = por %p312, %p313
    %p315 = scmp.ne.s32.totalorder %s307, %s309
    %p316 = scmp.eq.s32.totalorder %s26, 1
    %p317 = por %p315, %p316
    %p318 = scmp.ne.s32.totalorder %s309, %s310
    %p319 = scmp.eq.s32.totalorder %s26, 0
    %p320 = por %p318, %p319
    %p321 = scmp.ne.s32.totalorder %s309, %s310
    %p322 = scmp.eq.s32.totalorder %s27, 1
    %p323 = por %p321, %p322
    %p325 = scmp.ne.s32.totalorder %s310, %s324
    %p326 = scmp.eq.s32.totalorder %s27, 0
    %p327 = por %p325, %p326
    %s329 = sadd.s32 %s328, 1
    %p332 = scmp.eq.s32.totalorder %s21, 1
    %p333 = scmp.ne.s32.totalorder %s328, %s330
    %p334 = scmp.eq.s32.totalorder %s21, 0
    %p335 = por %p333, %p334
    %p336 = scmp.ne.s32.totalorder %s328, %s330
    %p337 = scmp.eq.s32.totalorder %s26, 1
    %p338 = por %p336, %p337
    %p339 = scmp.ne.s32.totalorder %s330, %s331
    %p340 = scmp.eq.s32.totalorder %s26, 0
    %p341 = por %p339, %p340
    %p342 = scmp.ne.s32.totalorder %s330, %s331
    %p343 = scmp.eq.s32.totalorder %s27, 1
    %p344 = por %p342, %p343
    %p346 = scmp.ne.s32.totalorder %s331, %s345
    %p347 = scmp.eq.s32.totalorder %s27, 0
    %p348 = por %p346, %p347
    %s349 = ssub.s32 %s21, %s28
    %p350 = scmp.eq.s32.totalorder %s349, 0
    %s352 = sadd.s32 %s351, 1
    %s353 = scalar_select %p350, %s351, %s352
    %p356 = pneg %p350
    %p357 = scmp.eq.s32.totalorder %s21, 1
    %p358 = por %p356, %p357
    %p359 = scmp.ne.s32.totalorder %s351, %s354
    %p360 = scmp.eq.s32.totalorder %s21, 0
    %p361 = por %p359, %p360
    %p362 = scmp.ne.s32.totalorder %s351, %s354
    %p363 = scmp.eq.s32.totalorder %s26, 1
    %p364 = por %p362, %p363
    %p365 = scmp.ne.s32.totalorder %s354, %s355
    %p366 = scmp.eq.s32.totalorder %s26, 0
    %p367 = por %p365, %p366
    %p368 = scmp.ne.s32.totalorder %s354, %s355
    %p369 = scmp.eq.s32.totalorder %s27, 1
    %p370 = por %p368, %p369
    %p372 = scmp.ne.s32.totalorder %s355, %s371
    %p373 = scmp.eq.s32.totalorder %s27, 0
    %p374 = por %p372, %p373
    %p375 = scmp.le.s32.totalorder 1, %s21
    %p376 = scmp.lt.s32.totalorder %s21, 3
    %p377 = pnand %p375, %p376
    %p378 = pneg %p377
    // Predicated region
    $region9: #{dfe_forward.1} parent=5 // pred_check
      _
    $region10: #{dfe_forward.1} parent=5 // pred_check_branch
      %380 = sbr.rel (%p377) target = $region12
    $region11: #{dfe_forward.1} parent=5 // pred_region
      %s381 = ssub.s32 %s21, 1
      // Predicated region
      $region13: #{dfe_forward.1} parent=11 // pred_check
        %p382 = pneg %p68
      $region14: #{dfe_forward.1} parent=11 // pred_check_branch
        %384 = sbr.rel (%p382) target = $region16
      $region15: #{dfe_forward.1} parent=11 // pred_region
        _
      $region16: #{dfe_forward.1} parent=11 // pred_fallthru
        _
      // Predicated region
      $region17: #{dfe_forward.1} parent=11 // pred_check
        %p385 = pneg %p89
      $region18: #{dfe_forward.1} parent=11 // pred_check_branch
        %387 = sbr.rel (%p385) target = $region20
      $region19: #{dfe_forward.1} parent=11 // pred_region
        _
      $region20: #{dfe_forward.1} parent=11 // pred_fallthru
        _
      // Predicated region
      $region21: #{dfe_forward.1} parent=11 // pred_check
        %p388 = pneg %p110
      $region22: #{dfe_forward.1} parent=11 // pred_check_branch
        %390 = sbr.rel (%p388) target = $region24
      $region23: #{dfe_forward.1} parent=11 // pred_region
        _
      $region24: #{dfe_forward.1} parent=11 // pred_fallthru
        _
      // Predicated region
      $region25: #{dfe_forward.1} parent=11 // pred_check
        %p391 = pneg %p131
      $region26: #{dfe_forward.1} parent=11 // pred_check_branch
        %393 = sbr.rel (%p391) target = $region28
      $region27: #{dfe_forward.1} parent=11 // pred_region
        _
      $region28: #{dfe_forward.1} parent=11 // pred_fallthru
        _
      // Predicated region
      $region29: #{dfe_forward.1} parent=11 // pred_check
        %p394 = pneg %p152
      $region30: #{dfe_forward.1} parent=11 // pred_check_branch
        %396 = sbr.rel (%p394) target = $region32
      $region31: #{dfe_forward.1} parent=11 // pred_region
        _
      $region32: #{dfe_forward.1} parent=11 // pred_fallthru
        _
      // Predicated region
      $region33: #{dfe_forward.1} parent=11 // pred_check
        %p397 = pneg %p173
      $region34: #{dfe_forward.1} parent=11 // pred_check_branch
        %399 = sbr.rel (%p397) target = $region36
      $region35: #{dfe_forward.1} parent=11 // pred_region
        _
      $region36: #{dfe_forward.1} parent=11 // pred_fallthru
        _
      // Predicated region
      $region37: #{dfe_forward.1} parent=11 // pred_check
        %p400 = pneg %p194
      $region38: #{dfe_forward.1} parent=11 // pred_check_branch
        %402 = sbr.rel (%p400) target = $region40
      $region39: #{dfe_forward.1} parent=11 // pred_region
        _
      $region40: #{dfe_forward.1} parent=11 // pred_fallthru
        _
      // Predicated region
      $region41: #{dfe_forward.1} parent=11 // pred_check
        %p403 = pneg %p215
      $region42: #{dfe_forward.1} parent=11 // pred_check_branch
        %405 = sbr.rel (%p403) target = $region44
      $region43: #{dfe_forward.1} parent=11 // pred_region
        _
      $region44: #{dfe_forward.1} parent=11 // pred_fallthru
        _
      // Predicated region
      $region45: #{dfe_forward.1} parent=11 // pred_check
        %p406 = pneg %p236
      $region46: #{dfe_forward.1} parent=11 // pred_check_branch
        %408 = sbr.rel (%p406) target = $region48
      $region47: #{dfe_forward.1} parent=11 // pred_region
        _
      $region48: #{dfe_forward.1} parent=11 // pred_fallthru
        _
      // Predicated region
      $region49: #{dfe_forward.1} parent=11 // pred_check
        %p409 = pneg %p257
      $region50: #{dfe_forward.1} parent=11 // pred_check_branch
        %411 = sbr.rel (%p409) target = $region52
      $region51: #{dfe_forward.1} parent=11 // pred_region
        _
      $region52: #{dfe_forward.1} parent=11 // pred_fallthru
        _
      // Predicated region
      $region53: #{dfe_forward.1} parent=11 // pred_check
        %p412 = pneg %p278
      $region54: #{dfe_forward.1} parent=11 // pred_check_branch
        %414 = sbr.rel (%p412) target = $region56
      $region55: #{dfe_forward.1} parent=11 // pred_region
        _
      $region56: #{dfe_forward.1} parent=11 // pred_fallthru
        _
      // Predicated region
      $region57: #{dfe_forward.1} parent=11 // pred_check
        %p415 = pneg %p299
      $region58: #{dfe_forward.1} parent=11 // pred_check_branch
        %417 = sbr.rel (%p415) target = $region60
      $region59: #{dfe_forward.1} parent=11 // pred_region
        _
      $region60: #{dfe_forward.1} parent=11 // pred_fallthru
        _
      // Predicated region
      $region61: #{dfe_forward.1} parent=11 // pred_check
        %p418 = pneg %p320
      $region62: #{dfe_forward.1} parent=11 // pred_check_branch
        %420 = sbr.rel (%p418) target = $region64
      $region63: #{dfe_forward.1} parent=11 // pred_region
        _
      $region64: #{dfe_forward.1} parent=11 // pred_fallthru
        _
      // Predicated region
      $region65: #{dfe_forward.1} parent=11 // pred_check
        %p421 = pneg %p341
      $region66: #{dfe_forward.1} parent=11 // pred_check_branch
        %423 = sbr.rel (%p421) target = $region68
      $region67: #{dfe_forward.1} parent=11 // pred_region
        _
      $region68: #{dfe_forward.1} parent=11 // pred_fallthru
        _
    $region12: #{dfe_forward.1} parent=5 // pred_fallthru
      _
    %p424 = scmp.lt.s32.totalorder %s21, 2
    // Predicated region
    $region69: #{dfe_forward.1} parent=5 // pred_check
      %p425 = pneg %p424
    $region70: #{dfe_forward.1} parent=5 // pred_check_branch
      %427 = sbr.rel (%p425) target = $region72
    $region71: #{dfe_forward.1} parent=5 // pred_region
      // Predicated region
      $region73: #{dfe_forward.1} parent=71 // pred_check
        %p428 = pneg %p41
      $region74: #{dfe_forward.1} parent=71 // pred_check_branch
        %430 = sbr.rel (%p428) target = $region76
      $region75: #{dfe_forward.1} parent=71 // pred_region
        %p431 = scmp.lt.s32.totalorder %s21, 1
        %s432 = scalar_select %p431, %s21, 1
        %s433 = smul.addr %s432, 32
        %s434 = smul.addr %s433, 8
        %s435 = scalar_lea.vmem %s0, %s434
      $region76: #{dfe_forward.1} parent=71 // pred_fallthru
        _
    $region72: #{dfe_forward.1} parent=5 // pred_fallthru
      _
    %p436 = scmp.le.s32.totalorder 1, %s21
    %p437 = scmp.lt.s32.totalorder %s21, 3
    %p438 = pnand %p436, %p437
    %p439 = pneg %p438
    // Predicated region
    $region77: #{dfe_forward.1} parent=5 // pred_check
      _
    $region78: #{dfe_forward.1} parent=5 // pred_check_branch
      %441 = sbr.rel (%p438) target = $region80
    $region79: #{dfe_forward.1} parent=5 // pred_region
      %s442 = ssub.s32 %s21, 1
      %p443 = scmp.lt.s32.totalorder %s26, 1
      %s444 = scalar_select %p443, %s26, 1
      %s445 = smul.addr %s444, 32
      %s446 = smul.addr %s445, 8
      %s447 = scalar_lea.vmem %s0, %s446
      %p448 = pneg %p47
      %p449 = pneg %p44
      %p450 = pneg %p68
      %p451 = pneg %p65
      %p452 = pneg %p89
      %p453 = pneg %p86
      %p454 = pneg %p110
      %p455 = pneg %p107
      %p456 = pneg %p131
      %p457 = pneg %p128
      %p458 = pneg %p152
      %p459 = pneg %p149
      %p460 = pneg %p173
      %p461 = pneg %p170
      %p462 = pneg %p194
      %p463 = pneg %p191
      %p464 = pneg %p215
      %p465 = pneg %p212
      %p466 = pneg %p236
      %p467 = pneg %p233
      %p468 = pneg %p257
      %p469 = pneg %p254
      %p470 = pneg %p278
      %p471 = pneg %p275
      %p472 = pneg %p299
      %p473 = pneg %p296
      %p474 = pneg %p320
      %p475 = pneg %p317
      %p476 = pneg %p341
      %p477 = pneg %p338
      %p478 = pneg %p367
      %p479 = pneg %p364
      %p480 = scmp.lt.s32.totalorder %s26, 1
      %s481 = scalar_select %p480, %s26, 1
      %s482 = smul.addr %s481, 32
      %s483 = smul.addr %s482, 8
      %s484 = scalar_lea.vmem %s15, %s483
      %p485 = scmp.lt.s32.totalorder %s26, 1
      %s486 = scalar_select %p485, %s26, 1
      %s487 = smul.addr %s486, 32
      %s488 = smul.addr %s487, 8
      %s489 = scalar_lea.vmem %s0, %s488
      %p490 = scmp.lt.s32.totalorder %s26, 1
      %s491 = scalar_select %p490, %s26, 1
      %s492 = smul.addr %s491, 32
      %s493 = smul.addr %s492, 8
      %s494 = scalar_lea.vmem %s15, %s493
      %vm496 = vcmask 64512
      %497 = vst.msk [vmem:[#allocation2] sm:$0xff] %vm496, 0.0
      %498 = vst.msk [vmem:[#allocation2 + $0x8] sm:$0xff] %vm496, 0.0
      %vm499 = vcmask 58368
      %500 = vst.msk [vmem:[#allocation2 + $0x10] sm:$0x3] %vm499, 0.0
      %501 = vst.msk [vmem:[#allocation2 + $0x18] sm:$0xff] %vm496, 0.0
      %502 = vst.msk [vmem:[#allocation2 + $0x20] sm:$0xff] %vm496, 0.0
      %503 = vst.msk [vmem:[#allocation2 + $0x28] sm:$0x3] %vm499, 0.0
      %504 = vst.msk [vmem:[#allocation2 + $0x30] sm:$0xff] %vm496, 0.0
      %505 = vst.msk [vmem:[#allocation2 + $0x38] sm:$0xff] %vm496, 0.0
      %506 = vst.msk [vmem:[#allocation2 + $0x40] sm:$0x3] %vm499, 0.0
      %507 = vst.msk [vmem:[#allocation2 + $0x48] sm:$0xff] %vm496, 0.0
      %508 = vst.msk [vmem:[#allocation2 + $0x50] sm:$0xff] %vm496, 0.0
      %509 = vst.msk [vmem:[#allocation2 + $0x58] sm:$0x3] %vm499, 0.0
      %510 = vst.msk [vmem:[#allocation2 + $0x60] sm:$0xff] %vm496, 0.0
      %511 = vst.msk [vmem:[#allocation2 + $0x68] sm:$0xff] %vm496, 0.0
      %512 = vst.msk [vmem:[#allocation2 + $0x70] sm:$0x3] %vm499, 0.0
      %513 = vst.msk [vmem:[#allocation2 + $0x78] sm:$0xff] %vm496, 0.0
      %514 = vst.msk [vmem:[#allocation2 + $0x80] sm:$0xff] %vm496, 0.0
      %515 = vst.msk [vmem:[#allocation2 + $0x88] sm:$0x3] %vm499, 0.0
      %516 = vst.msk [vmem:[#allocation2 + $0x90] sm:$0xff] %vm496, 0.0
      %517 = vst.msk [vmem:[#allocation2 + $0x98] sm:$0xff] %vm496, 0.0
      %518 = vst.msk [vmem:[#allocation2 + $0xa0] sm:$0x3] %vm499, 0.0
      %519 = vst.msk [vmem:[#allocation2 + $0xa8] sm:$0xff] %vm496, 0.0
      %520 = vst.msk [vmem:[#allocation2 + $0xb0] sm:$0xff] %vm496, 0.0
      %521 = vst.msk [vmem:[#allocation2 + $0xb8] sm:$0x3] %vm499, 0.0
      %522 = vst.msk [vmem:[#allocation2 + $0xc0] sm:$0xff] %vm496, 0.0
      %523 = vst.msk [vmem:[#allocation2 + $0xc8] sm:$0xff] %vm496, 0.0
      %524 = vst.msk [vmem:[#allocation2 + $0xd0] sm:$0x3] %vm499, 0.0
      %525 = vst.msk [vmem:[#allocation2 + $0xd8] sm:$0xff] %vm496, 0.0
      %526 = vst.msk [vmem:[#allocation2 + $0xe0] sm:$0xff] %vm496, 0.0
      %527 = vst.msk [vmem:[#allocation2 + $0xe8] sm:$0x3] %vm499, 0.0
      %528 = vst.msk [vmem:[#allocation2 + $0xf0] sm:$0xff] %vm496, 0.0
      %529 = vst.msk [vmem:[#allocation2 + $0xf8] sm:$0xff] %vm496, 0.0
      %530 = vst.msk [vmem:[#allocation2 + $0x100] sm:$0x3] %vm499, 0.0
      %531 = vst.msk [vmem:[#allocation2 + $0x108] sm:$0xff] %vm496, 0.0
      %532 = vst.msk [vmem:[#allocation2 + $0x110] sm:$0xff] %vm496, 0.0
      %533 = vst.msk [vmem:[#allocation2 + $0x118] sm:$0x3] %vm499, 0.0
      %534 = vst.msk [vmem:[#allocation2 + $0x120] sm:$0xff] %vm496, 0.0
      %535 = vst.msk [vmem:[#allocation2 + $0x128] sm:$0xff] %vm496, 0.0
      %536 = vst.msk [vmem:[#allocation2 + $0x130] sm:$0x3] %vm499, 0.0
      %537 = vst.msk [vmem:[#allocation2 + $0x138] sm:$0xff] %vm496, 0.0
      %538 = vst.msk [vmem:[#allocation2 + $0x140] sm:$0xff] %vm496, 0.0
      %539 = vst.msk [vmem:[#allocation2 + $0x148] sm:$0x3] %vm499, 0.0
      %540 = vst.msk [vmem:[#allocation2 + $0x150] sm:$0xff] %vm496, 0.0
      %541 = vst.msk [vmem:[#allocation2 + $0x158] sm:$0xff] %vm496, 0.0
      %542 = vst.msk [vmem:[#allocation2 + $0x160] sm:$0x3] %vm499, 0.0
      %543 = vst.msk [vmem:[#allocation2 + $0x168] sm:$0xff] %vm496, 0.0
      %544 = vst.msk [vmem:[#allocation2 + $0x170] sm:$0xff] %vm496, 0.0
      %545 = vst.msk [vmem:[#allocation2 + $0x178] sm:$0x3] %vm499, 0.0
      %546 = vst.msk [vmem:[#allocation2 + $0x180] sm:$0xff] %vm496, 0.0
      %547 = vst.msk [vmem:[#allocation2 + $0x188] sm:$0xff] %vm496, 0.0
      %548 = vst.msk [vmem:[#allocation2 + $0x190] sm:$0x3] %vm499, 0.0
      %549 = vst.msk [vmem:[#allocation2 + $0x198] sm:$0xff] %vm496, 0.0
      %550 = vst.msk [vmem:[#allocation2 + $0x1a0] sm:$0xff] %vm496, 0.0
      %551 = vst.msk [vmem:[#allocation2 + $0x1a8] sm:$0x3] %vm499, 0.0
      %v552 = vld [vmem:[%s489] sm:$0xff]
      %v553 = vld [vmem:[%s489 + $0x8] sm:$0xff]
      %v554 = vld [vmem:[%s489 + $0x10] sm:$0xff]
      %v555 = vld [vmem:[%s489 + $0x18] sm:$0xff]
      %v556 = vld [vmem:[%s489 + $0x20] sm:$0xff]
      %v557 = vld [vmem:[%s489 + $0x28] sm:$0xff]
      %v558 = vld [vmem:[%s489 + $0x30] sm:$0xff]
      %v559 = vld [vmem:[%s489 + $0x38] sm:$0xff]
      %v560 = vld [vmem:[%s489 + $0x40] sm:$0xff]
      %v561 = vld [vmem:[%s489 + $0x48] sm:$0xff]
      %v562 = vld [vmem:[%s489 + $0x50] sm:$0xff]
      %v563 = vld [vmem:[%s489 + $0x58] sm:$0xff]
      %v564 = vld [vmem:[%s489 + $0x60] sm:$0xff]
      %v565 = vld [vmem:[%s489 + $0x68] sm:$0xff]
      %v566 = vld [vmem:[%s489 + $0x70] sm:$0xff]
      %v567 = vld [vmem:[%s489 + $0x78] sm:$0xff]
      %v568 = vld [vmem:[%s489 + $0x80] sm:$0xff]
      %v569 = vld [vmem:[%s489 + $0x88] sm:$0xff]
      %v570 = vld [vmem:[%s489 + $0x90] sm:$0xff]
      %v571 = vld [vmem:[%s489 + $0x98] sm:$0xff]
      %v572 = vld [vmem:[%s489 + $0xa0] sm:$0xff]
      %v573 = vld [vmem:[%s489 + $0xa8] sm:$0xff]
      %v574 = vld [vmem:[%s489 + $0xb0] sm:$0xff]
      %v575 = vld [vmem:[%s489 + $0xb8] sm:$0xff]
      %v576 = vld [vmem:[%s489 + $0xc0] sm:$0xff]
      %v577 = vld [vmem:[%s489 + $0xc8] sm:$0xff]
      %v578 = vld [vmem:[%s489 + $0xd0] sm:$0xff]
      %v579 = vld [vmem:[%s489 + $0xd8] sm:$0xff]
      %v580 = vld [vmem:[%s489 + $0xe0] sm:$0xff]
      %v581 = vld [vmem:[%s489 + $0xe8] sm:$0xff]
      %v582 = vld [vmem:[%s489 + $0xf0] sm:$0xff]
      %v583 = vld [vmem:[%s489 + $0xf8] sm:$0xff]
      %s584 = scalar_lea.vmem [#allocation2], 24
      %585 = vst.msk [vmem:[%s584 + $0x1] sm:$0xff] %vm496, %v552
      %586 = vst.msk [vmem:[%s584 + $0x9] sm:$0xff] %vm496, %v553
      %587 = vst.msk [vmem:[%s584 + $0x19] sm:$0xff] %vm496, %v554
      %588 = vst.msk [vmem:[%s584 + $0x21] sm:$0xff] %vm496, %v555
      %589 = vst.msk [vmem:[%s584 + $0x31] sm:$0xff] %vm496, %v556
      %590 = vst.msk [vmem:[%s584 + $0x39] sm:$0xff] %vm496, %v557
      %591 = vst.msk [vmem:[%s584 + $0x49] sm:$0xff] %vm496, %v558
      %592 = vst.msk [vmem:[%s584 + $0x51] sm:$0xff] %vm496, %v559
      %593 = vst.msk [vmem:[%s584 + $0x61] sm:$0xff] %vm496, %v560
      %594 = vst.msk [vmem:[%s584 + $0x69] sm:$0xff] %vm496, %v561
      %595 = vst.msk [vmem:[%s584 + $0x79] sm:$0xff] %vm496, %v562
      %596 = vst.msk [vmem:[%s584 + $0x81] sm:$0xff] %vm496, %v563
      %597 = vst.msk [vmem:[%s584 + $0x91] sm:$0xff] %vm496, %v564
      %598 = vst.msk [vmem:[%s584 + $0x99] sm:$0xff] %vm496, %v565
      %599 = vst.msk [vmem:[%s584 + $0xa9] sm:$0xff] %vm496, %v566
      %600 = vst.msk [vmem:[%s584 + $0xb1] sm:$0xff] %vm496, %v567
      %601 = vst.msk [vmem:[%s584 + $0xc1] sm:$0xff] %vm496, %v568
      %602 = vst.msk [vmem:[%s584 + $0xc9] sm:$0xff] %vm496, %v569
      %603 = vst.msk [vmem:[%s584 + $0xd9] sm:$0xff] %vm496, %v570
      %604 = vst.msk [vmem:[%s584 + $0xe1] sm:$0xff] %vm496, %v571
      %605 = vst.msk [vmem:[%s584 + $0xf1] sm:$0xff] %vm496, %v572
      %606 = vst.msk [vmem:[%s584 + $0xf9] sm:$0xff] %vm496, %v573
      %607 = vst.msk [vmem:[%s584 + $0x109] sm:$0xff] %vm496, %v574
      %608 = vst.msk [vmem:[%s584 + $0x111] sm:$0xff] %vm496, %v575
      %609 = vst.msk [vmem:[%s584 + $0x121] sm:$0xff] %vm496, %v576
      %610 = vst.msk [vmem:[%s584 + $0x129] sm:$0xff] %vm496, %v577
      %611 = vst.msk [vmem:[%s584 + $0x139] sm:$0xff] %vm496, %v578
      %612 = vst.msk [vmem:[%s584 + $0x141] sm:$0xff] %vm496, %v579
      %613 = vst.msk [vmem:[%s584 + $0x151] sm:$0xff] %vm496, %v580
      %614 = vst.msk [vmem:[%s584 + $0x159] sm:$0xff] %vm496, %v581
      %615 = vst.msk [vmem:[%s584 + $0x169] sm:$0xff] %vm496, %v582
      %616 = vst.msk [vmem:[%s584 + $0x171] sm:$0xff] %vm496, %v583
      %v617 = vld [vmem:[#allocation2] sm:$0xff]
      %v618 = vld [vmem:[#allocation2 + $0x8] sm:$0xff]
      %v619 = vld [vmem:[#allocation2 + $0x18] sm:$0xff]
      %v620 = vld [vmem:[#allocation2 + $0x20] sm:$0xff]
      %v621 = vld [vmem:[#allocation2 + $0x30] sm:$0xff]
      %v622 = vld [vmem:[#allocation2 + $0x38] sm:$0xff]
      %v623 = vld [vmem:[#allocation2 + $0x48] sm:$0xff]
      %v624 = vld [vmem:[#allocation2 + $0x50] sm:$0xff]
      %v625 = vld [vmem:[#allocation2 + $0x60] sm:$0xff]
      %v626 = vld [vmem:[#allocation2 + $0x68] sm:$0xff]
      %v627 = vld [vmem:[#allocation2 + $0x78] sm:$0xff]
      %v628 = vld [vmem:[#allocation2 + $0x80] sm:$0xff]
      %v629 = vld [vmem:[#allocation2 + $0x90] sm:$0xff]
      %v630 = vld [vmem:[#allocation2 + $0x98] sm:$0xff]
      %v631 = vld [vmem:[#allocation2 + $0xa8] sm:$0xff]
      %v632 = vld [vmem:[#allocation2 + $0xb0] sm:$0xff]
      %v633 = vld [vmem:[#allocation2 + $0xc0] sm:$0xff]
      %v634 = vld [vmem:[#allocation2 + $0xc8] sm:$0xff]
      %v635 = vld [vmem:[#allocation2 + $0xd8] sm:$0xff]
      %v636 = vld [vmem:[#allocation2 + $0xe0] sm:$0xff]
      %v637 = vld [vmem:[#allocation2 + $0xf0] sm:$0xff]
      %v638 = vld [vmem:[#allocation2 + $0xf8] sm:$0xff]
      %v639 = vld [vmem:[#allocation2 + $0x108] sm:$0xff]
      %v640 = vld [vmem:[#allocation2 + $0x110] sm:$0xff]
      %v641 = vld [vmem:[#allocation2 + $0x120] sm:$0xff]
      %v642 = vld [vmem:[#allocation2 + $0x128] sm:$0xff]
      %v643 = vld [vmem:[#allocation2 + $0x138] sm:$0xff]
      %v644 = vld [vmem:[#allocation2 + $0x140] sm:$0xff]
      %v645 = vld [vmem:[#allocation2 + $0x150] sm:$0xff]
      %v646 = vld [vmem:[#allocation2 + $0x158] sm:$0xff]
      %v647 = vld [vmem:[#allocation2 + $0x168] sm:$0xff]
      %v648 = vld [vmem:[#allocation2 + $0x170] sm:$0xff]
      %v649 = vpack.c.bf16 %v617, %v617
      %v650 = vpack.c.bf16 %v618, %v618
      %v651 = vpack.c.bf16 %v619, %v619
      %v652 = vpack.c.bf16 %v620, %v620
      %v653 = vpack.c.bf16 %v621, %v621
      %v654 = vpack.c.bf16 %v622, %v622
      %v655 = vpack.c.bf16 %v623, %v623
      %v656 = vpack.c.bf16 %v624, %v624
      %v657 = vpack.c.bf16 %v625, %v625
      %v658 = vpack.c.bf16 %v626, %v626
      %v659 = vpack.c.bf16 %v627, %v627
      %v660 = vpack.c.bf16 %v628, %v628
      %v661 = vpack.c.bf16 %v629, %v629
      %v662 = vpack.c.bf16 %v630, %v630
      %v663 = vpack.c.bf16 %v631, %v631
      %v664 = vpack.c.bf16 %v632, %v632
      %v665 = vpack.c.bf16 %v633, %v633
      %v666 = vpack.c.bf16 %v634, %v634
      %v667 = vpack.c.bf16 %v635, %v635
      %v668 = vpack.c.bf16 %v636, %v636
      %v669 = vpack.c.bf16 %v637, %v637
      %v670 = vpack.c.bf16 %v638, %v638
      %v671 = vpack.c.bf16 %v639, %v639
      %v672 = vpack.c.bf16 %v640, %v640
      %v673 = vpack.c.bf16 %v641, %v641
      %v674 = vpack.c.bf16 %v642, %v642
      %v675 = vpack.c.bf16 %v643, %v643
      %v676 = vpack.c.bf16 %v644, %v644
      %v677 = vpack.c.bf16 %v645, %v645
      %v678 = vpack.c.bf16 %v646, %v646
      %v679 = vpack.c.bf16 %v647, %v647
      %v680 = vpack.c.bf16 %v648, %v648
      %vm681 = vcmask 60416
      %682 = vst.msk [vmem:[#allocation3] sm:$0xf] %vm681, %v649
      %683 = vst.msk [vmem:[#allocation3 + $0x4] sm:$0xf] %vm681, %v650
      %684 = vst.msk [vmem:[#allocation3 + $0x8] sm:$0xf] %vm681, %v651
      %685 = vst.msk [vmem:[#allocation3 + $0xc] sm:$0xf] %vm681, %v652
      %686 = vst.msk [vmem:[#allocation3 + $0x10] sm:$0xf] %vm681, %v653
      %687 = vst.msk [vmem:[#allocation3 + $0x14] sm:$0xf] %vm681, %v654
      %688 = vst.msk [vmem:[#allocation3 + $0x18] sm:$0xf] %vm681, %v655
      %689 = vst.msk [vmem:[#allocation3 + $0x1c] sm:$0xf] %vm681, %v656
      %690 = vst.msk [vmem:[#allocation3 + $0x20] sm:$0xf] %vm681, %v657
      %691 = vst.msk [vmem:[#allocation3 + $0x24] sm:$0xf] %vm681, %v658
      %692 = vst.msk [vmem:[#allocation3 + $0x28] sm:$0xf] %vm681, %v659
      %693 = vst.msk [vmem:[#allocation3 + $0x2c] sm:$0xf] %vm681, %v660
      %694 = vst.msk [vmem:[#allocation3 + $0x30] sm:$0xf] %vm681, %v661
      %695 = vst.msk [vmem:[#allocation3 + $0x34] sm:$0xf] %vm681, %v662
      %696 = vst.msk [vmem:[#allocation3 + $0x38] sm:$0xf] %vm681, %v663
      %697 = vst.msk [vmem:[#allocation3 + $0x3c] sm:$0xf] %vm681, %v664
      %698 = vst.msk [vmem:[#allocation3 + $0x40] sm:$0xf] %vm681, %v665
      %699 = vst.msk [vmem:[#allocation3 + $0x44] sm:$0xf] %vm681, %v666
      %700 = vst.msk [vmem:[#allocation3 + $0x48] sm:$0xf] %vm681, %v667
      %701 = vst.msk [vmem:[#allocation3 + $0x4c] sm:$0xf] %vm681, %v668
      %702 = vst.msk [vmem:[#allocation3 + $0x50] sm:$0xf] %vm681, %v669
      %703 = vst.msk [vmem:[#allocation3 + $0x54] sm:$0xf] %vm681, %v670
      %704 = vst.msk [vmem:[#allocation3 + $0x58] sm:$0xf] %vm681, %v671
      %705 = vst.msk [vmem:[#allocation3 + $0x5c] sm:$0xf] %vm681, %v672
      %706 = vst.msk [vmem:[#allocation3 + $0x60] sm:$0xf] %vm681, %v673
      %707 = vst.msk [vmem:[#allocation3 + $0x64] sm:$0xf] %vm681, %v674
      %708 = vst.msk [vmem:[#allocation3 + $0x68] sm:$0xf] %vm681, %v675
      %709 = vst.msk [vmem:[#allocation3 + $0x6c] sm:$0xf] %vm681, %v676
      %710 = vst.msk [vmem:[#allocation3 + $0x70] sm:$0xf] %vm681, %v677
      %711 = vst.msk [vmem:[#allocation3 + $0x74] sm:$0xf] %vm681, %v678
      %712 = vst.msk [vmem:[#allocation3 + $0x78] sm:$0xf] %vm681, %v679
      %713 = vst.msk [vmem:[#allocation3 + $0x7c] sm:$0xf] %vm681, %v680
      %v714 = vld [vmem:[#allocation2 + $0x1] sm:$0xff]
      %v715 = vld [vmem:[#allocation2 + $0x9] sm:$0xff]
      %v716 = vld [vmem:[#allocation2 + $0x19] sm:$0xff]
      %v717 = vld [vmem:[#allocation2 + $0x21] sm:$0xff]
      %v718 = vld [vmem:[#allocation2 + $0x31] sm:$0xff]
      %v719 = vld [vmem:[#allocation2 + $0x39] sm:$0xff]
      %v720 = vld [vmem:[#allocation2 + $0x49] sm:$0xff]
      %v721 = vld [vmem:[#allocation2 + $0x51] sm:$0xff]
      %v722 = vld [vmem:[#allocation2 + $0x61] sm:$0xff]
      %v723 = vld [vmem:[#allocation2 + $0x69] sm:$0xff]
      %v724 = vld [vmem:[#allocation2 + $0x79] sm:$0xff]
      %v725 = vld [vmem:[#allocation2 + $0x81] sm:$0xff]
      %v726 = vld [vmem:[#allocation2 + $0x91] sm:$0xff]
      %v727 = vld [vmem:[#allocation2 + $0x99] sm:$0xff]
      %v728 = vld [vmem:[#allocation2 + $0xa9] sm:$0xff]
      %v729 = vld [vmem:[#allocation2 + $0xb1] sm:$0xff]
      %v730 = vld [vmem:[#allocation2 + $0xc1] sm:$0xff]
      %v731 = vld [vmem:[#allocation2 + $0xc9] sm:$0xff]
      %v732 = vld [vmem:[#allocation2 + $0xd9] sm:$0xff]
      %v733 = vld [vmem:[#allocation2 + $0xe1] sm:$0xff]
      %v734 = vld [vmem:[#allocation2 + $0xf1] sm:$0xff]
      %v735 = vld [vmem:[#allocation2 + $0xf9] sm:$0xff]
      %v736 = vld [vmem:[#allocation2 + $0x109] sm:$0xff]
      %v737 = vld [vmem:[#allocation2 + $0x111] sm:$0xff]
      %v738 = vld [vmem:[#allocation2 + $0x121] sm:$0xff]
      %v739 = vld [vmem:[#allocation2 + $0x129] sm:$0xff]
      %v740 = vld [vmem:[#allocation2 + $0x139] sm:$0xff]
      %v741 = vld [vmem:[#allocation2 + $0x141] sm:$0xff]
      %v742 = vld [vmem:[#allocation2 + $0x151] sm:$0xff]
      %v743 = vld [vmem:[#allocation2 + $0x159] sm:$0xff]
      %v744 = vld [vmem:[#allocation2 + $0x169] sm:$0xff]
      %v745 = vld [vmem:[#allocation2 + $0x171] sm:$0xff]
      %v746 = vpack.c.bf16 %v714, %v714
      %v747 = vpack.c.bf16 %v715, %v715
      %v748 = vpack.c.bf16 %v716, %v716
      %v749 = vpack.c.bf16 %v717, %v717
      %v750 = vpack.c.bf16 %v718, %v718
      %v751 = vpack.c.bf16 %v719, %v719
      %v752 = vpack.c.bf16 %v720, %v720
      %v753 = vpack.c.bf16 %v721, %v721
      %v754 = vpack.c.bf16 %v722, %v722
      %v755 = vpack.c.bf16 %v723, %v723
      %v756 = vpack.c.bf16 %v724, %v724
      %v757 = vpack.c.bf16 %v725, %v725
      %v758 = vpack.c.bf16 %v726, %v726
      %v759 = vpack.c.bf16 %v727, %v727
      %v760 = vpack.c.bf16 %v728, %v728
      %v761 = vpack.c.bf16 %v729, %v729
      %v762 = vpack.c.bf16 %v730, %v730
      %v763 = vpack.c.bf16 %v731, %v731
      %v764 = vpack.c.bf16 %v732, %v732
      %v765 = vpack.c.bf16 %v733, %v733
      %v766 = vpack.c.bf16 %v734, %v734
      %v767 = vpack.c.bf16 %v735, %v735
      %v768 = vpack.c.bf16 %v736, %v736
      %v769 = vpack.c.bf16 %v737, %v737
      %v770 = vpack.c.bf16 %v738, %v738
      %v771 = vpack.c.bf16 %v739, %v739
      %v772 = vpack.c.bf16 %v740, %v740
      %v773 = vpack.c.bf16 %v741, %v741
      %v774 = vpack.c.bf16 %v742, %v742
      %v775 = vpack.c.bf16 %v743, %v743
      %v776 = vpack.c.bf16 %v744, %v744
      %v777 = vpack.c.bf16 %v745, %v745
      %810 = vrot.lane.b32.xlu0 %v746, 8
      %v811 = vpop.permute.xlu0 %810
      %812 = vrot.lane.b32.xlu0 %v747, 8
      %v813 = vpop.permute.xlu0 %812
      %814 = vrot.lane.b32.xlu0 %v748, 8
      %v815 = vpop.permute.xlu0 %814
      %816 = vrot.lane.b32.xlu0 %v749, 8
      %v817 = vpop.permute.xlu0 %816
      %818 = vrot.lane.b32.xlu0 %v750, 8
      %v819 = vpop.permute.xlu0 %818
      %820 = vrot.lane.b32.xlu0 %v751, 8
      %v821 = vpop.permute.xlu0 %820
      %822 = vrot.lane.b32.xlu0 %v752, 8
      %v823 = vpop.permute.xlu0 %822
      %824 = vrot.lane.b32.xlu0 %v753, 8
      %v825 = vpop.permute.xlu0 %824
      %826 = vrot.lane.b32.xlu0 %v754, 8
      %v827 = vpop.permute.xlu0 %826
      %828 = vrot.lane.b32.xlu0 %v755, 8
      %v829 = vpop.permute.xlu0 %828
      %830 = vrot.lane.b32.xlu0 %v756, 8
      %v831 = vpop.permute.xlu0 %830
      %832 = vrot.lane.b32.xlu0 %v757, 8
      %v833 = vpop.permute.xlu0 %832
      %834 = vrot.lane.b32.xlu0 %v758, 8
      %v835 = vpop.permute.xlu0 %834
      %836 = vrot.lane.b32.xlu0 %v759, 8
      %v837 = vpop.permute.xlu0 %836
      %838 = vrot.lane.b32.xlu0 %v760, 8
      %v839 = vpop.permute.xlu0 %838
      %840 = vrot.lane.b32.xlu0 %v761, 8
      %v841 = vpop.permute.xlu0 %840
      %842 = vrot.lane.b32.xlu0 %v762, 8
      %v843 = vpop.permute.xlu0 %842
      %844 = vrot.lane.b32.xlu0 %v763, 8
      %v845 = vpop.permute.xlu0 %844
      %846 = vrot.lane.b32.xlu0 %v764, 8
      %v847 = vpop.permute.xlu0 %846
      %848 = vrot.lane.b32.xlu0 %v765, 8
      %v849 = vpop.permute.xlu0 %848
      %850 = vrot.lane.b32.xlu0 %v766, 8
      %v851 = vpop.permute.xlu0 %850
      %852 = vrot.lane.b32.xlu0 %v767, 8
      %v853 = vpop.permute.xlu0 %852
      %854 = vrot.lane.b32.xlu0 %v768, 8
      %v855 = vpop.permute.xlu0 %854
      %856 = vrot.lane.b32.xlu0 %v769, 8
      %v857 = vpop.permute.xlu0 %856
      %858 = vrot.lane.b32.xlu0 %v770, 8
      %v859 = vpop.permute.xlu0 %858
      %860 = vrot.lane.b32.xlu0 %v771, 8
      %v861 = vpop.permute.xlu0 %860
      %862 = vrot.lane.b32.xlu0 %v772, 8
      %v863 = vpop.permute.xlu0 %862
      %864 = vrot.lane.b32.xlu0 %v773, 8
      %v865 = vpop.permute.xlu0 %864
      %866 = vrot.lane.b32.xlu0 %v774, 8
      %v867 = vpop.permute.xlu0 %866
      %868 = vrot.lane.b32.xlu0 %v775, 8
      %v869 = vpop.permute.xlu0 %868
      %870 = vrot.lane.b32.xlu0 %v776, 8
      %v871 = vpop.permute.xlu0 %870
      %872 = vrot.lane.b32.xlu0 %v777, 8
      %v873 = vpop.permute.xlu0 %872
      %vm906 = vcmask 126016
      %907 = vst.msk [vmem:[#allocation3] sm:$0xf] %vm906, %v811
      %908 = vst.msk [vmem:[#allocation3 + $0x4] sm:$0xf] %vm906, %v813
      %909 = vst.msk [vmem:[#allocation3 + $0x8] sm:$0xf] %vm906, %v815
      %910 = vst.msk [vmem:[#allocation3 + $0xc] sm:$0xf] %vm906, %v817
      %911 = vst.msk [vmem:[#allocation3 + $0x10] sm:$0xf] %vm906, %v819
      %912 = vst.msk [vmem:[#allocation3 + $0x14] sm:$0xf] %vm906, %v821
      %913 = vst.msk [vmem:[#allocation3 + $0x18] sm:$0xf] %vm906, %v823
      %914 = vst.msk [vmem:[#allocation3 + $0x1c] sm:$0xf] %vm906, %v825
      %915 = vst.msk [vmem:[#allocation3 + $0x20] sm:$0xf] %vm906, %v827
      %916 = vst.msk [vmem:[#allocation3 + $0x24] sm:$0xf] %vm906, %v829
      %917 = vst.msk [vmem:[#allocation3 + $0x28] sm:$0xf] %vm906, %v831
      %918 = vst.msk [vmem:[#allocation3 + $0x2c] sm:$0xf] %vm906, %v833
      %919 = vst.msk [vmem:[#allocation3 + $0x30] sm:$0xf] %vm906, %v835
      %920 = vst.msk [vmem:[#allocation3 + $0x34] sm:$0xf] %vm906, %v837
      %921 = vst.msk [vmem:[#allocation3 + $0x38] sm:$0xf] %vm906, %v839
      %922 = vst.msk [vmem:[#allocation3 + $0x3c] sm:$0xf] %vm906, %v841
      %923 = vst.msk [vmem:[#allocation3 + $0x40] sm:$0xf] %vm906, %v843
      %924 = vst.msk [vmem:[#allocation3 + $0x44] sm:$0xf] %vm906, %v845
      %925 = vst.msk [vmem:[#allocation3 + $0x48] sm:$0xf] %vm906, %v847
      %926 = vst.msk [vmem:[#allocation3 + $0x4c] sm:$0xf] %vm906, %v849
      %927 = vst.msk [vmem:[#allocation3 + $0x50] sm:$0xf] %vm906, %v851
      %928 = vst.msk [vmem:[#allocation3 + $0x54] sm:$0xf] %vm906, %v853
      %929 = vst.msk [vmem:[#allocation3 + $0x58] sm:$0xf] %vm906, %v855
      %930 = vst.msk [vmem:[#allocation3 + $0x5c] sm:$0xf] %vm906, %v857
      %931 = vst.msk [vmem:[#allocation3 + $0x60] sm:$0xf] %vm906, %v859
      %932 = vst.msk [vmem:[#allocation3 + $0x64] sm:$0xf] %vm906, %v861
      %933 = vst.msk [vmem:[#allocation3 + $0x68] sm:$0xf] %vm906, %v863
      %934 = vst.msk [vmem:[#allocation3 + $0x6c] sm:$0xf] %vm906, %v865
      %935 = vst.msk [vmem:[#allocation3 + $0x70] sm:$0xf] %vm906, %v867
      %936 = vst.msk [vmem:[#allocation3 + $0x74] sm:$0xf] %vm906, %v869
      %937 = vst.msk [vmem:[#allocation3 + $0x78] sm:$0xf] %vm906, %v871
      %938 = vst.msk [vmem:[#allocation3 + $0x7c] sm:$0xf] %vm906, %v873
      %v939 = vld [vmem:[#allocation2 + $0x2] sm:$0xff]
      %v940 = vld [vmem:[#allocation2 + $0xa] sm:$0xff]
      %v941 = vld [vmem:[#allocation2 + $0x1a] sm:$0xff]
      %v942 = vld [vmem:[#allocation2 + $0x22] sm:$0xff]
      %v943 = vld [vmem:[#allocation2 + $0x32] sm:$0xff]
      %v944 = vld [vmem:[#allocation2 + $0x3a] sm:$0xff]
      %v945 = vld [vmem:[#allocation2 + $0x4a] sm:$0xff]
      %v946 = vld [vmem:[#allocation2 + $0x52] sm:$0xff]
      %v947 = vld [vmem:[#allocation2 + $0x62] sm:$0xff]
      %v948 = vld [vmem:[#allocation2 + $0x6a] sm:$0xff]
      %v949 = vld [vmem:[#allocation2 + $0x7a] sm:$0xff]
      %v950 = vld [vmem:[#allocation2 + $0x82] sm:$0xff]
      %v951 = vld [vmem:[#allocation2 + $0x92] sm:$0xff]
      %v952 = vld [vmem:[#allocation2 + $0x9a] sm:$0xff]
      %v953 = vld [vmem:[#allocation2 + $0xaa] sm:$0xff]
      %v954 = vld [vmem:[#allocation2 + $0xb2] sm:$0xff]
      %v955 = vld [vmem:[#allocation2 + $0xc2] sm:$0xff]
      %v956 = vld [vmem:[#allocation2 + $0xca] sm:$0xff]
      %v957 = vld [vmem:[#allocation2 + $0xda] sm:$0xff]
      %v958 = vld [vmem:[#allocation2 + $0xe2] sm:$0xff]
      %v959 = vld [vmem:[#allocation2 + $0xf2] sm:$0xff]
      %v960 = vld [vmem:[#allocation2 + $0xfa] sm:$0xff]
      %v961 = vld [vmem:[#allocation2 + $0x10a] sm:$0xff]
      %v962 = vld [vmem:[#allocation2 + $0x112] sm:$0xff]
      %v963 = vld [vmem:[#allocation2 + $0x122] sm:$0xff]
      %v964 = vld [vmem:[#allocation2 + $0x12a] sm:$0xff]
      %v965 = vld [vmem:[#allocation2 + $0x13a] sm:$0xff]
      %v966 = vld [vmem:[#allocation2 + $0x142] sm:$0xff]
      %v967 = vld [vmem:[#allocation2 + $0x152] sm:$0xff]
      %v968 = vld [vmem:[#allocation2 + $0x15a] sm:$0xff]
      %v969 = vld [vmem:[#allocation2 + $0x16a] sm:$0xff]
      %v970 = vld [vmem:[#allocation2 + $0x172] sm:$0xff]
      %v971 = vpack.c.bf16 %v939, %v939
      %v972 = vpack.c.bf16 %v940, %v940
      %v973 = vpack.c.bf16 %v941, %v941
      %v974 = vpack.c.bf16 %v942, %v942
      %v975 = vpack.c.bf16 %v943, %v943
      %v976 = vpack.c.bf16 %v944, %v944
      %v977 = vpack.c.bf16 %v945, %v945
      %v978 = vpack.c.bf16 %v946, %v946
      %v979 = vpack.c.bf16 %v947, %v947
      %v980 = vpack.c.bf16 %v948, %v948
      %v981 = vpack.c.bf16 %v949, %v949
      %v982 = vpack.c.bf16 %v950, %v950
      %v983 = vpack.c.bf16 %v951, %v951
      %v984 = vpack.c.bf16 %v952, %v952
      %v985 = vpack.c.bf16 %v953, %v953
      %v986 = vpack.c.bf16 %v954, %v954
      %v987 = vpack.c.bf16 %v955, %v955
      %v988 = vpack.c.bf16 %v956, %v956
      %v989 = vpack.c.bf16 %v957, %v957
      %v990 = vpack.c.bf16 %v958, %v958
      %v991 = vpack.c.bf16 %v959, %v959
      %v992 = vpack.c.bf16 %v960, %v960
      %v993 = vpack.c.bf16 %v961, %v961
      %v994 = vpack.c.bf16 %v962, %v962
      %v995 = vpack.c.bf16 %v963, %v963
      %v996 = vpack.c.bf16 %v964, %v964
      %v997 = vpack.c.bf16 %v965, %v965
      %v998 = vpack.c.bf16 %v966, %v966
      %v999 = vpack.c.bf16 %v967, %v967
      %v1000 = vpack.c.bf16 %v968, %v968
      %v1001 = vpack.c.bf16 %v969, %v969
      %v1002 = vpack.c.bf16 %v970, %v970
      %1035 = vrot.lane.b32.xlu0 %v971, 16
      %v1036 = vpop.permute.xlu0 %1035
      %1037 = vrot.lane.b32.xlu0 %v972, 16
      %v1038 = vpop.permute.xlu0 %1037
      %1039 = vrot.lane.b32.xlu0 %v973, 16
      %v1040 = vpop.permute.xlu0 %1039
      %1041 = vrot.lane.b32.xlu0 %v974, 16
      %v1042 = vpop.permute.xlu0 %1041
      %1043 = vrot.lane.b32.xlu0 %v975, 16
      %v1044 = vpop.permute.xlu0 %1043
      %1045 = vrot.lane.b32.xlu0 %v976, 16
      %v1046 = vpop.permute.xlu0 %1045
      %1047 = vrot.lane.b32.xlu0 %v977, 16
      %v1048 = vpop.permute.xlu0 %1047
      %1049 = vrot.lane.b32.xlu0 %v978, 16
      %v1050 = vpop.permute.xlu0 %1049
      %1051 = vrot.lane.b32.xlu0 %v979, 16
      %v1052 = vpop.permute.xlu0 %1051
      %1053 = vrot.lane.b32.xlu0 %v980, 16
      %v1054 = vpop.permute.xlu0 %1053
      %1055 = vrot.lane.b32.xlu0 %v981, 16
      %v1056 = vpop.permute.xlu0 %1055
      %1057 = vrot.lane.b32.xlu0 %v982, 16
      %v1058 = vpop.permute.xlu0 %1057
      %1059 = vrot.lane.b32.xlu0 %v983, 16
      %v1060 = vpop.permute.xlu0 %1059
      %1061 = vrot.lane.b32.xlu0 %v984, 16
      %v1062 = vpop.permute.xlu0 %1061
      %1063 = vrot.lane.b32.xlu0 %v985, 16
      %v1064 = vpop.permute.xlu0 %1063
      %1065 = vrot.lane.b32.xlu0 %v986, 16
      %v1066 = vpop.permute.xlu0 %1065
      %1067 = vrot.lane.b32.xlu0 %v987, 16
      %v1068 = vpop.permute.xlu0 %1067
      %1069 = vrot.lane.b32.xlu0 %v988, 16
      %v1070 = vpop.permute.xlu0 %1069
      %1071 = vrot.lane.b32.xlu0 %v989, 16
      %v1072 = vpop.permute.xlu0 %1071
      %1073 = vrot.lane.b32.xlu0 %v990, 16
      %v1074 = vpop.permute.xlu0 %1073
      %1075 = vrot.lane.b32.xlu0 %v991, 16
      %v1076 = vpop.permute.xlu0 %1075
      %1077 = vrot.lane.b32.xlu0 %v992, 16
      %v1078 = vpop.permute.xlu0 %1077
      %1079 = vrot.lane.b32.xlu0 %v993, 16
      %v1080 = vpop.permute.xlu0 %1079
      %1081 = vrot.lane.b32.xlu0 %v994, 16
      %v1082 = vpop.permute.xlu0 %1081
      %1083 = vrot.lane.b32.xlu0 %v995, 16
      %v1084 = vpop.permute.xlu0 %1083
      %1085 = vrot.lane.b32.xlu0 %v996, 16
      %v1086 = vpop.permute.xlu0 %1085
      %1087 = vrot.lane.b32.xlu0 %v997, 16
      %v1088 = vpop.permute.xlu0 %1087
      %1089 = vrot.lane.b32.xlu0 %v998, 16
      %v1090 = vpop.permute.xlu0 %1089
      %1091 = vrot.lane.b32.xlu0 %v999, 16
      %v1092 = vpop.permute.xlu0 %1091
      %1093 = vrot.lane.b32.xlu0 %v1000, 16
      %v1094 = vpop.permute.xlu0 %1093
      %1095 = vrot.lane.b32.xlu0 %v1001, 16
      %v1096 = vpop.permute.xlu0 %1095
      %1097 = vrot.lane.b32.xlu0 %v1002, 16
      %v1098 = vpop.permute.xlu0 %1097
      %vm1131 = vcmask 191616
      %1132 = vst.msk [vmem:[#allocation3] sm:$0xf] %vm1131, %v1036
      %1133 = vst.msk [vmem:[#allocation3 + $0x4] sm:$0xf] %vm1131, %v1038
      %1134 = vst.msk [vmem:[#allocation3 + $0x8] sm:$0xf] %vm1131, %v1040
      %1135 = vst.msk [vmem:[#allocation3 + $0xc] sm:$0xf] %vm1131, %v1042
      %1136 = vst.msk [vmem:[#allocation3 + $0x10] sm:$0xf] %vm1131, %v1044
      %1137 = vst.msk [vmem:[#allocation3 + $0x14] sm:$0xf] %vm1131, %v1046
      %1138 = vst.msk [vmem:[#allocation3 + $0x18] sm:$0xf] %vm1131, %v1048
      %1139 = vst.msk [vmem:[#allocation3 + $0x1c] sm:$0xf] %vm1131, %v1050
      %1140 = vst.msk [vmem:[#allocation3 + $0x20] sm:$0xf] %vm1131, %v1052
      %1141 = vst.msk [vmem:[#allocation3 + $0x24] sm:$0xf] %vm1131, %v1054
      %1142 = vst.msk [vmem:[#allocation3 + $0x28] sm:$0xf] %vm1131, %v1056
      %1143 = vst.msk [vmem:[#allocation3 + $0x2c] sm:$0xf] %vm1131, %v1058
      %1144 = vst.msk [vmem:[#allocation3 + $0x30] sm:$0xf] %vm1131, %v1060
      %1145 = vst.msk [vmem:[#allocation3 + $0x34] sm:$0xf] %vm1131, %v1062
      %1146 = vst.msk [vmem:[#allocation3 + $0x38] sm:$0xf] %vm1131, %v1064
      %1147 = vst.msk [vmem:[#allocation3 + $0x3c] sm:$0xf] %vm1131, %v1066
      %1148 = vst.msk [vmem:[#allocation3 + $0x40] sm:$0xf] %vm1131, %v1068
      %1149 = vst.msk [vmem:[#allocation3 + $0x44] sm:$0xf] %vm1131, %v1070
      %1150 = vst.msk [vmem:[#allocation3 + $0x48] sm:$0xf] %vm1131, %v1072
      %1151 = vst.msk [vmem:[#allocation3 + $0x4c] sm:$0xf] %vm1131, %v1074
      %1152 = vst.msk [vmem:[#allocation3 + $0x50] sm:$0xf] %vm1131, %v1076
      %1153 = vst.msk [vmem:[#allocation3 + $0x54] sm:$0xf] %vm1131, %v1078
      %1154 = vst.msk [vmem:[#allocation3 + $0x58] sm:$0xf] %vm1131, %v1080
      %1155 = vst.msk [vmem:[#allocation3 + $0x5c] sm:$0xf] %vm1131, %v1082
      %1156 = vst.msk [vmem:[#allocation3 + $0x60] sm:$0xf] %vm1131, %v1084
      %1157 = vst.msk [vmem:[#allocation3 + $0x64] sm:$0xf] %vm1131, %v1086
      %1158 = vst.msk [vmem:[#allocation3 + $0x68] sm:$0xf] %vm1131, %v1088
      %1159 = vst.msk [vmem:[#allocation3 + $0x6c] sm:$0xf] %vm1131, %v1090
      %1160 = vst.msk [vmem:[#allocation3 + $0x70] sm:$0xf] %vm1131, %v1092
      %1161 = vst.msk [vmem:[#allocation3 + $0x74] sm:$0xf] %vm1131, %v1094
      %1162 = vst.msk [vmem:[#allocation3 + $0x78] sm:$0xf] %vm1131, %v1096
      %1163 = vst.msk [vmem:[#allocation3 + $0x7c] sm:$0xf] %vm1131, %v1098
      %v1164 = vld [vmem:[%s584] sm:$0xff]
      %v1165 = vld [vmem:[%s584 + $0x8] sm:$0xff]
      %v1166 = vld [vmem:[%s584 + $0x18] sm:$0xff]
      %v1167 = vld [vmem:[%s584 + $0x20] sm:$0xff]
      %v1168 = vld [vmem:[%s584 + $0x30] sm:$0xff]
      %v1169 = vld [vmem:[%s584 + $0x38] sm:$0xff]
      %v1170 = vld [vmem:[%s584 + $0x48] sm:$0xff]
      %v1171 = vld [vmem:[%s584 + $0x50] sm:$0xff]
      %v1172 = vld [vmem:[%s584 + $0x60] sm:$0xff]
      %v1173 = vld [vmem:[%s584 + $0x68] sm:$0xff]
      %v1174 = vld [vmem:[%s584 + $0x78] sm:$0xff]
      %v1175 = vld [vmem:[%s584 + $0x80] sm:$0xff]
      %v1176 = vld [vmem:[%s584 + $0x90] sm:$0xff]
      %v1177 = vld [vmem:[%s584 + $0x98] sm:$0xff]
      %v1178 = vld [vmem:[%s584 + $0xa8] sm:$0xff]
      %v1179 = vld [vmem:[%s584 + $0xb0] sm:$0xff]
      %v1180 = vld [vmem:[%s584 + $0xc0] sm:$0xff]
      %v1181 = vld [vmem:[%s584 + $0xc8] sm:$0xff]
      %v1182 = vld [vmem:[%s584 + $0xd8] sm:$0xff]
      %v1183 = vld [vmem:[%s584 + $0xe0] sm:$0xff]
      %v1184 = vld [vmem:[%s584 + $0xf0] sm:$0xff]
      %v1185 = vld [vmem:[%s584 + $0xf8] sm:$0xff]
      %v1186 = vld [vmem:[%s584 + $0x108] sm:$0xff]
      %v1187 = vld [vmem:[%s584 + $0x110] sm:$0xff]
      %v1188 = vld [vmem:[%s584 + $0x120] sm:$0xff]
      %v1189 = vld [vmem:[%s584 + $0x128] sm:$0xff]
      %v1190 = vld [vmem:[%s584 + $0x138] sm:$0xff]
      %v1191 = vld [vmem:[%s584 + $0x140] sm:$0xff]
      %v1192 = vld [vmem:[%s584 + $0x150] sm:$0xff]
      %v1193 = vld [vmem:[%s584 + $0x158] sm:$0xff]
      %v1194 = vld [vmem:[%s584 + $0x168] sm:$0xff]
      %v1195 = vld [vmem:[%s584 + $0x170] sm:$0xff]
      %v1196 = vpack.c.bf16 %v1164, %v1164
      %v1197 = vpack.c.bf16 %v1165, %v1165
      %v1198 = vpack.c.bf16 %v1166, %v1166
      %v1199 = vpack.c.bf16 %v1167, %v1167
      %v1200 = vpack.c.bf16 %v1168, %v1168
      %v1201 = vpack.c.bf16 %v1169, %v1169
      %v1202 = vpack.c.bf16 %v1170, %v1170
      %v1203 = vpack.c.bf16 %v1171, %v1171
      %v1204 = vpack.c.bf16 %v1172, %v1172
      %v1205 = vpack.c.bf16 %v1173, %v1173
      %v1206 = vpack.c.bf16 %v1174, %v1174
      %v1207 = vpack.c.bf16 %v1175, %v1175
      %v1208 = vpack.c.bf16 %v1176, %v1176
      %v1209 = vpack.c.bf16 %v1177, %v1177
      %v1210 = vpack.c.bf16 %v1178, %v1178
      %v1211 = vpack.c.bf16 %v1179, %v1179
      %v1212 = vpack.c.bf16 %v1180, %v1180
      %v1213 = vpack.c.bf16 %v1181, %v1181
      %v1214 = vpack.c.bf16 %v1182, %v1182
      %v1215 = vpack.c.bf16 %v1183, %v1183
      %v1216 = vpack.c.bf16 %v1184, %v1184
      %v1217 = vpack.c.bf16 %v1185, %v1185
      %v1218 = vpack.c.bf16 %v1186, %v1186
      %v1219 = vpack.c.bf16 %v1187, %v1187
      %v1220 = vpack.c.bf16 %v1188, %v1188
      %v1221 = vpack.c.bf16 %v1189, %v1189
      %v1222 = vpack.c.bf16 %v1190, %v1190
      %v1223 = vpack.c.bf16 %v1191, %v1191
      %v1224 = vpack.c.bf16 %v1192, %v1192
      %v1225 = vpack.c.bf16 %v1193, %v1193
      %v1226 = vpack.c.bf16 %v1194, %v1194
      %v1227 = vpack.c.bf16 %v1195, %v1195
      %1260 = vrot.lane.b32.xlu0 %v1196, 24
      %v1261 = vpop.permute.xlu0 %1260
      %1262 = vrot.lane.b32.xlu0 %v1197, 24
      %v1263 = vpop.permute.xlu0 %1262
      %1264 = vrot.lane.b32.xlu0 %v1198, 24
      %v1265 = vpop.permute.xlu0 %1264
      %1266 = vrot.lane.b32.xlu0 %v1199, 24
      %v1267 = vpop.permute.xlu0 %1266
      %1268 = vrot.lane.b32.xlu0 %v1200, 24
      %v1269 = vpop.permute.xlu0 %1268
      %1270 = vrot.lane.b32.xlu0 %v1201, 24
      %v1271 = vpop.permute.xlu0 %1270
      %1272 = vrot.lane.b32.xlu0 %v1202, 24
      %v1273 = vpop.permute.xlu0 %1272
      %1274 = vrot.lane.b32.xlu0 %v1203, 24
      %v1275 = vpop.permute.xlu0 %1274
      %1276 = vrot.lane.b32.xlu0 %v1204, 24
      %v1277 = vpop.permute.xlu0 %1276
      %1278 = vrot.lane.b32.xlu0 %v1205, 24
      %v1279 = vpop.permute.xlu0 %1278
      %1280 = vrot.lane.b32.xlu0 %v1206, 24
      %v1281 = vpop.permute.xlu0 %1280
      %1282 = vrot.lane.b32.xlu0 %v1207, 24
      %v1283 = vpop.permute.xlu0 %1282
      %1284 = vrot.lane.b32.xlu0 %v1208, 24
      %v1285 = vpop.permute.xlu0 %1284
      %1286 = vrot.lane.b32.xlu0 %v1209, 24
      %v1287 = vpop.permute.xlu0 %1286
      %1288 = vrot.lane.b32.xlu0 %v1210, 24
      %v1289 = vpop.permute.xlu0 %1288
      %1290 = vrot.lane.b32.xlu0 %v1211, 24
      %v1291 = vpop.permute.xlu0 %1290
      %1292 = vrot.lane.b32.xlu0 %v1212, 24
      %v1293 = vpop.permute.xlu0 %1292
      %1294 = vrot.lane.b32.xlu0 %v1213, 24
      %v1295 = vpop.permute.xlu0 %1294
      %1296 = vrot.lane.b32.xlu0 %v1214, 24
      %v1297 = vpop.permute.xlu0 %1296
      %1298 = vrot.lane.b32.xlu0 %v1215, 24
      %v1299 = vpop.permute.xlu0 %1298
      %1300 = vrot.lane.b32.xlu0 %v1216, 24
      %v1301 = vpop.permute.xlu0 %1300
      %1302 = vrot.lane.b32.xlu0 %v1217, 24
      %v1303 = vpop.permute.xlu0 %1302
      %1304 = vrot.lane.b32.xlu0 %v1218, 24
      %v1305 = vpop.permute.xlu0 %1304
      %1306 = vrot.lane.b32.xlu0 %v1219, 24
      %v1307 = vpop.permute.xlu0 %1306
      %1308 = vrot.lane.b32.xlu0 %v1220, 24
      %v1309 = vpop.permute.xlu0 %1308
      %1310 = vrot.lane.b32.xlu0 %v1221, 24
      %v1311 = vpop.permute.xlu0 %1310
      %1312 = vrot.lane.b32.xlu0 %v1222, 24
      %v1313 = vpop.permute.xlu0 %1312
      %1314 = vrot.lane.b32.xlu0 %v1223, 24
      %v1315 = vpop.permute.xlu0 %1314
      %1316 = vrot.lane.b32.xlu0 %v1224, 24
      %v1317 = vpop.permute.xlu0 %1316
      %1318 = vrot.lane.b32.xlu0 %v1225, 24
      %v1319 = vpop.permute.xlu0 %1318
      %1320 = vrot.lane.b32.xlu0 %v1226, 24
      %v1321 = vpop.permute.xlu0 %1320
      %1322 = vrot.lane.b32.xlu0 %v1227, 24
      %v1323 = vpop.permute.xlu0 %1322
      %vm1356 = vcmask 257216
      %1357 = vst.msk [vmem:[#allocation3] sm:$0xf] %vm1356, %v1261
      %1358 = vst.msk [vmem:[#allocation3 + $0x4] sm:$0xf] %vm1356, %v1263
      %1359 = vst.msk [vmem:[#allocation3 + $0x8] sm:$0xf] %vm1356, %v1265
      %1360 = vst.msk [vmem:[#allocation3 + $0xc] sm:$0xf] %vm1356, %v1267
      %1361 = vst.msk [vmem:[#allocation3 + $0x10] sm:$0xf] %vm1356, %v1269
      %1362 = vst.msk [vmem:[#allocation3 + $0x14] sm:$0xf] %vm1356, %v1271
      %1363 = vst.msk [vmem:[#allocation3 + $0x18] sm:$0xf] %vm1356, %v1273
      %1364 = vst.msk [vmem:[#allocation3 + $0x1c] sm:$0xf] %vm1356, %v1275
      %1365 = vst.msk [vmem:[#allocation3 + $0x20] sm:$0xf] %vm1356, %v1277
      %1366 = vst.msk [vmem:[#allocation3 + $0x24] sm:$0xf] %vm1356, %v1279
      %1367 = vst.msk [vmem:[#allocation3 + $0x28] sm:$0xf] %vm1356, %v1281
      %1368 = vst.msk [vmem:[#allocation3 + $0x2c] sm:$0xf] %vm1356, %v1283
      %1369 = vst.msk [vmem:[#allocation3 + $0x30] sm:$0xf] %vm1356, %v1285
      %1370 = vst.msk [vmem:[#allocation3 + $0x34] sm:$0xf] %vm1356, %v1287
      %1371 = vst.msk [vmem:[#allocation3 + $0x38] sm:$0xf] %vm1356, %v1289
      %1372 = vst.msk [vmem:[#allocation3 + $0x3c] sm:$0xf] %vm1356, %v1291
      %1373 = vst.msk [vmem:[#allocation3 + $0x40] sm:$0xf] %vm1356, %v1293
      %1374 = vst.msk [vmem:[#allocation3 + $0x44] sm:$0xf] %vm1356, %v1295
      %1375 = vst.msk [vmem:[#allocation3 + $0x48] sm:$0xf] %vm1356, %v1297
      %1376 = vst.msk [vmem:[#allocation3 + $0x4c] sm:$0xf] %vm1356, %v1299
      %1377 = vst.msk [vmem:[#allocation3 + $0x50] sm:$0xf] %vm1356, %v1301
      %1378 = vst.msk [vmem:[#allocation3 + $0x54] sm:$0xf] %vm1356, %v1303
      %1379 = vst.msk [vmem:[#allocation3 + $0x58] sm:$0xf] %vm1356, %v1305
      %1380 = vst.msk [vmem:[#allocation3 + $0x5c] sm:$0xf] %vm1356, %v1307
      %1381 = vst.msk [vmem:[#allocation3 + $0x60] sm:$0xf] %vm1356, %v1309
      %1382 = vst.msk [vmem:[#allocation3 + $0x64] sm:$0xf] %vm1356, %v1311
      %1383 = vst.msk [vmem:[#allocation3 + $0x68] sm:$0xf] %vm1356, %v1313
      %1384 = vst.msk [vmem:[#allocation3 + $0x6c] sm:$0xf] %vm1356, %v1315
      %1385 = vst.msk [vmem:[#allocation3 + $0x70] sm:$0xf] %vm1356, %v1317
      %1386 = vst.msk [vmem:[#allocation3 + $0x74] sm:$0xf] %vm1356, %v1319
      %1387 = vst.msk [vmem:[#allocation3 + $0x78] sm:$0xf] %vm1356, %v1321
      %1388 = vst.msk [vmem:[#allocation3 + $0x7c] sm:$0xf] %vm1356, %v1323
      %v1389 = vld [vmem:[%s584 + $0x1] sm:$0xff]
      %v1390 = vld [vmem:[%s584 + $0x9] sm:$0xff]
      %v1391 = vld [vmem:[%s584 + $0x19] sm:$0xff]
      %v1392 = vld [vmem:[%s584 + $0x21] sm:$0xff]
      %v1393 = vld [vmem:[%s584 + $0x31] sm:$0xff]
      %v1394 = vld [vmem:[%s584 + $0x39] sm:$0xff]
      %v1395 = vld [vmem:[%s584 + $0x49] sm:$0xff]
      %v1396 = vld [vmem:[%s584 + $0x51] sm:$0xff]
      %v1397 = vld [vmem:[%s584 + $0x61] sm:$0xff]
      %v1398 = vld [vmem:[%s584 + $0x69] sm:$0xff]
      %v1399 = vld [vmem:[%s584 + $0x79] sm:$0xff]
      %v1400 = vld [vmem:[%s584 + $0x81] sm:$0xff]
      %v1401 = vld [vmem:[%s584 + $0x91] sm:$0xff]
      %v1402 = vld [vmem:[%s584 + $0x99] sm:$0xff]
      %v1403 = vld [vmem:[%s584 + $0xa9] sm:$0xff]
      %v1404 = vld [vmem:[%s584 + $0xb1] sm:$0xff]
      %v1405 = vld [vmem:[%s584 + $0xc1] sm:$0xff]
      %v1406 = vld [vmem:[%s584 + $0xc9] sm:$0xff]
      %v1407 = vld [vmem:[%s584 + $0xd9] sm:$0xff]
      %v1408 = vld [vmem:[%s584 + $0xe1] sm:$0xff]
      %v1409 = vld [vmem:[%s584 + $0xf1] sm:$0xff]
      %v1410 = vld [vmem:[%s584 + $0xf9] sm:$0xff]
      %v1411 = vld [vmem:[%s584 + $0x109] sm:$0xff]
      %v1412 = vld [vmem:[%s584 + $0x111] sm:$0xff]
      %v1413 = vld [vmem:[%s584 + $0x121] sm:$0xff]
      %v1414 = vld [vmem:[%s584 + $0x129] sm:$0xff]
      %v1415 = vld [vmem:[%s584 + $0x139] sm:$0xff]
      %v1416 = vld [vmem:[%s584 + $0x141] sm:$0xff]
      %v1417 = vld [vmem:[%s584 + $0x151] sm:$0xff]
      %v1418 = vld [vmem:[%s584 + $0x159] sm:$0xff]
      %v1419 = vld [vmem:[%s584 + $0x169] sm:$0xff]
      %v1420 = vld [vmem:[%s584 + $0x171] sm:$0xff]
      %v1421 = vpack.c.bf16 %v1389, %v1389
      %v1422 = vpack.c.bf16 %v1390, %v1390
      %v1423 = vpack.c.bf16 %v1391, %v1391
      %v1424 = vpack.c.bf16 %v1392, %v1392
      %v1425 = vpack.c.bf16 %v1393, %v1393
      %v1426 = vpack.c.bf16 %v1394, %v1394
      %v1427 = vpack.c.bf16 %v1395, %v1395
      %v1428 = vpack.c.bf16 %v1396, %v1396
      %v1429 = vpack.c.bf16 %v1397, %v1397
      %v1430 = vpack.c.bf16 %v1398, %v1398
      %v1431 = vpack.c.bf16 %v1399, %v1399
      %v1432 = vpack.c.bf16 %v1400, %v1400
      %v1433 = vpack.c.bf16 %v1401, %v1401
      %v1434 = vpack.c.bf16 %v1402, %v1402
      %v1435 = vpack.c.bf16 %v1403, %v1403
      %v1436 = vpack.c.bf16 %v1404, %v1404
      %v1437 = vpack.c.bf16 %v1405, %v1405
      %v1438 = vpack.c.bf16 %v1406, %v1406
      %v1439 = vpack.c.bf16 %v1407, %v1407
      %v1440 = vpack.c.bf16 %v1408, %v1408
      %v1441 = vpack.c.bf16 %v1409, %v1409
      %v1442 = vpack.c.bf16 %v1410, %v1410
      %v1443 = vpack.c.bf16 %v1411, %v1411
      %v1444 = vpack.c.bf16 %v1412, %v1412
      %v1445 = vpack.c.bf16 %v1413, %v1413
      %v1446 = vpack.c.bf16 %v1414, %v1414
      %v1447 = vpack.c.bf16 %v1415, %v1415
      %v1448 = vpack.c.bf16 %v1416, %v1416
      %v1449 = vpack.c.bf16 %v1417, %v1417
      %v1450 = vpack.c.bf16 %v1418, %v1418
      %v1451 = vpack.c.bf16 %v1419, %v1419
      %v1452 = vpack.c.bf16 %v1420, %v1420
      %1485 = vrot.lane.b32.xlu0 %v1421, 32
      %v1486 = vpop.permute.xlu0 %1485
      %1487 = vrot.lane.b32.xlu0 %v1422, 32
      %v1488 = vpop.permute.xlu0 %1487
      %1489 = vrot.lane.b32.xlu0 %v1423, 32
      %v1490 = vpop.permute.xlu0 %1489
      %1491 = vrot.lane.b32.xlu0 %v1424, 32
      %v1492 = vpop.permute.xlu0 %1491
      %1493 = vrot.lane.b32.xlu0 %v1425, 32
      %v1494 = vpop.permute.xlu0 %1493
      %1495 = vrot.lane.b32.xlu0 %v1426, 32
      %v1496 = vpop.permute.xlu0 %1495
      %1497 = vrot.lane.b32.xlu0 %v1427, 32
      %v1498 = vpop.permute.xlu0 %1497
      %1499 = vrot.lane.b32.xlu0 %v1428, 32
      %v1500 = vpop.permute.xlu0 %1499
      %1501 = vrot.lane.b32.xlu0 %v1429, 32
      %v1502 = vpop.permute.xlu0 %1501
      %1503 = vrot.lane.b32.xlu0 %v1430, 32
      %v1504 = vpop.permute.xlu0 %1503
      %1505 = vrot.lane.b32.xlu0 %v1431, 32
      %v1506 = vpop.permute.xlu0 %1505
      %1507 = vrot.lane.b32.xlu0 %v1432, 32
      %v1508 = vpop.permute.xlu0 %1507
      %1509 = vrot.lane.b32.xlu0 %v1433, 32
      %v1510 = vpop.permute.xlu0 %1509
      %1511 = vrot.lane.b32.xlu0 %v1434, 32
      %v1512 = vpop.permute.xlu0 %1511
      %1513 = vrot.lane.b32.xlu0 %v1435, 32
      %v1514 = vpop.permute.xlu0 %1513
      %1515 = vrot.lane.b32.xlu0 %v1436, 32
      %v1516 = vpop.permute.xlu0 %1515
      %1517 = vrot.lane.b32.xlu0 %v1437, 32
      %v1518 = vpop.permute.xlu0 %1517
      %1519 = vrot.lane.b32.xlu0 %v1438, 32
      %v1520 = vpop.permute.xlu0 %1519
      %1521 = vrot.lane.b32.xlu0 %v1439, 32
      %v1522 = vpop.permute.xlu0 %1521
      %1523 = vrot.lane.b32.xlu0 %v1440, 32
      %v1524 = vpop.permute.xlu0 %1523
      %1525 = vrot.lane.b32.xlu0 %v1441, 32
      %v1526 = vpop.permute.xlu0 %1525
      %1527 = vrot.lane.b32.xlu0 %v1442, 32
      %v1528 = vpop.permute.xlu0 %1527
      %1529 = vrot.lane.b32.xlu0 %v1443, 32
      %v1530 = vpop.permute.xlu0 %1529
      %1531 = vrot.lane.b32.xlu0 %v1444, 32
      %v1532 = vpop.permute.xlu0 %1531
      %1533 = vrot.lane.b32.xlu0 %v1445, 32
      %v1534 = vpop.permute.xlu0 %1533
      %1535 = vrot.lane.b32.xlu0 %v1446, 32
      %v1536 = vpop.permute.xlu0 %1535
      %1537 = vrot.lane.b32.xlu0 %v1447, 32
      %v1538 = vpop.permute.xlu0 %1537
      %1539 = vrot.lane.b32.xlu0 %v1448, 32
      %v1540 = vpop.permute.xlu0 %1539
      %1541 = vrot.lane.b32.xlu0 %v1449, 32
      %v1542 = vpop.permute.xlu0 %1541
      %1543 = vrot.lane.b32.xlu0 %v1450, 32
      %v1544 = vpop.permute.xlu0 %1543
      %1545 = vrot.lane.b32.xlu0 %v1451, 32
      %v1546 = vpop.permute.xlu0 %1545
      %1547 = vrot.lane.b32.xlu0 %v1452, 32
      %v1548 = vpop.permute.xlu0 %1547
      %vm1581 = vcmask 322816
      %1582 = vst.msk [vmem:[#allocation3] sm:$0xf] %vm1581, %v1486
      %1583 = vst.msk [vmem:[#allocation3 + $0x4] sm:$0xf] %vm1581, %v1488
      %1584 = vst.msk [vmem:[#allocation3 + $0x8] sm:$0xf] %vm1581, %v1490
      %1585 = vst.msk [vmem:[#allocation3 + $0xc] sm:$0xf] %vm1581, %v1492
      %1586 = vst.msk [vmem:[#allocation3 + $0x10] sm:$0xf] %vm1581, %v1494
      %1587 = vst.msk [vmem:[#allocation3 + $0x14] sm:$0xf] %vm1581, %v1496
      %1588 = vst.msk [vmem:[#allocation3 + $0x18] sm:$0xf] %vm1581, %v1498
      %1589 = vst.msk [vmem:[#allocation3 + $0x1c] sm:$0xf] %vm1581, %v1500
      %1590 = vst.msk [vmem:[#allocation3 + $0x20] sm:$0xf] %vm1581, %v1502
      %1591 = vst.msk [vmem:[#allocation3 + $0x24] sm:$0xf] %vm1581, %v1504
      %1592 = vst.msk [vmem:[#allocation3 + $0x28] sm:$0xf] %vm1581, %v1506
      %1593 = vst.msk [vmem:[#allocation3 + $0x2c] sm:$0xf] %vm1581, %v1508
      %1594 = vst.msk [vmem:[#allocation3 + $0x30] sm:$0xf] %vm1581, %v1510
      %1595 = vst.msk [vmem:[#allocation3 + $0x34] sm:$0xf] %vm1581, %v1512
      %1596 = vst.msk [vmem:[#allocation3 + $0x38] sm:$0xf] %vm1581, %v1514
      %1597 = vst.msk [vmem:[#allocation3 + $0x3c] sm:$0xf] %vm1581, %v1516
      %1598 = vst.msk [vmem:[#allocation3 + $0x40] sm:$0xf] %vm1581, %v1518
      %1599 = vst.msk [vmem:[#allocation3 + $0x44] sm:$0xf] %vm1581, %v1520
      %1600 = vst.msk [vmem:[#allocation3 + $0x48] sm:$0xf] %vm1581, %v1522
      %1601 = vst.msk [vmem:[#allocation3 + $0x4c] sm:$0xf] %vm1581, %v1524
      %1602 = vst.msk [vmem:[#allocation3 + $0x50] sm:$0xf] %vm1581, %v1526
      %1603 = vst.msk [vmem:[#allocation3 + $0x54] sm:$0xf] %vm1581, %v1528
      %1604 = vst.msk [vmem:[#allocation3 + $0x58] sm:$0xf] %vm1581, %v1530
      %1605 = vst.msk [vmem:[#allocation3 + $0x5c] sm:$0xf] %vm1581, %v1532
      %1606 = vst.msk [vmem:[#allocation3 + $0x60] sm:$0xf] %vm1581, %v1534
      %1607 = vst.msk [vmem:[#allocation3 + $0x64] sm:$0xf] %vm1581, %v1536
      %1608 = vst.msk [vmem:[#allocation3 + $0x68] sm:$0xf] %vm1581, %v1538
      %1609 = vst.msk [vmem:[#allocation3 + $0x6c] sm:$0xf] %vm1581, %v1540
      %1610 = vst.msk [vmem:[#allocation3 + $0x70] sm:$0xf] %vm1581, %v1542
      %1611 = vst.msk [vmem:[#allocation3 + $0x74] sm:$0xf] %vm1581, %v1544
      %1612 = vst.msk [vmem:[#allocation3 + $0x78] sm:$0xf] %vm1581, %v1546
      %1613 = vst.msk [vmem:[#allocation3 + $0x7c] sm:$0xf] %vm1581, %v1548
      %v1614 = vld [vmem:[%s584 + $0x2] sm:$0xff]
      %v1615 = vld [vmem:[%s584 + $0xa] sm:$0xff]
      %v1616 = vld [vmem:[%s584 + $0x1a] sm:$0xff]
      %v1617 = vld [vmem:[%s584 + $0x22] sm:$0xff]
      %v1618 = vld [vmem:[%s584 + $0x32] sm:$0xff]
      %v1619 = vld [vmem:[%s584 + $0x3a] sm:$0xff]
      %v1620 = vld [vmem:[%s584 + $0x4a] sm:$0xff]
      %v1621 = vld [vmem:[%s584 + $0x52] sm:$0xff]
      %v1622 = vld [vmem:[%s584 + $0x62] sm:$0xff]
      %v1623 = vld [vmem:[%s584 + $0x6a] sm:$0xff]
      %v1624 = vld [vmem:[%s584 + $0x7a] sm:$0xff]
      %v1625 = vld [vmem:[%s584 + $0x82] sm:$0xff]
      %v1626 = vld [vmem:[%s584 + $0x92] sm:$0xff]
      %v1627 = vld [vmem:[%s584 + $0x9a] sm:$0xff]
      %v1628 = vld [vmem:[%s584 + $0xaa] sm:$0xff]
      %v1629 = vld [vmem:[%s584 + $0xb2] sm:$0xff]
      %v1630 = vld [vmem:[%s584 + $0xc2] sm:$0xff]
      %v1631 = vld [vmem:[%s584 + $0xca] sm:$0xff]
      %v1632 = vld [vmem:[%s584 + $0xda] sm:$0xff]
      %v1633 = vld [vmem:[%s584 + $0xe2] sm:$0xff]
      %v1634 = vld [vmem:[%s584 + $0xf2] sm:$0xff]
      %v1635 = vld [vmem:[%s584 + $0xfa] sm:$0xff]
      %v1636 = vld [vmem:[%s584 + $0x10a] sm:$0xff]
      %v1637 = vld [vmem:[%s584 + $0x112] sm:$0xff]
      %v1638 = vld [vmem:[%s584 + $0x122] sm:$0xff]
      %v1639 = vld [vmem:[%s584 + $0x12a] sm:$0xff]
      %v1640 = vld [vmem:[%s584 + $0x13a] sm:$0xff]
      %v1641 = vld [vmem:[%s584 + $0x142] sm:$0xff]
      %v1642 = vld [vmem:[%s584 + $0x152] sm:$0xff]
      %v1643 = vld [vmem:[%s584 + $0x15a] sm:$0xff]
      %v1644 = vld [vmem:[%s584 + $0x16a] sm:$0xff]
      %v1645 = vld [vmem:[%s584 + $0x172] sm:$0xff]
      %v1646 = vpack.c.bf16 %v1614, %v1614
      %v1647 = vpack.c.bf16 %v1615, %v1615
      %v1648 = vpack.c.bf16 %v1616, %v1616
      %v1649 = vpack.c.bf16 %v1617, %v1617
      %v1650 = vpack.c.bf16 %v1618, %v1618
      %v1651 = vpack.c.bf16 %v1619, %v1619
      %v1652 = vpack.c.bf16 %v1620, %v1620
      %v1653 = vpack.c.bf16 %v1621, %v1621
      %v1654 = vpack.c.bf16 %v1622, %v1622
      %v1655 = vpack.c.bf16 %v1623, %v1623
      %v1656 = vpack.c.bf16 %v1624, %v1624
      %v1657 = vpack.c.bf16 %v1625, %v1625
      %v1658 = vpack.c.bf16 %v1626, %v1626
      %v1659 = vpack.c.bf16 %v1627, %v1627
      %v1660 = vpack.c.bf16 %v1628, %v1628
      %v1661 = vpack.c.bf16 %v1629, %v1629
      %v1662 = vpack.c.bf16 %v1630, %v1630
      %v1663 = vpack.c.bf16 %v1631, %v1631
      %v1664 = vpack.c.bf16 %v1632, %v1632
      %v1665 = vpack.c.bf16 %v1633, %v1633
      %v1666 = vpack.c.bf16 %v1634, %v1634
      %v1667 = vpack.c.bf16 %v1635, %v1635
      %v1668 = vpack.c.bf16 %v1636, %v1636
      %v1669 = vpack.c.bf16 %v1637, %v1637
      %v1670 = vpack.c.bf16 %v1638, %v1638
      %v1671 = vpack.c.bf16 %v1639, %v1639
      %v1672 = vpack.c.bf16 %v1640, %v1640
      %v1673 = vpack.c.bf16 %v1641, %v1641
      %v1674 = vpack.c.bf16 %v1642, %v1642
      %v1675 = vpack.c.bf16 %v1643, %v1643
      %v1676 = vpack.c.bf16 %v1644, %v1644
      %v1677 = vpack.c.bf16 %v1645, %v1645
      %1710 = vrot.lane.b32.xlu0 %v1646, 40
      %v1711 = vpop.permute.xlu0 %1710
      %1712 = vrot.lane.b32.xlu0 %v1647, 40
      %v1713 = vpop.permute.xlu0 %1712
      %1714 = vrot.lane.b32.xlu0 %v1648, 40
      %v1715 = vpop.permute.xlu0 %1714
      %1716 = vrot.lane.b32.xlu0 %v1649, 40
      %v1717 = vpop.permute.xlu0 %1716
      %1718 = vrot.lane.b32.xlu0 %v1650, 40
      %v1719 = vpop.permute.xlu0 %1718
      %1720 = vrot.lane.b32.xlu0 %v1651, 40
      %v1721 = vpop.permute.xlu0 %1720
      %1722 = vrot.lane.b32.xlu0 %v1652, 40
      %v1723 = vpop.permute.xlu0 %1722
      %1724 = vrot.lane.b32.xlu0 %v1653, 40
      %v1725 = vpop.permute.xlu0 %1724
      %1726 = vrot.lane.b32.xlu0 %v1654, 40
      %v1727 = vpop.permute.xlu0 %1726
      %1728 = vrot.lane.b32.xlu0 %v1655, 40
      %v1729 = vpop.permute.xlu0 %1728
      %1730 = vrot.lane.b32.xlu0 %v1656, 40
      %v1731 = vpop.permute.xlu0 %1730
      %1732 = vrot.lane.b32.xlu0 %v1657, 40
      %v1733 = vpop.permute.xlu0 %1732
      %1734 = vrot.lane.b32.xlu0 %v1658, 40
      %v1735 = vpop.permute.xlu0 %1734
      %1736 = vrot.lane.b32.xlu0 %v1659, 40
      %v1737 = vpop.permute.xlu0 %1736
      %1738 = vrot.lane.b32.xlu0 %v1660, 40
      %v1739 = vpop.permute.xlu0 %1738
      %1740 = vrot.lane.b32.xlu0 %v1661, 40
      %v1741 = vpop.permute.xlu0 %1740
      %1742 = vrot.lane.b32.xlu0 %v1662, 40
      %v1743 = vpop.permute.xlu0 %1742
      %1744 = vrot.lane.b32.xlu0 %v1663, 40
      %v1745 = vpop.permute.xlu0 %1744
      %1746 = vrot.lane.b32.xlu0 %v1664, 40
      %v1747 = vpop.permute.xlu0 %1746
      %1748 = vrot.lane.b32.xlu0 %v1665, 40
      %v1749 = vpop.permute.xlu0 %1748
      %1750 = vrot.lane.b32.xlu0 %v1666, 40
      %v1751 = vpop.permute.xlu0 %1750
      %1752 = vrot.lane.b32.xlu0 %v1667, 40
      %v1753 = vpop.permute.xlu0 %1752
      %1754 = vrot.lane.b32.xlu0 %v1668, 40
      %v1755 = vpop.permute.xlu0 %1754
      %1756 = vrot.lane.b32.xlu0 %v1669, 40
      %v1757 = vpop.permute.xlu0 %1756
      %1758 = vrot.lane.b32.xlu0 %v1670, 40
      %v1759 = vpop.permute.xlu0 %1758
      %1760 = vrot.lane.b32.xlu0 %v1671, 40
      %v1761 = vpop.permute.xlu0 %1760
      %1762 = vrot.lane.b32.xlu0 %v1672, 40
      %v1763 = vpop.permute.xlu0 %1762
      %1764 = vrot.lane.b32.xlu0 %v1673, 40
      %v1765 = vpop.permute.xlu0 %1764
      %1766 = vrot.lane.b32.xlu0 %v1674, 40
      %v1767 = vpop.permute.xlu0 %1766
      %1768 = vrot.lane.b32.xlu0 %v1675, 40
      %v1769 = vpop.permute.xlu0 %1768
      %1770 = vrot.lane.b32.xlu0 %v1676, 40
      %v1771 = vpop.permute.xlu0 %1770
      %1772 = vrot.lane.b32.xlu0 %v1677, 40
      %v1773 = vpop.permute.xlu0 %1772
      %vm1806 = vcmask 388416
      %1807 = vst.msk [vmem:[#allocation3] sm:$0xf] %vm1806, %v1711
      %1808 = vst.msk [vmem:[#allocation3 + $0x4] sm:$0xf] %vm1806, %v1713
      %1809 = vst.msk [vmem:[#allocation3 + $0x8] sm:$0xf] %vm1806, %v1715
      %1810 = vst.msk [vmem:[#allocation3 + $0xc] sm:$0xf] %vm1806, %v1717
      %1811 = vst.msk [vmem:[#allocation3 + $0x10] sm:$0xf] %vm1806, %v1719
      %1812 = vst.msk [vmem:[#allocation3 + $0x14] sm:$0xf] %vm1806, %v1721
      %1813 = vst.msk [vmem:[#allocation3 + $0x18] sm:$0xf] %vm1806, %v1723
      %1814 = vst.msk [vmem:[#allocation3 + $0x1c] sm:$0xf] %vm1806, %v1725
      %1815 = vst.msk [vmem:[#allocation3 + $0x20] sm:$0xf] %vm1806, %v1727
      %1816 = vst.msk [vmem:[#allocation3 + $0x24] sm:$0xf] %vm1806, %v1729
      %1817 = vst.msk [vmem:[#allocation3 + $0x28] sm:$0xf] %vm1806, %v1731
      %1818 = vst.msk [vmem:[#allocation3 + $0x2c] sm:$0xf] %vm1806, %v1733
      %1819 = vst.msk [vmem:[#allocation3 + $0x30] sm:$0xf] %vm1806, %v1735
      %1820 = vst.msk [vmem:[#allocation3 + $0x34] sm:$0xf] %vm1806, %v1737
      %1821 = vst.msk [vmem:[#allocation3 + $0x38] sm:$0xf] %vm1806, %v1739
      %1822 = vst.msk [vmem:[#allocation3 + $0x3c] sm:$0xf] %vm1806, %v1741
      %1823 = vst.msk [vmem:[#allocation3 + $0x40] sm:$0xf] %vm1806, %v1743
      %1824 = vst.msk [vmem:[#allocation3 + $0x44] sm:$0xf] %vm1806, %v1745
      %1825 = vst.msk [vmem:[#allocation3 + $0x48] sm:$0xf] %vm1806, %v1747
      %1826 = vst.msk [vmem:[#allocation3 + $0x4c] sm:$0xf] %vm1806, %v1749
      %1827 = vst.msk [vmem:[#allocation3 + $0x50] sm:$0xf] %vm1806, %v1751
      %1828 = vst.msk [vmem:[#allocation3 + $0x54] sm:$0xf] %vm1806, %v1753
      %1829 = vst.msk [vmem:[#allocation3 + $0x58] sm:$0xf] %vm1806, %v1755
      %1830 = vst.msk [vmem:[#allocation3 + $0x5c] sm:$0xf] %vm1806, %v1757
      %1831 = vst.msk [vmem:[#allocation3 + $0x60] sm:$0xf] %vm1806, %v1759
      %1832 = vst.msk [vmem:[#allocation3 + $0x64] sm:$0xf] %vm1806, %v1761
      %1833 = vst.msk [vmem:[#allocation3 + $0x68] sm:$0xf] %vm1806, %v1763
      %1834 = vst.msk [vmem:[#allocation3 + $0x6c] sm:$0xf] %vm1806, %v1765
      %1835 = vst.msk [vmem:[#allocation3 + $0x70] sm:$0xf] %vm1806, %v1767
      %1836 = vst.msk [vmem:[#allocation3 + $0x74] sm:$0xf] %vm1806, %v1769
      %1837 = vst.msk [vmem:[#allocation3 + $0x78] sm:$0xf] %vm1806, %v1771
      %1838 = vst.msk [vmem:[#allocation3 + $0x7c] sm:$0xf] %vm1806, %v1773
      %s1839 = scalar_lea.vmem [#allocation2], 48
      %v1840 = vld [vmem:[%s1839] sm:$0xff]
      %v1841 = vld [vmem:[%s1839 + $0x8] sm:$0xff]
      %v1842 = vld [vmem:[%s1839 + $0x18] sm:$0xff]
      %v1843 = vld [vmem:[%s1839 + $0x20] sm:$0xff]
      %v1844 = vld [vmem:[%s1839 + $0x30] sm:$0xff]
      %v1845 = vld [vmem:[%s1839 + $0x38] sm:$0xff]
      %v1846 = vld [vmem:[%s1839 + $0x48] sm:$0xff]
      %v1847 = vld [vmem:[%s1839 + $0x50] sm:$0xff]
      %v1848 = vld [vmem:[%s1839 + $0x60] sm:$0xff]
      %v1849 = vld [vmem:[%s1839 + $0x68] sm:$0xff]
      %v1850 = vld [vmem:[%s1839 + $0x78] sm:$0xff]
      %v1851 = vld [vmem:[%s1839 + $0x80] sm:$0xff]
      %v1852 = vld [vmem:[%s1839 + $0x90] sm:$0xff]
      %v1853 = vld [vmem:[%s1839 + $0x98] sm:$0xff]
      %v1854 = vld [vmem:[%s1839 + $0xa8] sm:$0xff]
      %v1855 = vld [vmem:[%s1839 + $0xb0] sm:$0xff]
      %v1856 = vld [vmem:[%s1839 + $0xc0] sm:$0xff]
      %v1857 = vld [vmem:[%s1839 + $0xc8] sm:$0xff]
      %v1858 = vld [vmem:[%s1839 + $0xd8] sm:$0xff]
      %v1859 = vld [vmem:[%s1839 + $0xe0] sm:$0xff]
      %v1860 = vld [vmem:[%s1839 + $0xf0] sm:$0xff]
      %v1861 = vld [vmem:[%s1839 + $0xf8] sm:$0xff]
      %v1862 = vld [vmem:[%s1839 + $0x108] sm:$0xff]
      %v1863 = vld [vmem:[%s1839 + $0x110] sm:$0xff]
      %v1864 = vld [vmem:[%s1839 + $0x120] sm:$0xff]
      %v1865 = vld [vmem:[%s1839 + $0x128] sm:$0xff]
      %v1866 = vld [vmem:[%s1839 + $0x138] sm:$0xff]
      %v1867 = vld [vmem:[%s1839 + $0x140] sm:$0xff]
      %v1868 = vld [vmem:[%s1839 + $0x150] sm:$0xff]
      %v1869 = vld [vmem:[%s1839 + $0x158] sm:$0xff]
      %v1870 = vld [vmem:[%s1839 + $0x168] sm:$0xff]
      %v1871 = vld [vmem:[%s1839 + $0x170] sm:$0xff]
      %v1872 = vpack.c.bf16 %v1840, %v1840
      %v1873 = vpack.c.bf16 %v1841, %v1841
      %v1874 = vpack.c.bf16 %v1842, %v1842
      %v1875 = vpack.c.bf16 %v1843, %v1843
      %v1876 = vpack.c.bf16 %v1844, %v1844
      %v1877 = vpack.c.bf16 %v1845, %v1845
      %v1878 = vpack.c.bf16 %v1846, %v1846
      %v1879 = vpack.c.bf16 %v1847, %v1847
      %v1880 = vpack.c.bf16 %v1848, %v1848
      %v1881 = vpack.c.bf16 %v1849, %v1849
      %v1882 = vpack.c.bf16 %v1850, %v1850
      %v1883 = vpack.c.bf16 %v1851, %v1851
      %v1884 = vpack.c.bf16 %v1852, %v1852
      %v1885 = vpack.c.bf16 %v1853, %v1853
      %v1886 = vpack.c.bf16 %v1854, %v1854
      %v1887 = vpack.c.bf16 %v1855, %v1855
      %v1888 = vpack.c.bf16 %v1856, %v1856
      %v1889 = vpack.c.bf16 %v1857, %v1857
      %v1890 = vpack.c.bf16 %v1858, %v1858
      %v1891 = vpack.c.bf16 %v1859, %v1859
      %v1892 = vpack.c.bf16 %v1860, %v1860
      %v1893 = vpack.c.bf16 %v1861, %v1861
      %v1894 = vpack.c.bf16 %v1862, %v1862
      %v1895 = vpack.c.bf16 %v1863, %v1863
      %v1896 = vpack.c.bf16 %v1864, %v1864
      %v1897 = vpack.c.bf16 %v1865, %v1865
      %v1898 = vpack.c.bf16 %v1866, %v1866
      %v1899 = vpack.c.bf16 %v1867, %v1867
      %v1900 = vpack.c.bf16 %v1868, %v1868
      %v1901 = vpack.c.bf16 %v1869, %v1869
      %v1902 = vpack.c.bf16 %v1870, %v1870
      %v1903 = vpack.c.bf16 %v1871, %v1871
      %1936 = vrot.lane.b32.xlu0 %v1872, 48
      %v1937 = vpop.permute.xlu0 %1936
      %1938 = vrot.lane.b32.xlu0 %v1873, 48
      %v1939 = vpop.permute.xlu0 %1938
      %1940 = vrot.lane.b32.xlu0 %v1874, 48
      %v1941 = vpop.permute.xlu0 %1940
      %1942 = vrot.lane.b32.xlu0 %v1875, 48
      %v1943 = vpop.permute.xlu0 %1942
      %1944 = vrot.lane.b32.xlu0 %v1876, 48
      %v1945 = vpop.permute.xlu0 %1944
      %1946 = vrot.lane.b32.xlu0 %v1877, 48
      %v1947 = vpop.permute.xlu0 %1946
      %1948 = vrot.lane.b32.xlu0 %v1878, 48
      %v1949 = vpop.permute.xlu0 %1948
      %1950 = vrot.lane.b32.xlu0 %v1879, 48
      %v1951 = vpop.permute.xlu0 %1950
      %1952 = vrot.lane.b32.xlu0 %v1880, 48
      %v1953 = vpop.permute.xlu0 %1952
      %1954 = vrot.lane.b32.xlu0 %v1881, 48
      %v1955 = vpop.permute.xlu0 %1954
      %1956 = vrot.lane.b32.xlu0 %v1882, 48
      %v1957 = vpop.permute.xlu0 %1956
      %1958 = vrot.lane.b32.xlu0 %v1883, 48
      %v1959 = vpop.permute.xlu0 %1958
      %1960 = vrot.lane.b32.xlu0 %v1884, 48
      %v1961 = vpop.permute.xlu0 %1960
      %1962 = vrot.lane.b32.xlu0 %v1885, 48
      %v1963 = vpop.permute.xlu0 %1962
      %1964 = vrot.lane.b32.xlu0 %v1886, 48
      %v1965 = vpop.permute.xlu0 %1964
      %1966 = vrot.lane.b32.xlu0 %v1887, 48
      %v1967 = vpop.permute.xlu0 %1966
      %1968 = vrot.lane.b32.xlu0 %v1888, 48
      %v1969 = vpop.permute.xlu0 %1968
      %1970 = vrot.lane.b32.xlu0 %v1889, 48
      %v1971 = vpop.permute.xlu0 %1970
      %1972 = vrot.lane.b32.xlu0 %v1890, 48
      %v1973 = vpop.permute.xlu0 %1972
      %1974 = vrot.lane.b32.xlu0 %v1891, 48
      %v1975 = vpop.permute.xlu0 %1974
      %1976 = vrot.lane.b32.xlu0 %v1892, 48
      %v1977 = vpop.permute.xlu0 %1976
      %1978 = vrot.lane.b32.xlu0 %v1893, 48
      %v1979 = vpop.permute.xlu0 %1978
      %1980 = vrot.lane.b32.xlu0 %v1894, 48
      %v1981 = vpop.permute.xlu0 %1980
      %1982 = vrot.lane.b32.xlu0 %v1895, 48
      %v1983 = vpop.permute.xlu0 %1982
      %1984 = vrot.lane.b32.xlu0 %v1896, 48
      %v1985 = vpop.permute.xlu0 %1984
      %1986 = vrot.lane.b32.xlu0 %v1897, 48
      %v1987 = vpop.permute.xlu0 %1986
      %1988 = vrot.lane.b32.xlu0 %v1898, 48
      %v1989 = vpop.permute.xlu0 %1988
      %1990 = vrot.lane.b32.xlu0 %v1899, 48
      %v1991 = vpop.permute.xlu0 %1990
      %1992 = vrot.lane.b32.xlu0 %v1900, 48
      %v1993 = vpop.permute.xlu0 %1992
      %1994 = vrot.lane.b32.xlu0 %v1901, 48
      %v1995 = vpop.permute.xlu0 %1994
      %1996 = vrot.lane.b32.xlu0 %v1902, 48
      %v1997 = vpop.permute.xlu0 %1996
      %1998 = vrot.lane.b32.xlu0 %v1903, 48
      %v1999 = vpop.permute.xlu0 %1998
      %vm2032 = vcmask 454016
      %2033 = vst.msk [vmem:[#allocation3] sm:$0xf] %vm2032, %v1937
      %2034 = vst.msk [vmem:[#allocation3 + $0x4] sm:$0xf] %vm2032, %v1939
      %2035 = vst.msk [vmem:[#allocation3 + $0x8] sm:$0xf] %vm2032, %v1941
      %2036 = vst.msk [vmem:[#allocation3 + $0xc] sm:$0xf] %vm2032, %v1943
      %2037 = vst.msk [vmem:[#allocation3 + $0x10] sm:$0xf] %vm2032, %v1945
      %2038 = vst.msk [vmem:[#allocation3 + $0x14] sm:$0xf] %vm2032, %v1947
      %2039 = vst.msk [vmem:[#allocation3 + $0x18] sm:$0xf] %vm2032, %v1949
      %2040 = vst.msk [vmem:[#allocation3 + $0x1c] sm:$0xf] %vm2032, %v1951
      %2041 = vst.msk [vmem:[#allocation3 + $0x20] sm:$0xf] %vm2032, %v1953
      %2042 = vst.msk [vmem:[#allocation3 + $0x24] sm:$0xf] %vm2032, %v1955
      %2043 = vst.msk [vmem:[#allocation3 + $0x28] sm:$0xf] %vm2032, %v1957
      %2044 = vst.msk [vmem:[#allocation3 + $0x2c] sm:$0xf] %vm2032, %v1959
      %2045 = vst.msk [vmem:[#allocation3 + $0x30] sm:$0xf] %vm2032, %v1961
      %2046 = vst.msk [vmem:[#allocation3 + $0x34] sm:$0xf] %vm2032, %v1963
      %2047 = vst.msk [vmem:[#allocation3 + $0x38] sm:$0xf] %vm2032, %v1965
      %2048 = vst.msk [vmem:[#allocation3 + $0x3c] sm:$0xf] %vm2032, %v1967
      %2049 = vst.msk [vmem:[#allocation3 + $0x40] sm:$0xf] %vm2032, %v1969
      %2050 = vst.msk [vmem:[#allocation3 + $0x44] sm:$0xf] %vm2032, %v1971
      %2051 = vst.msk [vmem:[#allocation3 + $0x48] sm:$0xf] %vm2032, %v1973
      %2052 = vst.msk [vmem:[#allocation3 + $0x4c] sm:$0xf] %vm2032, %v1975
      %2053 = vst.msk [vmem:[#allocation3 + $0x50] sm:$0xf] %vm2032, %v1977
      %2054 = vst.msk [vmem:[#allocation3 + $0x54] sm:$0xf] %vm2032, %v1979
      %2055 = vst.msk [vmem:[#allocation3 + $0x58] sm:$0xf] %vm2032, %v1981
      %2056 = vst.msk [vmem:[#allocation3 + $0x5c] sm:$0xf] %vm2032, %v1983
      %2057 = vst.msk [vmem:[#allocation3 + $0x60] sm:$0xf] %vm2032, %v1985
      %2058 = vst.msk [vmem:[#allocation3 + $0x64] sm:$0xf] %vm2032, %v1987
      %2059 = vst.msk [vmem:[#allocation3 + $0x68] sm:$0xf] %vm2032, %v1989
      %2060 = vst.msk [vmem:[#allocation3 + $0x6c] sm:$0xf] %vm2032, %v1991
      %2061 = vst.msk [vmem:[#allocation3 + $0x70] sm:$0xf] %vm2032, %v1993
      %2062 = vst.msk [vmem:[#allocation3 + $0x74] sm:$0xf] %vm2032, %v1995
      %2063 = vst.msk [vmem:[#allocation3 + $0x78] sm:$0xf] %vm2032, %v1997
      %2064 = vst.msk [vmem:[#allocation3 + $0x7c] sm:$0xf] %vm2032, %v1999
      %v2065 = vld [vmem:[%s1839 + $0x1] sm:$0xff]
      %v2066 = vld [vmem:[%s1839 + $0x9] sm:$0xff]
      %v2067 = vld [vmem:[%s1839 + $0x19] sm:$0xff]
      %v2068 = vld [vmem:[%s1839 + $0x21] sm:$0xff]
      %v2069 = vld [vmem:[%s1839 + $0x31] sm:$0xff]
      %v2070 = vld [vmem:[%s1839 + $0x39] sm:$0xff]
      %v2071 = vld [vmem:[%s1839 + $0x49] sm:$0xff]
      %v2072 = vld [vmem:[%s1839 + $0x51] sm:$0xff]
      %v2073 = vld [vmem:[%s1839 + $0x61] sm:$0xff]
      %v2074 = vld [vmem:[%s1839 + $0x69] sm:$0xff]
      %v2075 = vld [vmem:[%s1839 + $0x79] sm:$0xff]
      %v2076 = vld [vmem:[%s1839 + $0x81] sm:$0xff]
      %v2077 = vld [vmem:[%s1839 + $0x91] sm:$0xff]
      %v2078 = vld [vmem:[%s1839 + $0x99] sm:$0xff]
      %v2079 = vld [vmem:[%s1839 + $0xa9] sm:$0xff]
      %v2080 = vld [vmem:[%s1839 + $0xb1] sm:$0xff]
      %v2081 = vld [vmem:[%s1839 + $0xc1] sm:$0xff]
      %v2082 = vld [vmem:[%s1839 + $0xc9] sm:$0xff]
      %v2083 = vld [vmem:[%s1839 + $0xd9] sm:$0xff]
      %v2084 = vld [vmem:[%s1839 + $0xe1] sm:$0xff]
      %v2085 = vld [vmem:[%s1839 + $0xf1] sm:$0xff]
      %v2086 = vld [vmem:[%s1839 + $0xf9] sm:$0xff]
      %v2087 = vld [vmem:[%s1839 + $0x109] sm:$0xff]
      %v2088 = vld [vmem:[%s1839 + $0x111] sm:$0xff]
      %v2089 = vld [vmem:[%s1839 + $0x121] sm:$0xff]
      %v2090 = vld [vmem:[%s1839 + $0x129] sm:$0xff]
      %v2091 = vld [vmem:[%s1839 + $0x139] sm:$0xff]
      %v2092 = vld [vmem:[%s1839 + $0x141] sm:$0xff]
      %v2093 = vld [vmem:[%s1839 + $0x151] sm:$0xff]
      %v2094 = vld [vmem:[%s1839 + $0x159] sm:$0xff]
      %v2095 = vld [vmem:[%s1839 + $0x169] sm:$0xff]
      %v2096 = vld [vmem:[%s1839 + $0x171] sm:$0xff]
      %v2097 = vpack.c.bf16 %v2065, %v2065
      %v2098 = vpack.c.bf16 %v2066, %v2066
      %v2099 = vpack.c.bf16 %v2067, %v2067
      %v2100 = vpack.c.bf16 %v2068, %v2068
      %v2101 = vpack.c.bf16 %v2069, %v2069
      %v2102 = vpack.c.bf16 %v2070, %v2070
      %v2103 = vpack.c.bf16 %v2071, %v2071
      %v2104 = vpack.c.bf16 %v2072, %v2072
      %v2105 = vpack.c.bf16 %v2073, %v2073
      %v2106 = vpack.c.bf16 %v2074, %v2074
      %v2107 = vpack.c.bf16 %v2075, %v2075
      %v2108 = vpack.c.bf16 %v2076, %v2076
      %v2109 = vpack.c.bf16 %v2077, %v2077
      %v2110 = vpack.c.bf16 %v2078, %v2078
      %v2111 = vpack.c.bf16 %v2079, %v2079
      %v2112 = vpack.c.bf16 %v2080, %v2080
      %v2113 = vpack.c.bf16 %v2081, %v2081
      %v2114 = vpack.c.bf16 %v2082, %v2082
      %v2115 = vpack.c.bf16 %v2083, %v2083
      %v2116 = vpack.c.bf16 %v2084, %v2084
      %v2117 = vpack.c.bf16 %v2085, %v2085
      %v2118 = vpack.c.bf16 %v2086, %v2086
      %v2119 = vpack.c.bf16 %v2087, %v2087
      %v2120 = vpack.c.bf16 %v2088, %v2088
      %v2121 = vpack.c.bf16 %v2089, %v2089
      %v2122 = vpack.c.bf16 %v2090, %v2090
      %v2123 = vpack.c.bf16 %v2091, %v2091
      %v2124 = vpack.c.bf16 %v2092, %v2092
      %v2125 = vpack.c.bf16 %v2093, %v2093
      %v2126 = vpack.c.bf16 %v2094, %v2094
      %v2127 = vpack.c.bf16 %v2095, %v2095
      %v2128 = vpack.c.bf16 %v2096, %v2096
      %2161 = vrot.lane.b32.xlu0 %v2097, 56
      %v2162 = vpop.permute.xlu0 %2161
      %2163 = vrot.lane.b32.xlu0 %v2098, 56
      %v2164 = vpop.permute.xlu0 %2163
      %2165 = vrot.lane.b32.xlu0 %v2099, 56
      %v2166 = vpop.permute.xlu0 %2165
      %2167 = vrot.lane.b32.xlu0 %v2100, 56
      %v2168 = vpop.permute.xlu0 %2167
      %2169 = vrot.lane.b32.xlu0 %v2101, 56
      %v2170 = vpop.permute.xlu0 %2169
      %2171 = vrot.lane.b32.xlu0 %v2102, 56
      %v2172 = vpop.permute.xlu0 %2171
      %2173 = vrot.lane.b32.xlu0 %v2103, 56
      %v2174 = vpop.permute.xlu0 %2173
      %2175 = vrot.lane.b32.xlu0 %v2104, 56
      %v2176 = vpop.permute.xlu0 %2175
      %2177 = vrot.lane.b32.xlu0 %v2105, 56
      %v2178 = vpop.permute.xlu0 %2177
      %2179 = vrot.lane.b32.xlu0 %v2106, 56
      %v2180 = vpop.permute.xlu0 %2179
      %2181 = vrot.lane.b32.xlu0 %v2107, 56
      %v2182 = vpop.permute.xlu0 %2181
      %2183 = vrot.lane.b32.xlu0 %v2108, 56
      %v2184 = vpop.permute.xlu0 %2183
      %2185 = vrot.lane.b32.xlu0 %v2109, 56
      %v2186 = vpop.permute.xlu0 %2185
      %2187 = vrot.lane.b32.xlu0 %v2110, 56
      %v2188 = vpop.permute.xlu0 %2187
      %2189 = vrot.lane.b32.xlu0 %v2111, 56
      %v2190 = vpop.permute.xlu0 %2189
      %2191 = vrot.lane.b32.xlu0 %v2112, 56
      %v2192 = vpop.permute.xlu0 %2191
      %2193 = vrot.lane.b32.xlu0 %v2113, 56
      %v2194 = vpop.permute.xlu0 %2193
      %2195 = vrot.lane.b32.xlu0 %v2114, 56
      %v2196 = vpop.permute.xlu0 %2195
      %2197 = vrot.lane.b32.xlu0 %v2115, 56
      %v2198 = vpop.permute.xlu0 %2197
      %2199 = vrot.lane.b32.xlu0 %v2116, 56
      %v2200 = vpop.permute.xlu0 %2199
      %2201 = vrot.lane.b32.xlu0 %v2117, 56
      %v2202 = vpop.permute.xlu0 %2201
      %2203 = vrot.lane.b32.xlu0 %v2118, 56
      %v2204 = vpop.permute.xlu0 %2203
      %2205 = vrot.lane.b32.xlu0 %v2119, 56
      %v2206 = vpop.permute.xlu0 %2205
      %2207 = vrot.lane.b32.xlu0 %v2120, 56
      %v2208 = vpop.permute.xlu0 %2207
      %2209 = vrot.lane.b32.xlu0 %v2121, 56
      %v2210 = vpop.permute.xlu0 %2209
      %2211 = vrot.lane.b32.xlu0 %v2122, 56
      %v2212 = vpop.permute.xlu0 %2211
      %2213 = vrot.lane.b32.xlu0 %v2123, 56
      %v2214 = vpop.permute.xlu0 %2213
      %2215 = vrot.lane.b32.xlu0 %v2124, 56
      %v2216 = vpop.permute.xlu0 %2215
      %2217 = vrot.lane.b32.xlu0 %v2125, 56
      %v2218 = vpop.permute.xlu0 %2217
      %2219 = vrot.lane.b32.xlu0 %v2126, 56
      %v2220 = vpop.permute.xlu0 %2219
      %2221 = vrot.lane.b32.xlu0 %v2127, 56
      %v2222 = vpop.permute.xlu0 %2221
      %2223 = vrot.lane.b32.xlu0 %v2128, 56
      %v2224 = vpop.permute.xlu0 %2223
      %vm2257 = vcmask 519616
      %2258 = vst.msk [vmem:[#allocation3] sm:$0xf] %vm2257, %v2162
      %2259 = vst.msk [vmem:[#allocation3 + $0x4] sm:$0xf] %vm2257, %v2164
      %2260 = vst.msk [vmem:[#allocation3 + $0x8] sm:$0xf] %vm2257, %v2166
      %2261 = vst.msk [vmem:[#allocation3 + $0xc] sm:$0xf] %vm2257, %v2168
      %2262 = vst.msk [vmem:[#allocation3 + $0x10] sm:$0xf] %vm2257, %v2170
      %2263 = vst.msk [vmem:[#allocation3 + $0x14] sm:$0xf] %vm2257, %v2172
      %2264 = vst.msk [vmem:[#allocation3 + $0x18] sm:$0xf] %vm2257, %v2174
      %2265 = vst.msk [vmem:[#allocation3 + $0x1c] sm:$0xf] %vm2257, %v2176
      %2266 = vst.msk [vmem:[#allocation3 + $0x20] sm:$0xf] %vm2257, %v2178
      %2267 = vst.msk [vmem:[#allocation3 + $0x24] sm:$0xf] %vm2257, %v2180
      %2268 = vst.msk [vmem:[#allocation3 + $0x28] sm:$0xf] %vm2257, %v2182
      %2269 = vst.msk [vmem:[#allocation3 + $0x2c] sm:$0xf] %vm2257, %v2184
      %2270 = vst.msk [vmem:[#allocation3 + $0x30] sm:$0xf] %vm2257, %v2186
      %2271 = vst.msk [vmem:[#allocation3 + $0x34] sm:$0xf] %vm2257, %v2188
      %2272 = vst.msk [vmem:[#allocation3 + $0x38] sm:$0xf] %vm2257, %v2190
      %2273 = vst.msk [vmem:[#allocation3 + $0x3c] sm:$0xf] %vm2257, %v2192
      %2274 = vst.msk [vmem:[#allocation3 + $0x40] sm:$0xf] %vm2257, %v2194
      %2275 = vst.msk [vmem:[#allocation3 + $0x44] sm:$0xf] %vm2257, %v2196
      %2276 = vst.msk [vmem:[#allocation3 + $0x48] sm:$0xf] %vm2257, %v2198
      %2277 = vst.msk [vmem:[#allocation3 + $0x4c] sm:$0xf] %vm2257, %v2200
      %2278 = vst.msk [vmem:[#allocation3 + $0x50] sm:$0xf] %vm2257, %v2202
      %2279 = vst.msk [vmem:[#allocation3 + $0x54] sm:$0xf] %vm2257, %v2204
      %2280 = vst.msk [vmem:[#allocation3 + $0x58] sm:$0xf] %vm2257, %v2206
      %2281 = vst.msk [vmem:[#allocation3 + $0x5c] sm:$0xf] %vm2257, %v2208
      %2282 = vst.msk [vmem:[#allocation3 + $0x60] sm:$0xf] %vm2257, %v2210
      %2283 = vst.msk [vmem:[#allocation3 + $0x64] sm:$0xf] %vm2257, %v2212
      %2284 = vst.msk [vmem:[#allocation3 + $0x68] sm:$0xf] %vm2257, %v2214
      %2285 = vst.msk [vmem:[#allocation3 + $0x6c] sm:$0xf] %vm2257, %v2216
      %2286 = vst.msk [vmem:[#allocation3 + $0x70] sm:$0xf] %vm2257, %v2218
      %2287 = vst.msk [vmem:[#allocation3 + $0x74] sm:$0xf] %vm2257, %v2220
      %2288 = vst.msk [vmem:[#allocation3 + $0x78] sm:$0xf] %vm2257, %v2222
      %2289 = vst.msk [vmem:[#allocation3 + $0x7c] sm:$0xf] %vm2257, %v2224
      %v2290 = vld [vmem:[%s1839 + $0x2] sm:$0xff]
      %v2291 = vld [vmem:[%s1839 + $0xa] sm:$0xff]
      %v2292 = vld [vmem:[%s1839 + $0x1a] sm:$0xff]
      %v2293 = vld [vmem:[%s1839 + $0x22] sm:$0xff]
      %v2294 = vld [vmem:[%s1839 + $0x32] sm:$0xff]
      %v2295 = vld [vmem:[%s1839 + $0x3a] sm:$0xff]
      %v2296 = vld [vmem:[%s1839 + $0x4a] sm:$0xff]
      %v2297 = vld [vmem:[%s1839 + $0x52] sm:$0xff]
      %v2298 = vld [vmem:[%s1839 + $0x62] sm:$0xff]
      %v2299 = vld [vmem:[%s1839 + $0x6a] sm:$0xff]
      %v2300 = vld [vmem:[%s1839 + $0x7a] sm:$0xff]
      %v2301 = vld [vmem:[%s1839 + $0x82] sm:$0xff]
      %v2302 = vld [vmem:[%s1839 + $0x92] sm:$0xff]
      %v2303 = vld [vmem:[%s1839 + $0x9a] sm:$0xff]
      %v2304 = vld [vmem:[%s1839 + $0xaa] sm:$0xff]
      %v2305 = vld [vmem:[%s1839 + $0xb2] sm:$0xff]
      %v2306 = vld [vmem:[%s1839 + $0xc2] sm:$0xff]
      %v2307 = vld [vmem:[%s1839 + $0xca] sm:$0xff]
      %v2308 = vld [vmem:[%s1839 + $0xda] sm:$0xff]
      %v2309 = vld [vmem:[%s1839 + $0xe2] sm:$0xff]
      %v2310 = vld [vmem:[%s1839 + $0xf2] sm:$0xff]
      %v2311 = vld [vmem:[%s1839 + $0xfa] sm:$0xff]
      %v2312 = vld [vmem:[%s1839 + $0x10a] sm:$0xff]
      %v2313 = vld [vmem:[%s1839 + $0x112] sm:$0xff]
      %v2314 = vld [vmem:[%s1839 + $0x122] sm:$0xff]
      %v2315 = vld [vmem:[%s1839 + $0x12a] sm:$0xff]
      %v2316 = vld [vmem:[%s1839 + $0x13a] sm:$0xff]
      %v2317 = vld [vmem:[%s1839 + $0x142] sm:$0xff]
      %v2318 = vld [vmem:[%s1839 + $0x152] sm:$0xff]
      %v2319 = vld [vmem:[%s1839 + $0x15a] sm:$0xff]
      %v2320 = vld [vmem:[%s1839 + $0x16a] sm:$0xff]
      %v2321 = vld [vmem:[%s1839 + $0x172] sm:$0xff]
      %v2322 = vpack.c.bf16 %v2290, %v2290
      %v2323 = vpack.c.bf16 %v2291, %v2291
      %v2324 = vpack.c.bf16 %v2292, %v2292
      %v2325 = vpack.c.bf16 %v2293, %v2293
      %v2326 = vpack.c.bf16 %v2294, %v2294
      %v2327 = vpack.c.bf16 %v2295, %v2295
      %v2328 = vpack.c.bf16 %v2296, %v2296
      %v2329 = vpack.c.bf16 %v2297, %v2297
      %v2330 = vpack.c.bf16 %v2298, %v2298
      %v2331 = vpack.c.bf16 %v2299, %v2299
      %v2332 = vpack.c.bf16 %v2300, %v2300
      %v2333 = vpack.c.bf16 %v2301, %v2301
      %v2334 = vpack.c.bf16 %v2302, %v2302
      %v2335 = vpack.c.bf16 %v2303, %v2303
      %v2336 = vpack.c.bf16 %v2304, %v2304
      %v2337 = vpack.c.bf16 %v2305, %v2305
      %v2338 = vpack.c.bf16 %v2306, %v2306
      %v2339 = vpack.c.bf16 %v2307, %v2307
      %v2340 = vpack.c.bf16 %v2308, %v2308
      %v2341 = vpack.c.bf16 %v2309, %v2309
      %v2342 = vpack.c.bf16 %v2310, %v2310
      %v2343 = vpack.c.bf16 %v2311, %v2311
      %v2344 = vpack.c.bf16 %v2312, %v2312
      %v2345 = vpack.c.bf16 %v2313, %v2313
      %v2346 = vpack.c.bf16 %v2314, %v2314
      %v2347 = vpack.c.bf16 %v2315, %v2315
      %v2348 = vpack.c.bf16 %v2316, %v2316
      %v2349 = vpack.c.bf16 %v2317, %v2317
      %v2350 = vpack.c.bf16 %v2318, %v2318
      %v2351 = vpack.c.bf16 %v2319, %v2319
      %v2352 = vpack.c.bf16 %v2320, %v2320
      %v2353 = vpack.c.bf16 %v2321, %v2321
      %2386 = vrot.lane.b32.xlu0 %v2322, 64
      %v2387 = vpop.permute.xlu0 %2386
      %2388 = vrot.lane.b32.xlu0 %v2323, 64
      %v2389 = vpop.permute.xlu0 %2388
      %2390 = vrot.lane.b32.xlu0 %v2324, 64
      %v2391 = vpop.permute.xlu0 %2390
      %2392 = vrot.lane.b32.xlu0 %v2325, 64
      %v2393 = vpop.permute.xlu0 %2392
      %2394 = vrot.lane.b32.xlu0 %v2326, 64
      %v2395 = vpop.permute.xlu0 %2394
      %2396 = vrot.lane.b32.xlu0 %v2327, 64
      %v2397 = vpop.permute.xlu0 %2396
      %2398 = vrot.lane.b32.xlu0 %v2328, 64
      %v2399 = vpop.permute.xlu0 %2398
      %2400 = vrot.lane.b32.xlu0 %v2329, 64
      %v2401 = vpop.permute.xlu0 %2400
      %2402 = vrot.lane.b32.xlu0 %v2330, 64
      %v2403 = vpop.permute.xlu0 %2402
      %2404 = vrot.lane.b32.xlu0 %v2331, 64
      %v2405 = vpop.permute.xlu0 %2404
      %2406 = vrot.lane.b32.xlu0 %v2332, 64
      %v2407 = vpop.permute.xlu0 %2406
      %2408 = vrot.lane.b32.xlu0 %v2333, 64
      %v2409 = vpop.permute.xlu0 %2408
      %2410 = vrot.lane.b32.xlu0 %v2334, 64
      %v2411 = vpop.permute.xlu0 %2410
      %2412 = vrot.lane.b32.xlu0 %v2335, 64
      %v2413 = vpop.permute.xlu0 %2412
      %2414 = vrot.lane.b32.xlu0 %v2336, 64
      %v2415 = vpop.permute.xlu0 %2414
      %2416 = vrot.lane.b32.xlu0 %v2337, 64
      %v2417 = vpop.permute.xlu0 %2416
      %2418 = vrot.lane.b32.xlu0 %v2338, 64
      %v2419 = vpop.permute.xlu0 %2418
      %2420 = vrot.lane.b32.xlu0 %v2339, 64
      %v2421 = vpop.permute.xlu0 %2420
      %2422 = vrot.lane.b32.xlu0 %v2340, 64
      %v2423 = vpop.permute.xlu0 %2422
      %2424 = vrot.lane.b32.xlu0 %v2341, 64
      %v2425 = vpop.permute.xlu0 %2424
      %2426 = vrot.lane.b32.xlu0 %v2342, 64
      %v2427 = vpop.permute.xlu0 %2426
      %2428 = vrot.lane.b32.xlu0 %v2343, 64
      %v2429 = vpop.permute.xlu0 %2428
      %2430 = vrot.lane.b32.xlu0 %v2344, 64
      %v2431 = vpop.permute.xlu0 %2430
      %2432 = vrot.lane.b32.xlu0 %v2345, 64
      %v2433 = vpop.permute.xlu0 %2432
      %2434 = vrot.lane.b32.xlu0 %v2346, 64
      %v2435 = vpop.permute.xlu0 %2434
      %2436 = vrot.lane.b32.xlu0 %v2347, 64
      %v2437 = vpop.permute.xlu0 %2436
      %2438 = vrot.lane.b32.xlu0 %v2348, 64
      %v2439 = vpop.permute.xlu0 %2438
      %2440 = vrot.lane.b32.xlu0 %v2349, 64
      %v2441 = vpop.permute.xlu0 %2440
      %2442 = vrot.lane.b32.xlu0 %v2350, 64
      %v2443 = vpop.permute.xlu0 %2442
      %2444 = vrot.lane.b32.xlu0 %v2351, 64
      %v2445 = vpop.permute.xlu0 %2444
      %2446 = vrot.lane.b32.xlu0 %v2352, 64
      %v2447 = vpop.permute.xlu0 %2446
      %2448 = vrot.lane.b32.xlu0 %v2353, 64
      %v2449 = vpop.permute.xlu0 %2448
      %vm2482 = vcmask 585216
      %2483 = vst.msk [vmem:[#allocation3] sm:$0xf] %vm2482, %v2387
      %2484 = vst.msk [vmem:[#allocation3 + $0x4] sm:$0xf] %vm2482, %v2389
      %2485 = vst.msk [vmem:[#allocation3 + $0x8] sm:$0xf] %vm2482, %v2391
      %2486 = vst.msk [vmem:[#allocation3 + $0xc] sm:$0xf] %vm2482, %v2393
      %2487 = vst.msk [vmem:[#allocation3 + $0x10] sm:$0xf] %vm2482, %v2395
      %2488 = vst.msk [vmem:[#allocation3 + $0x14] sm:$0xf] %vm2482, %v2397
      %2489 = vst.msk [vmem:[#allocation3 + $0x18] sm:$0xf] %vm2482, %v2399
      %2490 = vst.msk [vmem:[#allocation3 + $0x1c] sm:$0xf] %vm2482, %v2401
      %2491 = vst.msk [vmem:[#allocation3 + $0x20] sm:$0xf] %vm2482, %v2403
      %2492 = vst.msk [vmem:[#allocation3 + $0x24] sm:$0xf] %vm2482, %v2405
      %2493 = vst.msk [vmem:[#allocation3 + $0x28] sm:$0xf] %vm2482, %v2407
      %2494 = vst.msk [vmem:[#allocation3 + $0x2c] sm:$0xf] %vm2482, %v2409
      %2495 = vst.msk [vmem:[#allocation3 + $0x30] sm:$0xf] %vm2482, %v2411
      %2496 = vst.msk [vmem:[#allocation3 + $0x34] sm:$0xf] %vm2482, %v2413
      %2497 = vst.msk [vmem:[#allocation3 + $0x38] sm:$0xf] %vm2482, %v2415
      %2498 = vst.msk [vmem:[#allocation3 + $0x3c] sm:$0xf] %vm2482, %v2417
      %2499 = vst.msk [vmem:[#allocation3 + $0x40] sm:$0xf] %vm2482, %v2419
      %2500 = vst.msk [vmem:[#allocation3 + $0x44] sm:$0xf] %vm2482, %v2421
      %2501 = vst.msk [vmem:[#allocation3 + $0x48] sm:$0xf] %vm2482, %v2423
      %2502 = vst.msk [vmem:[#allocation3 + $0x4c] sm:$0xf] %vm2482, %v2425
      %2503 = vst.msk [vmem:[#allocation3 + $0x50] sm:$0xf] %vm2482, %v2427
      %2504 = vst.msk [vmem:[#allocation3 + $0x54] sm:$0xf] %vm2482, %v2429
      %2505 = vst.msk [vmem:[#allocation3 + $0x58] sm:$0xf] %vm2482, %v2431
      %2506 = vst.msk [vmem:[#allocation3 + $0x5c] sm:$0xf] %vm2482, %v2433
      %2507 = vst.msk [vmem:[#allocation3 + $0x60] sm:$0xf] %vm2482, %v2435
      %2508 = vst.msk [vmem:[#allocation3 + $0x64] sm:$0xf] %vm2482, %v2437
      %2509 = vst.msk [vmem:[#allocation3 + $0x68] sm:$0xf] %vm2482, %v2439
      %2510 = vst.msk [vmem:[#allocation3 + $0x6c] sm:$0xf] %vm2482, %v2441
      %2511 = vst.msk [vmem:[#allocation3 + $0x70] sm:$0xf] %vm2482, %v2443
      %2512 = vst.msk [vmem:[#allocation3 + $0x74] sm:$0xf] %vm2482, %v2445
      %2513 = vst.msk [vmem:[#allocation3 + $0x78] sm:$0xf] %vm2482, %v2447
      %2514 = vst.msk [vmem:[#allocation3 + $0x7c] sm:$0xf] %vm2482, %v2449
      %v2515 = vld [vmem:[#allocation3] sm:$0xf]
      %v2516 = vld [vmem:[#allocation3 + $0x4] sm:$0xf]
      %v2517 = vld [vmem:[#allocation3 + $0x8] sm:$0xf]
      %v2518 = vld [vmem:[#allocation3 + $0xc] sm:$0xf]
      %v2519 = vld [vmem:[#allocation3 + $0x10] sm:$0xf]
      %v2520 = vld [vmem:[#allocation3 + $0x14] sm:$0xf]
      %v2521 = vld [vmem:[#allocation3 + $0x18] sm:$0xf]
      %v2522 = vld [vmem:[#allocation3 + $0x1c] sm:$0xf]
      %v2523 = vld [vmem:[#allocation3 + $0x20] sm:$0xf]
      %v2524 = vld [vmem:[#allocation3 + $0x24] sm:$0xf]
      %v2525 = vld [vmem:[#allocation3 + $0x28] sm:$0xf]
      %v2526 = vld [vmem:[#allocation3 + $0x2c] sm:$0xf]
      %v2527 = vld [vmem:[#allocation3 + $0x30] sm:$0xf]
      %v2528 = vld [vmem:[#allocation3 + $0x34] sm:$0xf]
      %v2529 = vld [vmem:[#allocation3 + $0x38] sm:$0xf]
      %v2530 = vld [vmem:[#allocation3 + $0x3c] sm:$0xf]
      %v2531 = vld [vmem:[#allocation3 + $0x40] sm:$0xf]
      %v2532 = vld [vmem:[#allocation3 + $0x44] sm:$0xf]
      %v2533 = vld [vmem:[#allocation3 + $0x48] sm:$0xf]
      %v2534 = vld [vmem:[#allocation3 + $0x4c] sm:$0xf]
      %v2535 = vld [vmem:[#allocation3 + $0x50] sm:$0xf]
      %v2536 = vld [vmem:[#allocation3 + $0x54] sm:$0xf]
      %v2537 = vld [vmem:[#allocation3 + $0x58] sm:$0xf]
      %v2538 = vld [vmem:[#allocation3 + $0x5c] sm:$0xf]
      %v2539 = vld [vmem:[#allocation3 + $0x60] sm:$0xf]
      %v2540 = vld [vmem:[#allocation3 + $0x64] sm:$0xf]
      %v2541 = vld [vmem:[#allocation3 + $0x68] sm:$0xf]
      %v2542 = vld [vmem:[#allocation3 + $0x6c] sm:$0xf]
      %v2543 = vld [vmem:[#allocation3 + $0x70] sm:$0xf]
      %v2544 = vld [vmem:[#allocation3 + $0x74] sm:$0xf]
      %v2545 = vld [vmem:[#allocation3 + $0x78] sm:$0xf]
      %v2546 = vld [vmem:[#allocation3 + $0x7c] sm:$0xf]
      %v2547 = vld [vmem:[%s1] sm:$0xf]
      %v2548 = vld [vmem:[%s1 + $0x4] sm:$0xf]
      %v2549 = vld [vmem:[%s1 + $0x8] sm:$0xf]
      %v2550 = vld [vmem:[%s1 + $0xc] sm:$0xf]
      %v2551 = vld [vmem:[%s1 + $0x10] sm:$0xf]
      %v2552 = vld [vmem:[%s1 + $0x14] sm:$0xf]
      %v2553 = vld [vmem:[%s1 + $0x18] sm:$0xf]
      %v2554 = vld [vmem:[%s1 + $0x1c] sm:$0xf]
      %v2555 = vld [vmem:[%s1 + $0x20] sm:$0xf]
      %v2556 = vld [vmem:[%s2] sm:$0x1]
      %v2558 = vperm.slane %v2556, 0
      %v2592 = vunpack.c.l.b16 %v2515
      %v2593 = vunpack.c.l.b16 %v2516
      %v2594 = vunpack.c.l.b16 %v2517
      %v2595 = vunpack.c.l.b16 %v2518
      %v2596 = vunpack.c.l.b16 %v2519
      %v2597 = vunpack.c.l.b16 %v2520
      %v2598 = vunpack.c.l.b16 %v2521
      %v2599 = vunpack.c.l.b16 %v2522
      %v2600 = vunpack.c.l.b16 %v2523
      %v2601 = vunpack.c.l.b16 %v2524
      %v2602 = vunpack.c.l.b16 %v2525
      %v2603 = vunpack.c.l.b16 %v2526
      %v2604 = vunpack.c.l.b16 %v2527
      %v2605 = vunpack.c.l.b16 %v2528
      %v2606 = vunpack.c.l.b16 %v2529
      %v2607 = vunpack.c.l.b16 %v2530
      %v2608 = vunpack.c.l.b16 %v2531
      %v2609 = vunpack.c.l.b16 %v2532
      %v2610 = vunpack.c.l.b16 %v2533
      %v2611 = vunpack.c.l.b16 %v2534
      %v2612 = vunpack.c.l.b16 %v2535
      %v2613 = vunpack.c.l.b16 %v2536
      %v2614 = vunpack.c.l.b16 %v2537
      %v2615 = vunpack.c.l.b16 %v2538
      %v2616 = vunpack.c.l.b16 %v2539
      %v2617 = vunpack.c.l.b16 %v2540
      %v2618 = vunpack.c.l.b16 %v2541
      %v2619 = vunpack.c.l.b16 %v2542
      %v2620 = vunpack.c.l.b16 %v2543
      %v2621 = vunpack.c.l.b16 %v2544
      %v2622 = vunpack.c.l.b16 %v2545
      %v2623 = vunpack.c.l.b16 %v2546
      %v2624 = vpack.c.b16 %v2593, %v2592
      %v2625 = vpack.c.b16 %v2595, %v2594
      %v2626 = vpack.c.b16 %v2597, %v2596
      %v2627 = vpack.c.b16 %v2599, %v2598
      %v2628 = vpack.c.b16 %v2601, %v2600
      %v2629 = vpack.c.b16 %v2603, %v2602
      %v2630 = vpack.c.b16 %v2605, %v2604
      %v2631 = vpack.c.b16 %v2607, %v2606
      %v2632 = vpack.c.b16 %v2609, %v2608
      %v2633 = vpack.c.b16 %v2611, %v2610
      %v2634 = vpack.c.b16 %v2613, %v2612
      %v2635 = vpack.c.b16 %v2615, %v2614
      %v2636 = vpack.c.b16 %v2617, %v2616
      %v2637 = vpack.c.b16 %v2619, %v2618
      %v2638 = vpack.c.b16 %v2621, %v2620
      %v2639 = vpack.c.b16 %v2623, %v2622
      %v2649 = vunpack.c.l.b16 %v2547
      %v2650 = vunpack.c.l.b16 %v2548
      %v2651 = vunpack.c.l.b16 %v2549
      %v2652 = vunpack.c.l.b16 %v2550
      %v2653 = vunpack.c.l.b16 %v2551
      %v2654 = vunpack.c.l.b16 %v2552
      %v2655 = vunpack.c.l.b16 %v2553
      %v2656 = vunpack.c.l.b16 %v2554
      %v2657 = vunpack.c.l.b16 %v2555
      %v2658 = vpack.c.b16 %v2650, %v2649
      %v2659 = vpack.c.b16 %v2652, %v2651
      %v2660 = vpack.c.b16 %v2654, %v2653
      %v2661 = vpack.c.b16 %v2656, %v2655
      %v2662 = vpack.c.b16 %v2657, %v2657
      %vm2667 = vcmask 588800
      %v2669 = vsel %vm2667, %v2624, 0
      %v2672 = vsel %vm2667, %v2625, 0
      %v2675 = vsel %vm2667, %v2626, 0
      %v2678 = vsel %vm2667, %v2627, 0
      %v2681 = vsel %vm2667, %v2628, 0
      %v2684 = vsel %vm2667, %v2629, 0
      %v2687 = vsel %vm2667, %v2630, 0
      %v2690 = vsel %vm2667, %v2631, 0
      %v2693 = vsel %vm2667, %v2632, 0
      %v2696 = vsel %vm2667, %v2633, 0
      %v2699 = vsel %vm2667, %v2634, 0
      %v2702 = vsel %vm2667, %v2635, 0
      %v2705 = vsel %vm2667, %v2636, 0
      %v2708 = vsel %vm2667, %v2637, 0
      %v2711 = vsel %vm2667, %v2638, 0
      %v2714 = vsel %vm2667, %v2639, 0
      %vm2716 = vcmask 1043456
      %v2718 = vsel %vm2716, %v2662, 0
      %2720 = vmatpush.bf16.msra.mxu0 0
      %2721 = vmatpush.bf16.msra.mxu0 0
      %2722 = vmatpush.bf16.msra.mxu0 0
      %2723 = vmatpush.bf16.msra.mxu0 %v2718
      %2724 = vmatpush.bf16.msra.mxu0 %v2661
      %2725 = vmatpush.bf16.msra.mxu0 %v2660
      %2726 = vmatpush.bf16.msra.mxu0 %v2659
      %2727 = vmatpush.bf16.msra.mxu0 %v2658
      %2728 = vmatmul.bf16.gmra.mxu0 %v2669
      %v2729 = vpop.f32.mrf.mxu0
      %v2730 = vadd.f32 %v2558, %v2729
      %v2731 = vpop.f32.mrf.mxu0
      %v2732 = vadd.f32 %v2558, %v2731
      %2733 = vmatmul.bf16.gmra.mxu0 %v2672
      %v2734 = vpop.f32.mrf.mxu0
      %v2735 = vadd.f32 %v2558, %v2734
      %v2736 = vpop.f32.mrf.mxu0
      %v2737 = vadd.f32 %v2558, %v2736
      %2738 = vmatmul.bf16.gmra.mxu0 %v2675
      %v2739 = vpop.f32.mrf.mxu0
      %v2740 = vadd.f32 %v2558, %v2739
      %v2741 = vpop.f32.mrf.mxu0
      %v2742 = vadd.f32 %v2558, %v2741
      %2743 = vmatmul.bf16.gmra.mxu0 %v2678
      %v2744 = vpop.f32.mrf.mxu0
      %v2745 = vadd.f32 %v2558, %v2744
      %v2746 = vpop.f32.mrf.mxu0
      %v2747 = vadd.f32 %v2558, %v2746
      %2748 = vmatmul.bf16.gmra.mxu0 %v2681
      %v2749 = vpop.f32.mrf.mxu0
      %v2750 = vadd.f32 %v2558, %v2749
      %v2751 = vpop.f32.mrf.mxu0
      %v2752 = vadd.f32 %v2558, %v2751
      %2753 = vmatmul.bf16.gmra.mxu0 %v2684
      %v2754 = vpop.f32.mrf.mxu0
      %v2755 = vadd.f32 %v2558, %v2754
      %v2756 = vpop.f32.mrf.mxu0
      %v2757 = vadd.f32 %v2558, %v2756
      %2758 = vmatmul.bf16.gmra.mxu0 %v2687
      %v2759 = vpop.f32.mrf.mxu0
      %v2760 = vadd.f32 %v2558, %v2759
      %v2761 = vpop.f32.mrf.mxu0
      %v2762 = vadd.f32 %v2558, %v2761
      %2763 = vmatmul.bf16.gmra.mxu0 %v2690
      %v2764 = vpop.f32.mrf.mxu0
      %v2765 = vadd.f32 %v2558, %v2764
      %v2766 = vpop.f32.mrf.mxu0
      %v2767 = vadd.f32 %v2558, %v2766
      %2768 = vmatmul.bf16.gmra.mxu0 %v2693
      %v2769 = vpop.f32.mrf.mxu0
      %v2770 = vadd.f32 %v2558, %v2769
      %v2771 = vpop.f32.mrf.mxu0
      %v2772 = vadd.f32 %v2558, %v2771
      %2773 = vmatmul.bf16.gmra.mxu0 %v2696
      %v2774 = vpop.f32.mrf.mxu0
      %v2775 = vadd.f32 %v2558, %v2774
      %v2776 = vpop.f32.mrf.mxu0
      %v2777 = vadd.f32 %v2558, %v2776
      %2778 = vmatmul.bf16.gmra.mxu0 %v2699
      %v2779 = vpop.f32.mrf.mxu0
      %v2780 = vadd.f32 %v2558, %v2779
      %v2781 = vpop.f32.mrf.mxu0
      %v2782 = vadd.f32 %v2558, %v2781
      %2783 = vmatmul.bf16.gmra.mxu0 %v2702
      %v2784 = vpop.f32.mrf.mxu0
      %v2785 = vadd.f32 %v2558, %v2784
      %v2786 = vpop.f32.mrf.mxu0
      %v2787 = vadd.f32 %v2558, %v2786
      %2788 = vmatmul.bf16.gmra.mxu0 %v2705
      %v2789 = vpop.f32.mrf.mxu0
      %v2790 = vadd.f32 %v2558, %v2789
      %v2791 = vpop.f32.mrf.mxu0
      %v2792 = vadd.f32 %v2558, %v2791
      %2793 = vmatmul.bf16.gmra.mxu0 %v2708
      %v2794 = vpop.f32.mrf.mxu0
      %v2795 = vadd.f32 %v2558, %v2794
      %v2796 = vpop.f32.mrf.mxu0
      %v2797 = vadd.f32 %v2558, %v2796
      %2798 = vmatmul.bf16.gmra.mxu0 %v2711
      %v2799 = vpop.f32.mrf.mxu0
      %v2800 = vadd.f32 %v2558, %v2799
      %v2801 = vpop.f32.mrf.mxu0
      %v2802 = vadd.f32 %v2558, %v2801
      %2803 = vmatmul.bf16.gmra.mxu0 %v2714
      %v2804 = vpop.f32.mrf.mxu0
      %v2805 = vadd.f32 %v2558, %v2804
      %v2806 = vpop.f32.mrf.mxu0
      %v2807 = vadd.f32 %v2558, %v2806
      %2808 = vdwg.mxu0
      %v2809 = vmax.f32 %v2730, 0.0
      %v2810 = vmax.f32 %v2732, 0.0
      %v2811 = vmax.f32 %v2735, 0.0
      %v2812 = vmax.f32 %v2737, 0.0
      %v2813 = vmax.f32 %v2740, 0.0
      %v2814 = vmax.f32 %v2742, 0.0
      %v2815 = vmax.f32 %v2745, 0.0
      %v2816 = vmax.f32 %v2747, 0.0
      %v2817 = vmax.f32 %v2750, 0.0
      %v2818 = vmax.f32 %v2752, 0.0
      %v2819 = vmax.f32 %v2755, 0.0
      %v2820 = vmax.f32 %v2757, 0.0
      %v2821 = vmax.f32 %v2760, 0.0
      %v2822 = vmax.f32 %v2762, 0.0
      %v2823 = vmax.f32 %v2765, 0.0
      %v2824 = vmax.f32 %v2767, 0.0
      %v2825 = vmax.f32 %v2770, 0.0
      %v2826 = vmax.f32 %v2772, 0.0
      %v2827 = vmax.f32 %v2775, 0.0
      %v2828 = vmax.f32 %v2777, 0.0
      %v2829 = vmax.f32 %v2780, 0.0
      %v2830 = vmax.f32 %v2782, 0.0
      %v2831 = vmax.f32 %v2785, 0.0
      %v2832 = vmax.f32 %v2787, 0.0
      %v2833 = vmax.f32 %v2790, 0.0
      %v2834 = vmax.f32 %v2792, 0.0
      %v2835 = vmax.f32 %v2795, 0.0
      %v2836 = vmax.f32 %v2797, 0.0
      %v2837 = vmax.f32 %v2800, 0.0
      %v2838 = vmax.f32 %v2802, 0.0
      %v2839 = vmax.f32 %v2805, 0.0
      %v2840 = vmax.f32 %v2807, 0.0
      %vm2841 = vcmask 195584
      %2842 = vst.msk [vmem:[#allocation4] sm:$0xff] %vm2841, %v2809
      %2843 = vst.msk [vmem:[#allocation4 + $0x8] sm:$0xff] %vm2841, %v2810
      %2844 = vst.msk [vmem:[#allocation4 + $0x10] sm:$0xff] %vm2841, %v2811
      %2845 = vst.msk [vmem:[#allocation4 + $0x18] sm:$0xff] %vm2841, %v2812
      %2846 = vst.msk [vmem:[#allocation4 + $0x20] sm:$0xff] %vm2841, %v2813
      %2847 = vst.msk [vmem:[#allocation4 + $0x28] sm:$0xff] %vm2841, %v2814
      %2848 = vst.msk [vmem:[#allocation4 + $0x30] sm:$0xff] %vm2841, %v2815
      %2849 = vst.msk [vmem:[#allocation4 + $0x38] sm:$0xff] %vm2841, %v2816
      %2850 = vst.msk [vmem:[#allocation4 + $0x40] sm:$0xff] %vm2841, %v2817
      %2851 = vst.msk [vmem:[#allocation4 + $0x48] sm:$0xff] %vm2841, %v2818
      %2852 = vst.msk [vmem:[#allocation4 + $0x50] sm:$0xff] %vm2841, %v2819
      %2853 = vst.msk [vmem:[#allocation4 + $0x58] sm:$0xff] %vm2841, %v2820
      %2854 = vst.msk [vmem:[#allocation4 + $0x60] sm:$0xff] %vm2841, %v2821
      %2855 = vst.msk [vmem:[#allocation4 + $0x68] sm:$0xff] %vm2841, %v2822
      %2856 = vst.msk [vmem:[#allocation4 + $0x70] sm:$0xff] %vm2841, %v2823
      %2857 = vst.msk [vmem:[#allocation4 + $0x78] sm:$0xff] %vm2841, %v2824
      %2858 = vst.msk [vmem:[#allocation4 + $0x80] sm:$0xff] %vm2841, %v2825
      %2859 = vst.msk [vmem:[#allocation4 + $0x88] sm:$0xff] %vm2841, %v2826
      %2860 = vst.msk [vmem:[#allocation4 + $0x90] sm:$0xff] %vm2841, %v2827
      %2861 = vst.msk [vmem:[#allocation4 + $0x98] sm:$0xff] %vm2841, %v2828
      %2862 = vst.msk [vmem:[#allocation4 + $0xa0] sm:$0xff] %vm2841, %v2829
      %2863 = vst.msk [vmem:[#allocation4 + $0xa8] sm:$0xff] %vm2841, %v2830
      %2864 = vst.msk [vmem:[#allocation4 + $0xb0] sm:$0xff] %vm2841, %v2831
      %2865 = vst.msk [vmem:[#allocation4 + $0xb8] sm:$0xff] %vm2841, %v2832
      %2866 = vst.msk [vmem:[#allocation4 + $0xc0] sm:$0xff] %vm2841, %v2833
      %2867 = vst.msk [vmem:[#allocation4 + $0xc8] sm:$0xff] %vm2841, %v2834
      %2868 = vst.msk [vmem:[#allocation4 + $0xd0] sm:$0xff] %vm2841, %v2835
      %2869 = vst.msk [vmem:[#allocation4 + $0xd8] sm:$0xff] %vm2841, %v2836
      %2870 = vst.msk [vmem:[#allocation4 + $0xe0] sm:$0xff] %vm2841, %v2837
      %2871 = vst.msk [vmem:[#allocation4 + $0xe8] sm:$0xff] %vm2841, %v2838
      %2872 = vst.msk [vmem:[#allocation4 + $0xf0] sm:$0xff] %vm2841, %v2839
      %2873 = vst.msk [vmem:[#allocation4 + $0xf8] sm:$0xff] %vm2841, %v2840
      %v2874 = vld [vmem:[#allocation4] sm:$0xff]
      %v2875 = vld [vmem:[#allocation4 + $0x8] sm:$0xff]
      %v2876 = vld [vmem:[#allocation4 + $0x10] sm:$0xff]
      %v2877 = vld [vmem:[#allocation4 + $0x18] sm:$0xff]
      %v2878 = vld [vmem:[#allocation4 + $0x20] sm:$0xff]
      %v2879 = vld [vmem:[#allocation4 + $0x28] sm:$0xff]
      %v2880 = vld [vmem:[#allocation4 + $0x30] sm:$0xff]
      %v2881 = vld [vmem:[#allocation4 + $0x38] sm:$0xff]
      %v2882 = vld [vmem:[#allocation4 + $0x40] sm:$0xff]
      %v2883 = vld [vmem:[#allocation4 + $0x48] sm:$0xff]
      %v2884 = vld [vmem:[#allocation4 + $0x50] sm:$0xff]
      %v2885 = vld [vmem:[#allocation4 + $0x58] sm:$0xff]
      %v2886 = vld [vmem:[#allocation4 + $0x60] sm:$0xff]
      %v2887 = vld [vmem:[#allocation4 + $0x68] sm:$0xff]
      %v2888 = vld [vmem:[#allocation4 + $0x70] sm:$0xff]
      %v2889 = vld [vmem:[#allocation4 + $0x78] sm:$0xff]
      %v2890 = vld [vmem:[#allocation4 + $0x80] sm:$0xff]
      %v2891 = vld [vmem:[#allocation4 + $0x88] sm:$0xff]
      %v2892 = vld [vmem:[#allocation4 + $0x90] sm:$0xff]
      %v2893 = vld [vmem:[#allocation4 + $0x98] sm:$0xff]
      %v2894 = vld [vmem:[#allocation4 + $0xa0] sm:$0xff]
      %v2895 = vld [vmem:[#allocation4 + $0xa8] sm:$0xff]
      %v2896 = vld [vmem:[#allocation4 + $0xb0] sm:$0xff]
      %v2897 = vld [vmem:[#allocation4 + $0xb8] sm:$0xff]
      %v2898 = vld [vmem:[#allocation4 + $0xc0] sm:$0xff]
      %v2899 = vld [vmem:[#allocation4 + $0xc8] sm:$0xff]
      %v2900 = vld [vmem:[#allocation4 + $0xd0] sm:$0xff]
      %v2901 = vld [vmem:[#allocation4 + $0xd8] sm:$0xff]
      %v2902 = vld [vmem:[#allocation4 + $0xe0] sm:$0xff]
      %v2903 = vld [vmem:[#allocation4 + $0xe8] sm:$0xff]
      %v2904 = vld [vmem:[#allocation4 + $0xf0] sm:$0xff]
      %v2905 = vld [vmem:[#allocation4 + $0xf8] sm:$0xff]
      %2938 = vrot.lane.b32.xlu0 %v2874, 120
      %v2939 = vpop.permute.xlu0 %2938
      %2940 = vrot.lane.b32.xlu0 %v2875, 120
      %v2941 = vpop.permute.xlu0 %2940
      %2942 = vrot.lane.b32.xlu0 %v2876, 120
      %v2943 = vpop.permute.xlu0 %2942
      %2944 = vrot.lane.b32.xlu0 %v2877, 120
      %v2945 = vpop.permute.xlu0 %2944
      %2946 = vrot.lane.b32.xlu0 %v2878, 120
      %v2947 = vpop.permute.xlu0 %2946
      %2948 = vrot.lane.b32.xlu0 %v2879, 120
      %v2949 = vpop.permute.xlu0 %2948
      %2950 = vrot.lane.b32.xlu0 %v2880, 120
      %v2951 = vpop.permute.xlu0 %2950
      %2952 = vrot.lane.b32.xlu0 %v2881, 120
      %v2953 = vpop.permute.xlu0 %2952
      %2954 = vrot.lane.b32.xlu0 %v2882, 120
      %v2955 = vpop.permute.xlu0 %2954
      %2956 = vrot.lane.b32.xlu0 %v2883, 120
      %v2957 = vpop.permute.xlu0 %2956
      %2958 = vrot.lane.b32.xlu0 %v2884, 120
      %v2959 = vpop.permute.xlu0 %2958
      %2960 = vrot.lane.b32.xlu0 %v2885, 120
      %v2961 = vpop.permute.xlu0 %2960
      %2962 = vrot.lane.b32.xlu0 %v2886, 120
      %v2963 = vpop.permute.xlu0 %2962
      %2964 = vrot.lane.b32.xlu0 %v2887, 120
      %v2965 = vpop.permute.xlu0 %2964
      %2966 = vrot.lane.b32.xlu0 %v2888, 120
      %v2967 = vpop.permute.xlu0 %2966
      %2968 = vrot.lane.b32.xlu0 %v2889, 120
      %v2969 = vpop.permute.xlu0 %2968
      %2970 = vrot.lane.b32.xlu0 %v2890, 120
      %v2971 = vpop.permute.xlu0 %2970
      %2972 = vrot.lane.b32.xlu0 %v2891, 120
      %v2973 = vpop.permute.xlu0 %2972
      %2974 = vrot.lane.b32.xlu0 %v2892, 120
      %v2975 = vpop.permute.xlu0 %2974
      %2976 = vrot.lane.b32.xlu0 %v2893, 120
      %v2977 = vpop.permute.xlu0 %2976
      %2978 = vrot.lane.b32.xlu0 %v2894, 120
      %v2979 = vpop.permute.xlu0 %2978
      %2980 = vrot.lane.b32.xlu0 %v2895, 120
      %v2981 = vpop.permute.xlu0 %2980
      %2982 = vrot.lane.b32.xlu0 %v2896, 120
      %v2983 = vpop.permute.xlu0 %2982
      %2984 = vrot.lane.b32.xlu0 %v2897, 120
      %v2985 = vpop.permute.xlu0 %2984
      %2986 = vrot.lane.b32.xlu0 %v2898, 120
      %v2987 = vpop.permute.xlu0 %2986
      %2988 = vrot.lane.b32.xlu0 %v2899, 120
      %v2989 = vpop.permute.xlu0 %2988
      %2990 = vrot.lane.b32.xlu0 %v2900, 120
      %v2991 = vpop.permute.xlu0 %2990
      %2992 = vrot.lane.b32.xlu0 %v2901, 120
      %v2993 = vpop.permute.xlu0 %2992
      %2994 = vrot.lane.b32.xlu0 %v2902, 120
      %v2995 = vpop.permute.xlu0 %2994
      %2996 = vrot.lane.b32.xlu0 %v2903, 120
      %v2997 = vpop.permute.xlu0 %2996
      %2998 = vrot.lane.b32.xlu0 %v2904, 120
      %v2999 = vpop.permute.xlu0 %2998
      %3000 = vrot.lane.b32.xlu0 %v2905, 120
      %v3001 = vpop.permute.xlu0 %3000
      %3034 = vst.msk [vmem:[%s584 + $0x1] sm:$0xff] %vm496, %v2939
      %3035 = vst.msk [vmem:[%s584 + $0x9] sm:$0xff] %vm496, %v2941
      %3036 = vst.msk [vmem:[%s584 + $0x19] sm:$0xff] %vm496, %v2943
      %3037 = vst.msk [vmem:[%s584 + $0x21] sm:$0xff] %vm496, %v2945
      %3038 = vst.msk [vmem:[%s584 + $0x31] sm:$0xff] %vm496, %v2947
      %3039 = vst.msk [vmem:[%s584 + $0x39] sm:$0xff] %vm496, %v2949
      %3040 = vst.msk [vmem:[%s584 + $0x49] sm:$0xff] %vm496, %v2951
      %3041 = vst.msk [vmem:[%s584 + $0x51] sm:$0xff] %vm496, %v2953
      %3042 = vst.msk [vmem:[%s584 + $0x61] sm:$0xff] %vm496, %v2955
      %3043 = vst.msk [vmem:[%s584 + $0x69] sm:$0xff] %vm496, %v2957
      %3044 = vst.msk [vmem:[%s584 + $0x79] sm:$0xff] %vm496, %v2959
      %3045 = vst.msk [vmem:[%s584 + $0x81] sm:$0xff] %vm496, %v2961
      %3046 = vst.msk [vmem:[%s584 + $0x91] sm:$0xff] %vm496, %v2963
      %3047 = vst.msk [vmem:[%s584 + $0x99] sm:$0xff] %vm496, %v2965
      %3048 = vst.msk [vmem:[%s584 + $0xa9] sm:$0xff] %vm496, %v2967
      %3049 = vst.msk [vmem:[%s584 + $0xb1] sm:$0xff] %vm496, %v2969
      %3050 = vst.msk [vmem:[%s584 + $0xc1] sm:$0xff] %vm496, %v2971
      %3051 = vst.msk [vmem:[%s584 + $0xc9] sm:$0xff] %vm496, %v2973
      %3052 = vst.msk [vmem:[%s584 + $0xd9] sm:$0xff] %vm496, %v2975
      %3053 = vst.msk [vmem:[%s584 + $0xe1] sm:$0xff] %vm496, %v2977
      %3054 = vst.msk [vmem:[%s584 + $0xf1] sm:$0xff] %vm496, %v2979
      %3055 = vst.msk [vmem:[%s584 + $0xf9] sm:$0xff] %vm496, %v2981
      %3056 = vst.msk [vmem:[%s584 + $0x109] sm:$0xff] %vm496, %v2983
      %3057 = vst.msk [vmem:[%s584 + $0x111] sm:$0xff] %vm496, %v2985
      %3058 = vst.msk [vmem:[%s584 + $0x121] sm:$0xff] %vm496, %v2987
      %3059 = vst.msk [vmem:[%s584 + $0x129] sm:$0xff] %vm496, %v2989
      %3060 = vst.msk [vmem:[%s584 + $0x139] sm:$0xff] %vm496, %v2991
      %3061 = vst.msk [vmem:[%s584 + $0x141] sm:$0xff] %vm496, %v2993
      %3062 = vst.msk [vmem:[%s584 + $0x151] sm:$0xff] %vm496, %v2995
      %3063 = vst.msk [vmem:[%s584 + $0x159] sm:$0xff] %vm496, %v2997
      %3064 = vst.msk [vmem:[%s584 + $0x169] sm:$0xff] %vm496, %v2999
      %3065 = vst.msk [vmem:[%s584 + $0x171] sm:$0xff] %vm496, %v3001
      %v3066 = vld [vmem:[#allocation2] sm:$0xff]
      %v3067 = vld [vmem:[#allocation2 + $0x8] sm:$0xff]
      %v3068 = vld [vmem:[#allocation2 + $0x18] sm:$0xff]
      %v3069 = vld [vmem:[#allocation2 + $0x20] sm:$0xff]
      %v3070 = vld [vmem:[#allocation2 + $0x30] sm:$0xff]
      %v3071 = vld [vmem:[#allocation2 + $0x38] sm:$0xff]
      %v3072 = vld [vmem:[#allocation2 + $0x48] sm:$0xff]
      %v3073 = vld [vmem:[#allocation2 + $0x50] sm:$0xff]
      %v3074 = vld [vmem:[#allocation2 + $0x60] sm:$0xff]
      %v3075 = vld [vmem:[#allocation2 + $0x68] sm:$0xff]
      %v3076 = vld [vmem:[#allocation2 + $0x78] sm:$0xff]
      %v3077 = vld [vmem:[#allocation2 + $0x80] sm:$0xff]
      %v3078 = vld [vmem:[#allocation2 + $0x90] sm:$0xff]
      %v3079 = vld [vmem:[#allocation2 + $0x98] sm:$0xff]
      %v3080 = vld [vmem:[#allocation2 + $0xa8] sm:$0xff]
      %v3081 = vld [vmem:[#allocation2 + $0xb0] sm:$0xff]
      %v3082 = vld [vmem:[#allocation2 + $0xc0] sm:$0xff]
      %v3083 = vld [vmem:[#allocation2 + $0xc8] sm:$0xff]
      %v3084 = vld [vmem:[#allocation2 + $0xd8] sm:$0xff]
      %v3085 = vld [vmem:[#allocation2 + $0xe0] sm:$0xff]
      %v3086 = vld [vmem:[#allocation2 + $0xf0] sm:$0xff]
      %v3087 = vld [vmem:[#allocation2 + $0xf8] sm:$0xff]
      %v3088 = vld [vmem:[#allocation2 + $0x108] sm:$0xff]
      %v3089 = vld [vmem:[#allocation2 + $0x110] sm:$0xff]
      %v3090 = vld [vmem:[#allocation2 + $0x120] sm:$0xff]
      %v3091 = vld [vmem:[#allocation2 + $0x128] sm:$0xff]
      %v3092 = vld [vmem:[#allocation2 + $0x138] sm:$0xff]
      %v3093 = vld [vmem:[#allocation2 + $0x140] sm:$0xff]
      %v3094 = vld [vmem:[#allocation2 + $0x150] sm:$0xff]
      %v3095 = vld [vmem:[#allocation2 + $0x158] sm:$0xff]
      %v3096 = vld [vmem:[#allocation2 + $0x168] sm:$0xff]
      %v3097 = vld [vmem:[#allocation2 + $0x170] sm:$0xff]
      %v3098 = vpack.c.bf16 %v3066, %v3066
      %v3099 = vpack.c.bf16 %v3067, %v3067
      %v3100 = vpack.c.bf16 %v3068, %v3068
      %v3101 = vpack.c.bf16 %v3069, %v3069
      %v3102 = vpack.c.bf16 %v3070, %v3070
      %v3103 = vpack.c.bf16 %v3071, %v3071
      %v3104 = vpack.c.bf16 %v3072, %v3072
      %v3105 = vpack.c.bf16 %v3073, %v3073
      %v3106 = vpack.c.bf16 %v3074, %v3074
      %v3107 = vpack.c.bf16 %v3075, %v3075
      %v3108 = vpack.c.bf16 %v3076, %v3076
      %v3109 = vpack.c.bf16 %v3077, %v3077
      %v3110 = vpack.c.bf16 %v3078, %v3078
      %v3111 = vpack.c.bf16 %v3079, %v3079
      %v3112 = vpack.c.bf16 %v3080, %v3080
      %v3113 = vpack.c.bf16 %v3081, %v3081
      %v3114 = vpack.c.bf16 %v3082, %v3082
      %v3115 = vpack.c.bf16 %v3083, %v3083
      %v3116 = vpack.c.bf16 %v3084, %v3084
      %v3117 = vpack.c.bf16 %v3085, %v3085
      %v3118 = vpack.c.bf16 %v3086, %v3086
      %v3119 = vpack.c.bf16 %v3087, %v3087
      %v3120 = vpack.c.bf16 %v3088, %v3088
      %v3121 = vpack.c.bf16 %v3089, %v3089
      %v3122 = vpack.c.bf16 %v3090, %v3090
      %v3123 = vpack.c.bf16 %v3091, %v3091
      %v3124 = vpack.c.bf16 %v3092, %v3092
      %v3125 = vpack.c.bf16 %v3093, %v3093
      %v3126 = vpack.c.bf16 %v3094, %v3094
      %v3127 = vpack.c.bf16 %v3095, %v3095
      %v3128 = vpack.c.bf16 %v3096, %v3096
      %v3129 = vpack.c.bf16 %v3097, %v3097
      %3130 = vst.msk [vmem:[#allocation3] sm:$0xf] %vm681, %v3098
      %3131 = vst.msk [vmem:[#allocation3 + $0x4] sm:$0xf] %vm681, %v3099
      %3132 = vst.msk [vmem:[#allocation3 + $0x8] sm:$0xf] %vm681, %v3100
      %3133 = vst.msk [vmem:[#allocation3 + $0xc] sm:$0xf] %vm681, %v3101
      %3134 = vst.msk [vmem:[#allocation3 + $0x10] sm:$0xf] %vm681, %v3102
      %3135 = vst.msk [vmem:[#allocation3 + $0x14] sm:$0xf] %vm681, %v3103
      %3136 = vst.msk [vmem:[#allocation3 + $0x18] sm:$0xf] %vm681, %v3104
      %3137 = vst.msk [vmem:[#allocation3 + $0x1c] sm:$0xf] %vm681, %v3105
      %3138 = vst.msk [vmem:[#allocation3 + $0x20] sm:$0xf] %vm681, %v3106
      %3139 = vst.msk [vmem:[#allocation3 + $0x24] sm:$0xf] %vm681, %v3107
      %3140 = vst.msk [vmem:[#allocation3 + $0x28] sm:$0xf] %vm681, %v3108
      %3141 = vst.msk [vmem:[#allocation3 + $0x2c] sm:$0xf] %vm681, %v3109
      %3142 = vst.msk [vmem:[#allocation3 + $0x30] sm:$0xf] %vm681, %v3110
      %3143 = vst.msk [vmem:[#allocation3 + $0x34] sm:$0xf] %vm681, %v3111
      %3144 = vst.msk [vmem:[#allocation3 + $0x38] sm:$0xf] %vm681, %v3112
      %3145 = vst.msk [vmem:[#allocation3 + $0x3c] sm:$0xf] %vm681, %v3113
      %3146 = vst.msk [vmem:[#allocation3 + $0x40] sm:$0xf] %vm681, %v3114
      %3147 = vst.msk [vmem:[#allocation3 + $0x44] sm:$0xf] %vm681, %v3115
      %3148 = vst.msk [vmem:[#allocation3 + $0x48] sm:$0xf] %vm681, %v3116
      %3149 = vst.msk [vmem:[#allocation3 + $0x4c] sm:$0xf] %vm681, %v3117
      %3150 = vst.msk [vmem:[#allocation3 + $0x50] sm:$0xf] %vm681, %v3118
      %3151 = vst.msk [vmem:[#allocation3 + $0x54] sm:$0xf] %vm681, %v3119
      %3152 = vst.msk [vmem:[#allocation3 + $0x58] sm:$0xf] %vm681, %v3120
      %3153 = vst.msk [vmem:[#allocation3 + $0x5c] sm:$0xf] %vm681, %v3121
      %3154 = vst.msk [vmem:[#allocation3 + $0x60] sm:$0xf] %vm681, %v3122
      %3155 = vst.msk [vmem:[#allocation3 + $0x64] sm:$0xf] %vm681, %v3123
      %3156 = vst.msk [vmem:[#allocation3 + $0x68] sm:$0xf] %vm681, %v3124
      %3157 = vst.msk [vmem:[#allocation3 + $0x6c] sm:$0xf] %vm681, %v3125
      %3158 = vst.msk [vmem:[#allocation3 + $0x70] sm:$0xf] %vm681, %v3126
      %3159 = vst.msk [vmem:[#allocation3 + $0x74] sm:$0xf] %vm681, %v3127
      %3160 = vst.msk [vmem:[#allocation3 + $0x78] sm:$0xf] %vm681, %v3128
      %3161 = vst.msk [vmem:[#allocation3 + $0x7c] sm:$0xf] %vm681, %v3129
      %v3162 = vld [vmem:[#allocation2 + $0x1] sm:$0xff]
      %v3163 = vld [vmem:[#allocation2 + $0x9] sm:$0xff]
      %v3164 = vld [vmem:[#allocation2 + $0x19] sm:$0xff]
      %v3165 = vld [vmem:[#allocation2 + $0x21] sm:$0xff]
      %v3166 = vld [vmem:[#allocation2 + $0x31] sm:$0xff]
      %v3167 = vld [vmem:[#allocation2 + $0x39] sm:$0xff]
      %v3168 = vld [vmem:[#allocation2 + $0x49] sm:$0xff]
      %v3169 = vld [vmem:[#allocation2 + $0x51] sm:$0xff]
      %v3170 = vld [vmem:[#allocation2 + $0x61] sm:$0xff]
      %v3171 = vld [vmem:[#allocation2 + $0x69] sm:$0xff]
      %v3172 = vld [vmem:[#allocation2 + $0x79] sm:$0xff]
      %v3173 = vld [vmem:[#allocation2 + $0x81] sm:$0xff]
      %v3174 = vld [vmem:[#allocation2 + $0x91] sm:$0xff]
      %v3175 = vld [vmem:[#allocation2 + $0x99] sm:$0xff]
      %v3176 = vld [vmem:[#allocation2 + $0xa9] sm:$0xff]
      %v3177 = vld [vmem:[#allocation2 + $0xb1] sm:$0xff]
      %v3178 = vld [vmem:[#allocation2 + $0xc1] sm:$0xff]
      %v3179 = vld [vmem:[#allocation2 + $0xc9] sm:$0xff]
      %v3180 = vld [vmem:[#allocation2 + $0xd9] sm:$0xff]
      %v3181 = vld [vmem:[#allocation2 + $0xe1] sm:$0xff]
      %v3182 = vld [vmem:[#allocation2 + $0xf1] sm:$0xff]
      %v3183 = vld [vmem:[#allocation2 + $0xf9] sm:$0xff]
      %v3184 = vld [vmem:[#allocation2 + $0x109] sm:$0xff]
      %v3185 = vld [vmem:[#allocation2 + $0x111] sm:$0xff]
      %v3186 = vld [vmem:[#allocation2 + $0x121] sm:$0xff]
      %v3187 = vld [vmem:[#allocation2 + $0x129] sm:$0xff]
      %v3188 = vld [vmem:[#allocation2 + $0x139] sm:$0xff]
      %v3189 = vld [vmem:[#allocation2 + $0x141] sm:$0xff]
      %v3190 = vld [vmem:[#allocation2 + $0x151] sm:$0xff]
      %v3191 = vld [vmem:[#allocation2 + $0x159] sm:$0xff]
      %v3192 = vld [vmem:[#allocation2 + $0x169] sm:$0xff]
      %v3193 = vld [vmem:[#allocation2 + $0x171] sm:$0xff]
      %v3194 = vpack.c.bf16 %v3162, %v3162
      %v3195 = vpack.c.bf16 %v3163, %v3163
      %v3196 = vpack.c.bf16 %v3164, %v3164
      %v3197 = vpack.c.bf16 %v3165, %v3165
      %v3198 = vpack.c.bf16 %v3166, %v3166
      %v3199 = vpack.c.bf16 %v3167, %v3167
      %v3200 = vpack.c.bf16 %v3168, %v3168
      %v3201 = vpack.c.bf16 %v3169, %v3169
      %v3202 = vpack.c.bf16 %v3170, %v3170
      %v3203 = vpack.c.bf16 %v3171, %v3171
      %v3204 = vpack.c.bf16 %v3172, %v3172
      %v3205 = vpack.c.bf16 %v3173, %v3173
      %v3206 = vpack.c.bf16 %v3174, %v3174
      %v3207 = vpack.c.bf16 %v3175, %v3175
      %v3208 = vpack.c.bf16 %v3176, %v3176
      %v3209 = vpack.c.bf16 %v3177, %v3177
      %v3210 = vpack.c.bf16 %v3178, %v3178
      %v3211 = vpack.c.bf16 %v3179, %v3179
      %v3212 = vpack.c.bf16 %v3180, %v3180
      %v3213 = vpack.c.bf16 %v3181, %v3181
      %v3214 = vpack.c.bf16 %v3182, %v3182
      %v3215 = vpack.c.bf16 %v3183, %v3183
      %v3216 = vpack.c.bf16 %v3184, %v3184
      %v3217 = vpack.c.bf16 %v3185, %v3185
      %v3218 = vpack.c.bf16 %v3186, %v3186
      %v3219 = vpack.c.bf16 %v3187, %v3187
      %v3220 = vpack.c.bf16 %v3188, %v3188
      %v3221 = vpack.c.bf16 %v3189, %v3189
      %v3222 = vpack.c.bf16 %v3190, %v3190
      %v3223 = vpack.c.bf16 %v3191, %v3191
      %v3224 = vpack.c.bf16 %v3192, %v3192
      %v3225 = vpack.c.bf16 %v3193, %v3193
      %3258 = vrot.lane.b32.xlu0 %v3194, 8
      %v3259 = vpop.permute.xlu0 %3258
      %3260 = vrot.lane.b32.xlu0 %v3195, 8
      %v3261 = vpop.permute.xlu0 %3260
      %3262 = vrot.lane.b32.xlu0 %v3196, 8
      %v3263 = vpop.permute.xlu0 %3262
      %3264 = vrot.lane.b32.xlu0 %v3197, 8
      %v3265 = vpop.permute.xlu0 %3264
      %3266 = vrot.lane.b32.xlu0 %v3198, 8
      %v3267 = vpop.permute.xlu0 %3266
      %3268 = vrot.lane.b32.xlu0 %v3199, 8
      %v3269 = vpop.permute.xlu0 %3268
      %3270 = vrot.lane.b32.xlu0 %v3200, 8
      %v3271 = vpop.permute.xlu0 %3270
      %3272 = vrot.lane.b32.xlu0 %v3201, 8
      %v3273 = vpop.permute.xlu0 %3272
      %3274 = vrot.lane.b32.xlu0 %v3202, 8
      %v3275 = vpop.permute.xlu0 %3274
      %3276 = vrot.lane.b32.xlu0 %v3203, 8
      %v3277 = vpop.permute.xlu0 %3276
      %3278 = vrot.lane.b32.xlu0 %v3204, 8
      %v3279 = vpop.permute.xlu0 %3278
      %3280 = vrot.lane.b32.xlu0 %v3205, 8
      %v3281 = vpop.permute.xlu0 %3280
      %3282 = vrot.lane.b32.xlu0 %v3206, 8
      %v3283 = vpop.permute.xlu0 %3282
      %3284 = vrot.lane.b32.xlu0 %v3207, 8
      %v3285 = vpop.permute.xlu0 %3284
      %3286 = vrot.lane.b32.xlu0 %v3208, 8
      %v3287 = vpop.permute.xlu0 %3286
      %3288 = vrot.lane.b32.xlu0 %v3209, 8
      %v3289 = vpop.permute.xlu0 %3288
      %3290 = vrot.lane.b32.xlu0 %v3210, 8
      %v3291 = vpop.permute.xlu0 %3290
      %3292 = vrot.lane.b32.xlu0 %v3211, 8
      %v3293 = vpop.permute.xlu0 %3292
      %3294 = vrot.lane.b32.xlu0 %v3212, 8
      %v3295 = vpop.permute.xlu0 %3294
      %3296 = vrot.lane.b32.xlu0 %v3213, 8
      %v3297 = vpop.permute.xlu0 %3296
      %3298 = vrot.lane.b32.xlu0 %v3214, 8
      %v3299 = vpop.permute.xlu0 %3298
      %3300 = vrot.lane.b32.xlu0 %v3215, 8
      %v3301 = vpop.permute.xlu0 %3300
      %3302 = vrot.lane.b32.xlu0 %v3216, 8
      %v3303 = vpop.permute.xlu0 %3302
      %3304 = vrot.lane.b32.xlu0 %v3217, 8
      %v3305 = vpop.permute.xlu0 %3304
      %3306 = vrot.lane.b32.xlu0 %v3218, 8
      %v3307 = vpop.permute.xlu0 %3306
      %3308 = vrot.lane.b32.xlu0 %v3219, 8
      %v3309 = vpop.permute.xlu0 %3308
      %3310 = vrot.lane.b32.xlu0 %v3220, 8
      %v3311 = vpop.permute.xlu0 %3310
      %3312 = vrot.lane.b32.xlu0 %v3221, 8
      %v3313 = vpop.permute.xlu0 %3312
      %3314 = vrot.lane.b32.xlu0 %v3222, 8
      %v3315 = vpop.permute.xlu0 %3314
      %3316 = vrot.lane.b32.xlu0 %v3223, 8
      %v3317 = vpop.permute.xlu0 %3316
      %3318 = vrot.lane.b32.xlu0 %v3224, 8
      %v3319 = vpop.permute.xlu0 %3318
      %3320 = vrot.lane.b32.xlu0 %v3225, 8
      %v3321 = vpop.permute.xlu0 %3320
      %3354 = vst.msk [vmem:[#allocation3] sm:$0xf] %vm906, %v3259
      %3355 = vst.msk [vmem:[#allocation3 + $0x4] sm:$0xf] %vm906, %v3261
      %3356 = vst.msk [vmem:[#allocation3 + $0x8] sm:$0xf] %vm906, %v3263
      %3357 = vst.msk [vmem:[#allocation3 + $0xc] sm:$0xf] %vm906, %v3265
      %3358 = vst.msk [vmem:[#allocation3 + $0x10] sm:$0xf] %vm906, %v3267
      %3359 = vst.msk [vmem:[#allocation3 + $0x14] sm:$0xf] %vm906, %v3269
      %3360 = vst.msk [vmem:[#allocation3 + $0x18] sm:$0xf] %vm906, %v3271
      %3361 = vst.msk [vmem:[#allocation3 + $0x1c] sm:$0xf] %vm906, %v3273
      %3362 = vst.msk [vmem:[#allocation3 + $0x20] sm:$0xf] %vm906, %v3275
      %3363 = vst.msk [vmem:[#allocation3 + $0x24] sm:$0xf] %vm906, %v3277
      %3364 = vst.msk [vmem:[#allocation3 + $0x28] sm:$0xf] %vm906, %v3279
      %3365 = vst.msk [vmem:[#allocation3 + $0x2c] sm:$0xf] %vm906, %v3281
      %3366 = vst.msk [vmem:[#allocation3 + $0x30] sm:$0xf] %vm906, %v3283
      %3367 = vst.msk [vmem:[#allocation3 + $0x34] sm:$0xf] %vm906, %v3285
      %3368 = vst.msk [vmem:[#allocation3 + $0x38] sm:$0xf] %vm906, %v3287
      %3369 = vst.msk [vmem:[#allocation3 + $0x3c] sm:$0xf] %vm906, %v3289
      %3370 = vst.msk [vmem:[#allocation3 + $0x40] sm:$0xf] %vm906, %v3291
      %3371 = vst.msk [vmem:[#allocation3 + $0x44] sm:$0xf] %vm906, %v3293
      %3372 = vst.msk [vmem:[#allocation3 + $0x48] sm:$0xf] %vm906, %v3295
      %3373 = vst.msk [vmem:[#allocation3 + $0x4c] sm:$0xf] %vm906, %v3297
      %3374 = vst.msk [vmem:[#allocation3 + $0x50] sm:$0xf] %vm906, %v3299
      %3375 = vst.msk [vmem:[#allocation3 + $0x54] sm:$0xf] %vm906, %v3301
      %3376 = vst.msk [vmem:[#allocation3 + $0x58] sm:$0xf] %vm906, %v3303
      %3377 = vst.msk [vmem:[#allocation3 + $0x5c] sm:$0xf] %vm906, %v3305
      %3378 = vst.msk [vmem:[#allocation3 + $0x60] sm:$0xf] %vm906, %v3307
      %3379 = vst.msk [vmem:[#allocation3 + $0x64] sm:$0xf] %vm906, %v3309
      %3380 = vst.msk [vmem:[#allocation3 + $0x68] sm:$0xf] %vm906, %v3311
      %3381 = vst.msk [vmem:[#allocation3 + $0x6c] sm:$0xf] %vm906, %v3313
      %3382 = vst.msk [vmem:[#allocation3 + $0x70] sm:$0xf] %vm906, %v3315
      %3383 = vst.msk [vmem:[#allocation3 + $0x74] sm:$0xf] %vm906, %v3317
      %3384 = vst.msk [vmem:[#allocation3 + $0x78] sm:$0xf] %vm906, %v3319
      %3385 = vst.msk [vmem:[#allocation3 + $0x7c] sm:$0xf] %vm906, %v3321
      %v3386 = vld [vmem:[#allocation2 + $0x2] sm:$0xff]
      %v3387 = vld [vmem:[#allocation2 + $0xa] sm:$0xff]
      %v3388 = vld [vmem:[#allocation2 + $0x1a] sm:$0xff]
      %v3389 = vld [vmem:[#allocation2 + $0x22] sm:$0xff]
      %v3390 = vld [vmem:[#allocation2 + $0x32] sm:$0xff]
      %v3391 = vld [vmem:[#allocation2 + $0x3a] sm:$0xff]
      %v3392 = vld [vmem:[#allocation2 + $0x4a] sm:$0xff]
      %v3393 = vld [vmem:[#allocation2 + $0x52] sm:$0xff]
      %v3394 = vld [vmem:[#allocation2 + $0x62] sm:$0xff]
      %v3395 = vld [vmem:[#allocation2 + $0x6a] sm:$0xff]
      %v3396 = vld [vmem:[#allocation2 + $0x7a] sm:$0xff]
      %v3397 = vld [vmem:[#allocation2 + $0x82] sm:$0xff]
      %v3398 = vld [vmem:[#allocation2 + $0x92] sm:$0xff]
      %v3399 = vld [vmem:[#allocation2 + $0x9a] sm:$0xff]
      %v3400 = vld [vmem:[#allocation2 + $0xaa] sm:$0xff]
      %v3401 = vld [vmem:[#allocation2 + $0xb2] sm:$0xff]
      %v3402 = vld [vmem:[#allocation2 + $0xc2] sm:$0xff]
      %v3403 = vld [vmem:[#allocation2 + $0xca] sm:$0xff]
      %v3404 = vld [vmem:[#allocation2 + $0xda] sm:$0xff]
      %v3405 = vld [vmem:[#allocation2 + $0xe2] sm:$0xff]
      %v3406 = vld [vmem:[#allocation2 + $0xf2] sm:$0xff]
      %v3407 = vld [vmem:[#allocation2 + $0xfa] sm:$0xff]
      %v3408 = vld [vmem:[#allocation2 + $0x10a] sm:$0xff]
      %v3409 = vld [vmem:[#allocation2 + $0x112] sm:$0xff]
      %v3410 = vld [vmem:[#allocation2 + $0x122] sm:$0xff]
      %v3411 = vld [vmem:[#allocation2 + $0x12a] sm:$0xff]
      %v3412 = vld [vmem:[#allocation2 + $0x13a] sm:$0xff]
      %v3413 = vld [vmem:[#allocation2 + $0x142] sm:$0xff]
      %v3414 = vld [vmem:[#allocation2 + $0x152] sm:$0xff]
      %v3415 = vld [vmem:[#allocation2 + $0x15a] sm:$0xff]
      %v3416 = vld [vmem:[#allocation2 + $0x16a] sm:$0xff]
      %v3417 = vld [vmem:[#allocation2 + $0x172] sm:$0xff]
      %v3418 = vpack.c.bf16 %v3386, %v3386
      %v3419 = vpack.c.bf16 %v3387, %v3387
      %v3420 = vpack.c.bf16 %v3388, %v3388
      %v3421 = vpack.c.bf16 %v3389, %v3389
      %v3422 = vpack.c.bf16 %v3390, %v3390
      %v3423 = vpack.c.bf16 %v3391, %v3391
      %v3424 = vpack.c.bf16 %v3392, %v3392
      %v3425 = vpack.c.bf16 %v3393, %v3393
      %v3426 = vpack.c.bf16 %v3394, %v3394
      %v3427 = vpack.c.bf16 %v3395, %v3395
      %v3428 = vpack.c.bf16 %v3396, %v3396
      %v3429 = vpack.c.bf16 %v3397, %v3397
      %v3430 = vpack.c.bf16 %v3398, %v3398
      %v3431 = vpack.c.bf16 %v3399, %v3399
      %v3432 = vpack.c.bf16 %v3400, %v3400
      %v3433 = vpack.c.bf16 %v3401, %v3401
      %v3434 = vpack.c.bf16 %v3402, %v3402
      %v3435 = vpack.c.bf16 %v3403, %v3403
      %v3436 = vpack.c.bf16 %v3404, %v3404
      %v3437 = vpack.c.bf16 %v3405, %v3405
      %v3438 = vpack.c.bf16 %v3406, %v3406
      %v3439 = vpack.c.bf16 %v3407, %v3407
      %v3440 = vpack.c.bf16 %v3408, %v3408
      %v3441 = vpack.c.bf16 %v3409, %v3409
      %v3442 = vpack.c.bf16 %v3410, %v3410
      %v3443 = vpack.c.bf16 %v3411, %v3411
      %v3444 = vpack.c.bf16 %v3412, %v3412
      %v3445 = vpack.c.bf16 %v3413, %v3413
      %v3446 = vpack.c.bf16 %v3414, %v3414
      %v3447 = vpack.c.bf16 %v3415, %v3415
      %v3448 = vpack.c.bf16 %v3416, %v3416
      %v3449 = vpack.c.bf16 %v3417, %v3417
      %3482 = vrot.lane.b32.xlu0 %v3418, 16
      %v3483 = vpop.permute.xlu0 %3482
      %3484 = vrot.lane.b32.xlu0 %v3419, 16
      %v3485 = vpop.permute.xlu0 %3484
      %3486 = vrot.lane.b32.xlu0 %v3420, 16
      %v3487 = vpop.permute.xlu0 %3486
      %3488 = vrot.lane.b32.xlu0 %v3421, 16
      %v3489 = vpop.permute.xlu0 %3488
      %3490 = vrot.lane.b32.xlu0 %v3422, 16
      %v3491 = vpop.permute.xlu0 %3490
      %3492 = vrot.lane.b32.xlu0 %v3423, 16
      %v3493 = vpop.permute.xlu0 %3492
      %3494 = vrot.lane.b32.xlu0 %v3424, 16
      %v3495 = vpop.permute.xlu0 %3494
      %3496 = vrot.lane.b32.xlu0 %v3425, 16
      %v3497 = vpop.permute.xlu0 %3496
      %3498 = vrot.lane.b32.xlu0 %v3426, 16
      %v3499 = vpop.permute.xlu0 %3498
      %3500 = vrot.lane.b32.xlu0 %v3427, 16
      %v3501 = vpop.permute.xlu0 %3500
      %3502 = vrot.lane.b32.xlu0 %v3428, 16
      %v3503 = vpop.permute.xlu0 %3502
      %3504 = vrot.lane.b32.xlu0 %v3429, 16
      %v3505 = vpop.permute.xlu0 %3504
      %3506 = vrot.lane.b32.xlu0 %v3430, 16
      %v3507 = vpop.permute.xlu0 %3506
      %3508 = vrot.lane.b32.xlu0 %v3431, 16
      %v3509 = vpop.permute.xlu0 %3508
      %3510 = vrot.lane.b32.xlu0 %v3432, 16
      %v3511 = vpop.permute.xlu0 %3510
      %3512 = vrot.lane.b32.xlu0 %v3433, 16
      %v3513 = vpop.permute.xlu0 %3512
      %3514 = vrot.lane.b32.xlu0 %v3434, 16
      %v3515 = vpop.permute.xlu0 %3514
      %3516 = vrot.lane.b32.xlu0 %v3435, 16
      %v3517 = vpop.permute.xlu0 %3516
      %3518 = vrot.lane.b32.xlu0 %v3436, 16
      %v3519 = vpop.permute.xlu0 %3518
      %3520 = vrot.lane.b32.xlu0 %v3437, 16
      %v3521 = vpop.permute.xlu0 %3520
      %3522 = vrot.lane.b32.xlu0 %v3438, 16
      %v3523 = vpop.permute.xlu0 %3522
      %3524 = vrot.lane.b32.xlu0 %v3439, 16
      %v3525 = vpop.permute.xlu0 %3524
      %3526 = vrot.lane.b32.xlu0 %v3440, 16
      %v3527 = vpop.permute.xlu0 %3526
      %3528 = vrot.lane.b32.xlu0 %v3441, 16
      %v3529 = vpop.permute.xlu0 %3528
      %3530 = vrot.lane.b32.xlu0 %v3442, 16
      %v3531 = vpop.permute.xlu0 %3530
      %3532 = vrot.lane.b32.xlu0 %v3443, 16
      %v3533 = vpop.permute.xlu0 %3532
      %3534 = vrot.lane.b32.xlu0 %v3444, 16
      %v3535 = vpop.permute.xlu0 %3534
      %3536 = vrot.lane.b32.xlu0 %v3445, 16
      %v3537 = vpop.permute.xlu0 %3536
      %3538 = vrot.lane.b32.xlu0 %v3446, 16
      %v3539 = vpop.permute.xlu0 %3538
      %3540 = vrot.lane.b32.xlu0 %v3447, 16
      %v3541 = vpop.permute.xlu0 %3540
      %3542 = vrot.lane.b32.xlu0 %v3448, 16
      %v3543 = vpop.permute.xlu0 %3542
      %3544 = vrot.lane.b32.xlu0 %v3449, 16
      %v3545 = vpop.permute.xlu0 %3544
      %3578 = vst.msk [vmem:[#allocation3] sm:$0xf] %vm1131, %v3483
      %3579 = vst.msk [vmem:[#allocation3 + $0x4] sm:$0xf] %vm1131, %v3485
      %3580 = vst.msk [vmem:[#allocation3 + $0x8] sm:$0xf] %vm1131, %v3487
      %3581 = vst.msk [vmem:[#allocation3 + $0xc] sm:$0xf] %vm1131, %v3489
      %3582 = vst.msk [vmem:[#allocation3 + $0x10] sm:$0xf] %vm1131, %v3491
      %3583 = vst.msk [vmem:[#allocation3 + $0x14] sm:$0xf] %vm1131, %v3493
      %3584 = vst.msk [vmem:[#allocation3 + $0x18] sm:$0xf] %vm1131, %v3495
      %3585 = vst.msk [vmem:[#allocation3 + $0x1c] sm:$0xf] %vm1131, %v3497
      %3586 = vst.msk [vmem:[#allocation3 + $0x20] sm:$0xf] %vm1131, %v3499
      %3587 = vst.msk [vmem:[#allocation3 + $0x24] sm:$0xf] %vm1131, %v3501
      %3588 = vst.msk [vmem:[#allocation3 + $0x28] sm:$0xf] %vm1131, %v3503
      %3589 = vst.msk [vmem:[#allocation3 + $0x2c] sm:$0xf] %vm1131, %v3505
      %3590 = vst.msk [vmem:[#allocation3 + $0x30] sm:$0xf] %vm1131, %v3507
      %3591 = vst.msk [vmem:[#allocation3 + $0x34] sm:$0xf] %vm1131, %v3509
      %3592 = vst.msk [vmem:[#allocation3 + $0x38] sm:$0xf] %vm1131, %v3511
      %3593 = vst.msk [vmem:[#allocation3 + $0x3c] sm:$0xf] %vm1131, %v3513
      %3594 = vst.msk [vmem:[#allocation3 + $0x40] sm:$0xf] %vm1131, %v3515
      %3595 = vst.msk [vmem:[#allocation3 + $0x44] sm:$0xf] %vm1131, %v3517
      %3596 = vst.msk [vmem:[#allocation3 + $0x48] sm:$0xf] %vm1131, %v3519
      %3597 = vst.msk [vmem:[#allocation3 + $0x4c] sm:$0xf] %vm1131, %v3521
      %3598 = vst.msk [vmem:[#allocation3 + $0x50] sm:$0xf] %vm1131, %v3523
      %3599 = vst.msk [vmem:[#allocation3 + $0x54] sm:$0xf] %vm1131, %v3525
      %3600 = vst.msk [vmem:[#allocation3 + $0x58] sm:$0xf] %vm1131, %v3527
      %3601 = vst.msk [vmem:[#allocation3 + $0x5c] sm:$0xf] %vm1131, %v3529
      %3602 = vst.msk [vmem:[#allocation3 + $0x60] sm:$0xf] %vm1131, %v3531
      %3603 = vst.msk [vmem:[#allocation3 + $0x64] sm:$0xf] %vm1131, %v3533
      %3604 = vst.msk [vmem:[#allocation3 + $0x68] sm:$0xf] %vm1131, %v3535
      %3605 = vst.msk [vmem:[#allocation3 + $0x6c] sm:$0xf] %vm1131, %v3537
      %3606 = vst.msk [vmem:[#allocation3 + $0x70] sm:$0xf] %vm1131, %v3539
      %3607 = vst.msk [vmem:[#allocation3 + $0x74] sm:$0xf] %vm1131, %v3541
      %3608 = vst.msk [vmem:[#allocation3 + $0x78] sm:$0xf] %vm1131, %v3543
      %3609 = vst.msk [vmem:[#allocation3 + $0x7c] sm:$0xf] %vm1131, %v3545
      %v3610 = vld [vmem:[%s584] sm:$0xff]
      %v3611 = vld [vmem:[%s584 + $0x8] sm:$0xff]
      %v3612 = vld [vmem:[%s584 + $0x18] sm:$0xff]
      %v3613 = vld [vmem:[%s584 + $0x20] sm:$0xff]
      %v3614 = vld [vmem:[%s584 + $0x30] sm:$0xff]
      %v3615 = vld [vmem:[%s584 + $0x38] sm:$0xff]
      %v3616 = vld [vmem:[%s584 + $0x48] sm:$0xff]
      %v3617 = vld [vmem:[%s584 + $0x50] sm:$0xff]
      %v3618 = vld [vmem:[%s584 + $0x60] sm:$0xff]
      %v3619 = vld [vmem:[%s584 + $0x68] sm:$0xff]
      %v3620 = vld [vmem:[%s584 + $0x78] sm:$0xff]
      %v3621 = vld [vmem:[%s584 + $0x80] sm:$0xff]
      %v3622 = vld [vmem:[%s584 + $0x90] sm:$0xff]
      %v3623 = vld [vmem:[%s584 + $0x98] sm:$0xff]
      %v3624 = vld [vmem:[%s584 + $0xa8] sm:$0xff]
      %v3625 = vld [vmem:[%s584 + $0xb0] sm:$0xff]
      %v3626 = vld [vmem:[%s584 + $0xc0] sm:$0xff]
      %v3627 = vld [vmem:[%s584 + $0xc8] sm:$0xff]
      %v3628 = vld [vmem:[%s584 + $0xd8] sm:$0xff]
      %v3629 = vld [vmem:[%s584 + $0xe0] sm:$0xff]
      %v3630 = vld [vmem:[%s584 + $0xf0] sm:$0xff]
      %v3631 = vld [vmem:[%s584 + $0xf8] sm:$0xff]
      %v3632 = vld [vmem:[%s584 + $0x108] sm:$0xff]
      %v3633 = vld [vmem:[%s584 + $0x110] sm:$0xff]
      %v3634 = vld [vmem:[%s584 + $0x120] sm:$0xff]
      %v3635 = vld [vmem:[%s584 + $0x128] sm:$0xff]
      %v3636 = vld [vmem:[%s584 + $0x138] sm:$0xff]
      %v3637 = vld [vmem:[%s584 + $0x140] sm:$0xff]
      %v3638 = vld [vmem:[%s584 + $0x150] sm:$0xff]
      %v3639 = vld [vmem:[%s584 + $0x158] sm:$0xff]
      %v3640 = vld [vmem:[%s584 + $0x168] sm:$0xff]
      %v3641 = vld [vmem:[%s584 + $0x170] sm:$0xff]
      %v3642 = vpack.c.bf16 %v3610, %v3610
      %v3643 = vpack.c.bf16 %v3611, %v3611
      %v3644 = vpack.c.bf16 %v3612, %v3612
      %v3645 = vpack.c.bf16 %v3613, %v3613
      %v3646 = vpack.c.bf16 %v3614, %v3614
      %v3647 = vpack.c.bf16 %v3615, %v3615
      %v3648 = vpack.c.bf16 %v3616, %v3616
      %v3649 = vpack.c.bf16 %v3617, %v3617
      %v3650 = vpack.c.bf16 %v3618, %v3618
      %v3651 = vpack.c.bf16 %v3619, %v3619
      %v3652 = vpack.c.bf16 %v3620, %v3620
      %v3653 = vpack.c.bf16 %v3621, %v3621
      %v3654 = vpack.c.bf16 %v3622, %v3622
      %v3655 = vpack.c.bf16 %v3623, %v3623
      %v3656 = vpack.c.bf16 %v3624, %v3624
      %v3657 = vpack.c.bf16 %v3625, %v3625
      %v3658 = vpack.c.bf16 %v3626, %v3626
      %v3659 = vpack.c.bf16 %v3627, %v3627
      %v3660 = vpack.c.bf16 %v3628, %v3628
      %v3661 = vpack.c.bf16 %v3629, %v3629
      %v3662 = vpack.c.bf16 %v3630, %v3630
      %v3663 = vpack.c.bf16 %v3631, %v3631
      %v3664 = vpack.c.bf16 %v3632, %v3632
      %v3665 = vpack.c.bf16 %v3633, %v3633
      %v3666 = vpack.c.bf16 %v3634, %v3634
      %v3667 = vpack.c.bf16 %v3635, %v3635
      %v3668 = vpack.c.bf16 %v3636, %v3636
      %v3669 = vpack.c.bf16 %v3637, %v3637
      %v3670 = vpack.c.bf16 %v3638, %v3638
      %v3671 = vpack.c.bf16 %v3639, %v3639
      %v3672 = vpack.c.bf16 %v3640, %v3640
      %v3673 = vpack.c.bf16 %v3641, %v3641
      %3706 = vrot.lane.b32.xlu0 %v3642, 24
      %v3707 = vpop.permute.xlu0 %3706
      %3708 = vrot.lane.b32.xlu0 %v3643, 24
      %v3709 = vpop.permute.xlu0 %3708
      %3710 = vrot.lane.b32.xlu0 %v3644, 24
      %v3711 = vpop.permute.xlu0 %3710
      %3712 = vrot.lane.b32.xlu0 %v3645, 24
      %v3713 = vpop.permute.xlu0 %3712
      %3714 = vrot.lane.b32.xlu0 %v3646, 24
      %v3715 = vpop.permute.xlu0 %3714
      %3716 = vrot.lane.b32.xlu0 %v3647, 24
      %v3717 = vpop.permute.xlu0 %3716
      %3718 = vrot.lane.b32.xlu0 %v3648, 24
      %v3719 = vpop.permute.xlu0 %3718
      %3720 = vrot.lane.b32.xlu0 %v3649, 24
      %v3721 = vpop.permute.xlu0 %3720
      %3722 = vrot.lane.b32.xlu0 %v3650, 24
      %v3723 = vpop.permute.xlu0 %3722
      %3724 = vrot.lane.b32.xlu0 %v3651, 24
      %v3725 = vpop.permute.xlu0 %3724
      %3726 = vrot.lane.b32.xlu0 %v3652, 24
      %v3727 = vpop.permute.xlu0 %3726
      %3728 = vrot.lane.b32.xlu0 %v3653, 24
      %v3729 = vpop.permute.xlu0 %3728
      %3730 = vrot.lane.b32.xlu0 %v3654, 24
      %v3731 = vpop.permute.xlu0 %3730
      %3732 = vrot.lane.b32.xlu0 %v3655, 24
      %v3733 = vpop.permute.xlu0 %3732
      %3734 = vrot.lane.b32.xlu0 %v3656, 24
      %v3735 = vpop.permute.xlu0 %3734
      %3736 = vrot.lane.b32.xlu0 %v3657, 24
      %v3737 = vpop.permute.xlu0 %3736
      %3738 = vrot.lane.b32.xlu0 %v3658, 24
      %v3739 = vpop.permute.xlu0 %3738
      %3740 = vrot.lane.b32.xlu0 %v3659, 24
      %v3741 = vpop.permute.xlu0 %3740
      %3742 = vrot.lane.b32.xlu0 %v3660, 24
      %v3743 = vpop.permute.xlu0 %3742
      %3744 = vrot.lane.b32.xlu0 %v3661, 24
      %v3745 = vpop.permute.xlu0 %3744
      %3746 = vrot.lane.b32.xlu0 %v3662, 24
      %v3747 = vpop.permute.xlu0 %3746
      %3748 = vrot.lane.b32.xlu0 %v3663, 24
      %v3749 = vpop.permute.xlu0 %3748
      %3750 = vrot.lane.b32.xlu0 %v3664, 24
      %v3751 = vpop.permute.xlu0 %3750
      %3752 = vrot.lane.b32.xlu0 %v3665, 24
      %v3753 = vpop.permute.xlu0 %3752
      %3754 = vrot.lane.b32.xlu0 %v3666, 24
      %v3755 = vpop.permute.xlu0 %3754
      %3756 = vrot.lane.b32.xlu0 %v3667, 24
      %v3757 = vpop.permute.xlu0 %3756
      %3758 = vrot.lane.b32.xlu0 %v3668, 24
      %v3759 = vpop.permute.xlu0 %3758
      %3760 = vrot.lane.b32.xlu0 %v3669, 24
      %v3761 = vpop.permute.xlu0 %3760
      %3762 = vrot.lane.b32.xlu0 %v3670, 24
      %v3763 = vpop.permute.xlu0 %3762
      %3764 = vrot.lane.b32.xlu0 %v3671, 24
      %v3765 = vpop.permute.xlu0 %3764
      %3766 = vrot.lane.b32.xlu0 %v3672, 24
      %v3767 = vpop.permute.xlu0 %3766
      %3768 = vrot.lane.b32.xlu0 %v3673, 24
      %v3769 = vpop.permute.xlu0 %3768
      %3802 = vst.msk [vmem:[#allocation3] sm:$0xf] %vm1356, %v3707
      %3803 = vst.msk [vmem:[#allocation3 + $0x4] sm:$0xf] %vm1356, %v3709
      %3804 = vst.msk [vmem:[#allocation3 + $0x8] sm:$0xf] %vm1356, %v3711
      %3805 = vst.msk [vmem:[#allocation3 + $0xc] sm:$0xf] %vm1356, %v3713
      %3806 = vst.msk [vmem:[#allocation3 + $0x10] sm:$0xf] %vm1356, %v3715
      %3807 = vst.msk [vmem:[#allocation3 + $0x14] sm:$0xf] %vm1356, %v3717
      %3808 = vst.msk [vmem:[#allocation3 + $0x18] sm:$0xf] %vm1356, %v3719
      %3809 = vst.msk [vmem:[#allocation3 + $0x1c] sm:$0xf] %vm1356, %v3721
      %3810 = vst.msk [vmem:[#allocation3 + $0x20] sm:$0xf] %vm1356, %v3723
      %3811 = vst.msk [vmem:[#allocation3 + $0x24] sm:$0xf] %vm1356, %v3725
      %3812 = vst.msk [vmem:[#allocation3 + $0x28] sm:$0xf] %vm1356, %v3727
      %3813 = vst.msk [vmem:[#allocation3 + $0x2c] sm:$0xf] %vm1356, %v3729
      %3814 = vst.msk [vmem:[#allocation3 + $0x30] sm:$0xf] %vm1356, %v3731
      %3815 = vst.msk [vmem:[#allocation3 + $0x34] sm:$0xf] %vm1356, %v3733
      %3816 = vst.msk [vmem:[#allocation3 + $0x38] sm:$0xf] %vm1356, %v3735
      %3817 = vst.msk [vmem:[#allocation3 + $0x3c] sm:$0xf] %vm1356, %v3737
      %3818 = vst.msk [vmem:[#allocation3 + $0x40] sm:$0xf] %vm1356, %v3739
      %3819 = vst.msk [vmem:[#allocation3 + $0x44] sm:$0xf] %vm1356, %v3741
      %3820 = vst.msk [vmem:[#allocation3 + $0x48] sm:$0xf] %vm1356, %v3743
      %3821 = vst.msk [vmem:[#allocation3 + $0x4c] sm:$0xf] %vm1356, %v3745
      %3822 = vst.msk [vmem:[#allocation3 + $0x50] sm:$0xf] %vm1356, %v3747
      %3823 = vst.msk [vmem:[#allocation3 + $0x54] sm:$0xf] %vm1356, %v3749
      %3824 = vst.msk [vmem:[#allocation3 + $0x58] sm:$0xf] %vm1356, %v3751
      %3825 = vst.msk [vmem:[#allocation3 + $0x5c] sm:$0xf] %vm1356, %v3753
      %3826 = vst.msk [vmem:[#allocation3 + $0x60] sm:$0xf] %vm1356, %v3755
      %3827 = vst.msk [vmem:[#allocation3 + $0x64] sm:$0xf] %vm1356, %v3757
      %3828 = vst.msk [vmem:[#allocation3 + $0x68] sm:$0xf] %vm1356, %v3759
      %3829 = vst.msk [vmem:[#allocation3 + $0x6c] sm:$0xf] %vm1356, %v3761
      %3830 = vst.msk [vmem:[#allocation3 + $0x70] sm:$0xf] %vm1356, %v3763
      %3831 = vst.msk [vmem:[#allocation3 + $0x74] sm:$0xf] %vm1356, %v3765
      %3832 = vst.msk [vmem:[#allocation3 + $0x78] sm:$0xf] %vm1356, %v3767
      %3833 = vst.msk [vmem:[#allocation3 + $0x7c] sm:$0xf] %vm1356, %v3769
      %v3834 = vld [vmem:[%s584 + $0x1] sm:$0xff]
      %v3835 = vld [vmem:[%s584 + $0x9] sm:$0xff]
      %v3836 = vld [vmem:[%s584 + $0x19] sm:$0xff]
      %v3837 = vld [vmem:[%s584 + $0x21] sm:$0xff]
      %v3838 = vld [vmem:[%s584 + $0x31] sm:$0xff]
      %v3839 = vld [vmem:[%s584 + $0x39] sm:$0xff]
      %v3840 = vld [vmem:[%s584 + $0x49] sm:$0xff]
      %v3841 = vld [vmem:[%s584 + $0x51] sm:$0xff]
      %v3842 = vld [vmem:[%s584 + $0x61] sm:$0xff]
      %v3843 = vld [vmem:[%s584 + $0x69] sm:$0xff]
      %v3844 = vld [vmem:[%s584 + $0x79] sm:$0xff]
      %v3845 = vld [vmem:[%s584 + $0x81] sm:$0xff]
      %v3846 = vld [vmem:[%s584 + $0x91] sm:$0xff]
      %v3847 = vld [vmem:[%s584 + $0x99] sm:$0xff]
      %v3848 = vld [vmem:[%s584 + $0xa9] sm:$0xff]
      %v3849 = vld [vmem:[%s584 + $0xb1] sm:$0xff]
      %v3850 = vld [vmem:[%s584 + $0xc1] sm:$0xff]
      %v3851 = vld [vmem:[%s584 + $0xc9] sm:$0xff]
      %v3852 = vld [vmem:[%s584 + $0xd9] sm:$0xff]
      %v3853 = vld [vmem:[%s584 + $0xe1] sm:$0xff]
      %v3854 = vld [vmem:[%s584 + $0xf1] sm:$0xff]
      %v3855 = vld [vmem:[%s584 + $0xf9] sm:$0xff]
      %v3856 = vld [vmem:[%s584 + $0x109] sm:$0xff]
      %v3857 = vld [vmem:[%s584 + $0x111] sm:$0xff]
      %v3858 = vld [vmem:[%s584 + $0x121] sm:$0xff]
      %v3859 = vld [vmem:[%s584 + $0x129] sm:$0xff]
      %v3860 = vld [vmem:[%s584 + $0x139] sm:$0xff]
      %v3861 = vld [vmem:[%s584 + $0x141] sm:$0xff]
      %v3862 = vld [vmem:[%s584 + $0x151] sm:$0xff]
      %v3863 = vld [vmem:[%s584 + $0x159] sm:$0xff]
      %v3864 = vld [vmem:[%s584 + $0x169] sm:$0xff]
      %v3865 = vld [vmem:[%s584 + $0x171] sm:$0xff]
      %v3866 = vpack.c.bf16 %v3834, %v3834
      %v3867 = vpack.c.bf16 %v3835, %v3835
      %v3868 = vpack.c.bf16 %v3836, %v3836
      %v3869 = vpack.c.bf16 %v3837, %v3837
      %v3870 = vpack.c.bf16 %v3838, %v3838
      %v3871 = vpack.c.bf16 %v3839, %v3839
      %v3872 = vpack.c.bf16 %v3840, %v3840
      %v3873 = vpack.c.bf16 %v3841, %v3841
      %v3874 = vpack.c.bf16 %v3842, %v3842
      %v3875 = vpack.c.bf16 %v3843, %v3843
      %v3876 = vpack.c.bf16 %v3844, %v3844
      %v3877 = vpack.c.bf16 %v3845, %v3845
      %v3878 = vpack.c.bf16 %v3846, %v3846
      %v3879 = vpack.c.bf16 %v3847, %v3847
      %v3880 = vpack.c.bf16 %v3848, %v3848
      %v3881 = vpack.c.bf16 %v3849, %v3849
      %v3882 = vpack.c.bf16 %v3850, %v3850
      %v3883 = vpack.c.bf16 %v3851, %v3851
      %v3884 = vpack.c.bf16 %v3852, %v3852
      %v3885 = vpack.c.bf16 %v3853, %v3853
      %v3886 = vpack.c.bf16 %v3854, %v3854
      %v3887 = vpack.c.bf16 %v3855, %v3855
      %v3888 = vpack.c.bf16 %v3856, %v3856
      %v3889 = vpack.c.bf16 %v3857, %v3857
      %v3890 = vpack.c.bf16 %v3858, %v3858
      %v3891 = vpack.c.bf16 %v3859, %v3859
      %v3892 = vpack.c.bf16 %v3860, %v3860
      %v3893 = vpack.c.bf16 %v3861, %v3861
      %v3894 = vpack.c.bf16 %v3862, %v3862
      %v3895 = vpack.c.bf16 %v3863, %v3863
      %v3896 = vpack.c.bf16 %v3864, %v3864
      %v3897 = vpack.c.bf16 %v3865, %v3865
      %3930 = vrot.lane.b32.xlu0 %v3866, 32
      %v3931 = vpop.permute.xlu0 %3930
      %3932 = vrot.lane.b32.xlu0 %v3867, 32
      %v3933 = vpop.permute.xlu0 %3932
      %3934 = vrot.lane.b32.xlu0 %v3868, 32
      %v3935 = vpop.permute.xlu0 %3934
      %3936 = vrot.lane.b32.xlu0 %v3869, 32
      %v3937 = vpop.permute.xlu0 %3936
      %3938 = vrot.lane.b32.xlu0 %v3870, 32
      %v3939 = vpop.permute.xlu0 %3938
      %3940 = vrot.lane.b32.xlu0 %v3871, 32
      %v3941 = vpop.permute.xlu0 %3940
      %3942 = vrot.lane.b32.xlu0 %v3872, 32
      %v3943 = vpop.permute.xlu0 %3942
      %3944 = vrot.lane.b32.xlu0 %v3873, 32
      %v3945 = vpop.permute.xlu0 %3944
      %3946 = vrot.lane.b32.xlu0 %v3874, 32
      %v3947 = vpop.permute.xlu0 %3946
      %3948 = vrot.lane.b32.xlu0 %v3875, 32
      %v3949 = vpop.permute.xlu0 %3948
      %3950 = vrot.lane.b32.xlu0 %v3876, 32
      %v3951 = vpop.permute.xlu0 %3950
      %3952 = vrot.lane.b32.xlu0 %v3877, 32
      %v3953 = vpop.permute.xlu0 %3952
      %3954 = vrot.lane.b32.xlu0 %v3878, 32
      %v3955 = vpop.permute.xlu0 %3954
      %3956 = vrot.lane.b32.xlu0 %v3879, 32
      %v3957 = vpop.permute.xlu0 %3956
      %3958 = vrot.lane.b32.xlu0 %v3880, 32
      %v3959 = vpop.permute.xlu0 %3958
      %3960 = vrot.lane.b32.xlu0 %v3881, 32
      %v3961 = vpop.permute.xlu0 %3960
      %3962 = vrot.lane.b32.xlu0 %v3882, 32
      %v3963 = vpop.permute.xlu0 %3962
      %3964 = vrot.lane.b32.xlu0 %v3883, 32
      %v3965 = vpop.permute.xlu0 %3964
      %3966 = vrot.lane.b32.xlu0 %v3884, 32
      %v3967 = vpop.permute.xlu0 %3966
      %3968 = vrot.lane.b32.xlu0 %v3885, 32
      %v3969 = vpop.permute.xlu0 %3968
      %3970 = vrot.lane.b32.xlu0 %v3886, 32
      %v3971 = vpop.permute.xlu0 %3970
      %3972 = vrot.lane.b32.xlu0 %v3887, 32
      %v3973 = vpop.permute.xlu0 %3972
      %3974 = vrot.lane.b32.xlu0 %v3888, 32
      %v3975 = vpop.permute.xlu0 %3974
      %3976 = vrot.lane.b32.xlu0 %v3889, 32
      %v3977 = vpop.permute.xlu0 %3976
      %3978 = vrot.lane.b32.xlu0 %v3890, 32
      %v3979 = vpop.permute.xlu0 %3978
      %3980 = vrot.lane.b32.xlu0 %v3891, 32
      %v3981 = vpop.permute.xlu0 %3980
      %3982 = vrot.lane.b32.xlu0 %v3892, 32
      %v3983 = vpop.permute.xlu0 %3982
      %3984 = vrot.lane.b32.xlu0 %v3893, 32
      %v3985 = vpop.permute.xlu0 %3984
      %3986 = vrot.lane.b32.xlu0 %v3894, 32
      %v3987 = vpop.permute.xlu0 %3986
      %3988 = vrot.lane.b32.xlu0 %v3895, 32
      %v3989 = vpop.permute.xlu0 %3988
      %3990 = vrot.lane.b32.xlu0 %v3896, 32
      %v3991 = vpop.permute.xlu0 %3990
      %3992 = vrot.lane.b32.xlu0 %v3897, 32
      %v3993 = vpop.permute.xlu0 %3992
      %4026 = vst.msk [vmem:[#allocation3] sm:$0xf] %vm1581, %v3931
      %4027 = vst.msk [vmem:[#allocation3 + $0x4] sm:$0xf] %vm1581, %v3933
      %4028 = vst.msk [vmem:[#allocation3 + $0x8] sm:$0xf] %vm1581, %v3935
      %4029 = vst.msk [vmem:[#allocation3 + $0xc] sm:$0xf] %vm1581, %v3937
      %4030 = vst.msk [vmem:[#allocation3 + $0x10] sm:$0xf] %vm1581, %v3939
      %4031 = vst.msk [vmem:[#allocation3 + $0x14] sm:$0xf] %vm1581, %v3941
      %4032 = vst.msk [vmem:[#allocation3 + $0x18] sm:$0xf] %vm1581, %v3943
      %4033 = vst.msk [vmem:[#allocation3 + $0x1c] sm:$0xf] %vm1581, %v3945
      %4034 = vst.msk [vmem:[#allocation3 + $0x20] sm:$0xf] %vm1581, %v3947
      %4035 = vst.msk [vmem:[#allocation3 + $0x24] sm:$0xf] %vm1581, %v3949
      %4036 = vst.msk [vmem:[#allocation3 + $0x28] sm:$0xf] %vm1581, %v3951
      %4037 = vst.msk [vmem:[#allocation3 + $0x2c] sm:$0xf] %vm1581, %v3953
      %4038 = vst.msk [vmem:[#allocation3 + $0x30] sm:$0xf] %vm1581, %v3955
      %4039 = vst.msk [vmem:[#allocation3 + $0x34] sm:$0xf] %vm1581, %v3957
      %4040 = vst.msk [vmem:[#allocation3 + $0x38] sm:$0xf] %vm1581, %v3959
      %4041 = vst.msk [vmem:[#allocation3 + $0x3c] sm:$0xf] %vm1581, %v3961
      %4042 = vst.msk [vmem:[#allocation3 + $0x40] sm:$0xf] %vm1581, %v3963
      %4043 = vst.msk [vmem:[#allocation3 + $0x44] sm:$0xf] %vm1581, %v3965
      %4044 = vst.msk [vmem:[#allocation3 + $0x48] sm:$0xf] %vm1581, %v3967
      %4045 = vst.msk [vmem:[#allocation3 + $0x4c] sm:$0xf] %vm1581, %v3969
      %4046 = vst.msk [vmem:[#allocation3 + $0x50] sm:$0xf] %vm1581, %v3971
      %4047 = vst.msk [vmem:[#allocation3 + $0x54] sm:$0xf] %vm1581, %v3973
      %4048 = vst.msk [vmem:[#allocation3 + $0x58] sm:$0xf] %vm1581, %v3975
      %4049 = vst.msk [vmem:[#allocation3 + $0x5c] sm:$0xf] %vm1581, %v3977
      %4050 = vst.msk [vmem:[#allocation3 + $0x60] sm:$0xf] %vm1581, %v3979
      %4051 = vst.msk [vmem:[#allocation3 + $0x64] sm:$0xf] %vm1581, %v3981
      %4052 = vst.msk [vmem:[#allocation3 + $0x68] sm:$0xf] %vm1581, %v3983
      %4053 = vst.msk [vmem:[#allocation3 + $0x6c] sm:$0xf] %vm1581, %v3985
      %4054 = vst.msk [vmem:[#allocation3 + $0x70] sm:$0xf] %vm1581, %v3987
      %4055 = vst.msk [vmem:[#allocation3 + $0x74] sm:$0xf] %vm1581, %v3989
      %4056 = vst.msk [vmem:[#allocation3 + $0x78] sm:$0xf] %vm1581, %v3991
      %4057 = vst.msk [vmem:[#allocation3 + $0x7c] sm:$0xf] %vm1581, %v3993
      %v4058 = vld [vmem:[%s584 + $0x2] sm:$0xff]
      %v4059 = vld [vmem:[%s584 + $0xa] sm:$0xff]
      %v4060 = vld [vmem:[%s584 + $0x1a] sm:$0xff]
      %v4061 = vld [vmem:[%s584 + $0x22] sm:$0xff]
      %v4062 = vld [vmem:[%s584 + $0x32] sm:$0xff]
      %v4063 = vld [vmem:[%s584 + $0x3a] sm:$0xff]
      %v4064 = vld [vmem:[%s584 + $0x4a] sm:$0xff]
      %v4065 = vld [vmem:[%s584 + $0x52] sm:$0xff]
      %v4066 = vld [vmem:[%s584 + $0x62] sm:$0xff]
      %v4067 = vld [vmem:[%s584 + $0x6a] sm:$0xff]
      %v4068 = vld [vmem:[%s584 + $0x7a] sm:$0xff]
      %v4069 = vld [vmem:[%s584 + $0x82] sm:$0xff]
      %v4070 = vld [vmem:[%s584 + $0x92] sm:$0xff]
      %v4071 = vld [vmem:[%s584 + $0x9a] sm:$0xff]
      %v4072 = vld [vmem:[%s584 + $0xaa] sm:$0xff]
      %v4073 = vld [vmem:[%s584 + $0xb2] sm:$0xff]
      %v4074 = vld [vmem:[%s584 + $0xc2] sm:$0xff]
      %v4075 = vld [vmem:[%s584 + $0xca] sm:$0xff]
      %v4076 = vld [vmem:[%s584 + $0xda] sm:$0xff]
      %v4077 = vld [vmem:[%s584 + $0xe2] sm:$0xff]
      %v4078 = vld [vmem:[%s584 + $0xf2] sm:$0xff]
      %v4079 = vld [vmem:[%s584 + $0xfa] sm:$0xff]
      %v4080 = vld [vmem:[%s584 + $0x10a] sm:$0xff]
      %v4081 = vld [vmem:[%s584 + $0x112] sm:$0xff]
      %v4082 = vld [vmem:[%s584 + $0x122] sm:$0xff]
      %v4083 = vld [vmem:[%s584 + $0x12a] sm:$0xff]
      %v4084 = vld [vmem:[%s584 + $0x13a] sm:$0xff]
      %v4085 = vld [vmem:[%s584 + $0x142] sm:$0xff]
      %v4086 = vld [vmem:[%s584 + $0x152] sm:$0xff]
      %v4087 = vld [vmem:[%s584 + $0x15a] sm:$0xff]
      %v4088 = vld [vmem:[%s584 + $0x16a] sm:$0xff]
      %v4089 = vld [vmem:[%s584 + $0x172] sm:$0xff]
      %v4090 = vpack.c.bf16 %v4058, %v4058
      %v4091 = vpack.c.bf16 %v4059, %v4059
      %v4092 = vpack.c.bf16 %v4060, %v4060
      %v4093 = vpack.c.bf16 %v4061, %v4061
      %v4094 = vpack.c.bf16 %v4062, %v4062
      %v4095 = vpack.c.bf16 %v4063, %v4063
      %v4096 = vpack.c.bf16 %v4064, %v4064
      %v4097 = vpack.c.bf16 %v4065, %v4065
      %v4098 = vpack.c.bf16 %v4066, %v4066
      %v4099 = vpack.c.bf16 %v4067, %v4067
      %v4100 = vpack.c.bf16 %v4068, %v4068
      %v4101 = vpack.c.bf16 %v4069, %v4069
      %v4102 = vpack.c.bf16 %v4070, %v4070
      %v4103 = vpack.c.bf16 %v4071, %v4071
      %v4104 = vpack.c.bf16 %v4072, %v4072
      %v4105 = vpack.c.bf16 %v4073, %v4073
      %v4106 = vpack.c.bf16 %v4074, %v4074
      %v4107 = vpack.c.bf16 %v4075, %v4075
      %v4108 = vpack.c.bf16 %v4076, %v4076
      %v4109 = vpack.c.bf16 %v4077, %v4077
      %v4110 = vpack.c.bf16 %v4078, %v4078
      %v4111 = vpack.c.bf16 %v4079, %v4079
      %v4112 = vpack.c.bf16 %v4080, %v4080
      %v4113 = vpack.c.bf16 %v4081, %v4081
      %v4114 = vpack.c.bf16 %v4082, %v4082
      %v4115 = vpack.c.bf16 %v4083, %v4083
      %v4116 = vpack.c.bf16 %v4084, %v4084
      %v4117 = vpack.c.bf16 %v4085, %v4085
      %v4118 = vpack.c.bf16 %v4086, %v4086
      %v4119 = vpack.c.bf16 %v4087, %v4087
      %v4120 = vpack.c.bf16 %v4088, %v4088
      %v4121 = vpack.c.bf16 %v4089, %v4089
      %4154 = vrot.lane.b32.xlu0 %v4090, 40
      %v4155 = vpop.permute.xlu0 %4154
      %4156 = vrot.lane.b32.xlu0 %v4091, 40
      %v4157 = vpop.permute.xlu0 %4156
      %4158 = vrot.lane.b32.xlu0 %v4092, 40
      %v4159 = vpop.permute.xlu0 %4158
      %4160 = vrot.lane.b32.xlu0 %v4093, 40
      %v4161 = vpop.permute.xlu0 %4160
      %4162 = vrot.lane.b32.xlu0 %v4094, 40
      %v4163 = vpop.permute.xlu0 %4162
      %4164 = vrot.lane.b32.xlu0 %v4095, 40
      %v4165 = vpop.permute.xlu0 %4164
      %4166 = vrot.lane.b32.xlu0 %v4096, 40
      %v4167 = vpop.permute.xlu0 %4166
      %4168 = vrot.lane.b32.xlu0 %v4097, 40
      %v4169 = vpop.permute.xlu0 %4168
      %4170 = vrot.lane.b32.xlu0 %v4098, 40
      %v4171 = vpop.permute.xlu0 %4170
      %4172 = vrot.lane.b32.xlu0 %v4099, 40
      %v4173 = vpop.permute.xlu0 %4172
      %4174 = vrot.lane.b32.xlu0 %v4100, 40
      %v4175 = vpop.permute.xlu0 %4174
      %4176 = vrot.lane.b32.xlu0 %v4101, 40
      %v4177 = vpop.permute.xlu0 %4176
      %4178 = vrot.lane.b32.xlu0 %v4102, 40
      %v4179 = vpop.permute.xlu0 %4178
      %4180 = vrot.lane.b32.xlu0 %v4103, 40
      %v4181 = vpop.permute.xlu0 %4180
      %4182 = vrot.lane.b32.xlu0 %v4104, 40
      %v4183 = vpop.permute.xlu0 %4182
      %4184 = vrot.lane.b32.xlu0 %v4105, 40
      %v4185 = vpop.permute.xlu0 %4184
      %4186 = vrot.lane.b32.xlu0 %v4106, 40
      %v4187 = vpop.permute.xlu0 %4186
      %4188 = vrot.lane.b32.xlu0 %v4107, 40
      %v4189 = vpop.permute.xlu0 %4188
      %4190 = vrot.lane.b32.xlu0 %v4108, 40
      %v4191 = vpop.permute.xlu0 %4190
      %4192 = vrot.lane.b32.xlu0 %v4109, 40
      %v4193 = vpop.permute.xlu0 %4192
      %4194 = vrot.lane.b32.xlu0 %v4110, 40
      %v4195 = vpop.permute.xlu0 %4194
      %4196 = vrot.lane.b32.xlu0 %v4111, 40
      %v4197 = vpop.permute.xlu0 %4196
      %4198 = vrot.lane.b32.xlu0 %v4112, 40
      %v4199 = vpop.permute.xlu0 %4198
      %4200 = vrot.lane.b32.xlu0 %v4113, 40
      %v4201 = vpop.permute.xlu0 %4200
      %4202 = vrot.lane.b32.xlu0 %v4114, 40
      %v4203 = vpop.permute.xlu0 %4202
      %4204 = vrot.lane.b32.xlu0 %v4115, 40
      %v4205 = vpop.permute.xlu0 %4204
      %4206 = vrot.lane.b32.xlu0 %v4116, 40
      %v4207 = vpop.permute.xlu0 %4206
      %4208 = vrot.lane.b32.xlu0 %v4117, 40
      %v4209 = vpop.permute.xlu0 %4208
      %4210 = vrot.lane.b32.xlu0 %v4118, 40
      %v4211 = vpop.permute.xlu0 %4210
      %4212 = vrot.lane.b32.xlu0 %v4119, 40
      %v4213 = vpop.permute.xlu0 %4212
      %4214 = vrot.lane.b32.xlu0 %v4120, 40
      %v4215 = vpop.permute.xlu0 %4214
      %4216 = vrot.lane.b32.xlu0 %v4121, 40
      %v4217 = vpop.permute.xlu0 %4216
      %4250 = vst.msk [vmem:[#allocation3] sm:$0xf] %vm1806, %v4155
      %4251 = vst.msk [vmem:[#allocation3 + $0x4] sm:$0xf] %vm1806, %v4157
      %4252 = vst.msk [vmem:[#allocation3 + $0x8] sm:$0xf] %vm1806, %v4159
      %4253 = vst.msk [vmem:[#allocation3 + $0xc] sm:$0xf] %vm1806, %v4161
      %4254 = vst.msk [vmem:[#allocation3 + $0x10] sm:$0xf] %vm1806, %v4163
      %4255 = vst.msk [vmem:[#allocation3 + $0x14] sm:$0xf] %vm1806, %v4165
      %4256 = vst.msk [vmem:[#allocation3 + $0x18] sm:$0xf] %vm1806, %v4167
      %4257 = vst.msk [vmem:[#allocation3 + $0x1c] sm:$0xf] %vm1806, %v4169
      %4258 = vst.msk [vmem:[#allocation3 + $0x20] sm:$0xf] %vm1806, %v4171
      %4259 = vst.msk [vmem:[#allocation3 + $0x24] sm:$0xf] %vm1806, %v4173
      %4260 = vst.msk [vmem:[#allocation3 + $0x28] sm:$0xf] %vm1806, %v4175
      %4261 = vst.msk [vmem:[#allocation3 + $0x2c] sm:$0xf] %vm1806, %v4177
      %4262 = vst.msk [vmem:[#allocation3 + $0x30] sm:$0xf] %vm1806, %v4179
      %4263 = vst.msk [vmem:[#allocation3 + $0x34] sm:$0xf] %vm1806, %v4181
      %4264 = vst.msk [vmem:[#allocation3 + $0x38] sm:$0xf] %vm1806, %v4183
      %4265 = vst.msk [vmem:[#allocation3 + $0x3c] sm:$0xf] %vm1806, %v4185
      %4266 = vst.msk [vmem:[#allocation3 + $0x40] sm:$0xf] %vm1806, %v4187
      %4267 = vst.msk [vmem:[#allocation3 + $0x44] sm:$0xf] %vm1806, %v4189
      %4268 = vst.msk [vmem:[#allocation3 + $0x48] sm:$0xf] %vm1806, %v4191
      %4269 = vst.msk [vmem:[#allocation3 + $0x4c] sm:$0xf] %vm1806, %v4193
      %4270 = vst.msk [vmem:[#allocation3 + $0x50] sm:$0xf] %vm1806, %v4195
      %4271 = vst.msk [vmem:[#allocation3 + $0x54] sm:$0xf] %vm1806, %v4197
      %4272 = vst.msk [vmem:[#allocation3 + $0x58] sm:$0xf] %vm1806, %v4199
      %4273 = vst.msk [vmem:[#allocation3 + $0x5c] sm:$0xf] %vm1806, %v4201
      %4274 = vst.msk [vmem:[#allocation3 + $0x60] sm:$0xf] %vm1806, %v4203
      %4275 = vst.msk [vmem:[#allocation3 + $0x64] sm:$0xf] %vm1806, %v4205
      %4276 = vst.msk [vmem:[#allocation3 + $0x68] sm:$0xf] %vm1806, %v4207
      %4277 = vst.msk [vmem:[#allocation3 + $0x6c] sm:$0xf] %vm1806, %v4209
      %4278 = vst.msk [vmem:[#allocation3 + $0x70] sm:$0xf] %vm1806, %v4211
      %4279 = vst.msk [vmem:[#allocation3 + $0x74] sm:$0xf] %vm1806, %v4213
      %4280 = vst.msk [vmem:[#allocation3 + $0x78] sm:$0xf] %vm1806, %v4215
      %4281 = vst.msk [vmem:[#allocation3 + $0x7c] sm:$0xf] %vm1806, %v4217
      %v4282 = vld [vmem:[%s1839] sm:$0xff]
      %v4283 = vld [vmem:[%s1839 + $0x8] sm:$0xff]
      %v4284 = vld [vmem:[%s1839 + $0x18] sm:$0xff]
      %v4285 = vld [vmem:[%s1839 + $0x20] sm:$0xff]
      %v4286 = vld [vmem:[%s1839 + $0x30] sm:$0xff]
      %v4287 = vld [vmem:[%s1839 + $0x38] sm:$0xff]
      %v4288 = vld [vmem:[%s1839 + $0x48] sm:$0xff]
      %v4289 = vld [vmem:[%s1839 + $0x50] sm:$0xff]
      %v4290 = vld [vmem:[%s1839 + $0x60] sm:$0xff]
      %v4291 = vld [vmem:[%s1839 + $0x68] sm:$0xff]
      %v4292 = vld [vmem:[%s1839 + $0x78] sm:$0xff]
      %v4293 = vld [vmem:[%s1839 + $0x80] sm:$0xff]
      %v4294 = vld [vmem:[%s1839 + $0x90] sm:$0xff]
      %v4295 = vld [vmem:[%s1839 + $0x98] sm:$0xff]
      %v4296 = vld [vmem:[%s1839 + $0xa8] sm:$0xff]
      %v4297 = vld [vmem:[%s1839 + $0xb0] sm:$0xff]
      %v4298 = vld [vmem:[%s1839 + $0xc0] sm:$0xff]
      %v4299 = vld [vmem:[%s1839 + $0xc8] sm:$0xff]
      %v4300 = vld [vmem:[%s1839 + $0xd8] sm:$0xff]
      %v4301 = vld [vmem:[%s1839 + $0xe0] sm:$0xff]
      %v4302 = vld [vmem:[%s1839 + $0xf0] sm:$0xff]
      %v4303 = vld [vmem:[%s1839 + $0xf8] sm:$0xff]
      %v4304 = vld [vmem:[%s1839 + $0x108] sm:$0xff]
      %v4305 = vld [vmem:[%s1839 + $0x110] sm:$0xff]
      %v4306 = vld [vmem:[%s1839 + $0x120] sm:$0xff]
      %v4307 = vld [vmem:[%s1839 + $0x128] sm:$0xff]
      %v4308 = vld [vmem:[%s1839 + $0x138] sm:$0xff]
      %v4309 = vld [vmem:[%s1839 + $0x140] sm:$0xff]
      %v4310 = vld [vmem:[%s1839 + $0x150] sm:$0xff]
      %v4311 = vld [vmem:[%s1839 + $0x158] sm:$0xff]
      %v4312 = vld [vmem:[%s1839 + $0x168] sm:$0xff]
      %v4313 = vld [vmem:[%s1839 + $0x170] sm:$0xff]
      %v4314 = vpack.c.bf16 %v4282, %v4282
      %v4315 = vpack.c.bf16 %v4283, %v4283
      %v4316 = vpack.c.bf16 %v4284, %v4284
      %v4317 = vpack.c.bf16 %v4285, %v4285
      %v4318 = vpack.c.bf16 %v4286, %v4286
      %v4319 = vpack.c.bf16 %v4287, %v4287
      %v4320 = vpack.c.bf16 %v4288, %v4288
      %v4321 = vpack.c.bf16 %v4289, %v4289
      %v4322 = vpack.c.bf16 %v4290, %v4290
      %v4323 = vpack.c.bf16 %v4291, %v4291
      %v4324 = vpack.c.bf16 %v4292, %v4292
      %v4325 = vpack.c.bf16 %v4293, %v4293
      %v4326 = vpack.c.bf16 %v4294, %v4294
      %v4327 = vpack.c.bf16 %v4295, %v4295
      %v4328 = vpack.c.bf16 %v4296, %v4296
      %v4329 = vpack.c.bf16 %v4297, %v4297
      %v4330 = vpack.c.bf16 %v4298, %v4298
      %v4331 = vpack.c.bf16 %v4299, %v4299
      %v4332 = vpack.c.bf16 %v4300, %v4300
      %v4333 = vpack.c.bf16 %v4301, %v4301
      %v4334 = vpack.c.bf16 %v4302, %v4302
      %v4335 = vpack.c.bf16 %v4303, %v4303
      %v4336 = vpack.c.bf16 %v4304, %v4304
      %v4337 = vpack.c.bf16 %v4305, %v4305
      %v4338 = vpack.c.bf16 %v4306, %v4306
      %v4339 = vpack.c.bf16 %v4307, %v4307
      %v4340 = vpack.c.bf16 %v4308, %v4308
      %v4341 = vpack.c.bf16 %v4309, %v4309
      %v4342 = vpack.c.bf16 %v4310, %v4310
      %v4343 = vpack.c.bf16 %v4311, %v4311
      %v4344 = vpack.c.bf16 %v4312, %v4312
      %v4345 = vpack.c.bf16 %v4313, %v4313
      %4378 = vrot.lane.b32.xlu0 %v4314, 48
      %v4379 = vpop.permute.xlu0 %4378
      %4380 = vrot.lane.b32.xlu0 %v4315, 48
      %v4381 = vpop.permute.xlu0 %4380
      %4382 = vrot.lane.b32.xlu0 %v4316, 48
      %v4383 = vpop.permute.xlu0 %4382
      %4384 = vrot.lane.b32.xlu0 %v4317, 48
      %v4385 = vpop.permute.xlu0 %4384
      %4386 = vrot.lane.b32.xlu0 %v4318, 48
      %v4387 = vpop.permute.xlu0 %4386
      %4388 = vrot.lane.b32.xlu0 %v4319, 48
      %v4389 = vpop.permute.xlu0 %4388
      %4390 = vrot.lane.b32.xlu0 %v4320, 48
      %v4391 = vpop.permute.xlu0 %4390
      %4392 = vrot.lane.b32.xlu0 %v4321, 48
      %v4393 = vpop.permute.xlu0 %4392
      %4394 = vrot.lane.b32.xlu0 %v4322, 48
      %v4395 = vpop.permute.xlu0 %4394
      %4396 = vrot.lane.b32.xlu0 %v4323, 48
      %v4397 = vpop.permute.xlu0 %4396
      %4398 = vrot.lane.b32.xlu0 %v4324, 48
      %v4399 = vpop.permute.xlu0 %4398
      %4400 = vrot.lane.b32.xlu0 %v4325, 48
      %v4401 = vpop.permute.xlu0 %4400
      %4402 = vrot.lane.b32.xlu0 %v4326, 48
      %v4403 = vpop.permute.xlu0 %4402
      %4404 = vrot.lane.b32.xlu0 %v4327, 48
      %v4405 = vpop.permute.xlu0 %4404
      %4406 = vrot.lane.b32.xlu0 %v4328, 48
      %v4407 = vpop.permute.xlu0 %4406
      %4408 = vrot.lane.b32.xlu0 %v4329, 48
      %v4409 = vpop.permute.xlu0 %4408
      %4410 = vrot.lane.b32.xlu0 %v4330, 48
      %v4411 = vpop.permute.xlu0 %4410
      %4412 = vrot.lane.b32.xlu0 %v4331, 48
      %v4413 = vpop.permute.xlu0 %4412
      %4414 = vrot.lane.b32.xlu0 %v4332, 48
      %v4415 = vpop.permute.xlu0 %4414
      %4416 = vrot.lane.b32.xlu0 %v4333, 48
      %v4417 = vpop.permute.xlu0 %4416
      %4418 = vrot.lane.b32.xlu0 %v4334, 48
      %v4419 = vpop.permute.xlu0 %4418
      %4420 = vrot.lane.b32.xlu0 %v4335, 48
      %v4421 = vpop.permute.xlu0 %4420
      %4422 = vrot.lane.b32.xlu0 %v4336, 48
      %v4423 = vpop.permute.xlu0 %4422
      %4424 = vrot.lane.b32.xlu0 %v4337, 48
      %v4425 = vpop.permute.xlu0 %4424
      %4426 = vrot.lane.b32.xlu0 %v4338, 48
      %v4427 = vpop.permute.xlu0 %4426
      %4428 = vrot.lane.b32.xlu0 %v4339, 48
      %v4429 = vpop.permute.xlu0 %4428
      %4430 = vrot.lane.b32.xlu0 %v4340, 48
      %v4431 = vpop.permute.xlu0 %4430
      %4432 = vrot.lane.b32.xlu0 %v4341, 48
      %v4433 = vpop.permute.xlu0 %4432
      %4434 = vrot.lane.b32.xlu0 %v4342, 48
      %v4435 = vpop.permute.xlu0 %4434
      %4436 = vrot.lane.b32.xlu0 %v4343, 48
      %v4437 = vpop.permute.xlu0 %4436
      %4438 = vrot.lane.b32.xlu0 %v4344, 48
      %v4439 = vpop.permute.xlu0 %4438
      %4440 = vrot.lane.b32.xlu0 %v4345, 48
      %v4441 = vpop.permute.xlu0 %4440
      %4474 = vst.msk [vmem:[#allocation3] sm:$0xf] %vm2032, %v4379
      %4475 = vst.msk [vmem:[#allocation3 + $0x4] sm:$0xf] %vm2032, %v4381
      %4476 = vst.msk [vmem:[#allocation3 + $0x8] sm:$0xf] %vm2032, %v4383
      %4477 = vst.msk [vmem:[#allocation3 + $0xc] sm:$0xf] %vm2032, %v4385
      %4478 = vst.msk [vmem:[#allocation3 + $0x10] sm:$0xf] %vm2032, %v4387
      %4479 = vst.msk [vmem:[#allocation3 + $0x14] sm:$0xf] %vm2032, %v4389
      %4480 = vst.msk [vmem:[#allocation3 + $0x18] sm:$0xf] %vm2032, %v4391
      %4481 = vst.msk [vmem:[#allocation3 + $0x1c] sm:$0xf] %vm2032, %v4393
      %4482 = vst.msk [vmem:[#allocation3 + $0x20] sm:$0xf] %vm2032, %v4395
      %4483 = vst.msk [vmem:[#allocation3 + $0x24] sm:$0xf] %vm2032, %v4397
      %4484 = vst.msk [vmem:[#allocation3 + $0x28] sm:$0xf] %vm2032, %v4399
      %4485 = vst.msk [vmem:[#allocation3 + $0x2c] sm:$0xf] %vm2032, %v4401
      %4486 = vst.msk [vmem:[#allocation3 + $0x30] sm:$0xf] %vm2032, %v4403
      %4487 = vst.msk [vmem:[#allocation3 + $0x34] sm:$0xf] %vm2032, %v4405
      %4488 = vst.msk [vmem:[#allocation3 + $0x38] sm:$0xf] %vm2032, %v4407
      %4489 = vst.msk [vmem:[#allocation3 + $0x3c] sm:$0xf] %vm2032, %v4409
      %4490 = vst.msk [vmem:[#allocation3 + $0x40] sm:$0xf] %vm2032, %v4411
      %4491 = vst.msk [vmem:[#allocation3 + $0x44] sm:$0xf] %vm2032, %v4413
      %4492 = vst.msk [vmem:[#allocation3 + $0x48] sm:$0xf] %vm2032, %v4415
      %4493 = vst.msk [vmem:[#allocation3 + $0x4c] sm:$0xf] %vm2032, %v4417
      %4494 = vst.msk [vmem:[#allocation3 + $0x50] sm:$0xf] %vm2032, %v4419
      %4495 = vst.msk [vmem:[#allocation3 + $0x54] sm:$0xf] %vm2032, %v4421
      %4496 = vst.msk [vmem:[#allocation3 + $0x58] sm:$0xf] %vm2032, %v4423
      %4497 = vst.msk [vmem:[#allocation3 + $0x5c] sm:$0xf] %vm2032, %v4425
      %4498 = vst.msk [vmem:[#allocation3 + $0x60] sm:$0xf] %vm2032, %v4427
      %4499 = vst.msk [vmem:[#allocation3 + $0x64] sm:$0xf] %vm2032, %v4429
      %4500 = vst.msk [vmem:[#allocation3 + $0x68] sm:$0xf] %vm2032, %v4431
      %4501 = vst.msk [vmem:[#allocation3 + $0x6c] sm:$0xf] %vm2032, %v4433
      %4502 = vst.msk [vmem:[#allocation3 + $0x70] sm:$0xf] %vm2032, %v4435
      %4503 = vst.msk [vmem:[#allocation3 + $0x74] sm:$0xf] %vm2032, %v4437
      %4504 = vst.msk [vmem:[#allocation3 + $0x78] sm:$0xf] %vm2032, %v4439
      %4505 = vst.msk [vmem:[#allocation3 + $0x7c] sm:$0xf] %vm2032, %v4441
      %v4506 = vld [vmem:[%s1839 + $0x1] sm:$0xff]
      %v4507 = vld [vmem:[%s1839 + $0x9] sm:$0xff]
      %v4508 = vld [vmem:[%s1839 + $0x19] sm:$0xff]
      %v4509 = vld [vmem:[%s1839 + $0x21] sm:$0xff]
      %v4510 = vld [vmem:[%s1839 + $0x31] sm:$0xff]
      %v4511 = vld [vmem:[%s1839 + $0x39] sm:$0xff]
      %v4512 = vld [vmem:[%s1839 + $0x49] sm:$0xff]
      %v4513 = vld [vmem:[%s1839 + $0x51] sm:$0xff]
      %v4514 = vld [vmem:[%s1839 + $0x61] sm:$0xff]
      %v4515 = vld [vmem:[%s1839 + $0x69] sm:$0xff]
      %v4516 = vld [vmem:[%s1839 + $0x79] sm:$0xff]
      %v4517 = vld [vmem:[%s1839 + $0x81] sm:$0xff]
      %v4518 = vld [vmem:[%s1839 + $0x91] sm:$0xff]
      %v4519 = vld [vmem:[%s1839 + $0x99] sm:$0xff]
      %v4520 = vld [vmem:[%s1839 + $0xa9] sm:$0xff]
      %v4521 = vld [vmem:[%s1839 + $0xb1] sm:$0xff]
      %v4522 = vld [vmem:[%s1839 + $0xc1] sm:$0xff]
      %v4523 = vld [vmem:[%s1839 + $0xc9] sm:$0xff]
      %v4524 = vld [vmem:[%s1839 + $0xd9] sm:$0xff]
      %v4525 = vld [vmem:[%s1839 + $0xe1] sm:$0xff]
      %v4526 = vld [vmem:[%s1839 + $0xf1] sm:$0xff]
      %v4527 = vld [vmem:[%s1839 + $0xf9] sm:$0xff]
      %v4528 = vld [vmem:[%s1839 + $0x109] sm:$0xff]
      %v4529 = vld [vmem:[%s1839 + $0x111] sm:$0xff]
      %v4530 = vld [vmem:[%s1839 + $0x121] sm:$0xff]
      %v4531 = vld [vmem:[%s1839 + $0x129] sm:$0xff]
      %v4532 = vld [vmem:[%s1839 + $0x139] sm:$0xff]
      %v4533 = vld [vmem:[%s1839 + $0x141] sm:$0xff]
      %v4534 = vld [vmem:[%s1839 + $0x151] sm:$0xff]
      %v4535 = vld [vmem:[%s1839 + $0x159] sm:$0xff]
      %v4536 = vld [vmem:[%s1839 + $0x169] sm:$0xff]
      %v4537 = vld [vmem:[%s1839 + $0x171] sm:$0xff]
      %v4538 = vpack.c.bf16 %v4506, %v4506
      %v4539 = vpack.c.bf16 %v4507, %v4507
      %v4540 = vpack.c.bf16 %v4508, %v4508
      %v4541 = vpack.c.bf16 %v4509, %v4509
      %v4542 = vpack.c.bf16 %v4510, %v4510
      %v4543 = vpack.c.bf16 %v4511, %v4511
      %v4544 = vpack.c.bf16 %v4512, %v4512
      %v4545 = vpack.c.bf16 %v4513, %v4513
      %v4546 = vpack.c.bf16 %v4514, %v4514
      %v4547 = vpack.c.bf16 %v4515, %v4515
      %v4548 = vpack.c.bf16 %v4516, %v4516
      %v4549 = vpack.c.bf16 %v4517, %v4517
      %v4550 = vpack.c.bf16 %v4518, %v4518
      %v4551 = vpack.c.bf16 %v4519, %v4519
      %v4552 = vpack.c.bf16 %v4520, %v4520
      %v4553 = vpack.c.bf16 %v4521, %v4521
      %v4554 = vpack.c.bf16 %v4522, %v4522
      %v4555 = vpack.c.bf16 %v4523, %v4523
      %v4556 = vpack.c.bf16 %v4524, %v4524
      %v4557 = vpack.c.bf16 %v4525, %v4525
      %v4558 = vpack.c.bf16 %v4526, %v4526
      %v4559 = vpack.c.bf16 %v4527, %v4527
      %v4560 = vpack.c.bf16 %v4528, %v4528
      %v4561 = vpack.c.bf16 %v4529, %v4529
      %v4562 = vpack.c.bf16 %v4530, %v4530
      %v4563 = vpack.c.bf16 %v4531, %v4531
      %v4564 = vpack.c.bf16 %v4532, %v4532
      %v4565 = vpack.c.bf16 %v4533, %v4533
      %v4566 = vpack.c.bf16 %v4534, %v4534
      %v4567 = vpack.c.bf16 %v4535, %v4535
      %v4568 = vpack.c.bf16 %v4536, %v4536
      %v4569 = vpack.c.bf16 %v4537, %v4537
      %4602 = vrot.lane.b32.xlu0 %v4538, 56
      %v4603 = vpop.permute.xlu0 %4602
      %4604 = vrot.lane.b32.xlu0 %v4539, 56
      %v4605 = vpop.permute.xlu0 %4604
      %4606 = vrot.lane.b32.xlu0 %v4540, 56
      %v4607 = vpop.permute.xlu0 %4606
      %4608 = vrot.lane.b32.xlu0 %v4541, 56
      %v4609 = vpop.permute.xlu0 %4608
      %4610 = vrot.lane.b32.xlu0 %v4542, 56
      %v4611 = vpop.permute.xlu0 %4610
      %4612 = vrot.lane.b32.xlu0 %v4543, 56
      %v4613 = vpop.permute.xlu0 %4612
      %4614 = vrot.lane.b32.xlu0 %v4544, 56
      %v4615 = vpop.permute.xlu0 %4614
      %4616 = vrot.lane.b32.xlu0 %v4545, 56
      %v4617 = vpop.permute.xlu0 %4616
      %4618 = vrot.lane.b32.xlu0 %v4546, 56
      %v4619 = vpop.permute.xlu0 %4618
      %4620 = vrot.lane.b32.xlu0 %v4547, 56
      %v4621 = vpop.permute.xlu0 %4620
      %4622 = vrot.lane.b32.xlu0 %v4548, 56
      %v4623 = vpop.permute.xlu0 %4622
      %4624 = vrot.lane.b32.xlu0 %v4549, 56
      %v4625 = vpop.permute.xlu0 %4624
      %4626 = vrot.lane.b32.xlu0 %v4550, 56
      %v4627 = vpop.permute.xlu0 %4626
      %4628 = vrot.lane.b32.xlu0 %v4551, 56
      %v4629 = vpop.permute.xlu0 %4628
      %4630 = vrot.lane.b32.xlu0 %v4552, 56
      %v4631 = vpop.permute.xlu0 %4630
      %4632 = vrot.lane.b32.xlu0 %v4553, 56
      %v4633 = vpop.permute.xlu0 %4632
      %4634 = vrot.lane.b32.xlu0 %v4554, 56
      %v4635 = vpop.permute.xlu0 %4634
      %4636 = vrot.lane.b32.xlu0 %v4555, 56
      %v4637 = vpop.permute.xlu0 %4636
      %4638 = vrot.lane.b32.xlu0 %v4556, 56
      %v4639 = vpop.permute.xlu0 %4638
      %4640 = vrot.lane.b32.xlu0 %v4557, 56
      %v4641 = vpop.permute.xlu0 %4640
      %4642 = vrot.lane.b32.xlu0 %v4558, 56
      %v4643 = vpop.permute.xlu0 %4642
      %4644 = vrot.lane.b32.xlu0 %v4559, 56
      %v4645 = vpop.permute.xlu0 %4644
      %4646 = vrot.lane.b32.xlu0 %v4560, 56
      %v4647 = vpop.permute.xlu0 %4646
      %4648 = vrot.lane.b32.xlu0 %v4561, 56
      %v4649 = vpop.permute.xlu0 %4648
      %4650 = vrot.lane.b32.xlu0 %v4562, 56
      %v4651 = vpop.permute.xlu0 %4650
      %4652 = vrot.lane.b32.xlu0 %v4563, 56
      %v4653 = vpop.permute.xlu0 %4652
      %4654 = vrot.lane.b32.xlu0 %v4564, 56
      %v4655 = vpop.permute.xlu0 %4654
      %4656 = vrot.lane.b32.xlu0 %v4565, 56
      %v4657 = vpop.permute.xlu0 %4656
      %4658 = vrot.lane.b32.xlu0 %v4566, 56
      %v4659 = vpop.permute.xlu0 %4658
      %4660 = vrot.lane.b32.xlu0 %v4567, 56
      %v4661 = vpop.permute.xlu0 %4660
      %4662 = vrot.lane.b32.xlu0 %v4568, 56
      %v4663 = vpop.permute.xlu0 %4662
      %4664 = vrot.lane.b32.xlu0 %v4569, 56
      %v4665 = vpop.permute.xlu0 %4664
      %4698 = vst.msk [vmem:[#allocation3] sm:$0xf] %vm2257, %v4603
      %4699 = vst.msk [vmem:[#allocation3 + $0x4] sm:$0xf] %vm2257, %v4605
      %4700 = vst.msk [vmem:[#allocation3 + $0x8] sm:$0xf] %vm2257, %v4607
      %4701 = vst.msk [vmem:[#allocation3 + $0xc] sm:$0xf] %vm2257, %v4609
      %4702 = vst.msk [vmem:[#allocation3 + $0x10] sm:$0xf] %vm2257, %v4611
      %4703 = vst.msk [vmem:[#allocation3 + $0x14] sm:$0xf] %vm2257, %v4613
      %4704 = vst.msk [vmem:[#allocation3 + $0x18] sm:$0xf] %vm2257, %v4615
      %4705 = vst.msk [vmem:[#allocation3 + $0x1c] sm:$0xf] %vm2257, %v4617
      %4706 = vst.msk [vmem:[#allocation3 + $0x20] sm:$0xf] %vm2257, %v4619
      %4707 = vst.msk [vmem:[#allocation3 + $0x24] sm:$0xf] %vm2257, %v4621
      %4708 = vst.msk [vmem:[#allocation3 + $0x28] sm:$0xf] %vm2257, %v4623
      %4709 = vst.msk [vmem:[#allocation3 + $0x2c] sm:$0xf] %vm2257, %v4625
      %4710 = vst.msk [vmem:[#allocation3 + $0x30] sm:$0xf] %vm2257, %v4627
      %4711 = vst.msk [vmem:[#allocation3 + $0x34] sm:$0xf] %vm2257, %v4629
      %4712 = vst.msk [vmem:[#allocation3 + $0x38] sm:$0xf] %vm2257, %v4631
      %4713 = vst.msk [vmem:[#allocation3 + $0x3c] sm:$0xf] %vm2257, %v4633
      %4714 = vst.msk [vmem:[#allocation3 + $0x40] sm:$0xf] %vm2257, %v4635
      %4715 = vst.msk [vmem:[#allocation3 + $0x44] sm:$0xf] %vm2257, %v4637
      %4716 = vst.msk [vmem:[#allocation3 + $0x48] sm:$0xf] %vm2257, %v4639
      %4717 = vst.msk [vmem:[#allocation3 + $0x4c] sm:$0xf] %vm2257, %v4641
      %4718 = vst.msk [vmem:[#allocation3 + $0x50] sm:$0xf] %vm2257, %v4643
      %4719 = vst.msk [vmem:[#allocation3 + $0x54] sm:$0xf] %vm2257, %v4645
      %4720 = vst.msk [vmem:[#allocation3 + $0x58] sm:$0xf] %vm2257, %v4647
      %4721 = vst.msk [vmem:[#allocation3 + $0x5c] sm:$0xf] %vm2257, %v4649
      %4722 = vst.msk [vmem:[#allocation3 + $0x60] sm:$0xf] %vm2257, %v4651
      %4723 = vst.msk [vmem:[#allocation3 + $0x64] sm:$0xf] %vm2257, %v4653
      %4724 = vst.msk [vmem:[#allocation3 + $0x68] sm:$0xf] %vm2257, %v4655
      %4725 = vst.msk [vmem:[#allocation3 + $0x6c] sm:$0xf] %vm2257, %v4657
      %4726 = vst.msk [vmem:[#allocation3 + $0x70] sm:$0xf] %vm2257, %v4659
      %4727 = vst.msk [vmem:[#allocation3 + $0x74] sm:$0xf] %vm2257, %v4661
      %4728 = vst.msk [vmem:[#allocation3 + $0x78] sm:$0xf] %vm2257, %v4663
      %4729 = vst.msk [vmem:[#allocation3 + $0x7c] sm:$0xf] %vm2257, %v4665
      %v4730 = vld [vmem:[%s1839 + $0x2] sm:$0xff]
      %v4731 = vld [vmem:[%s1839 + $0xa] sm:$0xff]
      %v4732 = vld [vmem:[%s1839 + $0x1a] sm:$0xff]
      %v4733 = vld [vmem:[%s1839 + $0x22] sm:$0xff]
      %v4734 = vld [vmem:[%s1839 + $0x32] sm:$0xff]
      %v4735 = vld [vmem:[%s1839 + $0x3a] sm:$0xff]
      %v4736 = vld [vmem:[%s1839 + $0x4a] sm:$0xff]
      %v4737 = vld [vmem:[%s1839 + $0x52] sm:$0xff]
      %v4738 = vld [vmem:[%s1839 + $0x62] sm:$0xff]
      %v4739 = vld [vmem:[%s1839 + $0x6a] sm:$0xff]
      %v4740 = vld [vmem:[%s1839 + $0x7a] sm:$0xff]
      %v4741 = vld [vmem:[%s1839 + $0x82] sm:$0xff]
      %v4742 = vld [vmem:[%s1839 + $0x92] sm:$0xff]
      %v4743 = vld [vmem:[%s1839 + $0x9a] sm:$0xff]
      %v4744 = vld [vmem:[%s1839 + $0xaa] sm:$0xff]
      %v4745 = vld [vmem:[%s1839 + $0xb2] sm:$0xff]
      %v4746 = vld [vmem:[%s1839 + $0xc2] sm:$0xff]
      %v4747 = vld [vmem:[%s1839 + $0xca] sm:$0xff]
      %v4748 = vld [vmem:[%s1839 + $0xda] sm:$0xff]
      %v4749 = vld [vmem:[%s1839 + $0xe2] sm:$0xff]
      %v4750 = vld [vmem:[%s1839 + $0xf2] sm:$0xff]
      %v4751 = vld [vmem:[%s1839 + $0xfa] sm:$0xff]
      %v4752 = vld [vmem:[%s1839 + $0x10a] sm:$0xff]
      %v4753 = vld [vmem:[%s1839 + $0x112] sm:$0xff]
      %v4754 = vld [vmem:[%s1839 + $0x122] sm:$0xff]
      %v4755 = vld [vmem:[%s1839 + $0x12a] sm:$0xff]
      %v4756 = vld [vmem:[%s1839 + $0x13a] sm:$0xff]
      %v4757 = vld [vmem:[%s1839 + $0x142] sm:$0xff]
      %v4758 = vld [vmem:[%s1839 + $0x152] sm:$0xff]
      %v4759 = vld [vmem:[%s1839 + $0x15a] sm:$0xff]
      %v4760 = vld [vmem:[%s1839 + $0x16a] sm:$0xff]
      %v4761 = vld [vmem:[%s1839 + $0x172] sm:$0xff]
      %v4762 = vpack.c.bf16 %v4730, %v4730
      %v4763 = vpack.c.bf16 %v4731, %v4731
      %v4764 = vpack.c.bf16 %v4732, %v4732
      %v4765 = vpack.c.bf16 %v4733, %v4733
      %v4766 = vpack.c.bf16 %v4734, %v4734
      %v4767 = vpack.c.bf16 %v4735, %v4735
      %v4768 = vpack.c.bf16 %v4736, %v4736
      %v4769 = vpack.c.bf16 %v4737, %v4737
      %v4770 = vpack.c.bf16 %v4738, %v4738
      %v4771 = vpack.c.bf16 %v4739, %v4739
      %v4772 = vpack.c.bf16 %v4740, %v4740
      %v4773 = vpack.c.bf16 %v4741, %v4741
      %v4774 = vpack.c.bf16 %v4742, %v4742
      %v4775 = vpack.c.bf16 %v4743, %v4743
      %v4776 = vpack.c.bf16 %v4744, %v4744
      %v4777 = vpack.c.bf16 %v4745, %v4745
      %v4778 = vpack.c.bf16 %v4746, %v4746
      %v4779 = vpack.c.bf16 %v4747, %v4747
      %v4780 = vpack.c.bf16 %v4748, %v4748
      %v4781 = vpack.c.bf16 %v4749, %v4749
      %v4782 = vpack.c.bf16 %v4750, %v4750
      %v4783 = vpack.c.bf16 %v4751, %v4751
      %v4784 = vpack.c.bf16 %v4752, %v4752
      %v4785 = vpack.c.bf16 %v4753, %v4753
      %v4786 = vpack.c.bf16 %v4754, %v4754
      %v4787 = vpack.c.bf16 %v4755, %v4755
      %v4788 = vpack.c.bf16 %v4756, %v4756
      %v4789 = vpack.c.bf16 %v4757, %v4757
      %v4790 = vpack.c.bf16 %v4758, %v4758
      %v4791 = vpack.c.bf16 %v4759, %v4759
      %v4792 = vpack.c.bf16 %v4760, %v4760
      %v4793 = vpack.c.bf16 %v4761, %v4761
      %4826 = vrot.lane.b32.xlu0 %v4762, 64
      %v4827 = vpop.permute.xlu0 %4826
      %4828 = vrot.lane.b32.xlu0 %v4763, 64
      %v4829 = vpop.permute.xlu0 %4828
      %4830 = vrot.lane.b32.xlu0 %v4764, 64
      %v4831 = vpop.permute.xlu0 %4830
      %4832 = vrot.lane.b32.xlu0 %v4765, 64
      %v4833 = vpop.permute.xlu0 %4832
      %4834 = vrot.lane.b32.xlu0 %v4766, 64
      %v4835 = vpop.permute.xlu0 %4834
      %4836 = vrot.lane.b32.xlu0 %v4767, 64
      %v4837 = vpop.permute.xlu0 %4836
      %4838 = vrot.lane.b32.xlu0 %v4768, 64
      %v4839 = vpop.permute.xlu0 %4838
      %4840 = vrot.lane.b32.xlu0 %v4769, 64
      %v4841 = vpop.permute.xlu0 %4840
      %4842 = vrot.lane.b32.xlu0 %v4770, 64
      %v4843 = vpop.permute.xlu0 %4842
      %4844 = vrot.lane.b32.xlu0 %v4771, 64
      %v4845 = vpop.permute.xlu0 %4844
      %4846 = vrot.lane.b32.xlu0 %v4772, 64
      %v4847 = vpop.permute.xlu0 %4846
      %4848 = vrot.lane.b32.xlu0 %v4773, 64
      %v4849 = vpop.permute.xlu0 %4848
      %4850 = vrot.lane.b32.xlu0 %v4774, 64
      %v4851 = vpop.permute.xlu0 %4850
      %4852 = vrot.lane.b32.xlu0 %v4775, 64
      %v4853 = vpop.permute.xlu0 %4852
      %4854 = vrot.lane.b32.xlu0 %v4776, 64
      %v4855 = vpop.permute.xlu0 %4854
      %4856 = vrot.lane.b32.xlu0 %v4777, 64
      %v4857 = vpop.permute.xlu0 %4856
      %4858 = vrot.lane.b32.xlu0 %v4778, 64
      %v4859 = vpop.permute.xlu0 %4858
      %4860 = vrot.lane.b32.xlu0 %v4779, 64
      %v4861 = vpop.permute.xlu0 %4860
      %4862 = vrot.lane.b32.xlu0 %v4780, 64
      %v4863 = vpop.permute.xlu0 %4862
      %4864 = vrot.lane.b32.xlu0 %v4781, 64
      %v4865 = vpop.permute.xlu0 %4864
      %4866 = vrot.lane.b32.xlu0 %v4782, 64
      %v4867 = vpop.permute.xlu0 %4866
      %4868 = vrot.lane.b32.xlu0 %v4783, 64
      %v4869 = vpop.permute.xlu0 %4868
      %4870 = vrot.lane.b32.xlu0 %v4784, 64
      %v4871 = vpop.permute.xlu0 %4870
      %4872 = vrot.lane.b32.xlu0 %v4785, 64
      %v4873 = vpop.permute.xlu0 %4872
      %4874 = vrot.lane.b32.xlu0 %v4786, 64
      %v4875 = vpop.permute.xlu0 %4874
      %4876 = vrot.lane.b32.xlu0 %v4787, 64
      %v4877 = vpop.permute.xlu0 %4876
      %4878 = vrot.lane.b32.xlu0 %v4788, 64
      %v4879 = vpop.permute.xlu0 %4878
      %4880 = vrot.lane.b32.xlu0 %v4789, 64
      %v4881 = vpop.permute.xlu0 %4880
      %4882 = vrot.lane.b32.xlu0 %v4790, 64
      %v4883 = vpop.permute.xlu0 %4882
      %4884 = vrot.lane.b32.xlu0 %v4791, 64
      %v4885 = vpop.permute.xlu0 %4884
      %4886 = vrot.lane.b32.xlu0 %v4792, 64
      %v4887 = vpop.permute.xlu0 %4886
      %4888 = vrot.lane.b32.xlu0 %v4793, 64
      %v4889 = vpop.permute.xlu0 %4888
      %4922 = vst.msk [vmem:[#allocation3] sm:$0xf] %vm2482, %v4827
      %4923 = vst.msk [vmem:[#allocation3 + $0x4] sm:$0xf] %vm2482, %v4829
      %4924 = vst.msk [vmem:[#allocation3 + $0x8] sm:$0xf] %vm2482, %v4831
      %4925 = vst.msk [vmem:[#allocation3 + $0xc] sm:$0xf] %vm2482, %v4833
      %4926 = vst.msk [vmem:[#allocation3 + $0x10] sm:$0xf] %vm2482, %v4835
      %4927 = vst.msk [vmem:[#allocation3 + $0x14] sm:$0xf] %vm2482, %v4837
      %4928 = vst.msk [vmem:[#allocation3 + $0x18] sm:$0xf] %vm2482, %v4839
      %4929 = vst.msk [vmem:[#allocation3 + $0x1c] sm:$0xf] %vm2482, %v4841
      %4930 = vst.msk [vmem:[#allocation3 + $0x20] sm:$0xf] %vm2482, %v4843
      %4931 = vst.msk [vmem:[#allocation3 + $0x24] sm:$0xf] %vm2482, %v4845
      %4932 = vst.msk [vmem:[#allocation3 + $0x28] sm:$0xf] %vm2482, %v4847
      %4933 = vst.msk [vmem:[#allocation3 + $0x2c] sm:$0xf] %vm2482, %v4849
      %4934 = vst.msk [vmem:[#allocation3 + $0x30] sm:$0xf] %vm2482, %v4851
      %4935 = vst.msk [vmem:[#allocation3 + $0x34] sm:$0xf] %vm2482, %v4853
      %4936 = vst.msk [vmem:[#allocation3 + $0x38] sm:$0xf] %vm2482, %v4855
      %4937 = vst.msk [vmem:[#allocation3 + $0x3c] sm:$0xf] %vm2482, %v4857
      %4938 = vst.msk [vmem:[#allocation3 + $0x40] sm:$0xf] %vm2482, %v4859
      %4939 = vst.msk [vmem:[#allocation3 + $0x44] sm:$0xf] %vm2482, %v4861
      %4940 = vst.msk [vmem:[#allocation3 + $0x48] sm:$0xf] %vm2482, %v4863
      %4941 = vst.msk [vmem:[#allocation3 + $0x4c] sm:$0xf] %vm2482, %v4865
      %4942 = vst.msk [vmem:[#allocation3 + $0x50] sm:$0xf] %vm2482, %v4867
      %4943 = vst.msk [vmem:[#allocation3 + $0x54] sm:$0xf] %vm2482, %v4869
      %4944 = vst.msk [vmem:[#allocation3 + $0x58] sm:$0xf] %vm2482, %v4871
      %4945 = vst.msk [vmem:[#allocation3 + $0x5c] sm:$0xf] %vm2482, %v4873
      %4946 = vst.msk [vmem:[#allocation3 + $0x60] sm:$0xf] %vm2482, %v4875
      %4947 = vst.msk [vmem:[#allocation3 + $0x64] sm:$0xf] %vm2482, %v4877
      %4948 = vst.msk [vmem:[#allocation3 + $0x68] sm:$0xf] %vm2482, %v4879
      %4949 = vst.msk [vmem:[#allocation3 + $0x6c] sm:$0xf] %vm2482, %v4881
      %4950 = vst.msk [vmem:[#allocation3 + $0x70] sm:$0xf] %vm2482, %v4883
      %4951 = vst.msk [vmem:[#allocation3 + $0x74] sm:$0xf] %vm2482, %v4885
      %4952 = vst.msk [vmem:[#allocation3 + $0x78] sm:$0xf] %vm2482, %v4887
      %4953 = vst.msk [vmem:[#allocation3 + $0x7c] sm:$0xf] %vm2482, %v4889
      %v4954 = vld [vmem:[#allocation3] sm:$0xf]
      %v4955 = vld [vmem:[#allocation3 + $0x4] sm:$0xf]
      %v4956 = vld [vmem:[#allocation3 + $0x8] sm:$0xf]
      %v4957 = vld [vmem:[#allocation3 + $0xc] sm:$0xf]
      %v4958 = vld [vmem:[#allocation3 + $0x10] sm:$0xf]
      %v4959 = vld [vmem:[#allocation3 + $0x14] sm:$0xf]
      %v4960 = vld [vmem:[#allocation3 + $0x18] sm:$0xf]
      %v4961 = vld [vmem:[#allocation3 + $0x1c] sm:$0xf]
      %v4962 = vld [vmem:[#allocation3 + $0x20] sm:$0xf]
      %v4963 = vld [vmem:[#allocation3 + $0x24] sm:$0xf]
      %v4964 = vld [vmem:[#allocation3 + $0x28] sm:$0xf]
      %v4965 = vld [vmem:[#allocation3 + $0x2c] sm:$0xf]
      %v4966 = vld [vmem:[#allocation3 + $0x30] sm:$0xf]
      %v4967 = vld [vmem:[#allocation3 + $0x34] sm:$0xf]
      %v4968 = vld [vmem:[#allocation3 + $0x38] sm:$0xf]
      %v4969 = vld [vmem:[#allocation3 + $0x3c] sm:$0xf]
      %v4970 = vld [vmem:[#allocation3 + $0x40] sm:$0xf]
      %v4971 = vld [vmem:[#allocation3 + $0x44] sm:$0xf]
      %v4972 = vld [vmem:[#allocation3 + $0x48] sm:$0xf]
      %v4973 = vld [vmem:[#allocation3 + $0x4c] sm:$0xf]
      %v4974 = vld [vmem:[#allocation3 + $0x50] sm:$0xf]
      %v4975 = vld [vmem:[#allocation3 + $0x54] sm:$0xf]
      %v4976 = vld [vmem:[#allocation3 + $0x58] sm:$0xf]
      %v4977 = vld [vmem:[#allocation3 + $0x5c] sm:$0xf]
      %v4978 = vld [vmem:[#allocation3 + $0x60] sm:$0xf]
      %v4979 = vld [vmem:[#allocation3 + $0x64] sm:$0xf]
      %v4980 = vld [vmem:[#allocation3 + $0x68] sm:$0xf]
      %v4981 = vld [vmem:[#allocation3 + $0x6c] sm:$0xf]
      %v4982 = vld [vmem:[#allocation3 + $0x70] sm:$0xf]
      %v4983 = vld [vmem:[#allocation3 + $0x74] sm:$0xf]
      %v4984 = vld [vmem:[#allocation3 + $0x78] sm:$0xf]
      %v4985 = vld [vmem:[#allocation3 + $0x7c] sm:$0xf]
      %v4986 = vld [vmem:[%s3] sm:$0xf]
      %v4987 = vld [vmem:[%s3 + $0x4] sm:$0xf]
      %v4988 = vld [vmem:[%s3 + $0x8] sm:$0xf]
      %v4989 = vld [vmem:[%s3 + $0xc] sm:$0xf]
      %v4990 = vld [vmem:[%s3 + $0x10] sm:$0xf]
      %v4991 = vld [vmem:[%s3 + $0x14] sm:$0xf]
      %v4992 = vld [vmem:[%s3 + $0x18] sm:$0xf]
      %v4993 = vld [vmem:[%s3 + $0x1c] sm:$0xf]
      %v4994 = vld [vmem:[%s3 + $0x20] sm:$0xf]
      %v4995 = vld [vmem:[%s4] sm:$0x1]
      %v4997 = vperm.slane %v4995, 0
      %v5031 = vunpack.c.l.b16 %v4954
      %v5032 = vunpack.c.l.b16 %v4955
      %v5033 = vunpack.c.l.b16 %v4956
      %v5034 = vunpack.c.l.b16 %v4957
      %v5035 = vunpack.c.l.b16 %v4958
      %v5036 = vunpack.c.l.b16 %v4959
      %v5037 = vunpack.c.l.b16 %v4960
      %v5038 = vunpack.c.l.b16 %v4961
      %v5039 = vunpack.c.l.b16 %v4962
      %v5040 = vunpack.c.l.b16 %v4963
      %v5041 = vunpack.c.l.b16 %v4964
      %v5042 = vunpack.c.l.b16 %v4965
      %v5043 = vunpack.c.l.b16 %v4966
      %v5044 = vunpack.c.l.b16 %v4967
      %v5045 = vunpack.c.l.b16 %v4968
      %v5046 = vunpack.c.l.b16 %v4969
      %v5047 = vunpack.c.l.b16 %v4970
      %v5048 = vunpack.c.l.b16 %v4971
      %v5049 = vunpack.c.l.b16 %v4972
      %v5050 = vunpack.c.l.b16 %v4973
      %v5051 = vunpack.c.l.b16 %v4974
      %v5052 = vunpack.c.l.b16 %v4975
      %v5053 = vunpack.c.l.b16 %v4976
      %v5054 = vunpack.c.l.b16 %v4977
      %v5055 = vunpack.c.l.b16 %v4978
      %v5056 = vunpack.c.l.b16 %v4979
      %v5057 = vunpack.c.l.b16 %v4980
      %v5058 = vunpack.c.l.b16 %v4981
      %v5059 = vunpack.c.l.b16 %v4982
      %v5060 = vunpack.c.l.b16 %v4983
      %v5061 = vunpack.c.l.b16 %v4984
      %v5062 = vunpack.c.l.b16 %v4985
      %v5063 = vpack.c.b16 %v5032, %v5031
      %v5064 = vpack.c.b16 %v5034, %v5033
      %v5065 = vpack.c.b16 %v5036, %v5035
      %v5066 = vpack.c.b16 %v5038, %v5037
      %v5067 = vpack.c.b16 %v5040, %v5039
      %v5068 = vpack.c.b16 %v5042, %v5041
      %v5069 = vpack.c.b16 %v5044, %v5043
      %v5070 = vpack.c.b16 %v5046, %v5045
      %v5071 = vpack.c.b16 %v5048, %v5047
      %v5072 = vpack.c.b16 %v5050, %v5049
      %v5073 = vpack.c.b16 %v5052, %v5051
      %v5074 = vpack.c.b16 %v5054, %v5053
      %v5075 = vpack.c.b16 %v5056, %v5055
      %v5076 = vpack.c.b16 %v5058, %v5057
      %v5077 = vpack.c.b16 %v5060, %v5059
      %v5078 = vpack.c.b16 %v5062, %v5061
      %v5088 = vunpack.c.l.b16 %v4986
      %v5089 = vunpack.c.l.b16 %v4987
      %v5090 = vunpack.c.l.b16 %v4988
      %v5091 = vunpack.c.l.b16 %v4989
      %v5092 = vunpack.c.l.b16 %v4990
      %v5093 = vunpack.c.l.b16 %v4991
      %v5094 = vunpack.c.l.b16 %v4992
      %v5095 = vunpack.c.l.b16 %v4993
      %v5096 = vunpack.c.l.b16 %v4994
      %v5097 = vpack.c.b16 %v5089, %v5088
      %v5098 = vpack.c.b16 %v5091, %v5090
      %v5099 = vpack.c.b16 %v5093, %v5092
      %v5100 = vpack.c.b16 %v5095, %v5094
      %v5101 = vpack.c.b16 %v5096, %v5096
      %v5107 = vsel %vm2667, %v5063, 0
      %v5110 = vsel %vm2667, %v5064, 0
      %v5113 = vsel %vm2667, %v5065, 0
      %v5116 = vsel %vm2667, %v5066, 0
      %v5119 = vsel %vm2667, %v5067, 0
      %v5122 = vsel %vm2667, %v5068, 0
      %v5125 = vsel %vm2667, %v5069, 0
      %v5128 = vsel %vm2667, %v5070, 0
      %v5131 = vsel %vm2667, %v5071, 0
      %v5134 = vsel %vm2667, %v5072, 0
      %v5137 = vsel %vm2667, %v5073, 0
      %v5140 = vsel %vm2667, %v5074, 0
      %v5143 = vsel %vm2667, %v5075, 0
      %v5146 = vsel %vm2667, %v5076, 0
      %v5149 = vsel %vm2667, %v5077, 0
      %v5152 = vsel %vm2667, %v5078, 0
      %v5155 = vsel %vm2716, %v5101, 0
      %5157 = vmatpush.bf16.msra.mxu0 0
      %5158 = vmatpush.bf16.msra.mxu0 0
      %5159 = vmatpush.bf16.msra.mxu0 0
      %5160 = vmatpush.bf16.msra.mxu0 %v5155
      %5161 = vmatpush.bf16.msra.mxu0 %v5100
      %5162 = vmatpush.bf16.msra.mxu0 %v5099
      %5163 = vmatpush.bf16.msra.mxu0 %v5098
      %5164 = vmatpush.bf16.msra.mxu0 %v5097
      %5165 = vmatmul.bf16.gmra.mxu0 %v5107
      %v5166 = vpop.f32.mrf.mxu0
      %v5167 = vadd.f32 %v4997, %v5166
      %v5168 = vpop.f32.mrf.mxu0
      %v5169 = vadd.f32 %v4997, %v5168
      %5170 = vmatmul.bf16.gmra.mxu0 %v5110
      %v5171 = vpop.f32.mrf.mxu0
      %v5172 = vadd.f32 %v4997, %v5171
      %v5173 = vpop.f32.mrf.mxu0
      %v5174 = vadd.f32 %v4997, %v5173
      %5175 = vmatmul.bf16.gmra.mxu0 %v5113
      %v5176 = vpop.f32.mrf.mxu0
      %v5177 = vadd.f32 %v4997, %v5176
      %v5178 = vpop.f32.mrf.mxu0
      %v5179 = vadd.f32 %v4997, %v5178
      %5180 = vmatmul.bf16.gmra.mxu0 %v5116
      %v5181 = vpop.f32.mrf.mxu0
      %v5182 = vadd.f32 %v4997, %v5181
      %v5183 = vpop.f32.mrf.mxu0
      %v5184 = vadd.f32 %v4997, %v5183
      %5185 = vmatmul.bf16.gmra.mxu0 %v5119
      %v5186 = vpop.f32.mrf.mxu0
      %v5187 = vadd.f32 %v4997, %v5186
      %v5188 = vpop.f32.mrf.mxu0
      %v5189 = vadd.f32 %v4997, %v5188
      %5190 = vmatmul.bf16.gmra.mxu0 %v5122
      %v5191 = vpop.f32.mrf.mxu0
      %v5192 = vadd.f32 %v4997, %v5191
      %v5193 = vpop.f32.mrf.mxu0
      %v5194 = vadd.f32 %v4997, %v5193
      %5195 = vmatmul.bf16.gmra.mxu0 %v5125
      %v5196 = vpop.f32.mrf.mxu0
      %v5197 = vadd.f32 %v4997, %v5196
      %v5198 = vpop.f32.mrf.mxu0
      %v5199 = vadd.f32 %v4997, %v5198
      %5200 = vmatmul.bf16.gmra.mxu0 %v5128
      %v5201 = vpop.f32.mrf.mxu0
      %v5202 = vadd.f32 %v4997, %v5201
      %v5203 = vpop.f32.mrf.mxu0
      %v5204 = vadd.f32 %v4997, %v5203
      %5205 = vmatmul.bf16.gmra.mxu0 %v5131
      %v5206 = vpop.f32.mrf.mxu0
      %v5207 = vadd.f32 %v4997, %v5206
      %v5208 = vpop.f32.mrf.mxu0
      %v5209 = vadd.f32 %v4997, %v5208
      %5210 = vmatmul.bf16.gmra.mxu0 %v5134
      %v5211 = vpop.f32.mrf.mxu0
      %v5212 = vadd.f32 %v4997, %v5211
      %v5213 = vpop.f32.mrf.mxu0
      %v5214 = vadd.f32 %v4997, %v5213
      %5215 = vmatmul.bf16.gmra.mxu0 %v5137
      %v5216 = vpop.f32.mrf.mxu0
      %v5217 = vadd.f32 %v4997, %v5216
      %v5218 = vpop.f32.mrf.mxu0
      %v5219 = vadd.f32 %v4997, %v5218
      %5220 = vmatmul.bf16.gmra.mxu0 %v5140
      %v5221 = vpop.f32.mrf.mxu0
      %v5222 = vadd.f32 %v4997, %v5221
      %v5223 = vpop.f32.mrf.mxu0
      %v5224 = vadd.f32 %v4997, %v5223
      %5225 = vmatmul.bf16.gmra.mxu0 %v5143
      %v5226 = vpop.f32.mrf.mxu0
      %v5227 = vadd.f32 %v4997, %v5226
      %v5228 = vpop.f32.mrf.mxu0
      %v5229 = vadd.f32 %v4997, %v5228
      %5230 = vmatmul.bf16.gmra.mxu0 %v5146
      %v5231 = vpop.f32.mrf.mxu0
      %v5232 = vadd.f32 %v4997, %v5231
      %v5233 = vpop.f32.mrf.mxu0
      %v5234 = vadd.f32 %v4997, %v5233
      %5235 = vmatmul.bf16.gmra.mxu0 %v5149
      %v5236 = vpop.f32.mrf.mxu0
      %v5237 = vadd.f32 %v4997, %v5236
      %v5238 = vpop.f32.mrf.mxu0
      %v5239 = vadd.f32 %v4997, %v5238
      %5240 = vmatmul.bf16.gmra.mxu0 %v5152
      %v5241 = vpop.f32.mrf.mxu0
      %v5242 = vadd.f32 %v4997, %v5241
      %v5243 = vpop.f32.mrf.mxu0
      %v5244 = vadd.f32 %v4997, %v5243
      %5245 = vdwg.mxu0
      %v5246 = vmax.f32 %v5167, 0.0
      %v5247 = vmax.f32 %v5169, 0.0
      %v5248 = vmax.f32 %v5172, 0.0
      %v5249 = vmax.f32 %v5174, 0.0
      %v5250 = vmax.f32 %v5177, 0.0
      %v5251 = vmax.f32 %v5179, 0.0
      %v5252 = vmax.f32 %v5182, 0.0
      %v5253 = vmax.f32 %v5184, 0.0
      %v5254 = vmax.f32 %v5187, 0.0
      %v5255 = vmax.f32 %v5189, 0.0
      %v5256 = vmax.f32 %v5192, 0.0
      %v5257 = vmax.f32 %v5194, 0.0
      %v5258 = vmax.f32 %v5197, 0.0
      %v5259 = vmax.f32 %v5199, 0.0
      %v5260 = vmax.f32 %v5202, 0.0
      %v5261 = vmax.f32 %v5204, 0.0
      %v5262 = vmax.f32 %v5207, 0.0
      %v5263 = vmax.f32 %v5209, 0.0
      %v5264 = vmax.f32 %v5212, 0.0
      %v5265 = vmax.f32 %v5214, 0.0
      %v5266 = vmax.f32 %v5217, 0.0
      %v5267 = vmax.f32 %v5219, 0.0
      %v5268 = vmax.f32 %v5222, 0.0
      %v5269 = vmax.f32 %v5224, 0.0
      %v5270 = vmax.f32 %v5227, 0.0
      %v5271 = vmax.f32 %v5229, 0.0
      %v5272 = vmax.f32 %v5232, 0.0
      %v5273 = vmax.f32 %v5234, 0.0
      %v5274 = vmax.f32 %v5237, 0.0
      %v5275 = vmax.f32 %v5239, 0.0
      %v5276 = vmax.f32 %v5242, 0.0
      %v5277 = vmax.f32 %v5244, 0.0
      %5310 = vrot.lane.b32.xlu0 %v5246, 8
      %v5311 = vpop.permute.xlu0 %5310
      %5312 = vrot.lane.b32.xlu0 %v5247, 8
      %v5313 = vpop.permute.xlu0 %5312
      %5314 = vrot.lane.b32.xlu0 %v5248, 8
      %v5315 = vpop.permute.xlu0 %5314
      %5316 = vrot.lane.b32.xlu0 %v5249, 8
      %v5317 = vpop.permute.xlu0 %5316
      %5318 = vrot.lane.b32.xlu0 %v5250, 8
      %v5319 = vpop.permute.xlu0 %5318
      %5320 = vrot.lane.b32.xlu0 %v5251, 8
      %v5321 = vpop.permute.xlu0 %5320
      %5322 = vrot.lane.b32.xlu0 %v5252, 8
      %v5323 = vpop.permute.xlu0 %5322
      %5324 = vrot.lane.b32.xlu0 %v5253, 8
      %v5325 = vpop.permute.xlu0 %5324
      %5326 = vrot.lane.b32.xlu0 %v5254, 8
      %v5327 = vpop.permute.xlu0 %5326
      %5328 = vrot.lane.b32.xlu0 %v5255, 8
      %v5329 = vpop.permute.xlu0 %5328
      %5330 = vrot.lane.b32.xlu0 %v5256, 8
      %v5331 = vpop.permute.xlu0 %5330
      %5332 = vrot.lane.b32.xlu0 %v5257, 8
      %v5333 = vpop.permute.xlu0 %5332
      %5334 = vrot.lane.b32.xlu0 %v5258, 8
      %v5335 = vpop.permute.xlu0 %5334
      %5336 = vrot.lane.b32.xlu0 %v5259, 8
      %v5337 = vpop.permute.xlu0 %5336
      %5338 = vrot.lane.b32.xlu0 %v5260, 8
      %v5339 = vpop.permute.xlu0 %5338
      %5340 = vrot.lane.b32.xlu0 %v5261, 8
      %v5341 = vpop.permute.xlu0 %5340
      %5342 = vrot.lane.b32.xlu0 %v5262, 8
      %v5343 = vpop.permute.xlu0 %5342
      %5344 = vrot.lane.b32.xlu0 %v5263, 8
      %v5345 = vpop.permute.xlu0 %5344
      %5346 = vrot.lane.b32.xlu0 %v5264, 8
      %v5347 = vpop.permute.xlu0 %5346
      %5348 = vrot.lane.b32.xlu0 %v5265, 8
      %v5349 = vpop.permute.xlu0 %5348
      %5350 = vrot.lane.b32.xlu0 %v5266, 8
      %v5351 = vpop.permute.xlu0 %5350
      %5352 = vrot.lane.b32.xlu0 %v5267, 8
      %v5353 = vpop.permute.xlu0 %5352
      %5354 = vrot.lane.b32.xlu0 %v5268, 8
      %v5355 = vpop.permute.xlu0 %5354
      %5356 = vrot.lane.b32.xlu0 %v5269, 8
      %v5357 = vpop.permute.xlu0 %5356
      %5358 = vrot.lane.b32.xlu0 %v5270, 8
      %v5359 = vpop.permute.xlu0 %5358
      %5360 = vrot.lane.b32.xlu0 %v5271, 8
      %v5361 = vpop.permute.xlu0 %5360
      %5362 = vrot.lane.b32.xlu0 %v5272, 8
      %v5363 = vpop.permute.xlu0 %5362
      %5364 = vrot.lane.b32.xlu0 %v5273, 8
      %v5365 = vpop.permute.xlu0 %5364
      %5366 = vrot.lane.b32.xlu0 %v5274, 8
      %v5367 = vpop.permute.xlu0 %5366
      %5368 = vrot.lane.b32.xlu0 %v5275, 8
      %v5369 = vpop.permute.xlu0 %5368
      %5370 = vrot.lane.b32.xlu0 %v5276, 8
      %v5371 = vpop.permute.xlu0 %5370
      %5372 = vrot.lane.b32.xlu0 %v5277, 8
      %v5373 = vpop.permute.xlu0 %5372
      %vm5406 = vcmask 130112
      %5407 = vst.msk [vmem:[#allocation4] sm:$0xff] %vm5406, %v5311
      %5408 = vst.msk [vmem:[#allocation4 + $0x8] sm:$0xff] %vm5406, %v5313
      %5409 = vst.msk [vmem:[#allocation4 + $0x10] sm:$0xff] %vm5406, %v5315
      %5410 = vst.msk [vmem:[#allocation4 + $0x18] sm:$0xff] %vm5406, %v5317
      %5411 = vst.msk [vmem:[#allocation4 + $0x20] sm:$0xff] %vm5406, %v5319
      %5412 = vst.msk [vmem:[#allocation4 + $0x28] sm:$0xff] %vm5406, %v5321
      %5413 = vst.msk [vmem:[#allocation4 + $0x30] sm:$0xff] %vm5406, %v5323
      %5414 = vst.msk [vmem:[#allocation4 + $0x38] sm:$0xff] %vm5406, %v5325
      %5415 = vst.msk [vmem:[#allocation4 + $0x40] sm:$0xff] %vm5406, %v5327
      %5416 = vst.msk [vmem:[#allocation4 + $0x48] sm:$0xff] %vm5406, %v5329
      %5417 = vst.msk [vmem:[#allocation4 + $0x50] sm:$0xff] %vm5406, %v5331
      %5418 = vst.msk [vmem:[#allocation4 + $0x58] sm:$0xff] %vm5406, %v5333
      %5419 = vst.msk [vmem:[#allocation4 + $0x60] sm:$0xff] %vm5406, %v5335
      %5420 = vst.msk [vmem:[#allocation4 + $0x68] sm:$0xff] %vm5406, %v5337
      %5421 = vst.msk [vmem:[#allocation4 + $0x70] sm:$0xff] %vm5406, %v5339
      %5422 = vst.msk [vmem:[#allocation4 + $0x78] sm:$0xff] %vm5406, %v5341
      %5423 = vst.msk [vmem:[#allocation4 + $0x80] sm:$0xff] %vm5406, %v5343
      %5424 = vst.msk [vmem:[#allocation4 + $0x88] sm:$0xff] %vm5406, %v5345
      %5425 = vst.msk [vmem:[#allocation4 + $0x90] sm:$0xff] %vm5406, %v5347
      %5426 = vst.msk [vmem:[#allocation4 + $0x98] sm:$0xff] %vm5406, %v5349
      %5427 = vst.msk [vmem:[#allocation4 + $0xa0] sm:$0xff] %vm5406, %v5351
      %5428 = vst.msk [vmem:[#allocation4 + $0xa8] sm:$0xff] %vm5406, %v5353
      %5429 = vst.msk [vmem:[#allocation4 + $0xb0] sm:$0xff] %vm5406, %v5355
      %5430 = vst.msk [vmem:[#allocation4 + $0xb8] sm:$0xff] %vm5406, %v5357
      %5431 = vst.msk [vmem:[#allocation4 + $0xc0] sm:$0xff] %vm5406, %v5359
      %5432 = vst.msk [vmem:[#allocation4 + $0xc8] sm:$0xff] %vm5406, %v5361
      %5433 = vst.msk [vmem:[#allocation4 + $0xd0] sm:$0xff] %vm5406, %v5363
      %5434 = vst.msk [vmem:[#allocation4 + $0xd8] sm:$0xff] %vm5406, %v5365
      %5435 = vst.msk [vmem:[#allocation4 + $0xe0] sm:$0xff] %vm5406, %v5367
      %5436 = vst.msk [vmem:[#allocation4 + $0xe8] sm:$0xff] %vm5406, %v5369
      %5437 = vst.msk [vmem:[#allocation4 + $0xf0] sm:$0xff] %vm5406, %v5371
      %5438 = vst.msk [vmem:[#allocation4 + $0xf8] sm:$0xff] %vm5406, %v5373
      %v5439 = vld [vmem:[#allocation4] sm:$0xff]
      %v5440 = vld [vmem:[#allocation4 + $0x8] sm:$0xff]
      %v5441 = vld [vmem:[#allocation4 + $0x10] sm:$0xff]
      %v5442 = vld [vmem:[#allocation4 + $0x18] sm:$0xff]
      %v5443 = vld [vmem:[#allocation4 + $0x20] sm:$0xff]
      %v5444 = vld [vmem:[#allocation4 + $0x28] sm:$0xff]
      %v5445 = vld [vmem:[#allocation4 + $0x30] sm:$0xff]
      %v5446 = vld [vmem:[#allocation4 + $0x38] sm:$0xff]
      %v5447 = vld [vmem:[#allocation4 + $0x40] sm:$0xff]
      %v5448 = vld [vmem:[#allocation4 + $0x48] sm:$0xff]
      %v5449 = vld [vmem:[#allocation4 + $0x50] sm:$0xff]
      %v5450 = vld [vmem:[#allocation4 + $0x58] sm:$0xff]
      %v5451 = vld [vmem:[#allocation4 + $0x60] sm:$0xff]
      %v5452 = vld [vmem:[#allocation4 + $0x68] sm:$0xff]
      %v5453 = vld [vmem:[#allocation4 + $0x70] sm:$0xff]
      %v5454 = vld [vmem:[#allocation4 + $0x78] sm:$0xff]
      %v5455 = vld [vmem:[#allocation4 + $0x80] sm:$0xff]
      %v5456 = vld [vmem:[#allocation4 + $0x88] sm:$0xff]
      %v5457 = vld [vmem:[#allocation4 + $0x90] sm:$0xff]
      %v5458 = vld [vmem:[#allocation4 + $0x98] sm:$0xff]
      %v5459 = vld [vmem:[#allocation4 + $0xa0] sm:$0xff]
      %v5460 = vld [vmem:[#allocation4 + $0xa8] sm:$0xff]
      %v5461 = vld [vmem:[#allocation4 + $0xb0] sm:$0xff]
      %v5462 = vld [vmem:[#allocation4 + $0xb8] sm:$0xff]
      %v5463 = vld [vmem:[#allocation4 + $0xc0] sm:$0xff]
      %v5464 = vld [vmem:[#allocation4 + $0xc8] sm:$0xff]
      %v5465 = vld [vmem:[#allocation4 + $0xd0] sm:$0xff]
      %v5466 = vld [vmem:[#allocation4 + $0xd8] sm:$0xff]
      %v5467 = vld [vmem:[#allocation4 + $0xe0] sm:$0xff]
      %v5468 = vld [vmem:[#allocation4 + $0xe8] sm:$0xff]
      %v5469 = vld [vmem:[#allocation4 + $0xf0] sm:$0xff]
      %v5470 = vld [vmem:[#allocation4 + $0xf8] sm:$0xff]
      %5503 = vrot.lane.b32.xlu0 %v5439, 112
      %v5504 = vpop.permute.xlu0 %5503
      %5505 = vrot.lane.b32.xlu0 %v5440, 112
      %v5506 = vpop.permute.xlu0 %5505
      %5507 = vrot.lane.b32.xlu0 %v5441, 112
      %v5508 = vpop.permute.xlu0 %5507
      %5509 = vrot.lane.b32.xlu0 %v5442, 112
      %v5510 = vpop.permute.xlu0 %5509
      %5511 = vrot.lane.b32.xlu0 %v5443, 112
      %v5512 = vpop.permute.xlu0 %5511
      %5513 = vrot.lane.b32.xlu0 %v5444, 112
      %v5514 = vpop.permute.xlu0 %5513
      %5515 = vrot.lane.b32.xlu0 %v5445, 112
      %v5516 = vpop.permute.xlu0 %5515
      %5517 = vrot.lane.b32.xlu0 %v5446, 112
      %v5518 = vpop.permute.xlu0 %5517
      %5519 = vrot.lane.b32.xlu0 %v5447, 112
      %v5520 = vpop.permute.xlu0 %5519
      %5521 = vrot.lane.b32.xlu0 %v5448, 112
      %v5522 = vpop.permute.xlu0 %5521
      %5523 = vrot.lane.b32.xlu0 %v5449, 112
      %v5524 = vpop.permute.xlu0 %5523
      %5525 = vrot.lane.b32.xlu0 %v5450, 112
      %v5526 = vpop.permute.xlu0 %5525
      %5527 = vrot.lane.b32.xlu0 %v5451, 112
      %v5528 = vpop.permute.xlu0 %5527
      %5529 = vrot.lane.b32.xlu0 %v5452, 112
      %v5530 = vpop.permute.xlu0 %5529
      %5531 = vrot.lane.b32.xlu0 %v5453, 112
      %v5532 = vpop.permute.xlu0 %5531
      %5533 = vrot.lane.b32.xlu0 %v5454, 112
      %v5534 = vpop.permute.xlu0 %5533
      %5535 = vrot.lane.b32.xlu0 %v5455, 112
      %v5536 = vpop.permute.xlu0 %5535
      %5537 = vrot.lane.b32.xlu0 %v5456, 112
      %v5538 = vpop.permute.xlu0 %5537
      %5539 = vrot.lane.b32.xlu0 %v5457, 112
      %v5540 = vpop.permute.xlu0 %5539
      %5541 = vrot.lane.b32.xlu0 %v5458, 112
      %v5542 = vpop.permute.xlu0 %5541
      %5543 = vrot.lane.b32.xlu0 %v5459, 112
      %v5544 = vpop.permute.xlu0 %5543
      %5545 = vrot.lane.b32.xlu0 %v5460, 112
      %v5546 = vpop.permute.xlu0 %5545
      %5547 = vrot.lane.b32.xlu0 %v5461, 112
      %v5548 = vpop.permute.xlu0 %5547
      %5549 = vrot.lane.b32.xlu0 %v5462, 112
      %v5550 = vpop.permute.xlu0 %5549
      %5551 = vrot.lane.b32.xlu0 %v5463, 112
      %v5552 = vpop.permute.xlu0 %5551
      %5553 = vrot.lane.b32.xlu0 %v5464, 112
      %v5554 = vpop.permute.xlu0 %5553
      %5555 = vrot.lane.b32.xlu0 %v5465, 112
      %v5556 = vpop.permute.xlu0 %5555
      %5557 = vrot.lane.b32.xlu0 %v5466, 112
      %v5558 = vpop.permute.xlu0 %5557
      %5559 = vrot.lane.b32.xlu0 %v5467, 112
      %v5560 = vpop.permute.xlu0 %5559
      %5561 = vrot.lane.b32.xlu0 %v5468, 112
      %v5562 = vpop.permute.xlu0 %5561
      %5563 = vrot.lane.b32.xlu0 %v5469, 112
      %v5564 = vpop.permute.xlu0 %5563
      %5565 = vrot.lane.b32.xlu0 %v5470, 112
      %v5566 = vpop.permute.xlu0 %5565
      %5599 = vst.msk [vmem:[%s584 + $0x1] sm:$0xff] %vm496, %v5504
      %5600 = vst.msk [vmem:[%s584 + $0x9] sm:$0xff] %vm496, %v5506
      %5601 = vst.msk [vmem:[%s584 + $0x19] sm:$0xff] %vm496, %v5508
      %5602 = vst.msk [vmem:[%s584 + $0x21] sm:$0xff] %vm496, %v5510
      %5603 = vst.msk [vmem:[%s584 + $0x31] sm:$0xff] %vm496, %v5512
      %5604 = vst.msk [vmem:[%s584 + $0x39] sm:$0xff] %vm496, %v5514
      %5605 = vst.msk [vmem:[%s584 + $0x49] sm:$0xff] %vm496, %v5516
      %5606 = vst.msk [vmem:[%s584 + $0x51] sm:$0xff] %vm496, %v5518
      %5607 = vst.msk [vmem:[%s584 + $0x61] sm:$0xff] %vm496, %v5520
      %5608 = vst.msk [vmem:[%s584 + $0x69] sm:$0xff] %vm496, %v5522
      %5609 = vst.msk [vmem:[%s584 + $0x79] sm:$0xff] %vm496, %v5524
      %5610 = vst.msk [vmem:[%s584 + $0x81] sm:$0xff] %vm496, %v5526
      %5611 = vst.msk [vmem:[%s584 + $0x91] sm:$0xff] %vm496, %v5528
      %5612 = vst.msk [vmem:[%s584 + $0x99] sm:$0xff] %vm496, %v5530
      %5613 = vst.msk [vmem:[%s584 + $0xa9] sm:$0xff] %vm496, %v5532
      %5614 = vst.msk [vmem:[%s584 + $0xb1] sm:$0xff] %vm496, %v5534
      %5615 = vst.msk [vmem:[%s584 + $0xc1] sm:$0xff] %vm496, %v5536
      %5616 = vst.msk [vmem:[%s584 + $0xc9] sm:$0xff] %vm496, %v5538
      %5617 = vst.msk [vmem:[%s584 + $0xd9] sm:$0xff] %vm496, %v5540
      %5618 = vst.msk [vmem:[%s584 + $0xe1] sm:$0xff] %vm496, %v5542
      %5619 = vst.msk [vmem:[%s584 + $0xf1] sm:$0xff] %vm496, %v5544
      %5620 = vst.msk [vmem:[%s584 + $0xf9] sm:$0xff] %vm496, %v5546
      %5621 = vst.msk [vmem:[%s584 + $0x109] sm:$0xff] %vm496, %v5548
      %5622 = vst.msk [vmem:[%s584 + $0x111] sm:$0xff] %vm496, %v5550
      %5623 = vst.msk [vmem:[%s584 + $0x121] sm:$0xff] %vm496, %v5552
      %5624 = vst.msk [vmem:[%s584 + $0x129] sm:$0xff] %vm496, %v5554
      %5625 = vst.msk [vmem:[%s584 + $0x139] sm:$0xff] %vm496, %v5556
      %5626 = vst.msk [vmem:[%s584 + $0x141] sm:$0xff] %vm496, %v5558
      %5627 = vst.msk [vmem:[%s584 + $0x151] sm:$0xff] %vm496, %v5560
      %5628 = vst.msk [vmem:[%s584 + $0x159] sm:$0xff] %vm496, %v5562
      %5629 = vst.msk [vmem:[%s584 + $0x169] sm:$0xff] %vm496, %v5564
      %5630 = vst.msk [vmem:[%s584 + $0x171] sm:$0xff] %vm496, %v5566
      %v5631 = vld [vmem:[#allocation2] sm:$0xff]
      %v5632 = vld [vmem:[#allocation2 + $0x8] sm:$0xff]
      %v5633 = vld [vmem:[#allocation2 + $0x18] sm:$0xff]
      %v5634 = vld [vmem:[#allocation2 + $0x20] sm:$0xff]
      %v5635 = vld [vmem:[#allocation2 + $0x30] sm:$0xff]
      %v5636 = vld [vmem:[#allocation2 + $0x38] sm:$0xff]
      %v5637 = vld [vmem:[#allocation2 + $0x48] sm:$0xff]
      %v5638 = vld [vmem:[#allocation2 + $0x50] sm:$0xff]
      %v5639 = vld [vmem:[#allocation2 + $0x60] sm:$0xff]
      %v5640 = vld [vmem:[#allocation2 + $0x68] sm:$0xff]
      %v5641 = vld [vmem:[#allocation2 + $0x78] sm:$0xff]
      %v5642 = vld [vmem:[#allocation2 + $0x80] sm:$0xff]
      %v5643 = vld [vmem:[#allocation2 + $0x90] sm:$0xff]
      %v5644 = vld [vmem:[#allocation2 + $0x98] sm:$0xff]
      %v5645 = vld [vmem:[#allocation2 + $0xa8] sm:$0xff]
      %v5646 = vld [vmem:[#allocation2 + $0xb0] sm:$0xff]
      %v5647 = vld [vmem:[#allocation2 + $0xc0] sm:$0xff]
      %v5648 = vld [vmem:[#allocation2 + $0xc8] sm:$0xff]
      %v5649 = vld [vmem:[#allocation2 + $0xd8] sm:$0xff]
      %v5650 = vld [vmem:[#allocation2 + $0xe0] sm:$0xff]
      %v5651 = vld [vmem:[#allocation2 + $0xf0] sm:$0xff]
      %v5652 = vld [vmem:[#allocation2 + $0xf8] sm:$0xff]
      %v5653 = vld [vmem:[#allocation2 + $0x108] sm:$0xff]
      %v5654 = vld [vmem:[#allocation2 + $0x110] sm:$0xff]
      %v5655 = vld [vmem:[#allocation2 + $0x120] sm:$0xff]
      %v5656 = vld [vmem:[#allocation2 + $0x128] sm:$0xff]
      %v5657 = vld [vmem:[#allocation2 + $0x138] sm:$0xff]
      %v5658 = vld [vmem:[#allocation2 + $0x140] sm:$0xff]
      %v5659 = vld [vmem:[#allocation2 + $0x150] sm:$0xff]
      %v5660 = vld [vmem:[#allocation2 + $0x158] sm:$0xff]
      %v5661 = vld [vmem:[#allocation2 + $0x168] sm:$0xff]
      %v5662 = vld [vmem:[#allocation2 + $0x170] sm:$0xff]
      %v5663 = vpack.c.bf16 %v5631, %v5631
      %v5664 = vpack.c.bf16 %v5632, %v5632
      %v5665 = vpack.c.bf16 %v5633, %v5633
      %v5666 = vpack.c.bf16 %v5634, %v5634
      %v5667 = vpack.c.bf16 %v5635, %v5635
      %v5668 = vpack.c.bf16 %v5636, %v5636
      %v5669 = vpack.c.bf16 %v5637, %v5637
      %v5670 = vpack.c.bf16 %v5638, %v5638
      %v5671 = vpack.c.bf16 %v5639, %v5639
      %v5672 = vpack.c.bf16 %v5640, %v5640
      %v5673 = vpack.c.bf16 %v5641, %v5641
      %v5674 = vpack.c.bf16 %v5642, %v5642
      %v5675 = vpack.c.bf16 %v5643, %v5643
      %v5676 = vpack.c.bf16 %v5644, %v5644
      %v5677 = vpack.c.bf16 %v5645, %v5645
      %v5678 = vpack.c.bf16 %v5646, %v5646
      %v5679 = vpack.c.bf16 %v5647, %v5647
      %v5680 = vpack.c.bf16 %v5648, %v5648
      %v5681 = vpack.c.bf16 %v5649, %v5649
      %v5682 = vpack.c.bf16 %v5650, %v5650
      %v5683 = vpack.c.bf16 %v5651, %v5651
      %v5684 = vpack.c.bf16 %v5652, %v5652
      %v5685 = vpack.c.bf16 %v5653, %v5653
      %v5686 = vpack.c.bf16 %v5654, %v5654
      %v5687 = vpack.c.bf16 %v5655, %v5655
      %v5688 = vpack.c.bf16 %v5656, %v5656
      %v5689 = vpack.c.bf16 %v5657, %v5657
      %v5690 = vpack.c.bf16 %v5658, %v5658
      %v5691 = vpack.c.bf16 %v5659, %v5659
      %v5692 = vpack.c.bf16 %v5660, %v5660
      %v5693 = vpack.c.bf16 %v5661, %v5661
      %v5694 = vpack.c.bf16 %v5662, %v5662
      %5695 = vst.msk [vmem:[#allocation3] sm:$0xf] %vm681, %v5663
      %5696 = vst.msk [vmem:[#allocation3 + $0x4] sm:$0xf] %vm681, %v5664
      %5697 = vst.msk [vmem:[#allocation3 + $0x8] sm:$0xf] %vm681, %v5665
      %5698 = vst.msk [vmem:[#allocation3 + $0xc] sm:$0xf] %vm681, %v5666
      %5699 = vst.msk [vmem:[#allocation3 + $0x10] sm:$0xf] %vm681, %v5667
      %5700 = vst.msk [vmem:[#allocation3 + $0x14] sm:$0xf] %vm681, %v5668
      %5701 = vst.msk [vmem:[#allocation3 + $0x18] sm:$0xf] %vm681, %v5669
      %5702 = vst.msk [vmem:[#allocation3 + $0x1c] sm:$0xf] %vm681, %v5670
      %5703 = vst.msk [vmem:[#allocation3 + $0x20] sm:$0xf] %vm681, %v5671
      %5704 = vst.msk [vmem:[#allocation3 + $0x24] sm:$0xf] %vm681, %v5672
      %5705 = vst.msk [vmem:[#allocation3 + $0x28] sm:$0xf] %vm681, %v5673
      %5706 = vst.msk [vmem:[#allocation3 + $0x2c] sm:$0xf] %vm681, %v5674
      %5707 = vst.msk [vmem:[#allocation3 + $0x30] sm:$0xf] %vm681, %v5675
      %5708 = vst.msk [vmem:[#allocation3 + $0x34] sm:$0xf] %vm681, %v5676
      %5709 = vst.msk [vmem:[#allocation3 + $0x38] sm:$0xf] %vm681, %v5677
      %5710 = vst.msk [vmem:[#allocation3 + $0x3c] sm:$0xf] %vm681, %v5678
      %5711 = vst.msk [vmem:[#allocation3 + $0x40] sm:$0xf] %vm681, %v5679
      %5712 = vst.msk [vmem:[#allocation3 + $0x44] sm:$0xf] %vm681, %v5680
      %5713 = vst.msk [vmem:[#allocation3 + $0x48] sm:$0xf] %vm681, %v5681
      %5714 = vst.msk [vmem:[#allocation3 + $0x4c] sm:$0xf] %vm681, %v5682
      %5715 = vst.msk [vmem:[#allocation3 + $0x50] sm:$0xf] %vm681, %v5683
      %5716 = vst.msk [vmem:[#allocation3 + $0x54] sm:$0xf] %vm681, %v5684
      %5717 = vst.msk [vmem:[#allocation3 + $0x58] sm:$0xf] %vm681, %v5685
      %5718 = vst.msk [vmem:[#allocation3 + $0x5c] sm:$0xf] %vm681, %v5686
      %5719 = vst.msk [vmem:[#allocation3 + $0x60] sm:$0xf] %vm681, %v5687
      %5720 = vst.msk [vmem:[#allocation3 + $0x64] sm:$0xf] %vm681, %v5688
      %5721 = vst.msk [vmem:[#allocation3 + $0x68] sm:$0xf] %vm681, %v5689
      %5722 = vst.msk [vmem:[#allocation3 + $0x6c] sm:$0xf] %vm681, %v5690
      %5723 = vst.msk [vmem:[#allocation3 + $0x70] sm:$0xf] %vm681, %v5691
      %5724 = vst.msk [vmem:[#allocation3 + $0x74] sm:$0xf] %vm681, %v5692
      %5725 = vst.msk [vmem:[#allocation3 + $0x78] sm:$0xf] %vm681, %v5693
      %5726 = vst.msk [vmem:[#allocation3 + $0x7c] sm:$0xf] %vm681, %v5694
      %v5727 = vld [vmem:[#allocation2 + $0x1] sm:$0xff]
      %v5728 = vld [vmem:[#allocation2 + $0x9] sm:$0xff]
      %v5729 = vld [vmem:[#allocation2 + $0x19] sm:$0xff]
      %v5730 = vld [vmem:[#allocation2 + $0x21] sm:$0xff]
      %v5731 = vld [vmem:[#allocation2 + $0x31] sm:$0xff]
      %v5732 = vld [vmem:[#allocation2 + $0x39] sm:$0xff]
      %v5733 = vld [vmem:[#allocation2 + $0x49] sm:$0xff]
      %v5734 = vld [vmem:[#allocation2 + $0x51] sm:$0xff]
      %v5735 = vld [vmem:[#allocation2 + $0x61] sm:$0xff]
      %v5736 = vld [vmem:[#allocation2 + $0x69] sm:$0xff]
      %v5737 = vld [vmem:[#allocation2 + $0x79] sm:$0xff]
      %v5738 = vld [vmem:[#allocation2 + $0x81] sm:$0xff]
      %v5739 = vld [vmem:[#allocation2 + $0x91] sm:$0xff]
      %v5740 = vld [vmem:[#allocation2 + $0x99] sm:$0xff]
      %v5741 = vld [vmem:[#allocation2 + $0xa9] sm:$0xff]
      %v5742 = vld [vmem:[#allocation2 + $0xb1] sm:$0xff]
      %v5743 = vld [vmem:[#allocation2 + $0xc1] sm:$0xff]
      %v5744 = vld [vmem:[#allocation2 + $0xc9] sm:$0xff]
      %v5745 = vld [vmem:[#allocation2 + $0xd9] sm:$0xff]
      %v5746 = vld [vmem:[#allocation2 + $0xe1] sm:$0xff]
      %v5747 = vld [vmem:[#allocation2 + $0xf1] sm:$0xff]
      %v5748 = vld [vmem:[#allocation2 + $0xf9] sm:$0xff]
      %v5749 = vld [vmem:[#allocation2 + $0x109] sm:$0xff]
      %v5750 = vld [vmem:[#allocation2 + $0x111] sm:$0xff]
      %v5751 = vld [vmem:[#allocation2 + $0x121] sm:$0xff]
      %v5752 = vld [vmem:[#allocation2 + $0x129] sm:$0xff]
      %v5753 = vld [vmem:[#allocation2 + $0x139] sm:$0xff]
      %v5754 = vld [vmem:[#allocation2 + $0x141] sm:$0xff]
      %v5755 = vld [vmem:[#allocation2 + $0x151] sm:$0xff]
      %v5756 = vld [vmem:[#allocation2 + $0x159] sm:$0xff]
      %v5757 = vld [vmem:[#allocation2 + $0x169] sm:$0xff]
      %v5758 = vld [vmem:[#allocation2 + $0x171] sm:$0xff]
      %v5759 = vpack.c.bf16 %v5727, %v5727
      %v5760 = vpack.c.bf16 %v5728, %v5728
      %v5761 = vpack.c.bf16 %v5729, %v5729
      %v5762 = vpack.c.bf16 %v5730, %v5730
      %v5763 = vpack.c.bf16 %v5731, %v5731
      %v5764 = vpack.c.bf16 %v5732, %v5732
      %v5765 = vpack.c.bf16 %v5733, %v5733
      %v5766 = vpack.c.bf16 %v5734, %v5734
      %v5767 = vpack.c.bf16 %v5735, %v5735
      %v5768 = vpack.c.bf16 %v5736, %v5736
      %v5769 = vpack.c.bf16 %v5737, %v5737
      %v5770 = vpack.c.bf16 %v5738, %v5738
      %v5771 = vpack.c.bf16 %v5739, %v5739
      %v5772 = vpack.c.bf16 %v5740, %v5740
      %v5773 = vpack.c.bf16 %v5741, %v5741
      %v5774 = vpack.c.bf16 %v5742, %v5742
      %v5775 = vpack.c.bf16 %v5743, %v5743
      %v5776 = vpack.c.bf16 %v5744, %v5744
      %v5777 = vpack.c.bf16 %v5745, %v5745
      %v5778 = vpack.c.bf16 %v5746, %v5746
      %v5779 = vpack.c.bf16 %v5747, %v5747
      %v5780 = vpack.c.bf16 %v5748, %v5748
      %v5781 = vpack.c.bf16 %v5749, %v5749
      %v5782 = vpack.c.bf16 %v5750, %v5750
      %v5783 = vpack.c.bf16 %v5751, %v5751
      %v5784 = vpack.c.bf16 %v5752, %v5752
      %v5785 = vpack.c.bf16 %v5753, %v5753
      %v5786 = vpack.c.bf16 %v5754, %v5754
      %v5787 = vpack.c.bf16 %v5755, %v5755
      %v5788 = vpack.c.bf16 %v5756, %v5756
      %v5789 = vpack.c.bf16 %v5757, %v5757
      %v5790 = vpack.c.bf16 %v5758, %v5758
      %5823 = vrot.lane.b32.xlu0 %v5759, 8
      %v5824 = vpop.permute.xlu0 %5823
      %5825 = vrot.lane.b32.xlu0 %v5760, 8
      %v5826 = vpop.permute.xlu0 %5825
      %5827 = vrot.lane.b32.xlu0 %v5761, 8
      %v5828 = vpop.permute.xlu0 %5827
      %5829 = vrot.lane.b32.xlu0 %v5762, 8
      %v5830 = vpop.permute.xlu0 %5829
      %5831 = vrot.lane.b32.xlu0 %v5763, 8
      %v5832 = vpop.permute.xlu0 %5831
      %5833 = vrot.lane.b32.xlu0 %v5764, 8
      %v5834 = vpop.permute.xlu0 %5833
      %5835 = vrot.lane.b32.xlu0 %v5765, 8
      %v5836 = vpop.permute.xlu0 %5835
      %5837 = vrot.lane.b32.xlu0 %v5766, 8
      %v5838 = vpop.permute.xlu0 %5837
      %5839 = vrot.lane.b32.xlu0 %v5767, 8
      %v5840 = vpop.permute.xlu0 %5839
      %5841 = vrot.lane.b32.xlu0 %v5768, 8
      %v5842 = vpop.permute.xlu0 %5841
      %5843 = vrot.lane.b32.xlu0 %v5769, 8
      %v5844 = vpop.permute.xlu0 %5843
      %5845 = vrot.lane.b32.xlu0 %v5770, 8
      %v5846 = vpop.permute.xlu0 %5845
      %5847 = vrot.lane.b32.xlu0 %v5771, 8
      %v5848 = vpop.permute.xlu0 %5847
      %5849 = vrot.lane.b32.xlu0 %v5772, 8
      %v5850 = vpop.permute.xlu0 %5849
      %5851 = vrot.lane.b32.xlu0 %v5773, 8
      %v5852 = vpop.permute.xlu0 %5851
      %5853 = vrot.lane.b32.xlu0 %v5774, 8
      %v5854 = vpop.permute.xlu0 %5853
      %5855 = vrot.lane.b32.xlu0 %v5775, 8
      %v5856 = vpop.permute.xlu0 %5855
      %5857 = vrot.lane.b32.xlu0 %v5776, 8
      %v5858 = vpop.permute.xlu0 %5857
      %5859 = vrot.lane.b32.xlu0 %v5777, 8
      %v5860 = vpop.permute.xlu0 %5859
      %5861 = vrot.lane.b32.xlu0 %v5778, 8
      %v5862 = vpop.permute.xlu0 %5861
      %5863 = vrot.lane.b32.xlu0 %v5779, 8
      %v5864 = vpop.permute.xlu0 %5863
      %5865 = vrot.lane.b32.xlu0 %v5780, 8
      %v5866 = vpop.permute.xlu0 %5865
      %5867 = vrot.lane.b32.xlu0 %v5781, 8
      %v5868 = vpop.permute.xlu0 %5867
      %5869 = vrot.lane.b32.xlu0 %v5782, 8
      %v5870 = vpop.permute.xlu0 %5869
      %5871 = vrot.lane.b32.xlu0 %v5783, 8
      %v5872 = vpop.permute.xlu0 %5871
      %5873 = vrot.lane.b32.xlu0 %v5784, 8
      %v5874 = vpop.permute.xlu0 %5873
      %5875 = vrot.lane.b32.xlu0 %v5785, 8
      %v5876 = vpop.permute.xlu0 %5875
      %5877 = vrot.lane.b32.xlu0 %v5786, 8
      %v5878 = vpop.permute.xlu0 %5877
      %5879 = vrot.lane.b32.xlu0 %v5787, 8
      %v5880 = vpop.permute.xlu0 %5879
      %5881 = vrot.lane.b32.xlu0 %v5788, 8
      %v5882 = vpop.permute.xlu0 %5881
      %5883 = vrot.lane.b32.xlu0 %v5789, 8
      %v5884 = vpop.permute.xlu0 %5883
      %5885 = vrot.lane.b32.xlu0 %v5790, 8
      %v5886 = vpop.permute.xlu0 %5885
      %5919 = vst.msk [vmem:[#allocation3] sm:$0xf] %vm906, %v5824
      %5920 = vst.msk [vmem:[#allocation3 + $0x4] sm:$0xf] %vm906, %v5826
      %5921 = vst.msk [vmem:[#allocation3 + $0x8] sm:$0xf] %vm906, %v5828
      %5922 = vst.msk [vmem:[#allocation3 + $0xc] sm:$0xf] %vm906, %v5830
      %5923 = vst.msk [vmem:[#allocation3 + $0x10] sm:$0xf] %vm906, %v5832
      %5924 = vst.msk [vmem:[#allocation3 + $0x14] sm:$0xf] %vm906, %v5834
      %5925 = vst.msk [vmem:[#allocation3 + $0x18] sm:$0xf] %vm906, %v5836
      %5926 = vst.msk [vmem:[#allocation3 + $0x1c] sm:$0xf] %vm906, %v5838
      %5927 = vst.msk [vmem:[#allocation3 + $0x20] sm:$0xf] %vm906, %v5840
      %5928 = vst.msk [vmem:[#allocation3 + $0x24] sm:$0xf] %vm906, %v5842
      %5929 = vst.msk [vmem:[#allocation3 + $0x28] sm:$0xf] %vm906, %v5844
      %5930 = vst.msk [vmem:[#allocation3 + $0x2c] sm:$0xf] %vm906, %v5846
      %5931 = vst.msk [vmem:[#allocation3 + $0x30] sm:$0xf] %vm906, %v5848
      %5932 = vst.msk [vmem:[#allocation3 + $0x34] sm:$0xf] %vm906, %v5850
      %5933 = vst.msk [vmem:[#allocation3 + $0x38] sm:$0xf] %vm906, %v5852
      %5934 = vst.msk [vmem:[#allocation3 + $0x3c] sm:$0xf] %vm906, %v5854
      %5935 = vst.msk [vmem:[#allocation3 + $0x40] sm:$0xf] %vm906, %v5856
      %5936 = vst.msk [vmem:[#allocation3 + $0x44] sm:$0xf] %vm906, %v5858
      %5937 = vst.msk [vmem:[#allocation3 + $0x48] sm:$0xf] %vm906, %v5860
      %5938 = vst.msk [vmem:[#allocation3 + $0x4c] sm:$0xf] %vm906, %v5862
      %5939 = vst.msk [vmem:[#allocation3 + $0x50] sm:$0xf] %vm906, %v5864
      %5940 = vst.msk [vmem:[#allocation3 + $0x54] sm:$0xf] %vm906, %v5866
      %5941 = vst.msk [vmem:[#allocation3 + $0x58] sm:$0xf] %vm906, %v5868
      %5942 = vst.msk [vmem:[#allocation3 + $0x5c] sm:$0xf] %vm906, %v5870
      %5943 = vst.msk [vmem:[#allocation3 + $0x60] sm:$0xf] %vm906, %v5872
      %5944 = vst.msk [vmem:[#allocation3 + $0x64] sm:$0xf] %vm906, %v5874
      %5945 = vst.msk [vmem:[#allocation3 + $0x68] sm:$0xf] %vm906, %v5876
      %5946 = vst.msk [vmem:[#allocation3 + $0x6c] sm:$0xf] %vm906, %v5878
      %5947 = vst.msk [vmem:[#allocation3 + $0x70] sm:$0xf] %vm906, %v5880
      %5948 = vst.msk [vmem:[#allocation3 + $0x74] sm:$0xf] %vm906, %v5882
      %5949 = vst.msk [vmem:[#allocation3 + $0x78] sm:$0xf] %vm906, %v5884
      %5950 = vst.msk [vmem:[#allocation3 + $0x7c] sm:$0xf] %vm906, %v5886
      %v5951 = vld [vmem:[#allocation2 + $0x2] sm:$0xff]
      %v5952 = vld [vmem:[#allocation2 + $0xa] sm:$0xff]
      %v5953 = vld [vmem:[#allocation2 + $0x1a] sm:$0xff]
      %v5954 = vld [vmem:[#allocation2 + $0x22] sm:$0xff]
      %v5955 = vld [vmem:[#allocation2 + $0x32] sm:$0xff]
      %v5956 = vld [vmem:[#allocation2 + $0x3a] sm:$0xff]
      %v5957 = vld [vmem:[#allocation2 + $0x4a] sm:$0xff]
      %v5958 = vld [vmem:[#allocation2 + $0x52] sm:$0xff]
      %v5959 = vld [vmem:[#allocation2 + $0x62] sm:$0xff]
      %v5960 = vld [vmem:[#allocation2 + $0x6a] sm:$0xff]
      %v5961 = vld [vmem:[#allocation2 + $0x7a] sm:$0xff]
      %v5962 = vld [vmem:[#allocation2 + $0x82] sm:$0xff]
      %v5963 = vld [vmem:[#allocation2 + $0x92] sm:$0xff]
      %v5964 = vld [vmem:[#allocation2 + $0x9a] sm:$0xff]
      %v5965 = vld [vmem:[#allocation2 + $0xaa] sm:$0xff]
      %v5966 = vld [vmem:[#allocation2 + $0xb2] sm:$0xff]
      %v5967 = vld [vmem:[#allocation2 + $0xc2] sm:$0xff]
      %v5968 = vld [vmem:[#allocation2 + $0xca] sm:$0xff]
      %v5969 = vld [vmem:[#allocation2 + $0xda] sm:$0xff]
      %v5970 = vld [vmem:[#allocation2 + $0xe2] sm:$0xff]
      %v5971 = vld [vmem:[#allocation2 + $0xf2] sm:$0xff]
      %v5972 = vld [vmem:[#allocation2 + $0xfa] sm:$0xff]
      %v5973 = vld [vmem:[#allocation2 + $0x10a] sm:$0xff]
      %v5974 = vld [vmem:[#allocation2 + $0x112] sm:$0xff]
      %v5975 = vld [vmem:[#allocation2 + $0x122] sm:$0xff]
      %v5976 = vld [vmem:[#allocation2 + $0x12a] sm:$0xff]
      %v5977 = vld [vmem:[#allocation2 + $0x13a] sm:$0xff]
      %v5978 = vld [vmem:[#allocation2 + $0x142] sm:$0xff]
      %v5979 = vld [vmem:[#allocation2 + $0x152] sm:$0xff]
      %v5980 = vld [vmem:[#allocation2 + $0x15a] sm:$0xff]
      %v5981 = vld [vmem:[#allocation2 + $0x16a] sm:$0xff]
      %v5982 = vld [vmem:[#allocation2 + $0x172] sm:$0xff]
      %v5983 = vpack.c.bf16 %v5951, %v5951
      %v5984 = vpack.c.bf16 %v5952, %v5952
      %v5985 = vpack.c.bf16 %v5953, %v5953
      %v5986 = vpack.c.bf16 %v5954, %v5954
      %v5987 = vpack.c.bf16 %v5955, %v5955
      %v5988 = vpack.c.bf16 %v5956, %v5956
      %v5989 = vpack.c.bf16 %v5957, %v5957
      %v5990 = vpack.c.bf16 %v5958, %v5958
      %v5991 = vpack.c.bf16 %v5959, %v5959
      %v5992 = vpack.c.bf16 %v5960, %v5960
      %v5993 = vpack.c.bf16 %v5961, %v5961
      %v5994 = vpack.c.bf16 %v5962, %v5962
      %v5995 = vpack.c.bf16 %v5963, %v5963
      %v5996 = vpack.c.bf16 %v5964, %v5964
      %v5997 = vpack.c.bf16 %v5965, %v5965
      %v5998 = vpack.c.bf16 %v5966, %v5966
      %v5999 = vpack.c.bf16 %v5967, %v5967
      %v6000 = vpack.c.bf16 %v5968, %v5968
      %v6001 = vpack.c.bf16 %v5969, %v5969
      %v6002 = vpack.c.bf16 %v5970, %v5970
      %v6003 = vpack.c.bf16 %v5971, %v5971
      %v6004 = vpack.c.bf16 %v5972, %v5972
      %v6005 = vpack.c.bf16 %v5973, %v5973
      %v6006 = vpack.c.bf16 %v5974, %v5974
      %v6007 = vpack.c.bf16 %v5975, %v5975
      %v6008 = vpack.c.bf16 %v5976, %v5976
      %v6009 = vpack.c.bf16 %v5977, %v5977
      %v6010 = vpack.c.bf16 %v5978, %v5978
      %v6011 = vpack.c.bf16 %v5979, %v5979
      %v6012 = vpack.c.bf16 %v5980, %v5980
      %v6013 = vpack.c.bf16 %v5981, %v5981
      %v6014 = vpack.c.bf16 %v5982, %v5982
      %6047 = vrot.lane.b32.xlu0 %v5983, 16
      %v6048 = vpop.permute.xlu0 %6047
      %6049 = vrot.lane.b32.xlu0 %v5984, 16
      %v6050 = vpop.permute.xlu0 %6049
      %6051 = vrot.lane.b32.xlu0 %v5985, 16
      %v6052 = vpop.permute.xlu0 %6051
      %6053 = vrot.lane.b32.xlu0 %v5986, 16
      %v6054 = vpop.permute.xlu0 %6053
      %6055 = vrot.lane.b32.xlu0 %v5987, 16
      %v6056 = vpop.permute.xlu0 %6055
      %6057 = vrot.lane.b32.xlu0 %v5988, 16
      %v6058 = vpop.permute.xlu0 %6057
      %6059 = vrot.lane.b32.xlu0 %v5989, 16
      %v6060 = vpop.permute.xlu0 %6059
      %6061 = vrot.lane.b32.xlu0 %v5990, 16
      %v6062 = vpop.permute.xlu0 %6061
      %6063 = vrot.lane.b32.xlu0 %v5991, 16
      %v6064 = vpop.permute.xlu0 %6063
      %6065 = vrot.lane.b32.xlu0 %v5992, 16
      %v6066 = vpop.permute.xlu0 %6065
      %6067 = vrot.lane.b32.xlu0 %v5993, 16
      %v6068 = vpop.permute.xlu0 %6067
      %6069 = vrot.lane.b32.xlu0 %v5994, 16
      %v6070 = vpop.permute.xlu0 %6069
      %6071 = vrot.lane.b32.xlu0 %v5995, 16
      %v6072 = vpop.permute.xlu0 %6071
      %6073 = vrot.lane.b32.xlu0 %v5996, 16
      %v6074 = vpop.permute.xlu0 %6073
      %6075 = vrot.lane.b32.xlu0 %v5997, 16
      %v6076 = vpop.permute.xlu0 %6075
      %6077 = vrot.lane.b32.xlu0 %v5998, 16
      %v6078 = vpop.permute.xlu0 %6077
      %6079 = vrot.lane.b32.xlu0 %v5999, 16
      %v6080 = vpop.permute.xlu0 %6079
      %6081 = vrot.lane.b32.xlu0 %v6000, 16
      %v6082 = vpop.permute.xlu0 %6081
      %6083 = vrot.lane.b32.xlu0 %v6001, 16
      %v6084 = vpop.permute.xlu0 %6083
      %6085 = vrot.lane.b32.xlu0 %v6002, 16
      %v6086 = vpop.permute.xlu0 %6085
      %6087 = vrot.lane.b32.xlu0 %v6003, 16
      %v6088 = vpop.permute.xlu0 %6087
      %6089 = vrot.lane.b32.xlu0 %v6004, 16
      %v6090 = vpop.permute.xlu0 %6089
      %6091 = vrot.lane.b32.xlu0 %v6005, 16
      %v6092 = vpop.permute.xlu0 %6091
      %6093 = vrot.lane.b32.xlu0 %v6006, 16
      %v6094 = vpop.permute.xlu0 %6093
      %6095 = vrot.lane.b32.xlu0 %v6007, 16
      %v6096 = vpop.permute.xlu0 %6095
      %6097 = vrot.lane.b32.xlu0 %v6008, 16
      %v6098 = vpop.permute.xlu0 %6097
      %6099 = vrot.lane.b32.xlu0 %v6009, 16
      %v6100 = vpop.permute.xlu0 %6099
      %6101 = vrot.lane.b32.xlu0 %v6010, 16
      %v6102 = vpop.permute.xlu0 %6101
      %6103 = vrot.lane.b32.xlu0 %v6011, 16
      %v6104 = vpop.permute.xlu0 %6103
      %6105 = vrot.lane.b32.xlu0 %v6012, 16
      %v6106 = vpop.permute.xlu0 %6105
      %6107 = vrot.lane.b32.xlu0 %v6013, 16
      %v6108 = vpop.permute.xlu0 %6107
      %6109 = vrot.lane.b32.xlu0 %v6014, 16
      %v6110 = vpop.permute.xlu0 %6109
      %6143 = vst.msk [vmem:[#allocation3] sm:$0xf] %vm1131, %v6048
      %6144 = vst.msk [vmem:[#allocation3 + $0x4] sm:$0xf] %vm1131, %v6050
      %6145 = vst.msk [vmem:[#allocation3 + $0x8] sm:$0xf] %vm1131, %v6052
      %6146 = vst.msk [vmem:[#allocation3 + $0xc] sm:$0xf] %vm1131, %v6054
      %6147 = vst.msk [vmem:[#allocation3 + $0x10] sm:$0xf] %vm1131, %v6056
      %6148 = vst.msk [vmem:[#allocation3 + $0x14] sm:$0xf] %vm1131, %v6058
      %6149 = vst.msk [vmem:[#allocation3 + $0x18] sm:$0xf] %vm1131, %v6060
      %6150 = vst.msk [vmem:[#allocation3 + $0x1c] sm:$0xf] %vm1131, %v6062
      %6151 = vst.msk [vmem:[#allocation3 + $0x20] sm:$0xf] %vm1131, %v6064
      %6152 = vst.msk [vmem:[#allocation3 + $0x24] sm:$0xf] %vm1131, %v6066
      %6153 = vst.msk [vmem:[#allocation3 + $0x28] sm:$0xf] %vm1131, %v6068
      %6154 = vst.msk [vmem:[#allocation3 + $0x2c] sm:$0xf] %vm1131, %v6070
      %6155 = vst.msk [vmem:[#allocation3 + $0x30] sm:$0xf] %vm1131, %v6072
      %6156 = vst.msk [vmem:[#allocation3 + $0x34] sm:$0xf] %vm1131, %v6074
      %6157 = vst.msk [vmem:[#allocation3 + $0x38] sm:$0xf] %vm1131, %v6076
      %6158 = vst.msk [vmem:[#allocation3 + $0x3c] sm:$0xf] %vm1131, %v6078
      %6159 = vst.msk [vmem:[#allocation3 + $0x40] sm:$0xf] %vm1131, %v6080
      %6160 = vst.msk [vmem:[#allocation3 + $0x44] sm:$0xf] %vm1131, %v6082
      %6161 = vst.msk [vmem:[#allocation3 + $0x48] sm:$0xf] %vm1131, %v6084
      %6162 = vst.msk [vmem:[#allocation3 + $0x4c] sm:$0xf] %vm1131, %v6086
      %6163 = vst.msk [vmem:[#allocation3 + $0x50] sm:$0xf] %vm1131, %v6088
      %6164 = vst.msk [vmem:[#allocation3 + $0x54] sm:$0xf] %vm1131, %v6090
      %6165 = vst.msk [vmem:[#allocation3 + $0x58] sm:$0xf] %vm1131, %v6092
      %6166 = vst.msk [vmem:[#allocation3 + $0x5c] sm:$0xf] %vm1131, %v6094
      %6167 = vst.msk [vmem:[#allocation3 + $0x60] sm:$0xf] %vm1131, %v6096
      %6168 = vst.msk [vmem:[#allocation3 + $0x64] sm:$0xf] %vm1131, %v6098
      %6169 = vst.msk [vmem:[#allocation3 + $0x68] sm:$0xf] %vm1131, %v6100
      %6170 = vst.msk [vmem:[#allocation3 + $0x6c] sm:$0xf] %vm1131, %v6102
      %6171 = vst.msk [vmem:[#allocation3 + $0x70] sm:$0xf] %vm1131, %v6104
      %6172 = vst.msk [vmem:[#allocation3 + $0x74] sm:$0xf] %vm1131, %v6106
      %6173 = vst.msk [vmem:[#allocation3 + $0x78] sm:$0xf] %vm1131, %v6108
      %6174 = vst.msk [vmem:[#allocation3 + $0x7c] sm:$0xf] %vm1131, %v6110
      %v6175 = vld [vmem:[%s584] sm:$0xff]
      %v6176 = vld [vmem:[%s584 + $0x8] sm:$0xff]
      %v6177 = vld [vmem:[%s584 + $0x18] sm:$0xff]
      %v6178 = vld [vmem:[%s584 + $0x20] sm:$0xff]
      %v6179 = vld [vmem:[%s584 + $0x30] sm:$0xff]
      %v6180 = vld [vmem:[%s584 + $0x38] sm:$0xff]
      %v6181 = vld [vmem:[%s584 + $0x48] sm:$0xff]
      %v6182 = vld [vmem:[%s584 + $0x50] sm:$0xff]
      %v6183 = vld [vmem:[%s584 + $0x60] sm:$0xff]
      %v6184 = vld [vmem:[%s584 + $0x68] sm:$0xff]
      %v6185 = vld [vmem:[%s584 + $0x78] sm:$0xff]
      %v6186 = vld [vmem:[%s584 + $0x80] sm:$0xff]
      %v6187 = vld [vmem:[%s584 + $0x90] sm:$0xff]
      %v6188 = vld [vmem:[%s584 + $0x98] sm:$0xff]
      %v6189 = vld [vmem:[%s584 + $0xa8] sm:$0xff]
      %v6190 = vld [vmem:[%s584 + $0xb0] sm:$0xff]
      %v6191 = vld [vmem:[%s584 + $0xc0] sm:$0xff]
      %v6192 = vld [vmem:[%s584 + $0xc8] sm:$0xff]
      %v6193 = vld [vmem:[%s584 + $0xd8] sm:$0xff]
      %v6194 = vld [vmem:[%s584 + $0xe0] sm:$0xff]
      %v6195 = vld [vmem:[%s584 + $0xf0] sm:$0xff]
      %v6196 = vld [vmem:[%s584 + $0xf8] sm:$0xff]
      %v6197 = vld [vmem:[%s584 + $0x108] sm:$0xff]
      %v6198 = vld [vmem:[%s584 + $0x110] sm:$0xff]
      %v6199 = vld [vmem:[%s584 + $0x120] sm:$0xff]
      %v6200 = vld [vmem:[%s584 + $0x128] sm:$0xff]
      %v6201 = vld [vmem:[%s584 + $0x138] sm:$0xff]
      %v6202 = vld [vmem:[%s584 + $0x140] sm:$0xff]
      %v6203 = vld [vmem:[%s584 + $0x150] sm:$0xff]
      %v6204 = vld [vmem:[%s584 + $0x158] sm:$0xff]
      %v6205 = vld [vmem:[%s584 + $0x168] sm:$0xff]
      %v6206 = vld [vmem:[%s584 + $0x170] sm:$0xff]
      %v6207 = vpack.c.bf16 %v6175, %v6175
      %v6208 = vpack.c.bf16 %v6176, %v6176
      %v6209 = vpack.c.bf16 %v6177, %v6177
      %v6210 = vpack.c.bf16 %v6178, %v6178
      %v6211 = vpack.c.bf16 %v6179, %v6179
      %v6212 = vpack.c.bf16 %v6180, %v6180
      %v6213 = vpack.c.bf16 %v6181, %v6181
      %v6214 = vpack.c.bf16 %v6182, %v6182
      %v6215 = vpack.c.bf16 %v6183, %v6183
      %v6216 = vpack.c.bf16 %v6184, %v6184
      %v6217 = vpack.c.bf16 %v6185, %v6185
      %v6218 = vpack.c.bf16 %v6186, %v6186
      %v6219 = vpack.c.bf16 %v6187, %v6187
      %v6220 = vpack.c.bf16 %v6188, %v6188
      %v6221 = vpack.c.bf16 %v6189, %v6189
      %v6222 = vpack.c.bf16 %v6190, %v6190
      %v6223 = vpack.c.bf16 %v6191, %v6191
      %v6224 = vpack.c.bf16 %v6192, %v6192
      %v6225 = vpack.c.bf16 %v6193, %v6193
      %v6226 = vpack.c.bf16 %v6194, %v6194
      %v6227 = vpack.c.bf16 %v6195, %v6195
      %v6228 = vpack.c.bf16 %v6196, %v6196
      %v6229 = vpack.c.bf16 %v6197, %v6197
      %v6230 = vpack.c.bf16 %v6198, %v6198
      %v6231 = vpack.c.bf16 %v6199, %v6199
      %v6232 = vpack.c.bf16 %v6200, %v6200
      %v6233 = vpack.c.bf16 %v6201, %v6201
      %v6234 = vpack.c.bf16 %v6202, %v6202
      %v6235 = vpack.c.bf16 %v6203, %v6203
      %v6236 = vpack.c.bf16 %v6204, %v6204
      %v6237 = vpack.c.bf16 %v6205, %v6205
      %v6238 = vpack.c.bf16 %v6206, %v6206
      %6271 = vrot.lane.b32.xlu0 %v6207, 24
      %v6272 = vpop.permute.xlu0 %6271
      %6273 = vrot.lane.b32.xlu0 %v6208, 24
      %v6274 = vpop.permute.xlu0 %6273
      %6275 = vrot.lane.b32.xlu0 %v6209, 24
      %v6276 = vpop.permute.xlu0 %6275
      %6277 = vrot.lane.b32.xlu0 %v6210, 24
      %v6278 = vpop.permute.xlu0 %6277
      %6279 = vrot.lane.b32.xlu0 %v6211, 24
      %v6280 = vpop.permute.xlu0 %6279
      %6281 = vrot.lane.b32.xlu0 %v6212, 24
      %v6282 = vpop.permute.xlu0 %6281
      %6283 = vrot.lane.b32.xlu0 %v6213, 24
      %v6284 = vpop.permute.xlu0 %6283
      %6285 = vrot.lane.b32.xlu0 %v6214, 24
      %v6286 = vpop.permute.xlu0 %6285
      %6287 = vrot.lane.b32.xlu0 %v6215, 24
      %v6288 = vpop.permute.xlu0 %6287
      %6289 = vrot.lane.b32.xlu0 %v6216, 24
      %v6290 = vpop.permute.xlu0 %6289
      %6291 = vrot.lane.b32.xlu0 %v6217, 24
      %v6292 = vpop.permute.xlu0 %6291
      %6293 = vrot.lane.b32.xlu0 %v6218, 24
      %v6294 = vpop.permute.xlu0 %6293
      %6295 = vrot.lane.b32.xlu0 %v6219, 24
      %v6296 = vpop.permute.xlu0 %6295
      %6297 = vrot.lane.b32.xlu0 %v6220, 24
      %v6298 = vpop.permute.xlu0 %6297
      %6299 = vrot.lane.b32.xlu0 %v6221, 24
      %v6300 = vpop.permute.xlu0 %6299
      %6301 = vrot.lane.b32.xlu0 %v6222, 24
      %v6302 = vpop.permute.xlu0 %6301
      %6303 = vrot.lane.b32.xlu0 %v6223, 24
      %v6304 = vpop.permute.xlu0 %6303
      %6305 = vrot.lane.b32.xlu0 %v6224, 24
      %v6306 = vpop.permute.xlu0 %6305
      %6307 = vrot.lane.b32.xlu0 %v6225, 24
      %v6308 = vpop.permute.xlu0 %6307
      %6309 = vrot.lane.b32.xlu0 %v6226, 24
      %v6310 = vpop.permute.xlu0 %6309
      %6311 = vrot.lane.b32.xlu0 %v6227, 24
      %v6312 = vpop.permute.xlu0 %6311
      %6313 = vrot.lane.b32.xlu0 %v6228, 24
      %v6314 = vpop.permute.xlu0 %6313
      %6315 = vrot.lane.b32.xlu0 %v6229, 24
      %v6316 = vpop.permute.xlu0 %6315
      %6317 = vrot.lane.b32.xlu0 %v6230, 24
      %v6318 = vpop.permute.xlu0 %6317
      %6319 = vrot.lane.b32.xlu0 %v6231, 24
      %v6320 = vpop.permute.xlu0 %6319
      %6321 = vrot.lane.b32.xlu0 %v6232, 24
      %v6322 = vpop.permute.xlu0 %6321
      %6323 = vrot.lane.b32.xlu0 %v6233, 24
      %v6324 = vpop.permute.xlu0 %6323
      %6325 = vrot.lane.b32.xlu0 %v6234, 24
      %v6326 = vpop.permute.xlu0 %6325
      %6327 = vrot.lane.b32.xlu0 %v6235, 24
      %v6328 = vpop.permute.xlu0 %6327
      %6329 = vrot.lane.b32.xlu0 %v6236, 24
      %v6330 = vpop.permute.xlu0 %6329
      %6331 = vrot.lane.b32.xlu0 %v6237, 24
      %v6332 = vpop.permute.xlu0 %6331
      %6333 = vrot.lane.b32.xlu0 %v6238, 24
      %v6334 = vpop.permute.xlu0 %6333
      %6367 = vst.msk [vmem:[#allocation3] sm:$0xf] %vm1356, %v6272
      %6368 = vst.msk [vmem:[#allocation3 + $0x4] sm:$0xf] %vm1356, %v6274
      %6369 = vst.msk [vmem:[#allocation3 + $0x8] sm:$0xf] %vm1356, %v6276
      %6370 = vst.msk [vmem:[#allocation3 + $0xc] sm:$0xf] %vm1356, %v6278
      %6371 = vst.msk [vmem:[#allocation3 + $0x10] sm:$0xf] %vm1356, %v6280
      %6372 = vst.msk [vmem:[#allocation3 + $0x14] sm:$0xf] %vm1356, %v6282
      %6373 = vst.msk [vmem:[#allocation3 + $0x18] sm:$0xf] %vm1356, %v6284
      %6374 = vst.msk [vmem:[#allocation3 + $0x1c] sm:$0xf] %vm1356, %v6286
      %6375 = vst.msk [vmem:[#allocation3 + $0x20] sm:$0xf] %vm1356, %v6288
      %6376 = vst.msk [vmem:[#allocation3 + $0x24] sm:$0xf] %vm1356, %v6290
      %6377 = vst.msk [vmem:[#allocation3 + $0x28] sm:$0xf] %vm1356, %v6292
      %6378 = vst.msk [vmem:[#allocation3 + $0x2c] sm:$0xf] %vm1356, %v6294
      %6379 = vst.msk [vmem:[#allocation3 + $0x30] sm:$0xf] %vm1356, %v6296
      %6380 = vst.msk [vmem:[#allocation3 + $0x34] sm:$0xf] %vm1356, %v6298
      %6381 = vst.msk [vmem:[#allocation3 + $0x38] sm:$0xf] %vm1356, %v6300
      %6382 = vst.msk [vmem:[#allocation3 + $0x3c] sm:$0xf] %vm1356, %v6302
      %6383 = vst.msk [vmem:[#allocation3 + $0x40] sm:$0xf] %vm1356, %v6304
      %6384 = vst.msk [vmem:[#allocation3 + $0x44] sm:$0xf] %vm1356, %v6306
      %6385 = vst.msk [vmem:[#allocation3 + $0x48] sm:$0xf] %vm1356, %v6308
      %6386 = vst.msk [vmem:[#allocation3 + $0x4c] sm:$0xf] %vm1356, %v6310
      %6387 = vst.msk [vmem:[#allocation3 + $0x50] sm:$0xf] %vm1356, %v6312
      %6388 = vst.msk [vmem:[#allocation3 + $0x54] sm:$0xf] %vm1356, %v6314
      %6389 = vst.msk [vmem:[#allocation3 + $0x58] sm:$0xf] %vm1356, %v6316
      %6390 = vst.msk [vmem:[#allocation3 + $0x5c] sm:$0xf] %vm1356, %v6318
      %6391 = vst.msk [vmem:[#allocation3 + $0x60] sm:$0xf] %vm1356, %v6320
      %6392 = vst.msk [vmem:[#allocation3 + $0x64] sm:$0xf] %vm1356, %v6322
      %6393 = vst.msk [vmem:[#allocation3 + $0x68] sm:$0xf] %vm1356, %v6324
      %6394 = vst.msk [vmem:[#allocation3 + $0x6c] sm:$0xf] %vm1356, %v6326
      %6395 = vst.msk [vmem:[#allocation3 + $0x70] sm:$0xf] %vm1356, %v6328
      %6396 = vst.msk [vmem:[#allocation3 + $0x74] sm:$0xf] %vm1356, %v6330
      %6397 = vst.msk [vmem:[#allocation3 + $0x78] sm:$0xf] %vm1356, %v6332
      %6398 = vst.msk [vmem:[#allocation3 + $0x7c] sm:$0xf] %vm1356, %v6334
      %v6399 = vld [vmem:[%s584 + $0x1] sm:$0xff]
      %v6400 = vld [vmem:[%s584 + $0x9] sm:$0xff]
      %v6401 = vld [vmem:[%s584 + $0x19] sm:$0xff]
      %v6402 = vld [vmem:[%s584 + $0x21] sm:$0xff]
      %v6403 = vld [vmem:[%s584 + $0x31] sm:$0xff]
      %v6404 = vld [vmem:[%s584 + $0x39] sm:$0xff]
      %v6405 = vld [vmem:[%s584 + $0x49] sm:$0xff]
      %v6406 = vld [vmem:[%s584 + $0x51] sm:$0xff]
      %v6407 = vld [vmem:[%s584 + $0x61] sm:$0xff]
      %v6408 = vld [vmem:[%s584 + $0x69] sm:$0xff]
      %v6409 = vld [vmem:[%s584 + $0x79] sm:$0xff]
      %v6410 = vld [vmem:[%s584 + $0x81] sm:$0xff]
      %v6411 = vld [vmem:[%s584 + $0x91] sm:$0xff]
      %v6412 = vld [vmem:[%s584 + $0x99] sm:$0xff]
      %v6413 = vld [vmem:[%s584 + $0xa9] sm:$0xff]
      %v6414 = vld [vmem:[%s584 + $0xb1] sm:$0xff]
      %v6415 = vld [vmem:[%s584 + $0xc1] sm:$0xff]
      %v6416 = vld [vmem:[%s584 + $0xc9] sm:$0xff]
      %v6417 = vld [vmem:[%s584 + $0xd9] sm:$0xff]
      %v6418 = vld [vmem:[%s584 + $0xe1] sm:$0xff]
      %v6419 = vld [vmem:[%s584 + $0xf1] sm:$0xff]
      %v6420 = vld [vmem:[%s584 + $0xf9] sm:$0xff]
      %v6421 = vld [vmem:[%s584 + $0x109] sm:$0xff]
      %v6422 = vld [vmem:[%s584 + $0x111] sm:$0xff]
      %v6423 = vld [vmem:[%s584 + $0x121] sm:$0xff]
      %v6424 = vld [vmem:[%s584 + $0x129] sm:$0xff]
      %v6425 = vld [vmem:[%s584 + $0x139] sm:$0xff]
      %v6426 = vld [vmem:[%s584 + $0x141] sm:$0xff]
      %v6427 = vld [vmem:[%s584 + $0x151] sm:$0xff]
      %v6428 = vld [vmem:[%s584 + $0x159] sm:$0xff]
      %v6429 = vld [vmem:[%s584 + $0x169] sm:$0xff]
      %v6430 = vld [vmem:[%s584 + $0x171] sm:$0xff]
      %v6431 = vpack.c.bf16 %v6399, %v6399
      %v6432 = vpack.c.bf16 %v6400, %v6400
      %v6433 = vpack.c.bf16 %v6401, %v6401
      %v6434 = vpack.c.bf16 %v6402, %v6402
      %v6435 = vpack.c.bf16 %v6403, %v6403
      %v6436 = vpack.c.bf16 %v6404, %v6404
      %v6437 = vpack.c.bf16 %v6405, %v6405
      %v6438 = vpack.c.bf16 %v6406, %v6406
      %v6439 = vpack.c.bf16 %v6407, %v6407
      %v6440 = vpack.c.bf16 %v6408, %v6408
      %v6441 = vpack.c.bf16 %v6409, %v6409
      %v6442 = vpack.c.bf16 %v6410, %v6410
      %v6443 = vpack.c.bf16 %v6411, %v6411
      %v6444 = vpack.c.bf16 %v6412, %v6412
      %v6445 = vpack.c.bf16 %v6413, %v6413
      %v6446 = vpack.c.bf16 %v6414, %v6414
      %v6447 = vpack.c.bf16 %v6415, %v6415
      %v6448 = vpack.c.bf16 %v6416, %v6416
      %v6449 = vpack.c.bf16 %v6417, %v6417
      %v6450 = vpack.c.bf16 %v6418, %v6418
      %v6451 = vpack.c.bf16 %v6419, %v6419
      %v6452 = vpack.c.bf16 %v6420, %v6420
      %v6453 = vpack.c.bf16 %v6421, %v6421
      %v6454 = vpack.c.bf16 %v6422, %v6422
      %v6455 = vpack.c.bf16 %v6423, %v6423
      %v6456 = vpack.c.bf16 %v6424, %v6424
      %v6457 = vpack.c.bf16 %v6425, %v6425
      %v6458 = vpack.c.bf16 %v6426, %v6426
      %v6459 = vpack.c.bf16 %v6427, %v6427
      %v6460 = vpack.c.bf16 %v6428, %v6428
      %v6461 = vpack.c.bf16 %v6429, %v6429
      %v6462 = vpack.c.bf16 %v6430, %v6430
      %6495 = vrot.lane.b32.xlu0 %v6431, 32
      %v6496 = vpop.permute.xlu0 %6495
      %6497 = vrot.lane.b32.xlu0 %v6432, 32
      %v6498 = vpop.permute.xlu0 %6497
      %6499 = vrot.lane.b32.xlu0 %v6433, 32
      %v6500 = vpop.permute.xlu0 %6499
      %6501 = vrot.lane.b32.xlu0 %v6434, 32
      %v6502 = vpop.permute.xlu0 %6501
      %6503 = vrot.lane.b32.xlu0 %v6435, 32
      %v6504 = vpop.permute.xlu0 %6503
      %6505 = vrot.lane.b32.xlu0 %v6436, 32
      %v6506 = vpop.permute.xlu0 %6505
      %6507 = vrot.lane.b32.xlu0 %v6437, 32
      %v6508 = vpop.permute.xlu0 %6507
      %6509 = vrot.lane.b32.xlu0 %v6438, 32
      %v6510 = vpop.permute.xlu0 %6509
      %6511 = vrot.lane.b32.xlu0 %v6439, 32
      %v6512 = vpop.permute.xlu0 %6511
      %6513 = vrot.lane.b32.xlu0 %v6440, 32
      %v6514 = vpop.permute.xlu0 %6513
      %6515 = vrot.lane.b32.xlu0 %v6441, 32
      %v6516 = vpop.permute.xlu0 %6515
      %6517 = vrot.lane.b32.xlu0 %v6442, 32
      %v6518 = vpop.permute.xlu0 %6517
      %6519 = vrot.lane.b32.xlu0 %v6443, 32
      %v6520 = vpop.permute.xlu0 %6519
      %6521 = vrot.lane.b32.xlu0 %v6444, 32
      %v6522 = vpop.permute.xlu0 %6521
      %6523 = vrot.lane.b32.xlu0 %v6445, 32
      %v6524 = vpop.permute.xlu0 %6523
      %6525 = vrot.lane.b32.xlu0 %v6446, 32
      %v6526 = vpop.permute.xlu0 %6525
      %6527 = vrot.lane.b32.xlu0 %v6447, 32
      %v6528 = vpop.permute.xlu0 %6527
      %6529 = vrot.lane.b32.xlu0 %v6448, 32
      %v6530 = vpop.permute.xlu0 %6529
      %6531 = vrot.lane.b32.xlu0 %v6449, 32
      %v6532 = vpop.permute.xlu0 %6531
      %6533 = vrot.lane.b32.xlu0 %v6450, 32
      %v6534 = vpop.permute.xlu0 %6533
      %6535 = vrot.lane.b32.xlu0 %v6451, 32
      %v6536 = vpop.permute.xlu0 %6535
      %6537 = vrot.lane.b32.xlu0 %v6452, 32
      %v6538 = vpop.permute.xlu0 %6537
      %6539 = vrot.lane.b32.xlu0 %v6453, 32
      %v6540 = vpop.permute.xlu0 %6539
      %6541 = vrot.lane.b32.xlu0 %v6454, 32
      %v6542 = vpop.permute.xlu0 %6541
      %6543 = vrot.lane.b32.xlu0 %v6455, 32
      %v6544 = vpop.permute.xlu0 %6543
      %6545 = vrot.lane.b32.xlu0 %v6456, 32
      %v6546 = vpop.permute.xlu0 %6545
      %6547 = vrot.lane.b32.xlu0 %v6457, 32
      %v6548 = vpop.permute.xlu0 %6547
      %6549 = vrot.lane.b32.xlu0 %v6458, 32
      %v6550 = vpop.permute.xlu0 %6549
      %6551 = vrot.lane.b32.xlu0 %v6459, 32
      %v6552 = vpop.permute.xlu0 %6551
      %6553 = vrot.lane.b32.xlu0 %v6460, 32
      %v6554 = vpop.permute.xlu0 %6553
      %6555 = vrot.lane.b32.xlu0 %v6461, 32
      %v6556 = vpop.permute.xlu0 %6555
      %6557 = vrot.lane.b32.xlu0 %v6462, 32
      %v6558 = vpop.permute.xlu0 %6557
      %6591 = vst.msk [vmem:[#allocation3] sm:$0xf] %vm1581, %v6496
      %6592 = vst.msk [vmem:[#allocation3 + $0x4] sm:$0xf] %vm1581, %v6498
      %6593 = vst.msk [vmem:[#allocation3 + $0x8] sm:$0xf] %vm1581, %v6500
      %6594 = vst.msk [vmem:[#allocation3 + $0xc] sm:$0xf] %vm1581, %v6502
      %6595 = vst.msk [vmem:[#allocation3 + $0x10] sm:$0xf] %vm1581, %v6504
      %6596 = vst.msk [vmem:[#allocation3 + $0x14] sm:$0xf] %vm1581, %v6506
      %6597 = vst.msk [vmem:[#allocation3 + $0x18] sm:$0xf] %vm1581, %v6508
      %6598 = vst.msk [vmem:[#allocation3 + $0x1c] sm:$0xf] %vm1581, %v6510
      %6599 = vst.msk [vmem:[#allocation3 + $0x20] sm:$0xf] %vm1581, %v6512
      %6600 = vst.msk [vmem:[#allocation3 + $0x24] sm:$0xf] %vm1581, %v6514
      %6601 = vst.msk [vmem:[#allocation3 + $0x28] sm:$0xf] %vm1581, %v6516
      %6602 = vst.msk [vmem:[#allocation3 + $0x2c] sm:$0xf] %vm1581, %v6518
      %6603 = vst.msk [vmem:[#allocation3 + $0x30] sm:$0xf] %vm1581, %v6520
      %6604 = vst.msk [vmem:[#allocation3 + $0x34] sm:$0xf] %vm1581, %v6522
      %6605 = vst.msk [vmem:[#allocation3 + $0x38] sm:$0xf] %vm1581, %v6524
      %6606 = vst.msk [vmem:[#allocation3 + $0x3c] sm:$0xf] %vm1581, %v6526
      %6607 = vst.msk [vmem:[#allocation3 + $0x40] sm:$0xf] %vm1581, %v6528
      %6608 = vst.msk [vmem:[#allocation3 + $0x44] sm:$0xf] %vm1581, %v6530
      %6609 = vst.msk [vmem:[#allocation3 + $0x48] sm:$0xf] %vm1581, %v6532
      %6610 = vst.msk [vmem:[#allocation3 + $0x4c] sm:$0xf] %vm1581, %v6534
      %6611 = vst.msk [vmem:[#allocation3 + $0x50] sm:$0xf] %vm1581, %v6536
      %6612 = vst.msk [vmem:[#allocation3 + $0x54] sm:$0xf] %vm1581, %v6538
      %6613 = vst.msk [vmem:[#allocation3 + $0x58] sm:$0xf] %vm1581, %v6540
      %6614 = vst.msk [vmem:[#allocation3 + $0x5c] sm:$0xf] %vm1581, %v6542
      %6615 = vst.msk [vmem:[#allocation3 + $0x60] sm:$0xf] %vm1581, %v6544
      %6616 = vst.msk [vmem:[#allocation3 + $0x64] sm:$0xf] %vm1581, %v6546
      %6617 = vst.msk [vmem:[#allocation3 + $0x68] sm:$0xf] %vm1581, %v6548
      %6618 = vst.msk [vmem:[#allocation3 + $0x6c] sm:$0xf] %vm1581, %v6550
      %6619 = vst.msk [vmem:[#allocation3 + $0x70] sm:$0xf] %vm1581, %v6552
      %6620 = vst.msk [vmem:[#allocation3 + $0x74] sm:$0xf] %vm1581, %v6554
      %6621 = vst.msk [vmem:[#allocation3 + $0x78] sm:$0xf] %vm1581, %v6556
      %6622 = vst.msk [vmem:[#allocation3 + $0x7c] sm:$0xf] %vm1581, %v6558
      %v6623 = vld [vmem:[%s584 + $0x2] sm:$0xff]
      %v6624 = vld [vmem:[%s584 + $0xa] sm:$0xff]
      %v6625 = vld [vmem:[%s584 + $0x1a] sm:$0xff]
      %v6626 = vld [vmem:[%s584 + $0x22] sm:$0xff]
      %v6627 = vld [vmem:[%s584 + $0x32] sm:$0xff]
      %v6628 = vld [vmem:[%s584 + $0x3a] sm:$0xff]
      %v6629 = vld [vmem:[%s584 + $0x4a] sm:$0xff]
      %v6630 = vld [vmem:[%s584 + $0x52] sm:$0xff]
      %v6631 = vld [vmem:[%s584 + $0x62] sm:$0xff]
      %v6632 = vld [vmem:[%s584 + $0x6a] sm:$0xff]
      %v6633 = vld [vmem:[%s584 + $0x7a] sm:$0xff]
      %v6634 = vld [vmem:[%s584 + $0x82] sm:$0xff]
      %v6635 = vld [vmem:[%s584 + $0x92] sm:$0xff]
      %v6636 = vld [vmem:[%s584 + $0x9a] sm:$0xff]
      %v6637 = vld [vmem:[%s584 + $0xaa] sm:$0xff]
      %v6638 = vld [vmem:[%s584 + $0xb2] sm:$0xff]
      %v6639 = vld [vmem:[%s584 + $0xc2] sm:$0xff]
      %v6640 = vld [vmem:[%s584 + $0xca] sm:$0xff]
      %v6641 = vld [vmem:[%s584 + $0xda] sm:$0xff]
      %v6642 = vld [vmem:[%s584 + $0xe2] sm:$0xff]
      %v6643 = vld [vmem:[%s584 + $0xf2] sm:$0xff]
      %v6644 = vld [vmem:[%s584 + $0xfa] sm:$0xff]
      %v6645 = vld [vmem:[%s584 + $0x10a] sm:$0xff]
      %v6646 = vld [vmem:[%s584 + $0x112] sm:$0xff]
      %v6647 = vld [vmem:[%s584 + $0x122] sm:$0xff]
      %v6648 = vld [vmem:[%s584 + $0x12a] sm:$0xff]
      %v6649 = vld [vmem:[%s584 + $0x13a] sm:$0xff]
      %v6650 = vld [vmem:[%s584 + $0x142] sm:$0xff]
      %v6651 = vld [vmem:[%s584 + $0x152] sm:$0xff]
      %v6652 = vld [vmem:[%s584 + $0x15a] sm:$0xff]
      %v6653 = vld [vmem:[%s584 + $0x16a] sm:$0xff]
      %v6654 = vld [vmem:[%s584 + $0x172] sm:$0xff]
      %v6655 = vpack.c.bf16 %v6623, %v6623
      %v6656 = vpack.c.bf16 %v6624, %v6624
      %v6657 = vpack.c.bf16 %v6625, %v6625
      %v6658 = vpack.c.bf16 %v6626, %v6626
      %v6659 = vpack.c.bf16 %v6627, %v6627
      %v6660 = vpack.c.bf16 %v6628, %v6628
      %v6661 = vpack.c.bf16 %v6629, %v6629
      %v6662 = vpack.c.bf16 %v6630, %v6630
      %v6663 = vpack.c.bf16 %v6631, %v6631
      %v6664 = vpack.c.bf16 %v6632, %v6632
      %v6665 = vpack.c.bf16 %v6633, %v6633
      %v6666 = vpack.c.bf16 %v6634, %v6634
      %v6667 = vpack.c.bf16 %v6635, %v6635
      %v6668 = vpack.c.bf16 %v6636, %v6636
      %v6669 = vpack.c.bf16 %v6637, %v6637
      %v6670 = vpack.c.bf16 %v6638, %v6638
      %v6671 = vpack.c.bf16 %v6639, %v6639
      %v6672 = vpack.c.bf16 %v6640, %v6640
      %v6673 = vpack.c.bf16 %v6641, %v6641
      %v6674 = vpack.c.bf16 %v6642, %v6642
      %v6675 = vpack.c.bf16 %v6643, %v6643
      %v6676 = vpack.c.bf16 %v6644, %v6644
      %v6677 = vpack.c.bf16 %v6645, %v6645
      %v6678 = vpack.c.bf16 %v6646, %v6646
      %v6679 = vpack.c.bf16 %v6647, %v6647
      %v6680 = vpack.c.bf16 %v6648, %v6648
      %v6681 = vpack.c.bf16 %v6649, %v6649
      %v6682 = vpack.c.bf16 %v6650, %v6650
      %v6683 = vpack.c.bf16 %v6651, %v6651
      %v6684 = vpack.c.bf16 %v6652, %v6652
      %v6685 = vpack.c.bf16 %v6653, %v6653
      %v6686 = vpack.c.bf16 %v6654, %v6654
      %6719 = vrot.lane.b32.xlu0 %v6655, 40
      %v6720 = vpop.permute.xlu0 %6719
      %6721 = vrot.lane.b32.xlu0 %v6656, 40
      %v6722 = vpop.permute.xlu0 %6721
      %6723 = vrot.lane.b32.xlu0 %v6657, 40
      %v6724 = vpop.permute.xlu0 %6723
      %6725 = vrot.lane.b32.xlu0 %v6658, 40
      %v6726 = vpop.permute.xlu0 %6725
      %6727 = vrot.lane.b32.xlu0 %v6659, 40
      %v6728 = vpop.permute.xlu0 %6727
      %6729 = vrot.lane.b32.xlu0 %v6660, 40
      %v6730 = vpop.permute.xlu0 %6729
      %6731 = vrot.lane.b32.xlu0 %v6661, 40
      %v6732 = vpop.permute.xlu0 %6731
      %6733 = vrot.lane.b32.xlu0 %v6662, 40
      %v6734 = vpop.permute.xlu0 %6733
      %6735 = vrot.lane.b32.xlu0 %v6663, 40
      %v6736 = vpop.permute.xlu0 %6735
      %6737 = vrot.lane.b32.xlu0 %v6664, 40
      %v6738 = vpop.permute.xlu0 %6737
      %6739 = vrot.lane.b32.xlu0 %v6665, 40
      %v6740 = vpop.permute.xlu0 %6739
      %6741 = vrot.lane.b32.xlu0 %v6666, 40
      %v6742 = vpop.permute.xlu0 %6741
      %6743 = vrot.lane.b32.xlu0 %v6667, 40
      %v6744 = vpop.permute.xlu0 %6743
      %6745 = vrot.lane.b32.xlu0 %v6668, 40
      %v6746 = vpop.permute.xlu0 %6745
      %6747 = vrot.lane.b32.xlu0 %v6669, 40
      %v6748 = vpop.permute.xlu0 %6747
      %6749 = vrot.lane.b32.xlu0 %v6670, 40
      %v6750 = vpop.permute.xlu0 %6749
      %6751 = vrot.lane.b32.xlu0 %v6671, 40
      %v6752 = vpop.permute.xlu0 %6751
      %6753 = vrot.lane.b32.xlu0 %v6672, 40
      %v6754 = vpop.permute.xlu0 %6753
      %6755 = vrot.lane.b32.xlu0 %v6673, 40
      %v6756 = vpop.permute.xlu0 %6755
      %6757 = vrot.lane.b32.xlu0 %v6674, 40
      %v6758 = vpop.permute.xlu0 %6757
      %6759 = vrot.lane.b32.xlu0 %v6675, 40
      %v6760 = vpop.permute.xlu0 %6759
      %6761 = vrot.lane.b32.xlu0 %v6676, 40
      %v6762 = vpop.permute.xlu0 %6761
      %6763 = vrot.lane.b32.xlu0 %v6677, 40
      %v6764 = vpop.permute.xlu0 %6763
      %6765 = vrot.lane.b32.xlu0 %v6678, 40
      %v6766 = vpop.permute.xlu0 %6765
      %6767 = vrot.lane.b32.xlu0 %v6679, 40
      %v6768 = vpop.permute.xlu0 %6767
      %6769 = vrot.lane.b32.xlu0 %v6680, 40
      %v6770 = vpop.permute.xlu0 %6769
      %6771 = vrot.lane.b32.xlu0 %v6681, 40
      %v6772 = vpop.permute.xlu0 %6771
      %6773 = vrot.lane.b32.xlu0 %v6682, 40
      %v6774 = vpop.permute.xlu0 %6773
      %6775 = vrot.lane.b32.xlu0 %v6683, 40
      %v6776 = vpop.permute.xlu0 %6775
      %6777 = vrot.lane.b32.xlu0 %v6684, 40
      %v6778 = vpop.permute.xlu0 %6777
      %6779 = vrot.lane.b32.xlu0 %v6685, 40
      %v6780 = vpop.permute.xlu0 %6779
      %6781 = vrot.lane.b32.xlu0 %v6686, 40
      %v6782 = vpop.permute.xlu0 %6781
      %6815 = vst.msk [vmem:[#allocation3] sm:$0xf] %vm1806, %v6720
      %6816 = vst.msk [vmem:[#allocation3 + $0x4] sm:$0xf] %vm1806, %v6722
      %6817 = vst.msk [vmem:[#allocation3 + $0x8] sm:$0xf] %vm1806, %v6724
      %6818 = vst.msk [vmem:[#allocation3 + $0xc] sm:$0xf] %vm1806, %v6726
      %6819 = vst.msk [vmem:[#allocation3 + $0x10] sm:$0xf] %vm1806, %v6728
      %6820 = vst.msk [vmem:[#allocation3 + $0x14] sm:$0xf] %vm1806, %v6730
      %6821 = vst.msk [vmem:[#allocation3 + $0x18] sm:$0xf] %vm1806, %v6732
      %6822 = vst.msk [vmem:[#allocation3 + $0x1c] sm:$0xf] %vm1806, %v6734
      %6823 = vst.msk [vmem:[#allocation3 + $0x20] sm:$0xf] %vm1806, %v6736
      %6824 = vst.msk [vmem:[#allocation3 + $0x24] sm:$0xf] %vm1806, %v6738
      %6825 = vst.msk [vmem:[#allocation3 + $0x28] sm:$0xf] %vm1806, %v6740
      %6826 = vst.msk [vmem:[#allocation3 + $0x2c] sm:$0xf] %vm1806, %v6742
      %6827 = vst.msk [vmem:[#allocation3 + $0x30] sm:$0xf] %vm1806, %v6744
      %6828 = vst.msk [vmem:[#allocation3 + $0x34] sm:$0xf] %vm1806, %v6746
      %6829 = vst.msk [vmem:[#allocation3 + $0x38] sm:$0xf] %vm1806, %v6748
      %6830 = vst.msk [vmem:[#allocation3 + $0x3c] sm:$0xf] %vm1806, %v6750
      %6831 = vst.msk [vmem:[#allocation3 + $0x40] sm:$0xf] %vm1806, %v6752
      %6832 = vst.msk [vmem:[#allocation3 + $0x44] sm:$0xf] %vm1806, %v6754
      %6833 = vst.msk [vmem:[#allocation3 + $0x48] sm:$0xf] %vm1806, %v6756
      %6834 = vst.msk [vmem:[#allocation3 + $0x4c] sm:$0xf] %vm1806, %v6758
      %6835 = vst.msk [vmem:[#allocation3 + $0x50] sm:$0xf] %vm1806, %v6760
      %6836 = vst.msk [vmem:[#allocation3 + $0x54] sm:$0xf] %vm1806, %v6762
      %6837 = vst.msk [vmem:[#allocation3 + $0x58] sm:$0xf] %vm1806, %v6764
      %6838 = vst.msk [vmem:[#allocation3 + $0x5c] sm:$0xf] %vm1806, %v6766
      %6839 = vst.msk [vmem:[#allocation3 + $0x60] sm:$0xf] %vm1806, %v6768
      %6840 = vst.msk [vmem:[#allocation3 + $0x64] sm:$0xf] %vm1806, %v6770
      %6841 = vst.msk [vmem:[#allocation3 + $0x68] sm:$0xf] %vm1806, %v6772
      %6842 = vst.msk [vmem:[#allocation3 + $0x6c] sm:$0xf] %vm1806, %v6774
      %6843 = vst.msk [vmem:[#allocation3 + $0x70] sm:$0xf] %vm1806, %v6776
      %6844 = vst.msk [vmem:[#allocation3 + $0x74] sm:$0xf] %vm1806, %v6778
      %6845 = vst.msk [vmem:[#allocation3 + $0x78] sm:$0xf] %vm1806, %v6780
      %6846 = vst.msk [vmem:[#allocation3 + $0x7c] sm:$0xf] %vm1806, %v6782
      %v6847 = vld [vmem:[%s1839] sm:$0xff]
      %v6848 = vld [vmem:[%s1839 + $0x8] sm:$0xff]
      %v6849 = vld [vmem:[%s1839 + $0x18] sm:$0xff]
      %v6850 = vld [vmem:[%s1839 + $0x20] sm:$0xff]
      %v6851 = vld [vmem:[%s1839 + $0x30] sm:$0xff]
      %v6852 = vld [vmem:[%s1839 + $0x38] sm:$0xff]
      %v6853 = vld [vmem:[%s1839 + $0x48] sm:$0xff]
      %v6854 = vld [vmem:[%s1839 + $0x50] sm:$0xff]
      %v6855 = vld [vmem:[%s1839 + $0x60] sm:$0xff]
      %v6856 = vld [vmem:[%s1839 + $0x68] sm:$0xff]
      %v6857 = vld [vmem:[%s1839 + $0x78] sm:$0xff]
      %v6858 = vld [vmem:[%s1839 + $0x80] sm:$0xff]
      %v6859 = vld [vmem:[%s1839 + $0x90] sm:$0xff]
      %v6860 = vld [vmem:[%s1839 + $0x98] sm:$0xff]
      %v6861 = vld [vmem:[%s1839 + $0xa8] sm:$0xff]
      %v6862 = vld [vmem:[%s1839 + $0xb0] sm:$0xff]
      %v6863 = vld [vmem:[%s1839 + $0xc0] sm:$0xff]
      %v6864 = vld [vmem:[%s1839 + $0xc8] sm:$0xff]
      %v6865 = vld [vmem:[%s1839 + $0xd8] sm:$0xff]
      %v6866 = vld [vmem:[%s1839 + $0xe0] sm:$0xff]
      %v6867 = vld [vmem:[%s1839 + $0xf0] sm:$0xff]
      %v6868 = vld [vmem:[%s1839 + $0xf8] sm:$0xff]
      %v6869 = vld [vmem:[%s1839 + $0x108] sm:$0xff]
      %v6870 = vld [vmem:[%s1839 + $0x110] sm:$0xff]
      %v6871 = vld [vmem:[%s1839 + $0x120] sm:$0xff]
      %v6872 = vld [vmem:[%s1839 + $0x128] sm:$0xff]
      %v6873 = vld [vmem:[%s1839 + $0x138] sm:$0xff]
      %v6874 = vld [vmem:[%s1839 + $0x140] sm:$0xff]
      %v6875 = vld [vmem:[%s1839 + $0x150] sm:$0xff]
      %v6876 = vld [vmem:[%s1839 + $0x158] sm:$0xff]
      %v6877 = vld [vmem:[%s1839 + $0x168] sm:$0xff]
      %v6878 = vld [vmem:[%s1839 + $0x170] sm:$0xff]
      %v6879 = vpack.c.bf16 %v6847, %v6847
      %v6880 = vpack.c.bf16 %v6848, %v6848
      %v6881 = vpack.c.bf16 %v6849, %v6849
      %v6882 = vpack.c.bf16 %v6850, %v6850
      %v6883 = vpack.c.bf16 %v6851, %v6851
      %v6884 = vpack.c.bf16 %v6852, %v6852
      %v6885 = vpack.c.bf16 %v6853, %v6853
      %v6886 = vpack.c.bf16 %v6854, %v6854
      %v6887 = vpack.c.bf16 %v6855, %v6855
      %v6888 = vpack.c.bf16 %v6856, %v6856
      %v6889 = vpack.c.bf16 %v6857, %v6857
      %v6890 = vpack.c.bf16 %v6858, %v6858
      %v6891 = vpack.c.bf16 %v6859, %v6859
      %v6892 = vpack.c.bf16 %v6860, %v6860
      %v6893 = vpack.c.bf16 %v6861, %v6861
      %v6894 = vpack.c.bf16 %v6862, %v6862
      %v6895 = vpack.c.bf16 %v6863, %v6863
      %v6896 = vpack.c.bf16 %v6864, %v6864
      %v6897 = vpack.c.bf16 %v6865, %v6865
      %v6898 = vpack.c.bf16 %v6866, %v6866
      %v6899 = vpack.c.bf16 %v6867, %v6867
      %v6900 = vpack.c.bf16 %v6868, %v6868
      %v6901 = vpack.c.bf16 %v6869, %v6869
      %v6902 = vpack.c.bf16 %v6870, %v6870
      %v6903 = vpack.c.bf16 %v6871, %v6871
      %v6904 = vpack.c.bf16 %v6872, %v6872
      %v6905 = vpack.c.bf16 %v6873, %v6873
      %v6906 = vpack.c.bf16 %v6874, %v6874
      %v6907 = vpack.c.bf16 %v6875, %v6875
      %v6908 = vpack.c.bf16 %v6876, %v6876
      %v6909 = vpack.c.bf16 %v6877, %v6877
      %v6910 = vpack.c.bf16 %v6878, %v6878
      %6943 = vrot.lane.b32.xlu0 %v6879, 48
      %v6944 = vpop.permute.xlu0 %6943
      %6945 = vrot.lane.b32.xlu0 %v6880, 48
      %v6946 = vpop.permute.xlu0 %6945
      %6947 = vrot.lane.b32.xlu0 %v6881, 48
      %v6948 = vpop.permute.xlu0 %6947
      %6949 = vrot.lane.b32.xlu0 %v6882, 48
      %v6950 = vpop.permute.xlu0 %6949
      %6951 = vrot.lane.b32.xlu0 %v6883, 48
      %v6952 = vpop.permute.xlu0 %6951
      %6953 = vrot.lane.b32.xlu0 %v6884, 48
      %v6954 = vpop.permute.xlu0 %6953
      %6955 = vrot.lane.b32.xlu0 %v6885, 48
      %v6956 = vpop.permute.xlu0 %6955
      %6957 = vrot.lane.b32.xlu0 %v6886, 48
      %v6958 = vpop.permute.xlu0 %6957
      %6959 = vrot.lane.b32.xlu0 %v6887, 48
      %v6960 = vpop.permute.xlu0 %6959
      %6961 = vrot.lane.b32.xlu0 %v6888, 48
      %v6962 = vpop.permute.xlu0 %6961
      %6963 = vrot.lane.b32.xlu0 %v6889, 48
      %v6964 = vpop.permute.xlu0 %6963
      %6965 = vrot.lane.b32.xlu0 %v6890, 48
      %v6966 = vpop.permute.xlu0 %6965
      %6967 = vrot.lane.b32.xlu0 %v6891, 48
      %v6968 = vpop.permute.xlu0 %6967
      %6969 = vrot.lane.b32.xlu0 %v6892, 48
      %v6970 = vpop.permute.xlu0 %6969
      %6971 = vrot.lane.b32.xlu0 %v6893, 48
      %v6972 = vpop.permute.xlu0 %6971
      %6973 = vrot.lane.b32.xlu0 %v6894, 48
      %v6974 = vpop.permute.xlu0 %6973
      %6975 = vrot.lane.b32.xlu0 %v6895, 48
      %v6976 = vpop.permute.xlu0 %6975
      %6977 = vrot.lane.b32.xlu0 %v6896, 48
      %v6978 = vpop.permute.xlu0 %6977
      %6979 = vrot.lane.b32.xlu0 %v6897, 48
      %v6980 = vpop.permute.xlu0 %6979
      %6981 = vrot.lane.b32.xlu0 %v6898, 48
      %v6982 = vpop.permute.xlu0 %6981
      %6983 = vrot.lane.b32.xlu0 %v6899, 48
      %v6984 = vpop.permute.xlu0 %6983
      %6985 = vrot.lane.b32.xlu0 %v6900, 48
      %v6986 = vpop.permute.xlu0 %6985
      %6987 = vrot.lane.b32.xlu0 %v6901, 48
      %v6988 = vpop.permute.xlu0 %6987
      %6989 = vrot.lane.b32.xlu0 %v6902, 48
      %v6990 = vpop.permute.xlu0 %6989
      %6991 = vrot.lane.b32.xlu0 %v6903, 48
      %v6992 = vpop.permute.xlu0 %6991
      %6993 = vrot.lane.b32.xlu0 %v6904, 48
      %v6994 = vpop.permute.xlu0 %6993
      %6995 = vrot.lane.b32.xlu0 %v6905, 48
      %v6996 = vpop.permute.xlu0 %6995
      %6997 = vrot.lane.b32.xlu0 %v6906, 48
      %v6998 = vpop.permute.xlu0 %6997
      %6999 = vrot.lane.b32.xlu0 %v6907, 48
      %v7000 = vpop.permute.xlu0 %6999
      %7001 = vrot.lane.b32.xlu0 %v6908, 48
      %v7002 = vpop.permute.xlu0 %7001
      %7003 = vrot.lane.b32.xlu0 %v6909, 48
      %v7004 = vpop.permute.xlu0 %7003
      %7005 = vrot.lane.b32.xlu0 %v6910, 48
      %v7006 = vpop.permute.xlu0 %7005
      %7039 = vst.msk [vmem:[#allocation3] sm:$0xf] %vm2032, %v6944
      %7040 = vst.msk [vmem:[#allocation3 + $0x4] sm:$0xf] %vm2032, %v6946
      %7041 = vst.msk [vmem:[#allocation3 + $0x8] sm:$0xf] %vm2032, %v6948
      %7042 = vst.msk [vmem:[#allocation3 + $0xc] sm:$0xf] %vm2032, %v6950
      %7043 = vst.msk [vmem:[#allocation3 + $0x10] sm:$0xf] %vm2032, %v6952
      %7044 = vst.msk [vmem:[#allocation3 + $0x14] sm:$0xf] %vm2032, %v6954
      %7045 = vst.msk [vmem:[#allocation3 + $0x18] sm:$0xf] %vm2032, %v6956
      %7046 = vst.msk [vmem:[#allocation3 + $0x1c] sm:$0xf] %vm2032, %v6958
      %7047 = vst.msk [vmem:[#allocation3 + $0x20] sm:$0xf] %vm2032, %v6960
      %7048 = vst.msk [vmem:[#allocation3 + $0x24] sm:$0xf] %vm2032, %v6962
      %7049 = vst.msk [vmem:[#allocation3 + $0x28] sm:$0xf] %vm2032, %v6964
      %7050 = vst.msk [vmem:[#allocation3 + $0x2c] sm:$0xf] %vm2032, %v6966
      %7051 = vst.msk [vmem:[#allocation3 + $0x30] sm:$0xf] %vm2032, %v6968
      %7052 = vst.msk [vmem:[#allocation3 + $0x34] sm:$0xf] %vm2032, %v6970
      %7053 = vst.msk [vmem:[#allocation3 + $0x38] sm:$0xf] %vm2032, %v6972
      %7054 = vst.msk [vmem:[#allocation3 + $0x3c] sm:$0xf] %vm2032, %v6974
      %7055 = vst.msk [vmem:[#allocation3 + $0x40] sm:$0xf] %vm2032, %v6976
      %7056 = vst.msk [vmem:[#allocation3 + $0x44] sm:$0xf] %vm2032, %v6978
      %7057 = vst.msk [vmem:[#allocation3 + $0x48] sm:$0xf] %vm2032, %v6980
      %7058 = vst.msk [vmem:[#allocation3 + $0x4c] sm:$0xf] %vm2032, %v6982
      %7059 = vst.msk [vmem:[#allocation3 + $0x50] sm:$0xf] %vm2032, %v6984
      %7060 = vst.msk [vmem:[#allocation3 + $0x54] sm:$0xf] %vm2032, %v6986
      %7061 = vst.msk [vmem:[#allocation3 + $0x58] sm:$0xf] %vm2032, %v6988
      %7062 = vst.msk [vmem:[#allocation3 + $0x5c] sm:$0xf] %vm2032, %v6990
      %7063 = vst.msk [vmem:[#allocation3 + $0x60] sm:$0xf] %vm2032, %v6992
      %7064 = vst.msk [vmem:[#allocation3 + $0x64] sm:$0xf] %vm2032, %v6994
      %7065 = vst.msk [vmem:[#allocation3 + $0x68] sm:$0xf] %vm2032, %v6996
      %7066 = vst.msk [vmem:[#allocation3 + $0x6c] sm:$0xf] %vm2032, %v6998
      %7067 = vst.msk [vmem:[#allocation3 + $0x70] sm:$0xf] %vm2032, %v7000
      %7068 = vst.msk [vmem:[#allocation3 + $0x74] sm:$0xf] %vm2032, %v7002
      %7069 = vst.msk [vmem:[#allocation3 + $0x78] sm:$0xf] %vm2032, %v7004
      %7070 = vst.msk [vmem:[#allocation3 + $0x7c] sm:$0xf] %vm2032, %v7006
      %v7071 = vld [vmem:[%s1839 + $0x1] sm:$0xff]
      %v7072 = vld [vmem:[%s1839 + $0x9] sm:$0xff]
      %v7073 = vld [vmem:[%s1839 + $0x19] sm:$0xff]
      %v7074 = vld [vmem:[%s1839 + $0x21] sm:$0xff]
      %v7075 = vld [vmem:[%s1839 + $0x31] sm:$0xff]
      %v7076 = vld [vmem:[%s1839 + $0x39] sm:$0xff]
      %v7077 = vld [vmem:[%s1839 + $0x49] sm:$0xff]
      %v7078 = vld [vmem:[%s1839 + $0x51] sm:$0xff]
      %v7079 = vld [vmem:[%s1839 + $0x61] sm:$0xff]
      %v7080 = vld [vmem:[%s1839 + $0x69] sm:$0xff]
      %v7081 = vld [vmem:[%s1839 + $0x79] sm:$0xff]
      %v7082 = vld [vmem:[%s1839 + $0x81] sm:$0xff]
      %v7083 = vld [vmem:[%s1839 + $0x91] sm:$0xff]
      %v7084 = vld [vmem:[%s1839 + $0x99] sm:$0xff]
      %v7085 = vld [vmem:[%s1839 + $0xa9] sm:$0xff]
      %v7086 = vld [vmem:[%s1839 + $0xb1] sm:$0xff]
      %v7087 = vld [vmem:[%s1839 + $0xc1] sm:$0xff]
      %v7088 = vld [vmem:[%s1839 + $0xc9] sm:$0xff]
      %v7089 = vld [vmem:[%s1839 + $0xd9] sm:$0xff]
      %v7090 = vld [vmem:[%s1839 + $0xe1] sm:$0xff]
      %v7091 = vld [vmem:[%s1839 + $0xf1] sm:$0xff]
      %v7092 = vld [vmem:[%s1839 + $0xf9] sm:$0xff]
      %v7093 = vld [vmem:[%s1839 + $0x109] sm:$0xff]
      %v7094 = vld [vmem:[%s1839 + $0x111] sm:$0xff]
      %v7095 = vld [vmem:[%s1839 + $0x121] sm:$0xff]
      %v7096 = vld [vmem:[%s1839 + $0x129] sm:$0xff]
      %v7097 = vld [vmem:[%s1839 + $0x139] sm:$0xff]
      %v7098 = vld [vmem:[%s1839 + $0x141] sm:$0xff]
      %v7099 = vld [vmem:[%s1839 + $0x151] sm:$0xff]
      %v7100 = vld [vmem:[%s1839 + $0x159] sm:$0xff]
      %v7101 = vld [vmem:[%s1839 + $0x169] sm:$0xff]
      %v7102 = vld [vmem:[%s1839 + $0x171] sm:$0xff]
      %v7103 = vpack.c.bf16 %v7071, %v7071
      %v7104 = vpack.c.bf16 %v7072, %v7072
      %v7105 = vpack.c.bf16 %v7073, %v7073
      %v7106 = vpack.c.bf16 %v7074, %v7074
      %v7107 = vpack.c.bf16 %v7075, %v7075
      %v7108 = vpack.c.bf16 %v7076, %v7076
      %v7109 = vpack.c.bf16 %v7077, %v7077
      %v7110 = vpack.c.bf16 %v7078, %v7078
      %v7111 = vpack.c.bf16 %v7079, %v7079
      %v7112 = vpack.c.bf16 %v7080, %v7080
      %v7113 = vpack.c.bf16 %v7081, %v7081
      %v7114 = vpack.c.bf16 %v7082, %v7082
      %v7115 = vpack.c.bf16 %v7083, %v7083
      %v7116 = vpack.c.bf16 %v7084, %v7084
      %v7117 = vpack.c.bf16 %v7085, %v7085
      %v7118 = vpack.c.bf16 %v7086, %v7086
      %v7119 = vpack.c.bf16 %v7087, %v7087
      %v7120 = vpack.c.bf16 %v7088, %v7088
      %v7121 = vpack.c.bf16 %v7089, %v7089
      %v7122 = vpack.c.bf16 %v7090, %v7090
      %v7123 = vpack.c.bf16 %v7091, %v7091
      %v7124 = vpack.c.bf16 %v7092, %v7092
      %v7125 = vpack.c.bf16 %v7093, %v7093
      %v7126 = vpack.c.bf16 %v7094, %v7094
      %v7127 = vpack.c.bf16 %v7095, %v7095
      %v7128 = vpack.c.bf16 %v7096, %v7096
      %v7129 = vpack.c.bf16 %v7097, %v7097
      %v7130 = vpack.c.bf16 %v7098, %v7098
      %v7131 = vpack.c.bf16 %v7099, %v7099
      %v7132 = vpack.c.bf16 %v7100, %v7100
      %v7133 = vpack.c.bf16 %v7101, %v7101
      %v7134 = vpack.c.bf16 %v7102, %v7102
      %7167 = vrot.lane.b32.xlu0 %v7103, 56
      %v7168 = vpop.permute.xlu0 %7167
      %7169 = vrot.lane.b32.xlu0 %v7104, 56
      %v7170 = vpop.permute.xlu0 %7169
      %7171 = vrot.lane.b32.xlu0 %v7105, 56
      %v7172 = vpop.permute.xlu0 %7171
      %7173 = vrot.lane.b32.xlu0 %v7106, 56
      %v7174 = vpop.permute.xlu0 %7173
      %7175 = vrot.lane.b32.xlu0 %v7107, 56
      %v7176 = vpop.permute.xlu0 %7175
      %7177 = vrot.lane.b32.xlu0 %v7108, 56
      %v7178 = vpop.permute.xlu0 %7177
      %7179 = vrot.lane.b32.xlu0 %v7109, 56
      %v7180 = vpop.permute.xlu0 %7179
      %7181 = vrot.lane.b32.xlu0 %v7110, 56
      %v7182 = vpop.permute.xlu0 %7181
      %7183 = vrot.lane.b32.xlu0 %v7111, 56
      %v7184 = vpop.permute.xlu0 %7183
      %7185 = vrot.lane.b32.xlu0 %v7112, 56
      %v7186 = vpop.permute.xlu0 %7185
      %7187 = vrot.lane.b32.xlu0 %v7113, 56
      %v7188 = vpop.permute.xlu0 %7187
      %7189 = vrot.lane.b32.xlu0 %v7114, 56
      %v7190 = vpop.permute.xlu0 %7189
      %7191 = vrot.lane.b32.xlu0 %v7115, 56
      %v7192 = vpop.permute.xlu0 %7191
      %7193 = vrot.lane.b32.xlu0 %v7116, 56
      %v7194 = vpop.permute.xlu0 %7193
      %7195 = vrot.lane.b32.xlu0 %v7117, 56
      %v7196 = vpop.permute.xlu0 %7195
      %7197 = vrot.lane.b32.xlu0 %v7118, 56
      %v7198 = vpop.permute.xlu0 %7197
      %7199 = vrot.lane.b32.xlu0 %v7119, 56
      %v7200 = vpop.permute.xlu0 %7199
      %7201 = vrot.lane.b32.xlu0 %v7120, 56
      %v7202 = vpop.permute.xlu0 %7201
      %7203 = vrot.lane.b32.xlu0 %v7121, 56
      %v7204 = vpop.permute.xlu0 %7203
      %7205 = vrot.lane.b32.xlu0 %v7122, 56
      %v7206 = vpop.permute.xlu0 %7205
      %7207 = vrot.lane.b32.xlu0 %v7123, 56
      %v7208 = vpop.permute.xlu0 %7207
      %7209 = vrot.lane.b32.xlu0 %v7124, 56
      %v7210 = vpop.permute.xlu0 %7209
      %7211 = vrot.lane.b32.xlu0 %v7125, 56
      %v7212 = vpop.permute.xlu0 %7211
      %7213 = vrot.lane.b32.xlu0 %v7126, 56
      %v7214 = vpop.permute.xlu0 %7213
      %7215 = vrot.lane.b32.xlu0 %v7127, 56
      %v7216 = vpop.permute.xlu0 %7215
      %7217 = vrot.lane.b32.xlu0 %v7128, 56
      %v7218 = vpop.permute.xlu0 %7217
      %7219 = vrot.lane.b32.xlu0 %v7129, 56
      %v7220 = vpop.permute.xlu0 %7219
      %7221 = vrot.lane.b32.xlu0 %v7130, 56
      %v7222 = vpop.permute.xlu0 %7221
      %7223 = vrot.lane.b32.xlu0 %v7131, 56
      %v7224 = vpop.permute.xlu0 %7223
      %7225 = vrot.lane.b32.xlu0 %v7132, 56
      %v7226 = vpop.permute.xlu0 %7225
      %7227 = vrot.lane.b32.xlu0 %v7133, 56
      %v7228 = vpop.permute.xlu0 %7227
      %7229 = vrot.lane.b32.xlu0 %v7134, 56
      %v7230 = vpop.permute.xlu0 %7229
      %7263 = vst.msk [vmem:[#allocation3] sm:$0xf] %vm2257, %v7168
      %7264 = vst.msk [vmem:[#allocation3 + $0x4] sm:$0xf] %vm2257, %v7170
      %7265 = vst.msk [vmem:[#allocation3 + $0x8] sm:$0xf] %vm2257, %v7172
      %7266 = vst.msk [vmem:[#allocation3 + $0xc] sm:$0xf] %vm2257, %v7174
      %7267 = vst.msk [vmem:[#allocation3 + $0x10] sm:$0xf] %vm2257, %v7176
      %7268 = vst.msk [vmem:[#allocation3 + $0x14] sm:$0xf] %vm2257, %v7178
      %7269 = vst.msk [vmem:[#allocation3 + $0x18] sm:$0xf] %vm2257, %v7180
      %7270 = vst.msk [vmem:[#allocation3 + $0x1c] sm:$0xf] %vm2257, %v7182
      %7271 = vst.msk [vmem:[#allocation3 + $0x20] sm:$0xf] %vm2257, %v7184
      %7272 = vst.msk [vmem:[#allocation3 + $0x24] sm:$0xf] %vm2257, %v7186
      %7273 = vst.msk [vmem:[#allocation3 + $0x28] sm:$0xf] %vm2257, %v7188
      %7274 = vst.msk [vmem:[#allocation3 + $0x2c] sm:$0xf] %vm2257, %v7190
      %7275 = vst.msk [vmem:[#allocation3 + $0x30] sm:$0xf] %vm2257, %v7192
      %7276 = vst.msk [vmem:[#allocation3 + $0x34] sm:$0xf] %vm2257, %v7194
      %7277 = vst.msk [vmem:[#allocation3 + $0x38] sm:$0xf] %vm2257, %v7196
      %7278 = vst.msk [vmem:[#allocation3 + $0x3c] sm:$0xf] %vm2257, %v7198
      %7279 = vst.msk [vmem:[#allocation3 + $0x40] sm:$0xf] %vm2257, %v7200
      %7280 = vst.msk [vmem:[#allocation3 + $0x44] sm:$0xf] %vm2257, %v7202
      %7281 = vst.msk [vmem:[#allocation3 + $0x48] sm:$0xf] %vm2257, %v7204
      %7282 = vst.msk [vmem:[#allocation3 + $0x4c] sm:$0xf] %vm2257, %v7206
      %7283 = vst.msk [vmem:[#allocation3 + $0x50] sm:$0xf] %vm2257, %v7208
      %7284 = vst.msk [vmem:[#allocation3 + $0x54] sm:$0xf] %vm2257, %v7210
      %7285 = vst.msk [vmem:[#allocation3 + $0x58] sm:$0xf] %vm2257, %v7212
      %7286 = vst.msk [vmem:[#allocation3 + $0x5c] sm:$0xf] %vm2257, %v7214
      %7287 = vst.msk [vmem:[#allocation3 + $0x60] sm:$0xf] %vm2257, %v7216
      %7288 = vst.msk [vmem:[#allocation3 + $0x64] sm:$0xf] %vm2257, %v7218
      %7289 = vst.msk [vmem:[#allocation3 + $0x68] sm:$0xf] %vm2257, %v7220
      %7290 = vst.msk [vmem:[#allocation3 + $0x6c] sm:$0xf] %vm2257, %v7222
      %7291 = vst.msk [vmem:[#allocation3 + $0x70] sm:$0xf] %vm2257, %v7224
      %7292 = vst.msk [vmem:[#allocation3 + $0x74] sm:$0xf] %vm2257, %v7226
      %7293 = vst.msk [vmem:[#allocation3 + $0x78] sm:$0xf] %vm2257, %v7228
      %7294 = vst.msk [vmem:[#allocation3 + $0x7c] sm:$0xf] %vm2257, %v7230
      %v7295 = vld [vmem:[%s1839 + $0x2] sm:$0xff]
      %v7296 = vld [vmem:[%s1839 + $0xa] sm:$0xff]
      %v7297 = vld [vmem:[%s1839 + $0x1a] sm:$0xff]
      %v7298 = vld [vmem:[%s1839 + $0x22] sm:$0xff]
      %v7299 = vld [vmem:[%s1839 + $0x32] sm:$0xff]
      %v7300 = vld [vmem:[%s1839 + $0x3a] sm:$0xff]
      %v7301 = vld [vmem:[%s1839 + $0x4a] sm:$0xff]
      %v7302 = vld [vmem:[%s1839 + $0x52] sm:$0xff]
      %v7303 = vld [vmem:[%s1839 + $0x62] sm:$0xff]
      %v7304 = vld [vmem:[%s1839 + $0x6a] sm:$0xff]
      %v7305 = vld [vmem:[%s1839 + $0x7a] sm:$0xff]
      %v7306 = vld [vmem:[%s1839 + $0x82] sm:$0xff]
      %v7307 = vld [vmem:[%s1839 + $0x92] sm:$0xff]
      %v7308 = vld [vmem:[%s1839 + $0x9a] sm:$0xff]
      %v7309 = vld [vmem:[%s1839 + $0xaa] sm:$0xff]
      %v7310 = vld [vmem:[%s1839 + $0xb2] sm:$0xff]
      %v7311 = vld [vmem:[%s1839 + $0xc2] sm:$0xff]
      %v7312 = vld [vmem:[%s1839 + $0xca] sm:$0xff]
      %v7313 = vld [vmem:[%s1839 + $0xda] sm:$0xff]
      %v7314 = vld [vmem:[%s1839 + $0xe2] sm:$0xff]
      %v7315 = vld [vmem:[%s1839 + $0xf2] sm:$0xff]
      %v7316 = vld [vmem:[%s1839 + $0xfa] sm:$0xff]
      %v7317 = vld [vmem:[%s1839 + $0x10a] sm:$0xff]
      %v7318 = vld [vmem:[%s1839 + $0x112] sm:$0xff]
      %v7319 = vld [vmem:[%s1839 + $0x122] sm:$0xff]
      %v7320 = vld [vmem:[%s1839 + $0x12a] sm:$0xff]
      %v7321 = vld [vmem:[%s1839 + $0x13a] sm:$0xff]
      %v7322 = vld [vmem:[%s1839 + $0x142] sm:$0xff]
      %v7323 = vld [vmem:[%s1839 + $0x152] sm:$0xff]
      %v7324 = vld [vmem:[%s1839 + $0x15a] sm:$0xff]
      %v7325 = vld [vmem:[%s1839 + $0x16a] sm:$0xff]
      %v7326 = vld [vmem:[%s1839 + $0x172] sm:$0xff]
      %v7327 = vpack.c.bf16 %v7295, %v7295
      %v7328 = vpack.c.bf16 %v7296, %v7296
      %v7329 = vpack.c.bf16 %v7297, %v7297
      %v7330 = vpack.c.bf16 %v7298, %v7298
      %v7331 = vpack.c.bf16 %v7299, %v7299
      %v7332 = vpack.c.bf16 %v7300, %v7300
      %v7333 = vpack.c.bf16 %v7301, %v7301
      %v7334 = vpack.c.bf16 %v7302, %v7302
      %v7335 = vpack.c.bf16 %v7303, %v7303
      %v7336 = vpack.c.bf16 %v7304, %v7304
      %v7337 = vpack.c.bf16 %v7305, %v7305
      %v7338 = vpack.c.bf16 %v7306, %v7306
      %v7339 = vpack.c.bf16 %v7307, %v7307
      %v7340 = vpack.c.bf16 %v7308, %v7308
      %v7341 = vpack.c.bf16 %v7309, %v7309
      %v7342 = vpack.c.bf16 %v7310, %v7310
      %v7343 = vpack.c.bf16 %v7311, %v7311
      %v7344 = vpack.c.bf16 %v7312, %v7312
      %v7345 = vpack.c.bf16 %v7313, %v7313
      %v7346 = vpack.c.bf16 %v7314, %v7314
      %v7347 = vpack.c.bf16 %v7315, %v7315
      %v7348 = vpack.c.bf16 %v7316, %v7316
      %v7349 = vpack.c.bf16 %v7317, %v7317
      %v7350 = vpack.c.bf16 %v7318, %v7318
      %v7351 = vpack.c.bf16 %v7319, %v7319
      %v7352 = vpack.c.bf16 %v7320, %v7320
      %v7353 = vpack.c.bf16 %v7321, %v7321
      %v7354 = vpack.c.bf16 %v7322, %v7322
      %v7355 = vpack.c.bf16 %v7323, %v7323
      %v7356 = vpack.c.bf16 %v7324, %v7324
      %v7357 = vpack.c.bf16 %v7325, %v7325
      %v7358 = vpack.c.bf16 %v7326, %v7326
      %7391 = vrot.lane.b32.xlu0 %v7327, 64
      %v7392 = vpop.permute.xlu0 %7391
      %7393 = vrot.lane.b32.xlu0 %v7328, 64
      %v7394 = vpop.permute.xlu0 %7393
      %7395 = vrot.lane.b32.xlu0 %v7329, 64
      %v7396 = vpop.permute.xlu0 %7395
      %7397 = vrot.lane.b32.xlu0 %v7330, 64
      %v7398 = vpop.permute.xlu0 %7397
      %7399 = vrot.lane.b32.xlu0 %v7331, 64
      %v7400 = vpop.permute.xlu0 %7399
      %7401 = vrot.lane.b32.xlu0 %v7332, 64
      %v7402 = vpop.permute.xlu0 %7401
      %7403 = vrot.lane.b32.xlu0 %v7333, 64
      %v7404 = vpop.permute.xlu0 %7403
      %7405 = vrot.lane.b32.xlu0 %v7334, 64
      %v7406 = vpop.permute.xlu0 %7405
      %7407 = vrot.lane.b32.xlu0 %v7335, 64
      %v7408 = vpop.permute.xlu0 %7407
      %7409 = vrot.lane.b32.xlu0 %v7336, 64
      %v7410 = vpop.permute.xlu0 %7409
      %7411 = vrot.lane.b32.xlu0 %v7337, 64
      %v7412 = vpop.permute.xlu0 %7411
      %7413 = vrot.lane.b32.xlu0 %v7338, 64
      %v7414 = vpop.permute.xlu0 %7413
      %7415 = vrot.lane.b32.xlu0 %v7339, 64
      %v7416 = vpop.permute.xlu0 %7415
      %7417 = vrot.lane.b32.xlu0 %v7340, 64
      %v7418 = vpop.permute.xlu0 %7417
      %7419 = vrot.lane.b32.xlu0 %v7341, 64
      %v7420 = vpop.permute.xlu0 %7419
      %7421 = vrot.lane.b32.xlu0 %v7342, 64
      %v7422 = vpop.permute.xlu0 %7421
      %7423 = vrot.lane.b32.xlu0 %v7343, 64
      %v7424 = vpop.permute.xlu0 %7423
      %7425 = vrot.lane.b32.xlu0 %v7344, 64
      %v7426 = vpop.permute.xlu0 %7425
      %7427 = vrot.lane.b32.xlu0 %v7345, 64
      %v7428 = vpop.permute.xlu0 %7427
      %7429 = vrot.lane.b32.xlu0 %v7346, 64
      %v7430 = vpop.permute.xlu0 %7429
      %7431 = vrot.lane.b32.xlu0 %v7347, 64
      %v7432 = vpop.permute.xlu0 %7431
      %7433 = vrot.lane.b32.xlu0 %v7348, 64
      %v7434 = vpop.permute.xlu0 %7433
      %7435 = vrot.lane.b32.xlu0 %v7349, 64
      %v7436 = vpop.permute.xlu0 %7435
      %7437 = vrot.lane.b32.xlu0 %v7350, 64
      %v7438 = vpop.permute.xlu0 %7437
      %7439 = vrot.lane.b32.xlu0 %v7351, 64
      %v7440 = vpop.permute.xlu0 %7439
      %7441 = vrot.lane.b32.xlu0 %v7352, 64
      %v7442 = vpop.permute.xlu0 %7441
      %7443 = vrot.lane.b32.xlu0 %v7353, 64
      %v7444 = vpop.permute.xlu0 %7443
      %7445 = vrot.lane.b32.xlu0 %v7354, 64
      %v7446 = vpop.permute.xlu0 %7445
      %7447 = vrot.lane.b32.xlu0 %v7355, 64
      %v7448 = vpop.permute.xlu0 %7447
      %7449 = vrot.lane.b32.xlu0 %v7356, 64
      %v7450 = vpop.permute.xlu0 %7449
      %7451 = vrot.lane.b32.xlu0 %v7357, 64
      %v7452 = vpop.permute.xlu0 %7451
      %7453 = vrot.lane.b32.xlu0 %v7358, 64
      %v7454 = vpop.permute.xlu0 %7453
      %7487 = vst.msk [vmem:[#allocation3] sm:$0xf] %vm2482, %v7392
      %7488 = vst.msk [vmem:[#allocation3 + $0x4] sm:$0xf] %vm2482, %v7394
      %7489 = vst.msk [vmem:[#allocation3 + $0x8] sm:$0xf] %vm2482, %v7396
      %7490 = vst.msk [vmem:[#allocation3 + $0xc] sm:$0xf] %vm2482, %v7398
      %7491 = vst.msk [vmem:[#allocation3 + $0x10] sm:$0xf] %vm2482, %v7400
      %7492 = vst.msk [vmem:[#allocation3 + $0x14] sm:$0xf] %vm2482, %v7402
      %7493 = vst.msk [vmem:[#allocation3 + $0x18] sm:$0xf] %vm2482, %v7404
      %7494 = vst.msk [vmem:[#allocation3 + $0x1c] sm:$0xf] %vm2482, %v7406
      %7495 = vst.msk [vmem:[#allocation3 + $0x20] sm:$0xf] %vm2482, %v7408
      %7496 = vst.msk [vmem:[#allocation3 + $0x24] sm:$0xf] %vm2482, %v7410
      %7497 = vst.msk [vmem:[#allocation3 + $0x28] sm:$0xf] %vm2482, %v7412
      %7498 = vst.msk [vmem:[#allocation3 + $0x2c] sm:$0xf] %vm2482, %v7414
      %7499 = vst.msk [vmem:[#allocation3 + $0x30] sm:$0xf] %vm2482, %v7416
      %7500 = vst.msk [vmem:[#allocation3 + $0x34] sm:$0xf] %vm2482, %v7418
      %7501 = vst.msk [vmem:[#allocation3 + $0x38] sm:$0xf] %vm2482, %v7420
      %7502 = vst.msk [vmem:[#allocation3 + $0x3c] sm:$0xf] %vm2482, %v7422
      %7503 = vst.msk [vmem:[#allocation3 + $0x40] sm:$0xf] %vm2482, %v7424
      %7504 = vst.msk [vmem:[#allocation3 + $0x44] sm:$0xf] %vm2482, %v7426
      %7505 = vst.msk [vmem:[#allocation3 + $0x48] sm:$0xf] %vm2482, %v7428
      %7506 = vst.msk [vmem:[#allocation3 + $0x4c] sm:$0xf] %vm2482, %v7430
      %7507 = vst.msk [vmem:[#allocation3 + $0x50] sm:$0xf] %vm2482, %v7432
      %7508 = vst.msk [vmem:[#allocation3 + $0x54] sm:$0xf] %vm2482, %v7434
      %7509 = vst.msk [vmem:[#allocation3 + $0x58] sm:$0xf] %vm2482, %v7436
      %7510 = vst.msk [vmem:[#allocation3 + $0x5c] sm:$0xf] %vm2482, %v7438
      %7511 = vst.msk [vmem:[#allocation3 + $0x60] sm:$0xf] %vm2482, %v7440
      %7512 = vst.msk [vmem:[#allocation3 + $0x64] sm:$0xf] %vm2482, %v7442
      %7513 = vst.msk [vmem:[#allocation3 + $0x68] sm:$0xf] %vm2482, %v7444
      %7514 = vst.msk [vmem:[#allocation3 + $0x6c] sm:$0xf] %vm2482, %v7446
      %7515 = vst.msk [vmem:[#allocation3 + $0x70] sm:$0xf] %vm2482, %v7448
      %7516 = vst.msk [vmem:[#allocation3 + $0x74] sm:$0xf] %vm2482, %v7450
      %7517 = vst.msk [vmem:[#allocation3 + $0x78] sm:$0xf] %vm2482, %v7452
      %7518 = vst.msk [vmem:[#allocation3 + $0x7c] sm:$0xf] %vm2482, %v7454
      %v7519 = vld [vmem:[#allocation3] sm:$0xf]
      %v7520 = vld [vmem:[#allocation3 + $0x4] sm:$0xf]
      %v7521 = vld [vmem:[#allocation3 + $0x8] sm:$0xf]
      %v7522 = vld [vmem:[#allocation3 + $0xc] sm:$0xf]
      %v7523 = vld [vmem:[#allocation3 + $0x10] sm:$0xf]
      %v7524 = vld [vmem:[#allocation3 + $0x14] sm:$0xf]
      %v7525 = vld [vmem:[#allocation3 + $0x18] sm:$0xf]
      %v7526 = vld [vmem:[#allocation3 + $0x1c] sm:$0xf]
      %v7527 = vld [vmem:[#allocation3 + $0x20] sm:$0xf]
      %v7528 = vld [vmem:[#allocation3 + $0x24] sm:$0xf]
      %v7529 = vld [vmem:[#allocation3 + $0x28] sm:$0xf]
      %v7530 = vld [vmem:[#allocation3 + $0x2c] sm:$0xf]
      %v7531 = vld [vmem:[#allocation3 + $0x30] sm:$0xf]
      %v7532 = vld [vmem:[#allocation3 + $0x34] sm:$0xf]
      %v7533 = vld [vmem:[#allocation3 + $0x38] sm:$0xf]
      %v7534 = vld [vmem:[#allocation3 + $0x3c] sm:$0xf]
      %v7535 = vld [vmem:[#allocation3 + $0x40] sm:$0xf]
      %v7536 = vld [vmem:[#allocation3 + $0x44] sm:$0xf]
      %v7537 = vld [vmem:[#allocation3 + $0x48] sm:$0xf]
      %v7538 = vld [vmem:[#allocation3 + $0x4c] sm:$0xf]
      %v7539 = vld [vmem:[#allocation3 + $0x50] sm:$0xf]
      %v7540 = vld [vmem:[#allocation3 + $0x54] sm:$0xf]
      %v7541 = vld [vmem:[#allocation3 + $0x58] sm:$0xf]
      %v7542 = vld [vmem:[#allocation3 + $0x5c] sm:$0xf]
      %v7543 = vld [vmem:[#allocation3 + $0x60] sm:$0xf]
      %v7544 = vld [vmem:[#allocation3 + $0x64] sm:$0xf]
      %v7545 = vld [vmem:[#allocation3 + $0x68] sm:$0xf]
      %v7546 = vld [vmem:[#allocation3 + $0x6c] sm:$0xf]
      %v7547 = vld [vmem:[#allocation3 + $0x70] sm:$0xf]
      %v7548 = vld [vmem:[#allocation3 + $0x74] sm:$0xf]
      %v7549 = vld [vmem:[#allocation3 + $0x78] sm:$0xf]
      %v7550 = vld [vmem:[#allocation3 + $0x7c] sm:$0xf]
      %v7551 = vld [vmem:[%s5] sm:$0xf]
      %v7552 = vld [vmem:[%s5 + $0x4] sm:$0xf]
      %v7553 = vld [vmem:[%s5 + $0x8] sm:$0xf]
      %v7554 = vld [vmem:[%s5 + $0xc] sm:$0xf]
      %v7555 = vld [vmem:[%s5 + $0x10] sm:$0xf]
      %v7556 = vld [vmem:[%s5 + $0x14] sm:$0xf]
      %v7557 = vld [vmem:[%s5 + $0x18] sm:$0xf]
      %v7558 = vld [vmem:[%s5 + $0x1c] sm:$0xf]
      %v7559 = vld [vmem:[%s5 + $0x20] sm:$0xf]
      %v7560 = vld [vmem:[%s6] sm:$0x1]
      %v7562 = vperm.slane %v7560, 0
      %v7596 = vunpack.c.l.b16 %v7519
      %v7597 = vunpack.c.l.b16 %v7520
      %v7598 = vunpack.c.l.b16 %v7521
      %v7599 = vunpack.c.l.b16 %v7522
      %v7600 = vunpack.c.l.b16 %v7523
      %v7601 = vunpack.c.l.b16 %v7524
      %v7602 = vunpack.c.l.b16 %v7525
      %v7603 = vunpack.c.l.b16 %v7526
      %v7604 = vunpack.c.l.b16 %v7527
      %v7605 = vunpack.c.l.b16 %v7528
      %v7606 = vunpack.c.l.b16 %v7529
      %v7607 = vunpack.c.l.b16 %v7530
      %v7608 = vunpack.c.l.b16 %v7531
      %v7609 = vunpack.c.l.b16 %v7532
      %v7610 = vunpack.c.l.b16 %v7533
      %v7611 = vunpack.c.l.b16 %v7534
      %v7612 = vunpack.c.l.b16 %v7535
      %v7613 = vunpack.c.l.b16 %v7536
      %v7614 = vunpack.c.l.b16 %v7537
      %v7615 = vunpack.c.l.b16 %v7538
      %v7616 = vunpack.c.l.b16 %v7539
      %v7617 = vunpack.c.l.b16 %v7540
      %v7618 = vunpack.c.l.b16 %v7541
      %v7619 = vunpack.c.l.b16 %v7542
      %v7620 = vunpack.c.l.b16 %v7543
      %v7621 = vunpack.c.l.b16 %v7544
      %v7622 = vunpack.c.l.b16 %v7545
      %v7623 = vunpack.c.l.b16 %v7546
      %v7624 = vunpack.c.l.b16 %v7547
      %v7625 = vunpack.c.l.b16 %v7548
      %v7626 = vunpack.c.l.b16 %v7549
      %v7627 = vunpack.c.l.b16 %v7550
      %v7628 = vpack.c.b16 %v7597, %v7596
      %v7629 = vpack.c.b16 %v7599, %v7598
      %v7630 = vpack.c.b16 %v7601, %v7600
      %v7631 = vpack.c.b16 %v7603, %v7602
      %v7632 = vpack.c.b16 %v7605, %v7604
      %v7633 = vpack.c.b16 %v7607, %v7606
      %v7634 = vpack.c.b16 %v7609, %v7608
      %v7635 = vpack.c.b16 %v7611, %v7610
      %v7636 = vpack.c.b16 %v7613, %v7612
      %v7637 = vpack.c.b16 %v7615, %v7614
      %v7638 = vpack.c.b16 %v7617, %v7616
      %v7639 = vpack.c.b16 %v7619, %v7618
      %v7640 = vpack.c.b16 %v7621, %v7620
      %v7641 = vpack.c.b16 %v7623, %v7622
      %v7642 = vpack.c.b16 %v7625, %v7624
      %v7643 = vpack.c.b16 %v7627, %v7626
      %v7653 = vunpack.c.l.b16 %v7551
      %v7654 = vunpack.c.l.b16 %v7552
      %v7655 = vunpack.c.l.b16 %v7553
      %v7656 = vunpack.c.l.b16 %v7554
      %v7657 = vunpack.c.l.b16 %v7555
      %v7658 = vunpack.c.l.b16 %v7556
      %v7659 = vunpack.c.l.b16 %v7557
      %v7660 = vunpack.c.l.b16 %v7558
      %v7661 = vunpack.c.l.b16 %v7559
      %v7662 = vpack.c.b16 %v7654, %v7653
      %v7663 = vpack.c.b16 %v7656, %v7655
      %v7664 = vpack.c.b16 %v7658, %v7657
      %v7665 = vpack.c.b16 %v7660, %v7659
      %v7666 = vpack.c.b16 %v7661, %v7661
      %v7672 = vsel %vm2667, %v7628, 0
      %v7675 = vsel %vm2667, %v7629, 0
      %v7678 = vsel %vm2667, %v7630, 0
      %v7681 = vsel %vm2667, %v7631, 0
      %v7684 = vsel %vm2667, %v7632, 0
      %v7687 = vsel %vm2667, %v7633, 0
      %v7690 = vsel %vm2667, %v7634, 0
      %v7693 = vsel %vm2667, %v7635, 0
      %v7696 = vsel %vm2667, %v7636, 0
      %v7699 = vsel %vm2667, %v7637, 0
      %v7702 = vsel %vm2667, %v7638, 0
      %v7705 = vsel %vm2667, %v7639, 0
      %v7708 = vsel %vm2667, %v7640, 0
      %v7711 = vsel %vm2667, %v7641, 0
      %v7714 = vsel %vm2667, %v7642, 0
      %v7717 = vsel %vm2667, %v7643, 0
      %v7720 = vsel %vm2716, %v7666, 0
      %7722 = vmatpush.bf16.msra.mxu0 0
      %7723 = vmatpush.bf16.msra.mxu0 0
      %7724 = vmatpush.bf16.msra.mxu0 0
      %7725 = vmatpush.bf16.msra.mxu0 %v7720
      %7726 = vmatpush.bf16.msra.mxu0 %v7665
      %7727 = vmatpush.bf16.msra.mxu0 %v7664
      %7728 = vmatpush.bf16.msra.mxu0 %v7663
      %7729 = vmatpush.bf16.msra.mxu0 %v7662
      %7730 = vmatmul.bf16.gmra.mxu0 %v7672
      %v7731 = vpop.f32.mrf.mxu0
      %v7732 = vadd.f32 %v7562, %v7731
      %v7733 = vpop.f32.mrf.mxu0
      %v7734 = vadd.f32 %v7562, %v7733
      %7735 = vmatmul.bf16.gmra.mxu0 %v7675
      %v7736 = vpop.f32.mrf.mxu0
      %v7737 = vadd.f32 %v7562, %v7736
      %v7738 = vpop.f32.mrf.mxu0
      %v7739 = vadd.f32 %v7562, %v7738
      %7740 = vmatmul.bf16.gmra.mxu0 %v7678
      %v7741 = vpop.f32.mrf.mxu0
      %v7742 = vadd.f32 %v7562, %v7741
      %v7743 = vpop.f32.mrf.mxu0
      %v7744 = vadd.f32 %v7562, %v7743
      %7745 = vmatmul.bf16.gmra.mxu0 %v7681
      %v7746 = vpop.f32.mrf.mxu0
      %v7747 = vadd.f32 %v7562, %v7746
      %v7748 = vpop.f32.mrf.mxu0
      %v7749 = vadd.f32 %v7562, %v7748
      %7750 = vmatmul.bf16.gmra.mxu0 %v7684
      %v7751 = vpop.f32.mrf.mxu0
      %v7752 = vadd.f32 %v7562, %v7751
      %v7753 = vpop.f32.mrf.mxu0
      %v7754 = vadd.f32 %v7562, %v7753
      %7755 = vmatmul.bf16.gmra.mxu0 %v7687
      %v7756 = vpop.f32.mrf.mxu0
      %v7757 = vadd.f32 %v7562, %v7756
      %v7758 = vpop.f32.mrf.mxu0
      %v7759 = vadd.f32 %v7562, %v7758
      %7760 = vmatmul.bf16.gmra.mxu0 %v7690
      %v7761 = vpop.f32.mrf.mxu0
      %v7762 = vadd.f32 %v7562, %v7761
      %v7763 = vpop.f32.mrf.mxu0
      %v7764 = vadd.f32 %v7562, %v7763
      %7765 = vmatmul.bf16.gmra.mxu0 %v7693
      %v7766 = vpop.f32.mrf.mxu0
      %v7767 = vadd.f32 %v7562, %v7766
      %v7768 = vpop.f32.mrf.mxu0
      %v7769 = vadd.f32 %v7562, %v7768
      %7770 = vmatmul.bf16.gmra.mxu0 %v7696
      %v7771 = vpop.f32.mrf.mxu0
      %v7772 = vadd.f32 %v7562, %v7771
      %v7773 = vpop.f32.mrf.mxu0
      %v7774 = vadd.f32 %v7562, %v7773
      %7775 = vmatmul.bf16.gmra.mxu0 %v7699
      %v7776 = vpop.f32.mrf.mxu0
      %v7777 = vadd.f32 %v7562, %v7776
      %v7778 = vpop.f32.mrf.mxu0
      %v7779 = vadd.f32 %v7562, %v7778
      %7780 = vmatmul.bf16.gmra.mxu0 %v7702
      %v7781 = vpop.f32.mrf.mxu0
      %v7782 = vadd.f32 %v7562, %v7781
      %v7783 = vpop.f32.mrf.mxu0
      %v7784 = vadd.f32 %v7562, %v7783
      %7785 = vmatmul.bf16.gmra.mxu0 %v7705
      %v7786 = vpop.f32.mrf.mxu0
      %v7787 = vadd.f32 %v7562, %v7786
      %v7788 = vpop.f32.mrf.mxu0
      %v7789 = vadd.f32 %v7562, %v7788
      %7790 = vmatmul.bf16.gmra.mxu0 %v7708
      %v7791 = vpop.f32.mrf.mxu0
      %v7792 = vadd.f32 %v7562, %v7791
      %v7793 = vpop.f32.mrf.mxu0
      %v7794 = vadd.f32 %v7562, %v7793
      %7795 = vmatmul.bf16.gmra.mxu0 %v7711
      %v7796 = vpop.f32.mrf.mxu0
      %v7797 = vadd.f32 %v7562, %v7796
      %v7798 = vpop.f32.mrf.mxu0
      %v7799 = vadd.f32 %v7562, %v7798
      %7800 = vmatmul.bf16.gmra.mxu0 %v7714
      %v7801 = vpop.f32.mrf.mxu0
      %v7802 = vadd.f32 %v7562, %v7801
      %v7803 = vpop.f32.mrf.mxu0
      %v7804 = vadd.f32 %v7562, %v7803
      %7805 = vmatmul.bf16.gmra.mxu0 %v7717
      %v7806 = vpop.f32.mrf.mxu0
      %v7807 = vadd.f32 %v7562, %v7806
      %v7808 = vpop.f32.mrf.mxu0
      %v7809 = vadd.f32 %v7562, %v7808
      %7810 = vdwg.mxu0
      %v7811 = vmax.f32 %v7732, 0.0
      %v7812 = vmax.f32 %v7734, 0.0
      %v7813 = vmax.f32 %v7737, 0.0
      %v7814 = vmax.f32 %v7739, 0.0
      %v7815 = vmax.f32 %v7742, 0.0
      %v7816 = vmax.f32 %v7744, 0.0
      %v7817 = vmax.f32 %v7747, 0.0
      %v7818 = vmax.f32 %v7749, 0.0
      %v7819 = vmax.f32 %v7752, 0.0
      %v7820 = vmax.f32 %v7754, 0.0
      %v7821 = vmax.f32 %v7757, 0.0
      %v7822 = vmax.f32 %v7759, 0.0
      %v7823 = vmax.f32 %v7762, 0.0
      %v7824 = vmax.f32 %v7764, 0.0
      %v7825 = vmax.f32 %v7767, 0.0
      %v7826 = vmax.f32 %v7769, 0.0
      %v7827 = vmax.f32 %v7772, 0.0
      %v7828 = vmax.f32 %v7774, 0.0
      %v7829 = vmax.f32 %v7777, 0.0
      %v7830 = vmax.f32 %v7779, 0.0
      %v7831 = vmax.f32 %v7782, 0.0
      %v7832 = vmax.f32 %v7784, 0.0
      %v7833 = vmax.f32 %v7787, 0.0
      %v7834 = vmax.f32 %v7789, 0.0
      %v7835 = vmax.f32 %v7792, 0.0
      %v7836 = vmax.f32 %v7794, 0.0
      %v7837 = vmax.f32 %v7797, 0.0
      %v7838 = vmax.f32 %v7799, 0.0
      %v7839 = vmax.f32 %v7802, 0.0
      %v7840 = vmax.f32 %v7804, 0.0
      %v7841 = vmax.f32 %v7807, 0.0
      %v7842 = vmax.f32 %v7809, 0.0
      %7875 = vrot.lane.b32.xlu0 %v7811, 16
      %v7876 = vpop.permute.xlu0 %7875
      %7877 = vrot.lane.b32.xlu0 %v7812, 16
      %v7878 = vpop.permute.xlu0 %7877
      %7879 = vrot.lane.b32.xlu0 %v7813, 16
      %v7880 = vpop.permute.xlu0 %7879
      %7881 = vrot.lane.b32.xlu0 %v7814, 16
      %v7882 = vpop.permute.xlu0 %7881
      %7883 = vrot.lane.b32.xlu0 %v7815, 16
      %v7884 = vpop.permute.xlu0 %7883
      %7885 = vrot.lane.b32.xlu0 %v7816, 16
      %v7886 = vpop.permute.xlu0 %7885
      %7887 = vrot.lane.b32.xlu0 %v7817, 16
      %v7888 = vpop.permute.xlu0 %7887
      %7889 = vrot.lane.b32.xlu0 %v7818, 16
      %v7890 = vpop.permute.xlu0 %7889
      %7891 = vrot.lane.b32.xlu0 %v7819, 16
      %v7892 = vpop.permute.xlu0 %7891
      %7893 = vrot.lane.b32.xlu0 %v7820, 16
      %v7894 = vpop.permute.xlu0 %7893
      %7895 = vrot.lane.b32.xlu0 %v7821, 16
      %v7896 = vpop.permute.xlu0 %7895
      %7897 = vrot.lane.b32.xlu0 %v7822, 16
      %v7898 = vpop.permute.xlu0 %7897
      %7899 = vrot.lane.b32.xlu0 %v7823, 16
      %v7900 = vpop.permute.xlu0 %7899
      %7901 = vrot.lane.b32.xlu0 %v7824, 16
      %v7902 = vpop.permute.xlu0 %7901
      %7903 = vrot.lane.b32.xlu0 %v7825, 16
      %v7904 = vpop.permute.xlu0 %7903
      %7905 = vrot.lane.b32.xlu0 %v7826, 16
      %v7906 = vpop.permute.xlu0 %7905
      %7907 = vrot.lane.b32.xlu0 %v7827, 16
      %v7908 = vpop.permute.xlu0 %7907
      %7909 = vrot.lane.b32.xlu0 %v7828, 16
      %v7910 = vpop.permute.xlu0 %7909
      %7911 = vrot.lane.b32.xlu0 %v7829, 16
      %v7912 = vpop.permute.xlu0 %7911
      %7913 = vrot.lane.b32.xlu0 %v7830, 16
      %v7914 = vpop.permute.xlu0 %7913
      %7915 = vrot.lane.b32.xlu0 %v7831, 16
      %v7916 = vpop.permute.xlu0 %7915
      %7917 = vrot.lane.b32.xlu0 %v7832, 16
      %v7918 = vpop.permute.xlu0 %7917
      %7919 = vrot.lane.b32.xlu0 %v7833, 16
      %v7920 = vpop.permute.xlu0 %7919
      %7921 = vrot.lane.b32.xlu0 %v7834, 16
      %v7922 = vpop.permute.xlu0 %7921
      %7923 = vrot.lane.b32.xlu0 %v7835, 16
      %v7924 = vpop.permute.xlu0 %7923
      %7925 = vrot.lane.b32.xlu0 %v7836, 16
      %v7926 = vpop.permute.xlu0 %7925
      %7927 = vrot.lane.b32.xlu0 %v7837, 16
      %v7928 = vpop.permute.xlu0 %7927
      %7929 = vrot.lane.b32.xlu0 %v7838, 16
      %v7930 = vpop.permute.xlu0 %7929
      %7931 = vrot.lane.b32.xlu0 %v7839, 16
      %v7932 = vpop.permute.xlu0 %7931
      %7933 = vrot.lane.b32.xlu0 %v7840, 16
      %v7934 = vpop.permute.xlu0 %7933
      %7935 = vrot.lane.b32.xlu0 %v7841, 16
      %v7936 = vpop.permute.xlu0 %7935
      %7937 = vrot.lane.b32.xlu0 %v7842, 16
      %v7938 = vpop.permute.xlu0 %7937
      %vm7971 = vcmask 195712
      %7972 = vst.msk [vmem:[#allocation4] sm:$0xff] %vm7971, %v7876
      %7973 = vst.msk [vmem:[#allocation4 + $0x8] sm:$0xff] %vm7971, %v7878
      %7974 = vst.msk [vmem:[#allocation4 + $0x10] sm:$0xff] %vm7971, %v7880
      %7975 = vst.msk [vmem:[#allocation4 + $0x18] sm:$0xff] %vm7971, %v7882
      %7976 = vst.msk [vmem:[#allocation4 + $0x20] sm:$0xff] %vm7971, %v7884
      %7977 = vst.msk [vmem:[#allocation4 + $0x28] sm:$0xff] %vm7971, %v7886
      %7978 = vst.msk [vmem:[#allocation4 + $0x30] sm:$0xff] %vm7971, %v7888
      %7979 = vst.msk [vmem:[#allocation4 + $0x38] sm:$0xff] %vm7971, %v7890
      %7980 = vst.msk [vmem:[#allocation4 + $0x40] sm:$0xff] %vm7971, %v7892
      %7981 = vst.msk [vmem:[#allocation4 + $0x48] sm:$0xff] %vm7971, %v7894
      %7982 = vst.msk [vmem:[#allocation4 + $0x50] sm:$0xff] %vm7971, %v7896
      %7983 = vst.msk [vmem:[#allocation4 + $0x58] sm:$0xff] %vm7971, %v7898
      %7984 = vst.msk [vmem:[#allocation4 + $0x60] sm:$0xff] %vm7971, %v7900
      %7985 = vst.msk [vmem:[#allocation4 + $0x68] sm:$0xff] %vm7971, %v7902
      %7986 = vst.msk [vmem:[#allocation4 + $0x70] sm:$0xff] %vm7971, %v7904
      %7987 = vst.msk [vmem:[#allocation4 + $0x78] sm:$0xff] %vm7971, %v7906
      %7988 = vst.msk [vmem:[#allocation4 + $0x80] sm:$0xff] %vm7971, %v7908
      %7989 = vst.msk [vmem:[#allocation4 + $0x88] sm:$0xff] %vm7971, %v7910
      %7990 = vst.msk [vmem:[#allocation4 + $0x90] sm:$0xff] %vm7971, %v7912
      %7991 = vst.msk [vmem:[#allocation4 + $0x98] sm:$0xff] %vm7971, %v7914
      %7992 = vst.msk [vmem:[#allocation4 + $0xa0] sm:$0xff] %vm7971, %v7916
      %7993 = vst.msk [vmem:[#allocation4 + $0xa8] sm:$0xff] %vm7971, %v7918
      %7994 = vst.msk [vmem:[#allocation4 + $0xb0] sm:$0xff] %vm7971, %v7920
      %7995 = vst.msk [vmem:[#allocation4 + $0xb8] sm:$0xff] %vm7971, %v7922
      %7996 = vst.msk [vmem:[#allocation4 + $0xc0] sm:$0xff] %vm7971, %v7924
      %7997 = vst.msk [vmem:[#allocation4 + $0xc8] sm:$0xff] %vm7971, %v7926
      %7998 = vst.msk [vmem:[#allocation4 + $0xd0] sm:$0xff] %vm7971, %v7928
      %7999 = vst.msk [vmem:[#allocation4 + $0xd8] sm:$0xff] %vm7971, %v7930
      %8000 = vst.msk [vmem:[#allocation4 + $0xe0] sm:$0xff] %vm7971, %v7932
      %8001 = vst.msk [vmem:[#allocation4 + $0xe8] sm:$0xff] %vm7971, %v7934
      %8002 = vst.msk [vmem:[#allocation4 + $0xf0] sm:$0xff] %vm7971, %v7936
      %8003 = vst.msk [vmem:[#allocation4 + $0xf8] sm:$0xff] %vm7971, %v7938
      %v8004 = vld [vmem:[#allocation4] sm:$0xff]
      %v8005 = vld [vmem:[#allocation4 + $0x8] sm:$0xff]
      %v8006 = vld [vmem:[#allocation4 + $0x10] sm:$0xff]
      %v8007 = vld [vmem:[#allocation4 + $0x18] sm:$0xff]
      %v8008 = vld [vmem:[#allocation4 + $0x20] sm:$0xff]
      %v8009 = vld [vmem:[#allocation4 + $0x28] sm:$0xff]
      %v8010 = vld [vmem:[#allocation4 + $0x30] sm:$0xff]
      %v8011 = vld [vmem:[#allocation4 + $0x38] sm:$0xff]
      %v8012 = vld [vmem:[#allocation4 + $0x40] sm:$0xff]
      %v8013 = vld [vmem:[#allocation4 + $0x48] sm:$0xff]
      %v8014 = vld [vmem:[#allocation4 + $0x50] sm:$0xff]
      %v8015 = vld [vmem:[#allocation4 + $0x58] sm:$0xff]
      %v8016 = vld [vmem:[#allocation4 + $0x60] sm:$0xff]
      %v8017 = vld [vmem:[#allocation4 + $0x68] sm:$0xff]
      %v8018 = vld [vmem:[#allocation4 + $0x70] sm:$0xff]
      %v8019 = vld [vmem:[#allocation4 + $0x78] sm:$0xff]
      %v8020 = vld [vmem:[#allocation4 + $0x80] sm:$0xff]
      %v8021 = vld [vmem:[#allocation4 + $0x88] sm:$0xff]
      %v8022 = vld [vmem:[#allocation4 + $0x90] sm:$0xff]
      %v8023 = vld [vmem:[#allocation4 + $0x98] sm:$0xff]
      %v8024 = vld [vmem:[#allocation4 + $0xa0] sm:$0xff]
      %v8025 = vld [vmem:[#allocation4 + $0xa8] sm:$0xff]
      %v8026 = vld [vmem:[#allocation4 + $0xb0] sm:$0xff]
      %v8027 = vld [vmem:[#allocation4 + $0xb8] sm:$0xff]
      %v8028 = vld [vmem:[#allocation4 + $0xc0] sm:$0xff]
      %v8029 = vld [vmem:[#allocation4 + $0xc8] sm:$0xff]
      %v8030 = vld [vmem:[#allocation4 + $0xd0] sm:$0xff]
      %v8031 = vld [vmem:[#allocation4 + $0xd8] sm:$0xff]
      %v8032 = vld [vmem:[#allocation4 + $0xe0] sm:$0xff]
      %v8033 = vld [vmem:[#allocation4 + $0xe8] sm:$0xff]
      %v8034 = vld [vmem:[#allocation4 + $0xf0] sm:$0xff]
      %v8035 = vld [vmem:[#allocation4 + $0xf8] sm:$0xff]
      %8068 = vrot.lane.b32.xlu0 %v8004, 112
      %v8069 = vpop.permute.xlu0 %8068
      %8070 = vrot.lane.b32.xlu0 %v8005, 112
      %v8071 = vpop.permute.xlu0 %8070
      %8072 = vrot.lane.b32.xlu0 %v8006, 112
      %v8073 = vpop.permute.xlu0 %8072
      %8074 = vrot.lane.b32.xlu0 %v8007, 112
      %v8075 = vpop.permute.xlu0 %8074
      %8076 = vrot.lane.b32.xlu0 %v8008, 112
      %v8077 = vpop.permute.xlu0 %8076
      %8078 = vrot.lane.b32.xlu0 %v8009, 112
      %v8079 = vpop.permute.xlu0 %8078
      %8080 = vrot.lane.b32.xlu0 %v8010, 112
      %v8081 = vpop.permute.xlu0 %8080
      %8082 = vrot.lane.b32.xlu0 %v8011, 112
      %v8083 = vpop.permute.xlu0 %8082
      %8084 = vrot.lane.b32.xlu0 %v8012, 112
      %v8085 = vpop.permute.xlu0 %8084
      %8086 = vrot.lane.b32.xlu0 %v8013, 112
      %v8087 = vpop.permute.xlu0 %8086
      %8088 = vrot.lane.b32.xlu0 %v8014, 112
      %v8089 = vpop.permute.xlu0 %8088
      %8090 = vrot.lane.b32.xlu0 %v8015, 112
      %v8091 = vpop.permute.xlu0 %8090
      %8092 = vrot.lane.b32.xlu0 %v8016, 112
      %v8093 = vpop.permute.xlu0 %8092
      %8094 = vrot.lane.b32.xlu0 %v8017, 112
      %v8095 = vpop.permute.xlu0 %8094
      %8096 = vrot.lane.b32.xlu0 %v8018, 112
      %v8097 = vpop.permute.xlu0 %8096
      %8098 = vrot.lane.b32.xlu0 %v8019, 112
      %v8099 = vpop.permute.xlu0 %8098
      %8100 = vrot.lane.b32.xlu0 %v8020, 112
      %v8101 = vpop.permute.xlu0 %8100
      %8102 = vrot.lane.b32.xlu0 %v8021, 112
      %v8103 = vpop.permute.xlu0 %8102
      %8104 = vrot.lane.b32.xlu0 %v8022, 112
      %v8105 = vpop.permute.xlu0 %8104
      %8106 = vrot.lane.b32.xlu0 %v8023, 112
      %v8107 = vpop.permute.xlu0 %8106
      %8108 = vrot.lane.b32.xlu0 %v8024, 112
      %v8109 = vpop.permute.xlu0 %8108
      %8110 = vrot.lane.b32.xlu0 %v8025, 112
      %v8111 = vpop.permute.xlu0 %8110
      %8112 = vrot.lane.b32.xlu0 %v8026, 112
      %v8113 = vpop.permute.xlu0 %8112
      %8114 = vrot.lane.b32.xlu0 %v8027, 112
      %v8115 = vpop.permute.xlu0 %8114
      %8116 = vrot.lane.b32.xlu0 %v8028, 112
      %v8117 = vpop.permute.xlu0 %8116
      %8118 = vrot.lane.b32.xlu0 %v8029, 112
      %v8119 = vpop.permute.xlu0 %8118
      %8120 = vrot.lane.b32.xlu0 %v8030, 112
      %v8121 = vpop.permute.xlu0 %8120
      %8122 = vrot.lane.b32.xlu0 %v8031, 112
      %v8123 = vpop.permute.xlu0 %8122
      %8124 = vrot.lane.b32.xlu0 %v8032, 112
      %v8125 = vpop.permute.xlu0 %8124
      %8126 = vrot.lane.b32.xlu0 %v8033, 112
      %v8127 = vpop.permute.xlu0 %8126
      %8128 = vrot.lane.b32.xlu0 %v8034, 112
      %v8129 = vpop.permute.xlu0 %8128
      %8130 = vrot.lane.b32.xlu0 %v8035, 112
      %v8131 = vpop.permute.xlu0 %8130
      %8164 = vst.msk [vmem:[%s584 + $0x1] sm:$0xff] %vm496, %v8069
      %8165 = vst.msk [vmem:[%s584 + $0x9] sm:$0xff] %vm496, %v8071
      %8166 = vst.msk [vmem:[%s584 + $0x19] sm:$0xff] %vm496, %v8073
      %8167 = vst.msk [vmem:[%s584 + $0x21] sm:$0xff] %vm496, %v8075
      %8168 = vst.msk [vmem:[%s584 + $0x31] sm:$0xff] %vm496, %v8077
      %8169 = vst.msk [vmem:[%s584 + $0x39] sm:$0xff] %vm496, %v8079
      %8170 = vst.msk [vmem:[%s584 + $0x49] sm:$0xff] %vm496, %v8081
      %8171 = vst.msk [vmem:[%s584 + $0x51] sm:$0xff] %vm496, %v8083
      %8172 = vst.msk [vmem:[%s584 + $0x61] sm:$0xff] %vm496, %v8085
      %8173 = vst.msk [vmem:[%s584 + $0x69] sm:$0xff] %vm496, %v8087
      %8174 = vst.msk [vmem:[%s584 + $0x79] sm:$0xff] %vm496, %v8089
      %8175 = vst.msk [vmem:[%s584 + $0x81] sm:$0xff] %vm496, %v8091
      %8176 = vst.msk [vmem:[%s584 + $0x91] sm:$0xff] %vm496, %v8093
      %8177 = vst.msk [vmem:[%s584 + $0x99] sm:$0xff] %vm496, %v8095
      %8178 = vst.msk [vmem:[%s584 + $0xa9] sm:$0xff] %vm496, %v8097
      %8179 = vst.msk [vmem:[%s584 + $0xb1] sm:$0xff] %vm496, %v8099
      %8180 = vst.msk [vmem:[%s584 + $0xc1] sm:$0xff] %vm496, %v8101
      %8181 = vst.msk [vmem:[%s584 + $0xc9] sm:$0xff] %vm496, %v8103
      %8182 = vst.msk [vmem:[%s584 + $0xd9] sm:$0xff] %vm496, %v8105
      %8183 = vst.msk [vmem:[%s584 + $0xe1] sm:$0xff] %vm496, %v8107
      %8184 = vst.msk [vmem:[%s584 + $0xf1] sm:$0xff] %vm496, %v8109
      %8185 = vst.msk [vmem:[%s584 + $0xf9] sm:$0xff] %vm496, %v8111
      %8186 = vst.msk [vmem:[%s584 + $0x109] sm:$0xff] %vm496, %v8113
      %8187 = vst.msk [vmem:[%s584 + $0x111] sm:$0xff] %vm496, %v8115
      %8188 = vst.msk [vmem:[%s584 + $0x121] sm:$0xff] %vm496, %v8117
      %8189 = vst.msk [vmem:[%s584 + $0x129] sm:$0xff] %vm496, %v8119
      %8190 = vst.msk [vmem:[%s584 + $0x139] sm:$0xff] %vm496, %v8121
      %8191 = vst.msk [vmem:[%s584 + $0x141] sm:$0xff] %vm496, %v8123
      %8192 = vst.msk [vmem:[%s584 + $0x151] sm:$0xff] %vm496, %v8125
      %8193 = vst.msk [vmem:[%s584 + $0x159] sm:$0xff] %vm496, %v8127
      %8194 = vst.msk [vmem:[%s584 + $0x169] sm:$0xff] %vm496, %v8129
      %8195 = vst.msk [vmem:[%s584 + $0x171] sm:$0xff] %vm496, %v8131
      %v8196 = vld [vmem:[#allocation2] sm:$0xff]
      %v8197 = vld [vmem:[#allocation2 + $0x8] sm:$0xff]
      %v8198 = vld [vmem:[#allocation2 + $0x18] sm:$0xff]
      %v8199 = vld [vmem:[#allocation2 + $0x20] sm:$0xff]
      %v8200 = vld [vmem:[#allocation2 + $0x30] sm:$0xff]
      %v8201 = vld [vmem:[#allocation2 + $0x38] sm:$0xff]
      %v8202 = vld [vmem:[#allocation2 + $0x48] sm:$0xff]
      %v8203 = vld [vmem:[#allocation2 + $0x50] sm:$0xff]
      %v8204 = vld [vmem:[#allocation2 + $0x60] sm:$0xff]
      %v8205 = vld [vmem:[#allocation2 + $0x68] sm:$0xff]
      %v8206 = vld [vmem:[#allocation2 + $0x78] sm:$0xff]
      %v8207 = vld [vmem:[#allocation2 + $0x80] sm:$0xff]
      %v8208 = vld [vmem:[#allocation2 + $0x90] sm:$0xff]
      %v8209 = vld [vmem:[#allocation2 + $0x98] sm:$0xff]
      %v8210 = vld [vmem:[#allocation2 + $0xa8] sm:$0xff]
      %v8211 = vld [vmem:[#allocation2 + $0xb0] sm:$0xff]
      %v8212 = vld [vmem:[#allocation2 + $0xc0] sm:$0xff]
      %v8213 = vld [vmem:[#allocation2 + $0xc8] sm:$0xff]
      %v8214 = vld [vmem:[#allocation2 + $0xd8] sm:$0xff]
      %v8215 = vld [vmem:[#allocation2 + $0xe0] sm:$0xff]
      %v8216 = vld [vmem:[#allocation2 + $0xf0] sm:$0xff]
      %v8217 = vld [vmem:[#allocation2 + $0xf8] sm:$0xff]
      %v8218 = vld [vmem:[#allocation2 + $0x108] sm:$0xff]
      %v8219 = vld [vmem:[#allocation2 + $0x110] sm:$0xff]
      %v8220 = vld [vmem:[#allocation2 + $0x120] sm:$0xff]
      %v8221 = vld [vmem:[#allocation2 + $0x128] sm:$0xff]
      %v8222 = vld [vmem:[#allocation2 + $0x138] sm:$0xff]
      %v8223 = vld [vmem:[#allocation2 + $0x140] sm:$0xff]
      %v8224 = vld [vmem:[#allocation2 + $0x150] sm:$0xff]
      %v8225 = vld [vmem:[#allocation2 + $0x158] sm:$0xff]
      %v8226 = vld [vmem:[#allocation2 + $0x168] sm:$0xff]
      %v8227 = vld [vmem:[#allocation2 + $0x170] sm:$0xff]
      %v8228 = vpack.c.bf16 %v8196, %v8196
      %v8229 = vpack.c.bf16 %v8197, %v8197
      %v8230 = vpack.c.bf16 %v8198, %v8198
      %v8231 = vpack.c.bf16 %v8199, %v8199
      %v8232 = vpack.c.bf16 %v8200, %v8200
      %v8233 = vpack.c.bf16 %v8201, %v8201
      %v8234 = vpack.c.bf16 %v8202, %v8202
      %v8235 = vpack.c.bf16 %v8203, %v8203
      %v8236 = vpack.c.bf16 %v8204, %v8204
      %v8237 = vpack.c.bf16 %v8205, %v8205
      %v8238 = vpack.c.bf16 %v8206, %v8206
      %v8239 = vpack.c.bf16 %v8207, %v8207
      %v8240 = vpack.c.bf16 %v8208, %v8208
      %v8241 = vpack.c.bf16 %v8209, %v8209
      %v8242 = vpack.c.bf16 %v8210, %v8210
      %v8243 = vpack.c.bf16 %v8211, %v8211
      %v8244 = vpack.c.bf16 %v8212, %v8212
      %v8245 = vpack.c.bf16 %v8213, %v8213
      %v8246 = vpack.c.bf16 %v8214, %v8214
      %v8247 = vpack.c.bf16 %v8215, %v8215
      %v8248 = vpack.c.bf16 %v8216, %v8216
      %v8249 = vpack.c.bf16 %v8217, %v8217
      %v8250 = vpack.c.bf16 %v8218, %v8218
      %v8251 = vpack.c.bf16 %v8219, %v8219
      %v8252 = vpack.c.bf16 %v8220, %v8220
      %v8253 = vpack.c.bf16 %v8221, %v8221
      %v8254 = vpack.c.bf16 %v8222, %v8222
      %v8255 = vpack.c.bf16 %v8223, %v8223
      %v8256 = vpack.c.bf16 %v8224, %v8224
      %v8257 = vpack.c.bf16 %v8225, %v8225
      %v8258 = vpack.c.bf16 %v8226, %v8226
      %v8259 = vpack.c.bf16 %v8227, %v8227
      %8260 = vst.msk [vmem:[#allocation3] sm:$0xf] %vm681, %v8228
      %8261 = vst.msk [vmem:[#allocation3 + $0x4] sm:$0xf] %vm681, %v8229
      %8262 = vst.msk [vmem:[#allocation3 + $0x8] sm:$0xf] %vm681, %v8230
      %8263 = vst.msk [vmem:[#allocation3 + $0xc] sm:$0xf] %vm681, %v8231
      %8264 = vst.msk [vmem:[#allocation3 + $0x10] sm:$0xf] %vm681, %v8232
      %8265 = vst.msk [vmem:[#allocation3 + $0x14] sm:$0xf] %vm681, %v8233
      %8266 = vst.msk [vmem:[#allocation3 + $0x18] sm:$0xf] %vm681, %v8234
      %8267 = vst.msk [vmem:[#allocation3 + $0x1c] sm:$0xf] %vm681, %v8235
      %8268 = vst.msk [vmem:[#allocation3 + $0x20] sm:$0xf] %vm681, %v8236
      %8269 = vst.msk [vmem:[#allocation3 + $0x24] sm:$0xf] %vm681, %v8237
      %8270 = vst.msk [vmem:[#allocation3 + $0x28] sm:$0xf] %vm681, %v8238
      %8271 = vst.msk [vmem:[#allocation3 + $0x2c] sm:$0xf] %vm681, %v8239
      %8272 = vst.msk [vmem:[#allocation3 + $0x30] sm:$0xf] %vm681, %v8240
      %8273 = vst.msk [vmem:[#allocation3 + $0x34] sm:$0xf] %vm681, %v8241
      %8274 = vst.msk [vmem:[#allocation3 + $0x38] sm:$0xf] %vm681, %v8242
      %8275 = vst.msk [vmem:[#allocation3 + $0x3c] sm:$0xf] %vm681, %v8243
      %8276 = vst.msk [vmem:[#allocation3 + $0x40] sm:$0xf] %vm681, %v8244
      %8277 = vst.msk [vmem:[#allocation3 + $0x44] sm:$0xf] %vm681, %v8245
      %8278 = vst.msk [vmem:[#allocation3 + $0x48] sm:$0xf] %vm681, %v8246
      %8279 = vst.msk [vmem:[#allocation3 + $0x4c] sm:$0xf] %vm681, %v8247
      %8280 = vst.msk [vmem:[#allocation3 + $0x50] sm:$0xf] %vm681, %v8248
      %8281 = vst.msk [vmem:[#allocation3 + $0x54] sm:$0xf] %vm681, %v8249
      %8282 = vst.msk [vmem:[#allocation3 + $0x58] sm:$0xf] %vm681, %v8250
      %8283 = vst.msk [vmem:[#allocation3 + $0x5c] sm:$0xf] %vm681, %v8251
      %8284 = vst.msk [vmem:[#allocation3 + $0x60] sm:$0xf] %vm681, %v8252
      %8285 = vst.msk [vmem:[#allocation3 + $0x64] sm:$0xf] %vm681, %v8253
      %8286 = vst.msk [vmem:[#allocation3 + $0x68] sm:$0xf] %vm681, %v8254
      %8287 = vst.msk [vmem:[#allocation3 + $0x6c] sm:$0xf] %vm681, %v8255
      %8288 = vst.msk [vmem:[#allocation3 + $0x70] sm:$0xf] %vm681, %v8256
      %8289 = vst.msk [vmem:[#allocation3 + $0x74] sm:$0xf] %vm681, %v8257
      %8290 = vst.msk [vmem:[#allocation3 + $0x78] sm:$0xf] %vm681, %v8258
      %8291 = vst.msk [vmem:[#allocation3 + $0x7c] sm:$0xf] %vm681, %v8259
      %v8292 = vld [vmem:[#allocation2 + $0x1] sm:$0xff]
      %v8293 = vld [vmem:[#allocation2 + $0x9] sm:$0xff]
      %v8294 = vld [vmem:[#allocation2 + $0x19] sm:$0xff]
      %v8295 = vld [vmem:[#allocation2 + $0x21] sm:$0xff]
      %v8296 = vld [vmem:[#allocation2 + $0x31] sm:$0xff]
      %v8297 = vld [vmem:[#allocation2 + $0x39] sm:$0xff]
      %v8298 = vld [vmem:[#allocation2 + $0x49] sm:$0xff]
      %v8299 = vld [vmem:[#allocation2 + $0x51] sm:$0xff]
      %v8300 = vld [vmem:[#allocation2 + $0x61] sm:$0xff]
      %v8301 = vld [vmem:[#allocation2 + $0x69] sm:$0xff]
      %v8302 = vld [vmem:[#allocation2 + $0x79] sm:$0xff]
      %v8303 = vld [vmem:[#allocation2 + $0x81] sm:$0xff]
      %v8304 = vld [vmem:[#allocation2 + $0x91] sm:$0xff]
      %v8305 = vld [vmem:[#allocation2 + $0x99] sm:$0xff]
      %v8306 = vld [vmem:[#allocation2 + $0xa9] sm:$0xff]
      %v8307 = vld [vmem:[#allocation2 + $0xb1] sm:$0xff]
      %v8308 = vld [vmem:[#allocation2 + $0xc1] sm:$0xff]
      %v8309 = vld [vmem:[#allocation2 + $0xc9] sm:$0xff]
      %v8310 = vld [vmem:[#allocation2 + $0xd9] sm:$0xff]
      %v8311 = vld [vmem:[#allocation2 + $0xe1] sm:$0xff]
      %v8312 = vld [vmem:[#allocation2 + $0xf1] sm:$0xff]
      %v8313 = vld [vmem:[#allocation2 + $0xf9] sm:$0xff]
      %v8314 = vld [vmem:[#allocation2 + $0x109] sm:$0xff]
      %v8315 = vld [vmem:[#allocation2 + $0x111] sm:$0xff]
      %v8316 = vld [vmem:[#allocation2 + $0x121] sm:$0xff]
      %v8317 = vld [vmem:[#allocation2 + $0x129] sm:$0xff]
      %v8318 = vld [vmem:[#allocation2 + $0x139] sm:$0xff]
      %v8319 = vld [vmem:[#allocation2 + $0x141] sm:$0xff]
      %v8320 = vld [vmem:[#allocation2 + $0x151] sm:$0xff]
      %v8321 = vld [vmem:[#allocation2 + $0x159] sm:$0xff]
      %v8322 = vld [vmem:[#allocation2 + $0x169] sm:$0xff]
      %v8323 = vld [vmem:[#allocation2 + $0x171] sm:$0xff]
      %v8324 = vpack.c.bf16 %v8292, %v8292
      %v8325 = vpack.c.bf16 %v8293, %v8293
      %v8326 = vpack.c.bf16 %v8294, %v8294
      %v8327 = vpack.c.bf16 %v8295, %v8295
      %v8328 = vpack.c.bf16 %v8296, %v8296
      %v8329 = vpack.c.bf16 %v8297, %v8297
      %v8330 = vpack.c.bf16 %v8298, %v8298
      %v8331 = vpack.c.bf16 %v8299, %v8299
      %v8332 = vpack.c.bf16 %v8300, %v8300
      %v8333 = vpack.c.bf16 %v8301, %v8301
      %v8334 = vpack.c.bf16 %v8302, %v8302
      %v8335 = vpack.c.bf16 %v8303, %v8303
      %v8336 = vpack.c.bf16 %v8304, %v8304
      %v8337 = vpack.c.bf16 %v8305, %v8305
      %v8338 = vpack.c.bf16 %v8306, %v8306
      %v8339 = vpack.c.bf16 %v8307, %v8307
      %v8340 = vpack.c.bf16 %v8308, %v8308
      %v8341 = vpack.c.bf16 %v8309, %v8309
      %v8342 = vpack.c.bf16 %v8310, %v8310
      %v8343 = vpack.c.bf16 %v8311, %v8311
      %v8344 = vpack.c.bf16 %v8312, %v8312
      %v8345 = vpack.c.bf16 %v8313, %v8313
      %v8346 = vpack.c.bf16 %v8314, %v8314
      %v8347 = vpack.c.bf16 %v8315, %v8315
      %v8348 = vpack.c.bf16 %v8316, %v8316
      %v8349 = vpack.c.bf16 %v8317, %v8317
      %v8350 = vpack.c.bf16 %v8318, %v8318
      %v8351 = vpack.c.bf16 %v8319, %v8319
      %v8352 = vpack.c.bf16 %v8320, %v8320
      %v8353 = vpack.c.bf16 %v8321, %v8321
      %v8354 = vpack.c.bf16 %v8322, %v8322
      %v8355 = vpack.c.bf16 %v8323, %v8323
      %8388 = vrot.lane.b32.xlu0 %v8324, 8
      %v8389 = vpop.permute.xlu0 %8388
      %8390 = vrot.lane.b32.xlu0 %v8325, 8
      %v8391 = vpop.permute.xlu0 %8390
      %8392 = vrot.lane.b32.xlu0 %v8326, 8
      %v8393 = vpop.permute.xlu0 %8392
      %8394 = vrot.lane.b32.xlu0 %v8327, 8
      %v8395 = vpop.permute.xlu0 %8394
      %8396 = vrot.lane.b32.xlu0 %v8328, 8
      %v8397 = vpop.permute.xlu0 %8396
      %8398 = vrot.lane.b32.xlu0 %v8329, 8
      %v8399 = vpop.permute.xlu0 %8398
      %8400 = vrot.lane.b32.xlu0 %v8330, 8
      %v8401 = vpop.permute.xlu0 %8400
      %8402 = vrot.lane.b32.xlu0 %v8331, 8
      %v8403 = vpop.permute.xlu0 %8402
      %8404 = vrot.lane.b32.xlu0 %v8332, 8
      %v8405 = vpop.permute.xlu0 %8404
      %8406 = vrot.lane.b32.xlu0 %v8333, 8
      %v8407 = vpop.permute.xlu0 %8406
      %8408 = vrot.lane.b32.xlu0 %v8334, 8
      %v8409 = vpop.permute.xlu0 %8408
      %8410 = vrot.lane.b32.xlu0 %v8335, 8
      %v8411 = vpop.permute.xlu0 %8410
      %8412 = vrot.lane.b32.xlu0 %v8336, 8
      %v8413 = vpop.permute.xlu0 %8412
      %8414 = vrot.lane.b32.xlu0 %v8337, 8
      %v8415 = vpop.permute.xlu0 %8414
      %8416 = vrot.lane.b32.xlu0 %v8338, 8
      %v8417 = vpop.permute.xlu0 %8416
      %8418 = vrot.lane.b32.xlu0 %v8339, 8
      %v8419 = vpop.permute.xlu0 %8418
      %8420 = vrot.lane.b32.xlu0 %v8340, 8
      %v8421 = vpop.permute.xlu0 %8420
      %8422 = vrot.lane.b32.xlu0 %v8341, 8
      %v8423 = vpop.permute.xlu0 %8422
      %8424 = vrot.lane.b32.xlu0 %v8342, 8
      %v8425 = vpop.permute.xlu0 %8424
      %8426 = vrot.lane.b32.xlu0 %v8343, 8
      %v8427 = vpop.permute.xlu0 %8426
      %8428 = vrot.lane.b32.xlu0 %v8344, 8
      %v8429 = vpop.permute.xlu0 %8428
      %8430 = vrot.lane.b32.xlu0 %v8345, 8
      %v8431 = vpop.permute.xlu0 %8430
      %8432 = vrot.lane.b32.xlu0 %v8346, 8
      %v8433 = vpop.permute.xlu0 %8432
      %8434 = vrot.lane.b32.xlu0 %v8347, 8
      %v8435 = vpop.permute.xlu0 %8434
      %8436 = vrot.lane.b32.xlu0 %v8348, 8
      %v8437 = vpop.permute.xlu0 %8436
      %8438 = vrot.lane.b32.xlu0 %v8349, 8
      %v8439 = vpop.permute.xlu0 %8438
      %8440 = vrot.lane.b32.xlu0 %v8350, 8
      %v8441 = vpop.permute.xlu0 %8440
      %8442 = vrot.lane.b32.xlu0 %v8351, 8
      %v8443 = vpop.permute.xlu0 %8442
      %8444 = vrot.lane.b32.xlu0 %v8352, 8
      %v8445 = vpop.permute.xlu0 %8444
      %8446 = vrot.lane.b32.xlu0 %v8353, 8
      %v8447 = vpop.permute.xlu0 %8446
      %8448 = vrot.lane.b32.xlu0 %v8354, 8
      %v8449 = vpop.permute.xlu0 %8448
      %8450 = vrot.lane.b32.xlu0 %v8355, 8
      %v8451 = vpop.permute.xlu0 %8450
      %8484 = vst.msk [vmem:[#allocation3] sm:$0xf] %vm906, %v8389
      %8485 = vst.msk [vmem:[#allocation3 + $0x4] sm:$0xf] %vm906, %v8391
      %8486 = vst.msk [vmem:[#allocation3 + $0x8] sm:$0xf] %vm906, %v8393
      %8487 = vst.msk [vmem:[#allocation3 + $0xc] sm:$0xf] %vm906, %v8395
      %8488 = vst.msk [vmem:[#allocation3 + $0x10] sm:$0xf] %vm906, %v8397
      %8489 = vst.msk [vmem:[#allocation3 + $0x14] sm:$0xf] %vm906, %v8399
      %8490 = vst.msk [vmem:[#allocation3 + $0x18] sm:$0xf] %vm906, %v8401
      %8491 = vst.msk [vmem:[#allocation3 + $0x1c] sm:$0xf] %vm906, %v8403
      %8492 = vst.msk [vmem:[#allocation3 + $0x20] sm:$0xf] %vm906, %v8405
      %8493 = vst.msk [vmem:[#allocation3 + $0x24] sm:$0xf] %vm906, %v8407
      %8494 = vst.msk [vmem:[#allocation3 + $0x28] sm:$0xf] %vm906, %v8409
      %8495 = vst.msk [vmem:[#allocation3 + $0x2c] sm:$0xf] %vm906, %v8411
      %8496 = vst.msk [vmem:[#allocation3 + $0x30] sm:$0xf] %vm906, %v8413
      %8497 = vst.msk [vmem:[#allocation3 + $0x34] sm:$0xf] %vm906, %v8415
      %8498 = vst.msk [vmem:[#allocation3 + $0x38] sm:$0xf] %vm906, %v8417
      %8499 = vst.msk [vmem:[#allocation3 + $0x3c] sm:$0xf] %vm906, %v8419
      %8500 = vst.msk [vmem:[#allocation3 + $0x40] sm:$0xf] %vm906, %v8421
      %8501 = vst.msk [vmem:[#allocation3 + $0x44] sm:$0xf] %vm906, %v8423
      %8502 = vst.msk [vmem:[#allocation3 + $0x48] sm:$0xf] %vm906, %v8425
      %8503 = vst.msk [vmem:[#allocation3 + $0x4c] sm:$0xf] %vm906, %v8427
      %8504 = vst.msk [vmem:[#allocation3 + $0x50] sm:$0xf] %vm906, %v8429
      %8505 = vst.msk [vmem:[#allocation3 + $0x54] sm:$0xf] %vm906, %v8431
      %8506 = vst.msk [vmem:[#allocation3 + $0x58] sm:$0xf] %vm906, %v8433
      %8507 = vst.msk [vmem:[#allocation3 + $0x5c] sm:$0xf] %vm906, %v8435
      %8508 = vst.msk [vmem:[#allocation3 + $0x60] sm:$0xf] %vm906, %v8437
      %8509 = vst.msk [vmem:[#allocation3 + $0x64] sm:$0xf] %vm906, %v8439
      %8510 = vst.msk [vmem:[#allocation3 + $0x68] sm:$0xf] %vm906, %v8441
      %8511 = vst.msk [vmem:[#allocation3 + $0x6c] sm:$0xf] %vm906, %v8443
      %8512 = vst.msk [vmem:[#allocation3 + $0x70] sm:$0xf] %vm906, %v8445
      %8513 = vst.msk [vmem:[#allocation3 + $0x74] sm:$0xf] %vm906, %v8447
      %8514 = vst.msk [vmem:[#allocation3 + $0x78] sm:$0xf] %vm906, %v8449
      %8515 = vst.msk [vmem:[#allocation3 + $0x7c] sm:$0xf] %vm906, %v8451
      %v8516 = vld [vmem:[#allocation2 + $0x2] sm:$0xff]
      %v8517 = vld [vmem:[#allocation2 + $0xa] sm:$0xff]
      %v8518 = vld [vmem:[#allocation2 + $0x1a] sm:$0xff]
      %v8519 = vld [vmem:[#allocation2 + $0x22] sm:$0xff]
      %v8520 = vld [vmem:[#allocation2 + $0x32] sm:$0xff]
      %v8521 = vld [vmem:[#allocation2 + $0x3a] sm:$0xff]
      %v8522 = vld [vmem:[#allocation2 + $0x4a] sm:$0xff]
      %v8523 = vld [vmem:[#allocation2 + $0x52] sm:$0xff]
      %v8524 = vld [vmem:[#allocation2 + $0x62] sm:$0xff]
      %v8525 = vld [vmem:[#allocation2 + $0x6a] sm:$0xff]
      %v8526 = vld [vmem:[#allocation2 + $0x7a] sm:$0xff]
      %v8527 = vld [vmem:[#allocation2 + $0x82] sm:$0xff]
      %v8528 = vld [vmem:[#allocation2 + $0x92] sm:$0xff]
      %v8529 = vld [vmem:[#allocation2 + $0x9a] sm:$0xff]
      %v8530 = vld [vmem:[#allocation2 + $0xaa] sm:$0xff]
      %v8531 = vld [vmem:[#allocation2 + $0xb2] sm:$0xff]
      %v8532 = vld [vmem:[#allocation2 + $0xc2] sm:$0xff]
      %v8533 = vld [vmem:[#allocation2 + $0xca] sm:$0xff]
      %v8534 = vld [vmem:[#allocation2 + $0xda] sm:$0xff]
      %v8535 = vld [vmem:[#allocation2 + $0xe2] sm:$0xff]
      %v8536 = vld [vmem:[#allocation2 + $0xf2] sm:$0xff]
      %v8537 = vld [vmem:[#allocation2 + $0xfa] sm:$0xff]
      %v8538 = vld [vmem:[#allocation2 + $0x10a] sm:$0xff]
      %v8539 = vld [vmem:[#allocation2 + $0x112] sm:$0xff]
      %v8540 = vld [vmem:[#allocation2 + $0x122] sm:$0xff]
      %v8541 = vld [vmem:[#allocation2 + $0x12a] sm:$0xff]
      %v8542 = vld [vmem:[#allocation2 + $0x13a] sm:$0xff]
      %v8543 = vld [vmem:[#allocation2 + $0x142] sm:$0xff]
      %v8544 = vld [vmem:[#allocation2 + $0x152] sm:$0xff]
      %v8545 = vld [vmem:[#allocation2 + $0x15a] sm:$0xff]
      %v8546 = vld [vmem:[#allocation2 + $0x16a] sm:$0xff]
      %v8547 = vld [vmem:[#allocation2 + $0x172] sm:$0xff]
      %v8548 = vpack.c.bf16 %v8516, %v8516
      %v8549 = vpack.c.bf16 %v8517, %v8517
      %v8550 = vpack.c.bf16 %v8518, %v8518
      %v8551 = vpack.c.bf16 %v8519, %v8519
      %v8552 = vpack.c.bf16 %v8520, %v8520
      %v8553 = vpack.c.bf16 %v8521, %v8521
      %v8554 = vpack.c.bf16 %v8522, %v8522
      %v8555 = vpack.c.bf16 %v8523, %v8523
      %v8556 = vpack.c.bf16 %v8524, %v8524
      %v8557 = vpack.c.bf16 %v8525, %v8525
      %v8558 = vpack.c.bf16 %v8526, %v8526
      %v8559 = vpack.c.bf16 %v8527, %v8527
      %v8560 = vpack.c.bf16 %v8528, %v8528
      %v8561 = vpack.c.bf16 %v8529, %v8529
      %v8562 = vpack.c.bf16 %v8530, %v8530
      %v8563 = vpack.c.bf16 %v8531, %v8531
      %v8564 = vpack.c.bf16 %v8532, %v8532
      %v8565 = vpack.c.bf16 %v8533, %v8533
      %v8566 = vpack.c.bf16 %v8534, %v8534
      %v8567 = vpack.c.bf16 %v8535, %v8535
      %v8568 = vpack.c.bf16 %v8536, %v8536
      %v8569 = vpack.c.bf16 %v8537, %v8537
      %v8570 = vpack.c.bf16 %v8538, %v8538
      %v8571 = vpack.c.bf16 %v8539, %v8539
      %v8572 = vpack.c.bf16 %v8540, %v8540
      %v8573 = vpack.c.bf16 %v8541, %v8541
      %v8574 = vpack.c.bf16 %v8542, %v8542
      %v8575 = vpack.c.bf16 %v8543, %v8543
      %v8576 = vpack.c.bf16 %v8544, %v8544
      %v8577 = vpack.c.bf16 %v8545, %v8545
      %v8578 = vpack.c.bf16 %v8546, %v8546
      %v8579 = vpack.c.bf16 %v8547, %v8547
      %8612 = vrot.lane.b32.xlu0 %v8548, 16
      %v8613 = vpop.permute.xlu0 %8612
      %8614 = vrot.lane.b32.xlu0 %v8549, 16
      %v8615 = vpop.permute.xlu0 %8614
      %8616 = vrot.lane.b32.xlu0 %v8550, 16
      %v8617 = vpop.permute.xlu0 %8616
      %8618 = vrot.lane.b32.xlu0 %v8551, 16
      %v8619 = vpop.permute.xlu0 %8618
      %8620 = vrot.lane.b32.xlu0 %v8552, 16
      %v8621 = vpop.permute.xlu0 %8620
      %8622 = vrot.lane.b32.xlu0 %v8553, 16
      %v8623 = vpop.permute.xlu0 %8622
      %8624 = vrot.lane.b32.xlu0 %v8554, 16
      %v8625 = vpop.permute.xlu0 %8624
      %8626 = vrot.lane.b32.xlu0 %v8555, 16
      %v8627 = vpop.permute.xlu0 %8626
      %8628 = vrot.lane.b32.xlu0 %v8556, 16
      %v8629 = vpop.permute.xlu0 %8628
      %8630 = vrot.lane.b32.xlu0 %v8557, 16
      %v8631 = vpop.permute.xlu0 %8630
      %8632 = vrot.lane.b32.xlu0 %v8558, 16
      %v8633 = vpop.permute.xlu0 %8632
      %8634 = vrot.lane.b32.xlu0 %v8559, 16
      %v8635 = vpop.permute.xlu0 %8634
      %8636 = vrot.lane.b32.xlu0 %v8560, 16
      %v8637 = vpop.permute.xlu0 %8636
      %8638 = vrot.lane.b32.xlu0 %v8561, 16
      %v8639 = vpop.permute.xlu0 %8638
      %8640 = vrot.lane.b32.xlu0 %v8562, 16
      %v8641 = vpop.permute.xlu0 %8640
      %8642 = vrot.lane.b32.xlu0 %v8563, 16
      %v8643 = vpop.permute.xlu0 %8642
      %8644 = vrot.lane.b32.xlu0 %v8564, 16
      %v8645 = vpop.permute.xlu0 %8644
      %8646 = vrot.lane.b32.xlu0 %v8565, 16
      %v8647 = vpop.permute.xlu0 %8646
      %8648 = vrot.lane.b32.xlu0 %v8566, 16
      %v8649 = vpop.permute.xlu0 %8648
      %8650 = vrot.lane.b32.xlu0 %v8567, 16
      %v8651 = vpop.permute.xlu0 %8650
      %8652 = vrot.lane.b32.xlu0 %v8568, 16
      %v8653 = vpop.permute.xlu0 %8652
      %8654 = vrot.lane.b32.xlu0 %v8569, 16
      %v8655 = vpop.permute.xlu0 %8654
      %8656 = vrot.lane.b32.xlu0 %v8570, 16
      %v8657 = vpop.permute.xlu0 %8656
      %8658 = vrot.lane.b32.xlu0 %v8571, 16
      %v8659 = vpop.permute.xlu0 %8658
      %8660 = vrot.lane.b32.xlu0 %v8572, 16
      %v8661 = vpop.permute.xlu0 %8660
      %8662 = vrot.lane.b32.xlu0 %v8573, 16
      %v8663 = vpop.permute.xlu0 %8662
      %8664 = vrot.lane.b32.xlu0 %v8574, 16
      %v8665 = vpop.permute.xlu0 %8664
      %8666 = vrot.lane.b32.xlu0 %v8575, 16
      %v8667 = vpop.permute.xlu0 %8666
      %8668 = vrot.lane.b32.xlu0 %v8576, 16
      %v8669 = vpop.permute.xlu0 %8668
      %8670 = vrot.lane.b32.xlu0 %v8577, 16
      %v8671 = vpop.permute.xlu0 %8670
      %8672 = vrot.lane.b32.xlu0 %v8578, 16
      %v8673 = vpop.permute.xlu0 %8672
      %8674 = vrot.lane.b32.xlu0 %v8579, 16
      %v8675 = vpop.permute.xlu0 %8674
      %8708 = vst.msk [vmem:[#allocation3] sm:$0xf] %vm1131, %v8613
      %8709 = vst.msk [vmem:[#allocation3 + $0x4] sm:$0xf] %vm1131, %v8615
      %8710 = vst.msk [vmem:[#allocation3 + $0x8] sm:$0xf] %vm1131, %v8617
      %8711 = vst.msk [vmem:[#allocation3 + $0xc] sm:$0xf] %vm1131, %v8619
      %8712 = vst.msk [vmem:[#allocation3 + $0x10] sm:$0xf] %vm1131, %v8621
      %8713 = vst.msk [vmem:[#allocation3 + $0x14] sm:$0xf] %vm1131, %v8623
      %8714 = vst.msk [vmem:[#allocation3 + $0x18] sm:$0xf] %vm1131, %v8625
      %8715 = vst.msk [vmem:[#allocation3 + $0x1c] sm:$0xf] %vm1131, %v8627
      %8716 = vst.msk [vmem:[#allocation3 + $0x20] sm:$0xf] %vm1131, %v8629
      %8717 = vst.msk [vmem:[#allocation3 + $0x24] sm:$0xf] %vm1131, %v8631
      %8718 = vst.msk [vmem:[#allocation3 + $0x28] sm:$0xf] %vm1131, %v8633
      %8719 = vst.msk [vmem:[#allocation3 + $0x2c] sm:$0xf] %vm1131, %v8635
      %8720 = vst.msk [vmem:[#allocation3 + $0x30] sm:$0xf] %vm1131, %v8637
      %8721 = vst.msk [vmem:[#allocation3 + $0x34] sm:$0xf] %vm1131, %v8639
      %8722 = vst.msk [vmem:[#allocation3 + $0x38] sm:$0xf] %vm1131, %v8641
      %8723 = vst.msk [vmem:[#allocation3 + $0x3c] sm:$0xf] %vm1131, %v8643
      %8724 = vst.msk [vmem:[#allocation3 + $0x40] sm:$0xf] %vm1131, %v8645
      %8725 = vst.msk [vmem:[#allocation3 + $0x44] sm:$0xf] %vm1131, %v8647
      %8726 = vst.msk [vmem:[#allocation3 + $0x48] sm:$0xf] %vm1131, %v8649
      %8727 = vst.msk [vmem:[#allocation3 + $0x4c] sm:$0xf] %vm1131, %v8651
      %8728 = vst.msk [vmem:[#allocation3 + $0x50] sm:$0xf] %vm1131, %v8653
      %8729 = vst.msk [vmem:[#allocation3 + $0x54] sm:$0xf] %vm1131, %v8655
      %8730 = vst.msk [vmem:[#allocation3 + $0x58] sm:$0xf] %vm1131, %v8657
      %8731 = vst.msk [vmem:[#allocation3 + $0x5c] sm:$0xf] %vm1131, %v8659
      %8732 = vst.msk [vmem:[#allocation3 + $0x60] sm:$0xf] %vm1131, %v8661
      %8733 = vst.msk [vmem:[#allocation3 + $0x64] sm:$0xf] %vm1131, %v8663
      %8734 = vst.msk [vmem:[#allocation3 + $0x68] sm:$0xf] %vm1131, %v8665
      %8735 = vst.msk [vmem:[#allocation3 + $0x6c] sm:$0xf] %vm1131, %v8667
      %8736 = vst.msk [vmem:[#allocation3 + $0x70] sm:$0xf] %vm1131, %v8669
      %8737 = vst.msk [vmem:[#allocation3 + $0x74] sm:$0xf] %vm1131, %v8671
      %8738 = vst.msk [vmem:[#allocation3 + $0x78] sm:$0xf] %vm1131, %v8673
      %8739 = vst.msk [vmem:[#allocation3 + $0x7c] sm:$0xf] %vm1131, %v8675
      %v8740 = vld [vmem:[%s584] sm:$0xff]
      %v8741 = vld [vmem:[%s584 + $0x8] sm:$0xff]
      %v8742 = vld [vmem:[%s584 + $0x18] sm:$0xff]
      %v8743 = vld [vmem:[%s584 + $0x20] sm:$0xff]
      %v8744 = vld [vmem:[%s584 + $0x30] sm:$0xff]
      %v8745 = vld [vmem:[%s584 + $0x38] sm:$0xff]
      %v8746 = vld [vmem:[%s584 + $0x48] sm:$0xff]
      %v8747 = vld [vmem:[%s584 + $0x50] sm:$0xff]
      %v8748 = vld [vmem:[%s584 + $0x60] sm:$0xff]
      %v8749 = vld [vmem:[%s584 + $0x68] sm:$0xff]
      %v8750 = vld [vmem:[%s584 + $0x78] sm:$0xff]
      %v8751 = vld [vmem:[%s584 + $0x80] sm:$0xff]
      %v8752 = vld [vmem:[%s584 + $0x90] sm:$0xff]
      %v8753 = vld [vmem:[%s584 + $0x98] sm:$0xff]
      %v8754 = vld [vmem:[%s584 + $0xa8] sm:$0xff]
      %v8755 = vld [vmem:[%s584 + $0xb0] sm:$0xff]
      %v8756 = vld [vmem:[%s584 + $0xc0] sm:$0xff]
      %v8757 = vld [vmem:[%s584 + $0xc8] sm:$0xff]
      %v8758 = vld [vmem:[%s584 + $0xd8] sm:$0xff]
      %v8759 = vld [vmem:[%s584 + $0xe0] sm:$0xff]
      %v8760 = vld [vmem:[%s584 + $0xf0] sm:$0xff]
      %v8761 = vld [vmem:[%s584 + $0xf8] sm:$0xff]
      %v8762 = vld [vmem:[%s584 + $0x108] sm:$0xff]
      %v8763 = vld [vmem:[%s584 + $0x110] sm:$0xff]
      %v8764 = vld [vmem:[%s584 + $0x120] sm:$0xff]
      %v8765 = vld [vmem:[%s584 + $0x128] sm:$0xff]
      %v8766 = vld [vmem:[%s584 + $0x138] sm:$0xff]
      %v8767 = vld [vmem:[%s584 + $0x140] sm:$0xff]
      %v8768 = vld [vmem:[%s584 + $0x150] sm:$0xff]
      %v8769 = vld [vmem:[%s584 + $0x158] sm:$0xff]
      %v8770 = vld [vmem:[%s584 + $0x168] sm:$0xff]
      %v8771 = vld [vmem:[%s584 + $0x170] sm:$0xff]
      %v8772 = vpack.c.bf16 %v8740, %v8740
      %v8773 = vpack.c.bf16 %v8741, %v8741
      %v8774 = vpack.c.bf16 %v8742, %v8742
      %v8775 = vpack.c.bf16 %v8743, %v8743
      %v8776 = vpack.c.bf16 %v8744, %v8744
      %v8777 = vpack.c.bf16 %v8745, %v8745
      %v8778 = vpack.c.bf16 %v8746, %v8746
      %v8779 = vpack.c.bf16 %v8747, %v8747
      %v8780 = vpack.c.bf16 %v8748, %v8748
      %v8781 = vpack.c.bf16 %v8749, %v8749
      %v8782 = vpack.c.bf16 %v8750, %v8750
      %v8783 = vpack.c.bf16 %v8751, %v8751
      %v8784 = vpack.c.bf16 %v8752, %v8752
      %v8785 = vpack.c.bf16 %v8753, %v8753
      %v8786 = vpack.c.bf16 %v8754, %v8754
      %v8787 = vpack.c.bf16 %v8755, %v8755
      %v8788 = vpack.c.bf16 %v8756, %v8756
      %v8789 = vpack.c.bf16 %v8757, %v8757
      %v8790 = vpack.c.bf16 %v8758, %v8758
      %v8791 = vpack.c.bf16 %v8759, %v8759
      %v8792 = vpack.c.bf16 %v8760, %v8760
      %v8793 = vpack.c.bf16 %v8761, %v8761
      %v8794 = vpack.c.bf16 %v8762, %v8762
      %v8795 = vpack.c.bf16 %v8763, %v8763
      %v8796 = vpack.c.bf16 %v8764, %v8764
      %v8797 = vpack.c.bf16 %v8765, %v8765
      %v8798 = vpack.c.bf16 %v8766, %v8766
      %v8799 = vpack.c.bf16 %v8767, %v8767
      %v8800 = vpack.c.bf16 %v8768, %v8768
      %v8801 = vpack.c.bf16 %v8769, %v8769
      %v8802 = vpack.c.bf16 %v8770, %v8770
      %v8803 = vpack.c.bf16 %v8771, %v8771
      %8836 = vrot.lane.b32.xlu0 %v8772, 24
      %v8837 = vpop.permute.xlu0 %8836
      %8838 = vrot.lane.b32.xlu0 %v8773, 24
      %v8839 = vpop.permute.xlu0 %8838
      %8840 = vrot.lane.b32.xlu0 %v8774, 24
      %v8841 = vpop.permute.xlu0 %8840
      %8842 = vrot.lane.b32.xlu0 %v8775, 24
      %v8843 = vpop.permute.xlu0 %8842
      %8844 = vrot.lane.b32.xlu0 %v8776, 24
      %v8845 = vpop.permute.xlu0 %8844
      %8846 = vrot.lane.b32.xlu0 %v8777, 24
      %v8847 = vpop.permute.xlu0 %8846
      %8848 = vrot.lane.b32.xlu0 %v8778, 24
      %v8849 = vpop.permute.xlu0 %8848
      %8850 = vrot.lane.b32.xlu0 %v8779, 24
      %v8851 = vpop.permute.xlu0 %8850
      %8852 = vrot.lane.b32.xlu0 %v8780, 24
      %v8853 = vpop.permute.xlu0 %8852
      %8854 = vrot.lane.b32.xlu0 %v8781, 24
      %v8855 = vpop.permute.xlu0 %8854
      %8856 = vrot.lane.b32.xlu0 %v8782, 24
      %v8857 = vpop.permute.xlu0 %8856
      %8858 = vrot.lane.b32.xlu0 %v8783, 24
      %v8859 = vpop.permute.xlu0 %8858
      %8860 = vrot.lane.b32.xlu0 %v8784, 24
      %v8861 = vpop.permute.xlu0 %8860
      %8862 = vrot.lane.b32.xlu0 %v8785, 24
      %v8863 = vpop.permute.xlu0 %8862
      %8864 = vrot.lane.b32.xlu0 %v8786, 24
      %v8865 = vpop.permute.xlu0 %8864
      %8866 = vrot.lane.b32.xlu0 %v8787, 24
      %v8867 = vpop.permute.xlu0 %8866
      %8868 = vrot.lane.b32.xlu0 %v8788, 24
      %v8869 = vpop.permute.xlu0 %8868
      %8870 = vrot.lane.b32.xlu0 %v8789, 24
      %v8871 = vpop.permute.xlu0 %8870
      %8872 = vrot.lane.b32.xlu0 %v8790, 24
      %v8873 = vpop.permute.xlu0 %8872
      %8874 = vrot.lane.b32.xlu0 %v8791, 24
      %v8875 = vpop.permute.xlu0 %8874
      %8876 = vrot.lane.b32.xlu0 %v8792, 24
      %v8877 = vpop.permute.xlu0 %8876
      %8878 = vrot.lane.b32.xlu0 %v8793, 24
      %v8879 = vpop.permute.xlu0 %8878
      %8880 = vrot.lane.b32.xlu0 %v8794, 24
      %v8881 = vpop.permute.xlu0 %8880
      %8882 = vrot.lane.b32.xlu0 %v8795, 24
      %v8883 = vpop.permute.xlu0 %8882
      %8884 = vrot.lane.b32.xlu0 %v8796, 24
      %v8885 = vpop.permute.xlu0 %8884
      %8886 = vrot.lane.b32.xlu0 %v8797, 24
      %v8887 = vpop.permute.xlu0 %8886
      %8888 = vrot.lane.b32.xlu0 %v8798, 24
      %v8889 = vpop.permute.xlu0 %8888
      %8890 = vrot.lane.b32.xlu0 %v8799, 24
      %v8891 = vpop.permute.xlu0 %8890
      %8892 = vrot.lane.b32.xlu0 %v8800, 24
      %v8893 = vpop.permute.xlu0 %8892
      %8894 = vrot.lane.b32.xlu0 %v8801, 24
      %v8895 = vpop.permute.xlu0 %8894
      %8896 = vrot.lane.b32.xlu0 %v8802, 24
      %v8897 = vpop.permute.xlu0 %8896
      %8898 = vrot.lane.b32.xlu0 %v8803, 24
      %v8899 = vpop.permute.xlu0 %8898
      %8932 = vst.msk [vmem:[#allocation3] sm:$0xf] %vm1356, %v8837
      %8933 = vst.msk [vmem:[#allocation3 + $0x4] sm:$0xf] %vm1356, %v8839
      %8934 = vst.msk [vmem:[#allocation3 + $0x8] sm:$0xf] %vm1356, %v8841
      %8935 = vst.msk [vmem:[#allocation3 + $0xc] sm:$0xf] %vm1356, %v8843
      %8936 = vst.msk [vmem:[#allocation3 + $0x10] sm:$0xf] %vm1356, %v8845
      %8937 = vst.msk [vmem:[#allocation3 + $0x14] sm:$0xf] %vm1356, %v8847
      %8938 = vst.msk [vmem:[#allocation3 + $0x18] sm:$0xf] %vm1356, %v8849
      %8939 = vst.msk [vmem:[#allocation3 + $0x1c] sm:$0xf] %vm1356, %v8851
      %8940 = vst.msk [vmem:[#allocation3 + $0x20] sm:$0xf] %vm1356, %v8853
      %8941 = vst.msk [vmem:[#allocation3 + $0x24] sm:$0xf] %vm1356, %v8855
      %8942 = vst.msk [vmem:[#allocation3 + $0x28] sm:$0xf] %vm1356, %v8857
      %8943 = vst.msk [vmem:[#allocation3 + $0x2c] sm:$0xf] %vm1356, %v8859
      %8944 = vst.msk [vmem:[#allocation3 + $0x30] sm:$0xf] %vm1356, %v8861
      %8945 = vst.msk [vmem:[#allocation3 + $0x34] sm:$0xf] %vm1356, %v8863
      %8946 = vst.msk [vmem:[#allocation3 + $0x38] sm:$0xf] %vm1356, %v8865
      %8947 = vst.msk [vmem:[#allocation3 + $0x3c] sm:$0xf] %vm1356, %v8867
      %8948 = vst.msk [vmem:[#allocation3 + $0x40] sm:$0xf] %vm1356, %v8869
      %8949 = vst.msk [vmem:[#allocation3 + $0x44] sm:$0xf] %vm1356, %v8871
      %8950 = vst.msk [vmem:[#allocation3 + $0x48] sm:$0xf] %vm1356, %v8873
      %8951 = vst.msk [vmem:[#allocation3 + $0x4c] sm:$0xf] %vm1356, %v8875
      %8952 = vst.msk [vmem:[#allocation3 + $0x50] sm:$0xf] %vm1356, %v8877
      %8953 = vst.msk [vmem:[#allocation3 + $0x54] sm:$0xf] %vm1356, %v8879
      %8954 = vst.msk [vmem:[#allocation3 + $0x58] sm:$0xf] %vm1356, %v8881
      %8955 = vst.msk [vmem:[#allocation3 + $0x5c] sm:$0xf] %vm1356, %v8883
      %8956 = vst.msk [vmem:[#allocation3 + $0x60] sm:$0xf] %vm1356, %v8885
      %8957 = vst.msk [vmem:[#allocation3 + $0x64] sm:$0xf] %vm1356, %v8887
      %8958 = vst.msk [vmem:[#allocation3 + $0x68] sm:$0xf] %vm1356, %v8889
      %8959 = vst.msk [vmem:[#allocation3 + $0x6c] sm:$0xf] %vm1356, %v8891
      %8960 = vst.msk [vmem:[#allocation3 + $0x70] sm:$0xf] %vm1356, %v8893
      %8961 = vst.msk [vmem:[#allocation3 + $0x74] sm:$0xf] %vm1356, %v8895
      %8962 = vst.msk [vmem:[#allocation3 + $0x78] sm:$0xf] %vm1356, %v8897
      %8963 = vst.msk [vmem:[#allocation3 + $0x7c] sm:$0xf] %vm1356, %v8899
      %v8964 = vld [vmem:[%s584 + $0x1] sm:$0xff]
      %v8965 = vld [vmem:[%s584 + $0x9] sm:$0xff]
      %v8966 = vld [vmem:[%s584 + $0x19] sm:$0xff]
      %v8967 = vld [vmem:[%s584 + $0x21] sm:$0xff]
      %v8968 = vld [vmem:[%s584 + $0x31] sm:$0xff]
      %v8969 = vld [vmem:[%s584 + $0x39] sm:$0xff]
      %v8970 = vld [vmem:[%s584 + $0x49] sm:$0xff]
      %v8971 = vld [vmem:[%s584 + $0x51] sm:$0xff]
      %v8972 = vld [vmem:[%s584 + $0x61] sm:$0xff]
      %v8973 = vld [vmem:[%s584 + $0x69] sm:$0xff]
      %v8974 = vld [vmem:[%s584 + $0x79] sm:$0xff]
      %v8975 = vld [vmem:[%s584 + $0x81] sm:$0xff]
      %v8976 = vld [vmem:[%s584 + $0x91] sm:$0xff]
      %v8977 = vld [vmem:[%s584 + $0x99] sm:$0xff]
      %v8978 = vld [vmem:[%s584 + $0xa9] sm:$0xff]
      %v8979 = vld [vmem:[%s584 + $0xb1] sm:$0xff]
      %v8980 = vld [vmem:[%s584 + $0xc1] sm:$0xff]
      %v8981 = vld [vmem:[%s584 + $0xc9] sm:$0xff]
      %v8982 = vld [vmem:[%s584 + $0xd9] sm:$0xff]
      %v8983 = vld [vmem:[%s584 + $0xe1] sm:$0xff]
      %v8984 = vld [vmem:[%s584 + $0xf1] sm:$0xff]
      %v8985 = vld [vmem:[%s584 + $0xf9] sm:$0xff]
      %v8986 = vld [vmem:[%s584 + $0x109] sm:$0xff]
      %v8987 = vld [vmem:[%s584 + $0x111] sm:$0xff]
      %v8988 = vld [vmem:[%s584 + $0x121] sm:$0xff]
      %v8989 = vld [vmem:[%s584 + $0x129] sm:$0xff]
      %v8990 = vld [vmem:[%s584 + $0x139] sm:$0xff]
      %v8991 = vld [vmem:[%s584 + $0x141] sm:$0xff]
      %v8992 = vld [vmem:[%s584 + $0x151] sm:$0xff]
      %v8993 = vld [vmem:[%s584 + $0x159] sm:$0xff]
      %v8994 = vld [vmem:[%s584 + $0x169] sm:$0xff]
      %v8995 = vld [vmem:[%s584 + $0x171] sm:$0xff]
      %v8996 = vpack.c.bf16 %v8964, %v8964
      %v8997 = vpack.c.bf16 %v8965, %v8965
      %v8998 = vpack.c.bf16 %v8966, %v8966
      %v8999 = vpack.c.bf16 %v8967, %v8967
      %v9000 = vpack.c.bf16 %v8968, %v8968
      %v9001 = vpack.c.bf16 %v8969, %v8969
      %v9002 = vpack.c.bf16 %v8970, %v8970
      %v9003 = vpack.c.bf16 %v8971, %v8971
      %v9004 = vpack.c.bf16 %v8972, %v8972
      %v9005 = vpack.c.bf16 %v8973, %v8973
      %v9006 = vpack.c.bf16 %v8974, %v8974
      %v9007 = vpack.c.bf16 %v8975, %v8975
      %v9008 = vpack.c.bf16 %v8976, %v8976
      %v9009 = vpack.c.bf16 %v8977, %v8977
      %v9010 = vpack.c.bf16 %v8978, %v8978
      %v9011 = vpack.c.bf16 %v8979, %v8979
      %v9012 = vpack.c.bf16 %v8980, %v8980
      %v9013 = vpack.c.bf16 %v8981, %v8981
      %v9014 = vpack.c.bf16 %v8982, %v8982
      %v9015 = vpack.c.bf16 %v8983, %v8983
      %v9016 = vpack.c.bf16 %v8984, %v8984
      %v9017 = vpack.c.bf16 %v8985, %v8985
      %v9018 = vpack.c.bf16 %v8986, %v8986
      %v9019 = vpack.c.bf16 %v8987, %v8987
      %v9020 = vpack.c.bf16 %v8988, %v8988
      %v9021 = vpack.c.bf16 %v8989, %v8989
      %v9022 = vpack.c.bf16 %v8990, %v8990
      %v9023 = vpack.c.bf16 %v8991, %v8991
      %v9024 = vpack.c.bf16 %v8992, %v8992
      %v9025 = vpack.c.bf16 %v8993, %v8993
      %v9026 = vpack.c.bf16 %v8994, %v8994
      %v9027 = vpack.c.bf16 %v8995, %v8995
      %9060 = vrot.lane.b32.xlu0 %v8996, 32
      %v9061 = vpop.permute.xlu0 %9060
      %9062 = vrot.lane.b32.xlu0 %v8997, 32
      %v9063 = vpop.permute.xlu0 %9062
      %9064 = vrot.lane.b32.xlu0 %v8998, 32
      %v9065 = vpop.permute.xlu0 %9064
      %9066 = vrot.lane.b32.xlu0 %v8999, 32
      %v9067 = vpop.permute.xlu0 %9066
      %9068 = vrot.lane.b32.xlu0 %v9000, 32
      %v9069 = vpop.permute.xlu0 %9068
      %9070 = vrot.lane.b32.xlu0 %v9001, 32
      %v9071 = vpop.permute.xlu0 %9070
      %9072 = vrot.lane.b32.xlu0 %v9002, 32
      %v9073 = vpop.permute.xlu0 %9072
      %9074 = vrot.lane.b32.xlu0 %v9003, 32
      %v9075 = vpop.permute.xlu0 %9074
      %9076 = vrot.lane.b32.xlu0 %v9004, 32
      %v9077 = vpop.permute.xlu0 %9076
      %9078 = vrot.lane.b32.xlu0 %v9005, 32
      %v9079 = vpop.permute.xlu0 %9078
      %9080 = vrot.lane.b32.xlu0 %v9006, 32
      %v9081 = vpop.permute.xlu0 %9080
      %9082 = vrot.lane.b32.xlu0 %v9007, 32
      %v9083 = vpop.permute.xlu0 %9082
      %9084 = vrot.lane.b32.xlu0 %v9008, 32
      %v9085 = vpop.permute.xlu0 %9084
      %9086 = vrot.lane.b32.xlu0 %v9009, 32
      %v9087 = vpop.permute.xlu0 %9086
      %9088 = vrot.lane.b32.xlu0 %v9010, 32
      %v9089 = vpop.permute.xlu0 %9088
      %9090 = vrot.lane.b32.xlu0 %v9011, 32
      %v9091 = vpop.permute.xlu0 %9090
      %9092 = vrot.lane.b32.xlu0 %v9012, 32
      %v9093 = vpop.permute.xlu0 %9092
      %9094 = vrot.lane.b32.xlu0 %v9013, 32
      %v9095 = vpop.permute.xlu0 %9094
      %9096 = vrot.lane.b32.xlu0 %v9014, 32
      %v9097 = vpop.permute.xlu0 %9096
      %9098 = vrot.lane.b32.xlu0 %v9015, 32
      %v9099 = vpop.permute.xlu0 %9098
      %9100 = vrot.lane.b32.xlu0 %v9016, 32
      %v9101 = vpop.permute.xlu0 %9100
      %9102 = vrot.lane.b32.xlu0 %v9017, 32
      %v9103 = vpop.permute.xlu0 %9102
      %9104 = vrot.lane.b32.xlu0 %v9018, 32
      %v9105 = vpop.permute.xlu0 %9104
      %9106 = vrot.lane.b32.xlu0 %v9019, 32
      %v9107 = vpop.permute.xlu0 %9106
      %9108 = vrot.lane.b32.xlu0 %v9020, 32
      %v9109 = vpop.permute.xlu0 %9108
      %9110 = vrot.lane.b32.xlu0 %v9021, 32
      %v9111 = vpop.permute.xlu0 %9110
      %9112 = vrot.lane.b32.xlu0 %v9022, 32
      %v9113 = vpop.permute.xlu0 %9112
      %9114 = vrot.lane.b32.xlu0 %v9023, 32
      %v9115 = vpop.permute.xlu0 %9114
      %9116 = vrot.lane.b32.xlu0 %v9024, 32
      %v9117 = vpop.permute.xlu0 %9116
      %9118 = vrot.lane.b32.xlu0 %v9025, 32
      %v9119 = vpop.permute.xlu0 %9118
      %9120 = vrot.lane.b32.xlu0 %v9026, 32
      %v9121 = vpop.permute.xlu0 %9120
      %9122 = vrot.lane.b32.xlu0 %v9027, 32
      %v9123 = vpop.permute.xlu0 %9122
      %9156 = vst.msk [vmem:[#allocation3] sm:$0xf] %vm1581, %v9061
      %9157 = vst.msk [vmem:[#allocation3 + $0x4] sm:$0xf] %vm1581, %v9063
      %9158 = vst.msk [vmem:[#allocation3 + $0x8] sm:$0xf] %vm1581, %v9065
      %9159 = vst.msk [vmem:[#allocation3 + $0xc] sm:$0xf] %vm1581, %v9067
      %9160 = vst.msk [vmem:[#allocation3 + $0x10] sm:$0xf] %vm1581, %v9069
      %9161 = vst.msk [vmem:[#allocation3 + $0x14] sm:$0xf] %vm1581, %v9071
      %9162 = vst.msk [vmem:[#allocation3 + $0x18] sm:$0xf] %vm1581, %v9073
      %9163 = vst.msk [vmem:[#allocation3 + $0x1c] sm:$0xf] %vm1581, %v9075
      %9164 = vst.msk [vmem:[#allocation3 + $0x20] sm:$0xf] %vm1581, %v9077
      %9165 = vst.msk [vmem:[#allocation3 + $0x24] sm:$0xf] %vm1581, %v9079
      %9166 = vst.msk [vmem:[#allocation3 + $0x28] sm:$0xf] %vm1581, %v9081
      %9167 = vst.msk [vmem:[#allocation3 + $0x2c] sm:$0xf] %vm1581, %v9083
      %9168 = vst.msk [vmem:[#allocation3 + $0x30] sm:$0xf] %vm1581, %v9085
      %9169 = vst.msk [vmem:[#allocation3 + $0x34] sm:$0xf] %vm1581, %v9087
      %9170 = vst.msk [vmem:[#allocation3 + $0x38] sm:$0xf] %vm1581, %v9089
      %9171 = vst.msk [vmem:[#allocation3 + $0x3c] sm:$0xf] %vm1581, %v9091
      %9172 = vst.msk [vmem:[#allocation3 + $0x40] sm:$0xf] %vm1581, %v9093
      %9173 = vst.msk [vmem:[#allocation3 + $0x44] sm:$0xf] %vm1581, %v9095
      %9174 = vst.msk [vmem:[#allocation3 + $0x48] sm:$0xf] %vm1581, %v9097
      %9175 = vst.msk [vmem:[#allocation3 + $0x4c] sm:$0xf] %vm1581, %v9099
      %9176 = vst.msk [vmem:[#allocation3 + $0x50] sm:$0xf] %vm1581, %v9101
      %9177 = vst.msk [vmem:[#allocation3 + $0x54] sm:$0xf] %vm1581, %v9103
      %9178 = vst.msk [vmem:[#allocation3 + $0x58] sm:$0xf] %vm1581, %v9105
      %9179 = vst.msk [vmem:[#allocation3 + $0x5c] sm:$0xf] %vm1581, %v9107
      %9180 = vst.msk [vmem:[#allocation3 + $0x60] sm:$0xf] %vm1581, %v9109
      %9181 = vst.msk [vmem:[#allocation3 + $0x64] sm:$0xf] %vm1581, %v9111
      %9182 = vst.msk [vmem:[#allocation3 + $0x68] sm:$0xf] %vm1581, %v9113
      %9183 = vst.msk [vmem:[#allocation3 + $0x6c] sm:$0xf] %vm1581, %v9115
      %9184 = vst.msk [vmem:[#allocation3 + $0x70] sm:$0xf] %vm1581, %v9117
      %9185 = vst.msk [vmem:[#allocation3 + $0x74] sm:$0xf] %vm1581, %v9119
      %9186 = vst.msk [vmem:[#allocation3 + $0x78] sm:$0xf] %vm1581, %v9121
      %9187 = vst.msk [vmem:[#allocation3 + $0x7c] sm:$0xf] %vm1581, %v9123
      %v9188 = vld [vmem:[%s584 + $0x2] sm:$0xff]
      %v9189 = vld [vmem:[%s584 + $0xa] sm:$0xff]
      %v9190 = vld [vmem:[%s584 + $0x1a] sm:$0xff]
      %v9191 = vld [vmem:[%s584 + $0x22] sm:$0xff]
      %v9192 = vld [vmem:[%s584 + $0x32] sm:$0xff]
      %v9193 = vld [vmem:[%s584 + $0x3a] sm:$0xff]
      %v9194 = vld [vmem:[%s584 + $0x4a] sm:$0xff]
      %v9195 = vld [vmem:[%s584 + $0x52] sm:$0xff]
      %v9196 = vld [vmem:[%s584 + $0x62] sm:$0xff]
      %v9197 = vld [vmem:[%s584 + $0x6a] sm:$0xff]
      %v9198 = vld [vmem:[%s584 + $0x7a] sm:$0xff]
      %v9199 = vld [vmem:[%s584 + $0x82] sm:$0xff]
      %v9200 = vld [vmem:[%s584 + $0x92] sm:$0xff]
      %v9201 = vld [vmem:[%s584 + $0x9a] sm:$0xff]
      %v9202 = vld [vmem:[%s584 + $0xaa] sm:$0xff]
      %v9203 = vld [vmem:[%s584 + $0xb2] sm:$0xff]
      %v9204 = vld [vmem:[%s584 + $0xc2] sm:$0xff]
      %v9205 = vld [vmem:[%s584 + $0xca] sm:$0xff]
      %v9206 = vld [vmem:[%s584 + $0xda] sm:$0xff]
      %v9207 = vld [vmem:[%s584 + $0xe2] sm:$0xff]
      %v9208 = vld [vmem:[%s584 + $0xf2] sm:$0xff]
      %v9209 = vld [vmem:[%s584 + $0xfa] sm:$0xff]
      %v9210 = vld [vmem:[%s584 + $0x10a] sm:$0xff]
      %v9211 = vld [vmem:[%s584 + $0x112] sm:$0xff]
      %v9212 = vld [vmem:[%s584 + $0x122] sm:$0xff]
      %v9213 = vld [vmem:[%s584 + $0x12a] sm:$0xff]
      %v9214 = vld [vmem:[%s584 + $0x13a] sm:$0xff]
      %v9215 = vld [vmem:[%s584 + $0x142] sm:$0xff]
      %v9216 = vld [vmem:[%s584 + $0x152] sm:$0xff]
      %v9217 = vld [vmem:[%s584 + $0x15a] sm:$0xff]
      %v9218 = vld [vmem:[%s584 + $0x16a] sm:$0xff]
      %v9219 = vld [vmem:[%s584 + $0x172] sm:$0xff]
      %v9220 = vpack.c.bf16 %v9188, %v9188
      %v9221 = vpack.c.bf16 %v9189, %v9189
      %v9222 = vpack.c.bf16 %v9190, %v9190
      %v9223 = vpack.c.bf16 %v9191, %v9191
      %v9224 = vpack.c.bf16 %v9192, %v9192
      %v9225 = vpack.c.bf16 %v9193, %v9193
      %v9226 = vpack.c.bf16 %v9194, %v9194
      %v9227 = vpack.c.bf16 %v9195, %v9195
      %v9228 = vpack.c.bf16 %v9196, %v9196
      %v9229 = vpack.c.bf16 %v9197, %v9197
      %v9230 = vpack.c.bf16 %v9198, %v9198
      %v9231 = vpack.c.bf16 %v9199, %v9199
      %v9232 = vpack.c.bf16 %v9200, %v9200
      %v9233 = vpack.c.bf16 %v9201, %v9201
      %v9234 = vpack.c.bf16 %v9202, %v9202
      %v9235 = vpack.c.bf16 %v9203, %v9203
      %v9236 = vpack.c.bf16 %v9204, %v9204
      %v9237 = vpack.c.bf16 %v9205, %v9205
      %v9238 = vpack.c.bf16 %v9206, %v9206
      %v9239 = vpack.c.bf16 %v9207, %v9207
      %v9240 = vpack.c.bf16 %v9208, %v9208
      %v9241 = vpack.c.bf16 %v9209, %v9209
      %v9242 = vpack.c.bf16 %v9210, %v9210
      %v9243 = vpack.c.bf16 %v9211, %v9211
      %v9244 = vpack.c.bf16 %v9212, %v9212
      %v9245 = vpack.c.bf16 %v9213, %v9213
      %v9246 = vpack.c.bf16 %v9214, %v9214
      %v9247 = vpack.c.bf16 %v9215, %v9215
      %v9248 = vpack.c.bf16 %v9216, %v9216
      %v9249 = vpack.c.bf16 %v9217, %v9217
      %v9250 = vpack.c.bf16 %v9218, %v9218
      %v9251 = vpack.c.bf16 %v9219, %v9219
      %9284 = vrot.lane.b32.xlu0 %v9220, 40
      %v9285 = vpop.permute.xlu0 %9284
      %9286 = vrot.lane.b32.xlu0 %v9221, 40
      %v9287 = vpop.permute.xlu0 %9286
      %9288 = vrot.lane.b32.xlu0 %v9222, 40
      %v9289 = vpop.permute.xlu0 %9288
      %9290 = vrot.lane.b32.xlu0 %v9223, 40
      %v9291 = vpop.permute.xlu0 %9290
      %9292 = vrot.lane.b32.xlu0 %v9224, 40
      %v9293 = vpop.permute.xlu0 %9292
      %9294 = vrot.lane.b32.xlu0 %v9225, 40
      %v9295 = vpop.permute.xlu0 %9294
      %9296 = vrot.lane.b32.xlu0 %v9226, 40
      %v9297 = vpop.permute.xlu0 %9296
      %9298 = vrot.lane.b32.xlu0 %v9227, 40
      %v9299 = vpop.permute.xlu0 %9298
      %9300 = vrot.lane.b32.xlu0 %v9228, 40
      %v9301 = vpop.permute.xlu0 %9300
      %9302 = vrot.lane.b32.xlu0 %v9229, 40
      %v9303 = vpop.permute.xlu0 %9302
      %9304 = vrot.lane.b32.xlu0 %v9230, 40
      %v9305 = vpop.permute.xlu0 %9304
      %9306 = vrot.lane.b32.xlu0 %v9231, 40
      %v9307 = vpop.permute.xlu0 %9306
      %9308 = vrot.lane.b32.xlu0 %v9232, 40
      %v9309 = vpop.permute.xlu0 %9308
      %9310 = vrot.lane.b32.xlu0 %v9233, 40
      %v9311 = vpop.permute.xlu0 %9310
      %9312 = vrot.lane.b32.xlu0 %v9234, 40
      %v9313 = vpop.permute.xlu0 %9312
      %9314 = vrot.lane.b32.xlu0 %v9235, 40
      %v9315 = vpop.permute.xlu0 %9314
      %9316 = vrot.lane.b32.xlu0 %v9236, 40
      %v9317 = vpop.permute.xlu0 %9316
      %9318 = vrot.lane.b32.xlu0 %v9237, 40
      %v9319 = vpop.permute.xlu0 %9318
      %9320 = vrot.lane.b32.xlu0 %v9238, 40
      %v9321 = vpop.permute.xlu0 %9320
      %9322 = vrot.lane.b32.xlu0 %v9239, 40
      %v9323 = vpop.permute.xlu0 %9322
      %9324 = vrot.lane.b32.xlu0 %v9240, 40
      %v9325 = vpop.permute.xlu0 %9324
      %9326 = vrot.lane.b32.xlu0 %v9241, 40
      %v9327 = vpop.permute.xlu0 %9326
      %9328 = vrot.lane.b32.xlu0 %v9242, 40
      %v9329 = vpop.permute.xlu0 %9328
      %9330 = vrot.lane.b32.xlu0 %v9243, 40
      %v9331 = vpop.permute.xlu0 %9330
      %9332 = vrot.lane.b32.xlu0 %v9244, 40
      %v9333 = vpop.permute.xlu0 %9332
      %9334 = vrot.lane.b32.xlu0 %v9245, 40
      %v9335 = vpop.permute.xlu0 %9334
      %9336 = vrot.lane.b32.xlu0 %v9246, 40
      %v9337 = vpop.permute.xlu0 %9336
      %9338 = vrot.lane.b32.xlu0 %v9247, 40
      %v9339 = vpop.permute.xlu0 %9338
      %9340 = vrot.lane.b32.xlu0 %v9248, 40
      %v9341 = vpop.permute.xlu0 %9340
      %9342 = vrot.lane.b32.xlu0 %v9249, 40
      %v9343 = vpop.permute.xlu0 %9342
      %9344 = vrot.lane.b32.xlu0 %v9250, 40
      %v9345 = vpop.permute.xlu0 %9344
      %9346 = vrot.lane.b32.xlu0 %v9251, 40
      %v9347 = vpop.permute.xlu0 %9346
      %9380 = vst.msk [vmem:[#allocation3] sm:$0xf] %vm1806, %v9285
      %9381 = vst.msk [vmem:[#allocation3 + $0x4] sm:$0xf] %vm1806, %v9287
      %9382 = vst.msk [vmem:[#allocation3 + $0x8] sm:$0xf] %vm1806, %v9289
      %9383 = vst.msk [vmem:[#allocation3 + $0xc] sm:$0xf] %vm1806, %v9291
      %9384 = vst.msk [vmem:[#allocation3 + $0x10] sm:$0xf] %vm1806, %v9293
      %9385 = vst.msk [vmem:[#allocation3 + $0x14] sm:$0xf] %vm1806, %v9295
      %9386 = vst.msk [vmem:[#allocation3 + $0x18] sm:$0xf] %vm1806, %v9297
      %9387 = vst.msk [vmem:[#allocation3 + $0x1c] sm:$0xf] %vm1806, %v9299
      %9388 = vst.msk [vmem:[#allocation3 + $0x20] sm:$0xf] %vm1806, %v9301
      %9389 = vst.msk [vmem:[#allocation3 + $0x24] sm:$0xf] %vm1806, %v9303
      %9390 = vst.msk [vmem:[#allocation3 + $0x28] sm:$0xf] %vm1806, %v9305
      %9391 = vst.msk [vmem:[#allocation3 + $0x2c] sm:$0xf] %vm1806, %v9307
      %9392 = vst.msk [vmem:[#allocation3 + $0x30] sm:$0xf] %vm1806, %v9309
      %9393 = vst.msk [vmem:[#allocation3 + $0x34] sm:$0xf] %vm1806, %v9311
      %9394 = vst.msk [vmem:[#allocation3 + $0x38] sm:$0xf] %vm1806, %v9313
      %9395 = vst.msk [vmem:[#allocation3 + $0x3c] sm:$0xf] %vm1806, %v9315
      %9396 = vst.msk [vmem:[#allocation3 + $0x40] sm:$0xf] %vm1806, %v9317
      %9397 = vst.msk [vmem:[#allocation3 + $0x44] sm:$0xf] %vm1806, %v9319
      %9398 = vst.msk [vmem:[#allocation3 + $0x48] sm:$0xf] %vm1806, %v9321
      %9399 = vst.msk [vmem:[#allocation3 + $0x4c] sm:$0xf] %vm1806, %v9323
      %9400 = vst.msk [vmem:[#allocation3 + $0x50] sm:$0xf] %vm1806, %v9325
      %9401 = vst.msk [vmem:[#allocation3 + $0x54] sm:$0xf] %vm1806, %v9327
      %9402 = vst.msk [vmem:[#allocation3 + $0x58] sm:$0xf] %vm1806, %v9329
      %9403 = vst.msk [vmem:[#allocation3 + $0x5c] sm:$0xf] %vm1806, %v9331
      %9404 = vst.msk [vmem:[#allocation3 + $0x60] sm:$0xf] %vm1806, %v9333
      %9405 = vst.msk [vmem:[#allocation3 + $0x64] sm:$0xf] %vm1806, %v9335
      %9406 = vst.msk [vmem:[#allocation3 + $0x68] sm:$0xf] %vm1806, %v9337
      %9407 = vst.msk [vmem:[#allocation3 + $0x6c] sm:$0xf] %vm1806, %v9339
      %9408 = vst.msk [vmem:[#allocation3 + $0x70] sm:$0xf] %vm1806, %v9341
      %9409 = vst.msk [vmem:[#allocation3 + $0x74] sm:$0xf] %vm1806, %v9343
      %9410 = vst.msk [vmem:[#allocation3 + $0x78] sm:$0xf] %vm1806, %v9345
      %9411 = vst.msk [vmem:[#allocation3 + $0x7c] sm:$0xf] %vm1806, %v9347
      %v9412 = vld [vmem:[%s1839] sm:$0xff]
      %v9413 = vld [vmem:[%s1839 + $0x8] sm:$0xff]
      %v9414 = vld [vmem:[%s1839 + $0x18] sm:$0xff]
      %v9415 = vld [vmem:[%s1839 + $0x20] sm:$0xff]
      %v9416 = vld [vmem:[%s1839 + $0x30] sm:$0xff]
      %v9417 = vld [vmem:[%s1839 + $0x38] sm:$0xff]
      %v9418 = vld [vmem:[%s1839 + $0x48] sm:$0xff]
      %v9419 = vld [vmem:[%s1839 + $0x50] sm:$0xff]
      %v9420 = vld [vmem:[%s1839 + $0x60] sm:$0xff]
      %v9421 = vld [vmem:[%s1839 + $0x68] sm:$0xff]
      %v9422 = vld [vmem:[%s1839 + $0x78] sm:$0xff]
      %v9423 = vld [vmem:[%s1839 + $0x80] sm:$0xff]
      %v9424 = vld [vmem:[%s1839 + $0x90] sm:$0xff]
      %v9425 = vld [vmem:[%s1839 + $0x98] sm:$0xff]
      %v9426 = vld [vmem:[%s1839 + $0xa8] sm:$0xff]
      %v9427 = vld [vmem:[%s1839 + $0xb0] sm:$0xff]
      %v9428 = vld [vmem:[%s1839 + $0xc0] sm:$0xff]
      %v9429 = vld [vmem:[%s1839 + $0xc8] sm:$0xff]
      %v9430 = vld [vmem:[%s1839 + $0xd8] sm:$0xff]
      %v9431 = vld [vmem:[%s1839 + $0xe0] sm:$0xff]
      %v9432 = vld [vmem:[%s1839 + $0xf0] sm:$0xff]
      %v9433 = vld [vmem:[%s1839 + $0xf8] sm:$0xff]
      %v9434 = vld [vmem:[%s1839 + $0x108] sm:$0xff]
      %v9435 = vld [vmem:[%s1839 + $0x110] sm:$0xff]
      %v9436 = vld [vmem:[%s1839 + $0x120] sm:$0xff]
      %v9437 = vld [vmem:[%s1839 + $0x128] sm:$0xff]
      %v9438 = vld [vmem:[%s1839 + $0x138] sm:$0xff]
      %v9439 = vld [vmem:[%s1839 + $0x140] sm:$0xff]
      %v9440 = vld [vmem:[%s1839 + $0x150] sm:$0xff]
      %v9441 = vld [vmem:[%s1839 + $0x158] sm:$0xff]
      %v9442 = vld [vmem:[%s1839 + $0x168] sm:$0xff]
      %v9443 = vld [vmem:[%s1839 + $0x170] sm:$0xff]
      %v9444 = vpack.c.bf16 %v9412, %v9412
      %v9445 = vpack.c.bf16 %v9413, %v9413
      %v9446 = vpack.c.bf16 %v9414, %v9414
      %v9447 = vpack.c.bf16 %v9415, %v9415
      %v9448 = vpack.c.bf16 %v9416, %v9416
      %v9449 = vpack.c.bf16 %v9417, %v9417
      %v9450 = vpack.c.bf16 %v9418, %v9418
      %v9451 = vpack.c.bf16 %v9419, %v9419
      %v9452 = vpack.c.bf16 %v9420, %v9420
      %v9453 = vpack.c.bf16 %v9421, %v9421
      %v9454 = vpack.c.bf16 %v9422, %v9422
      %v9455 = vpack.c.bf16 %v9423, %v9423
      %v9456 = vpack.c.bf16 %v9424, %v9424
      %v9457 = vpack.c.bf16 %v9425, %v9425
      %v9458 = vpack.c.bf16 %v9426, %v9426
      %v9459 = vpack.c.bf16 %v9427, %v9427
      %v9460 = vpack.c.bf16 %v9428, %v9428
      %v9461 = vpack.c.bf16 %v9429, %v9429
      %v9462 = vpack.c.bf16 %v9430, %v9430
      %v9463 = vpack.c.bf16 %v9431, %v9431
      %v9464 = vpack.c.bf16 %v9432, %v9432
      %v9465 = vpack.c.bf16 %v9433, %v9433
      %v9466 = vpack.c.bf16 %v9434, %v9434
      %v9467 = vpack.c.bf16 %v9435, %v9435
      %v9468 = vpack.c.bf16 %v9436, %v9436
      %v9469 = vpack.c.bf16 %v9437, %v9437
      %v9470 = vpack.c.bf16 %v9438, %v9438
      %v9471 = vpack.c.bf16 %v9439, %v9439
      %v9472 = vpack.c.bf16 %v9440, %v9440
      %v9473 = vpack.c.bf16 %v9441, %v9441
      %v9474 = vpack.c.bf16 %v9442, %v9442
      %v9475 = vpack.c.bf16 %v9443, %v9443
      %9508 = vrot.lane.b32.xlu0 %v9444, 48
      %v9509 = vpop.permute.xlu0 %9508
      %9510 = vrot.lane.b32.xlu0 %v9445, 48
      %v9511 = vpop.permute.xlu0 %9510
      %9512 = vrot.lane.b32.xlu0 %v9446, 48
      %v9513 = vpop.permute.xlu0 %9512
      %9514 = vrot.lane.b32.xlu0 %v9447, 48
      %v9515 = vpop.permute.xlu0 %9514
      %9516 = vrot.lane.b32.xlu0 %v9448, 48
      %v9517 = vpop.permute.xlu0 %9516
      %9518 = vrot.lane.b32.xlu0 %v9449, 48
      %v9519 = vpop.permute.xlu0 %9518
      %9520 = vrot.lane.b32.xlu0 %v9450, 48
      %v9521 = vpop.permute.xlu0 %9520
      %9522 = vrot.lane.b32.xlu0 %v9451, 48
      %v9523 = vpop.permute.xlu0 %9522
      %9524 = vrot.lane.b32.xlu0 %v9452, 48
      %v9525 = vpop.permute.xlu0 %9524
      %9526 = vrot.lane.b32.xlu0 %v9453, 48
      %v9527 = vpop.permute.xlu0 %9526
      %9528 = vrot.lane.b32.xlu0 %v9454, 48
      %v9529 = vpop.permute.xlu0 %9528
      %9530 = vrot.lane.b32.xlu0 %v9455, 48
      %v9531 = vpop.permute.xlu0 %9530
      %9532 = vrot.lane.b32.xlu0 %v9456, 48
      %v9533 = vpop.permute.xlu0 %9532
      %9534 = vrot.lane.b32.xlu0 %v9457, 48
      %v9535 = vpop.permute.xlu0 %9534
      %9536 = vrot.lane.b32.xlu0 %v9458, 48
      %v9537 = vpop.permute.xlu0 %9536
      %9538 = vrot.lane.b32.xlu0 %v9459, 48
      %v9539 = vpop.permute.xlu0 %9538
      %9540 = vrot.lane.b32.xlu0 %v9460, 48
      %v9541 = vpop.permute.xlu0 %9540
      %9542 = vrot.lane.b32.xlu0 %v9461, 48
      %v9543 = vpop.permute.xlu0 %9542
      %9544 = vrot.lane.b32.xlu0 %v9462, 48
      %v9545 = vpop.permute.xlu0 %9544
      %9546 = vrot.lane.b32.xlu0 %v9463, 48
      %v9547 = vpop.permute.xlu0 %9546
      %9548 = vrot.lane.b32.xlu0 %v9464, 48
      %v9549 = vpop.permute.xlu0 %9548
      %9550 = vrot.lane.b32.xlu0 %v9465, 48
      %v9551 = vpop.permute.xlu0 %9550
      %9552 = vrot.lane.b32.xlu0 %v9466, 48
      %v9553 = vpop.permute.xlu0 %9552
      %9554 = vrot.lane.b32.xlu0 %v9467, 48
      %v9555 = vpop.permute.xlu0 %9554
      %9556 = vrot.lane.b32.xlu0 %v9468, 48
      %v9557 = vpop.permute.xlu0 %9556
      %9558 = vrot.lane.b32.xlu0 %v9469, 48
      %v9559 = vpop.permute.xlu0 %9558
      %9560 = vrot.lane.b32.xlu0 %v9470, 48
      %v9561 = vpop.permute.xlu0 %9560
      %9562 = vrot.lane.b32.xlu0 %v9471, 48
      %v9563 = vpop.permute.xlu0 %9562
      %9564 = vrot.lane.b32.xlu0 %v9472, 48
      %v9565 = vpop.permute.xlu0 %9564
      %9566 = vrot.lane.b32.xlu0 %v9473, 48
      %v9567 = vpop.permute.xlu0 %9566
      %9568 = vrot.lane.b32.xlu0 %v9474, 48
      %v9569 = vpop.permute.xlu0 %9568
      %9570 = vrot.lane.b32.xlu0 %v9475, 48
      %v9571 = vpop.permute.xlu0 %9570
      %9604 = vst.msk [vmem:[#allocation3] sm:$0xf] %vm2032, %v9509
      %9605 = vst.msk [vmem:[#allocation3 + $0x4] sm:$0xf] %vm2032, %v9511
      %9606 = vst.msk [vmem:[#allocation3 + $0x8] sm:$0xf] %vm2032, %v9513
      %9607 = vst.msk [vmem:[#allocation3 + $0xc] sm:$0xf] %vm2032, %v9515
      %9608 = vst.msk [vmem:[#allocation3 + $0x10] sm:$0xf] %vm2032, %v9517
      %9609 = vst.msk [vmem:[#allocation3 + $0x14] sm:$0xf] %vm2032, %v9519
      %9610 = vst.msk [vmem:[#allocation3 + $0x18] sm:$0xf] %vm2032, %v9521
      %9611 = vst.msk [vmem:[#allocation3 + $0x1c] sm:$0xf] %vm2032, %v9523
      %9612 = vst.msk [vmem:[#allocation3 + $0x20] sm:$0xf] %vm2032, %v9525
      %9613 = vst.msk [vmem:[#allocation3 + $0x24] sm:$0xf] %vm2032, %v9527
      %9614 = vst.msk [vmem:[#allocation3 + $0x28] sm:$0xf] %vm2032, %v9529
      %9615 = vst.msk [vmem:[#allocation3 + $0x2c] sm:$0xf] %vm2032, %v9531
      %9616 = vst.msk [vmem:[#allocation3 + $0x30] sm:$0xf] %vm2032, %v9533
      %9617 = vst.msk [vmem:[#allocation3 + $0x34] sm:$0xf] %vm2032, %v9535
      %9618 = vst.msk [vmem:[#allocation3 + $0x38] sm:$0xf] %vm2032, %v9537
      %9619 = vst.msk [vmem:[#allocation3 + $0x3c] sm:$0xf] %vm2032, %v9539
      %9620 = vst.msk [vmem:[#allocation3 + $0x40] sm:$0xf] %vm2032, %v9541
      %9621 = vst.msk [vmem:[#allocation3 + $0x44] sm:$0xf] %vm2032, %v9543
      %9622 = vst.msk [vmem:[#allocation3 + $0x48] sm:$0xf] %vm2032, %v9545
      %9623 = vst.msk [vmem:[#allocation3 + $0x4c] sm:$0xf] %vm2032, %v9547
      %9624 = vst.msk [vmem:[#allocation3 + $0x50] sm:$0xf] %vm2032, %v9549
      %9625 = vst.msk [vmem:[#allocation3 + $0x54] sm:$0xf] %vm2032, %v9551
      %9626 = vst.msk [vmem:[#allocation3 + $0x58] sm:$0xf] %vm2032, %v9553
      %9627 = vst.msk [vmem:[#allocation3 + $0x5c] sm:$0xf] %vm2032, %v9555
      %9628 = vst.msk [vmem:[#allocation3 + $0x60] sm:$0xf] %vm2032, %v9557
      %9629 = vst.msk [vmem:[#allocation3 + $0x64] sm:$0xf] %vm2032, %v9559
      %9630 = vst.msk [vmem:[#allocation3 + $0x68] sm:$0xf] %vm2032, %v9561
      %9631 = vst.msk [vmem:[#allocation3 + $0x6c] sm:$0xf] %vm2032, %v9563
      %9632 = vst.msk [vmem:[#allocation3 + $0x70] sm:$0xf] %vm2032, %v9565
      %9633 = vst.msk [vmem:[#allocation3 + $0x74] sm:$0xf] %vm2032, %v9567
      %9634 = vst.msk [vmem:[#allocation3 + $0x78] sm:$0xf] %vm2032, %v9569
      %9635 = vst.msk [vmem:[#allocation3 + $0x7c] sm:$0xf] %vm2032, %v9571
      %v9636 = vld [vmem:[%s1839 + $0x1] sm:$0xff]
      %v9637 = vld [vmem:[%s1839 + $0x9] sm:$0xff]
      %v9638 = vld [vmem:[%s1839 + $0x19] sm:$0xff]
      %v9639 = vld [vmem:[%s1839 + $0x21] sm:$0xff]
      %v9640 = vld [vmem:[%s1839 + $0x31] sm:$0xff]
      %v9641 = vld [vmem:[%s1839 + $0x39] sm:$0xff]
      %v9642 = vld [vmem:[%s1839 + $0x49] sm:$0xff]
      %v9643 = vld [vmem:[%s1839 + $0x51] sm:$0xff]
      %v9644 = vld [vmem:[%s1839 + $0x61] sm:$0xff]
      %v9645 = vld [vmem:[%s1839 + $0x69] sm:$0xff]
      %v9646 = vld [vmem:[%s1839 + $0x79] sm:$0xff]
      %v9647 = vld [vmem:[%s1839 + $0x81] sm:$0xff]
      %v9648 = vld [vmem:[%s1839 + $0x91] sm:$0xff]
      %v9649 = vld [vmem:[%s1839 + $0x99] sm:$0xff]
      %v9650 = vld [vmem:[%s1839 + $0xa9] sm:$0xff]
      %v9651 = vld [vmem:[%s1839 + $0xb1] sm:$0xff]
      %v9652 = vld [vmem:[%s1839 + $0xc1] sm:$0xff]
      %v9653 = vld [vmem:[%s1839 + $0xc9] sm:$0xff]
      %v9654 = vld [vmem:[%s1839 + $0xd9] sm:$0xff]
      %v9655 = vld [vmem:[%s1839 + $0xe1] sm:$0xff]
      %v9656 = vld [vmem:[%s1839 + $0xf1] sm:$0xff]
      %v9657 = vld [vmem:[%s1839 + $0xf9] sm:$0xff]
      %v9658 = vld [vmem:[%s1839 + $0x109] sm:$0xff]
      %v9659 = vld [vmem:[%s1839 + $0x111] sm:$0xff]
      %v9660 = vld [vmem:[%s1839 + $0x121] sm:$0xff]
      %v9661 = vld [vmem:[%s1839 + $0x129] sm:$0xff]
      %v9662 = vld [vmem:[%s1839 + $0x139] sm:$0xff]
      %v9663 = vld [vmem:[%s1839 + $0x141] sm:$0xff]
      %v9664 = vld [vmem:[%s1839 + $0x151] sm:$0xff]
      %v9665 = vld [vmem:[%s1839 + $0x159] sm:$0xff]
      %v9666 = vld [vmem:[%s1839 + $0x169] sm:$0xff]
      %v9667 = vld [vmem:[%s1839 + $0x171] sm:$0xff]
      %v9668 = vpack.c.bf16 %v9636, %v9636
      %v9669 = vpack.c.bf16 %v9637, %v9637
      %v9670 = vpack.c.bf16 %v9638, %v9638
      %v9671 = vpack.c.bf16 %v9639, %v9639
      %v9672 = vpack.c.bf16 %v9640, %v9640
      %v9673 = vpack.c.bf16 %v9641, %v9641
      %v9674 = vpack.c.bf16 %v9642, %v9642
      %v9675 = vpack.c.bf16 %v9643, %v9643
      %v9676 = vpack.c.bf16 %v9644, %v9644
      %v9677 = vpack.c.bf16 %v9645, %v9645
      %v9678 = vpack.c.bf16 %v9646, %v9646
      %v9679 = vpack.c.bf16 %v9647, %v9647
      %v9680 = vpack.c.bf16 %v9648, %v9648
      %v9681 = vpack.c.bf16 %v9649, %v9649
      %v9682 = vpack.c.bf16 %v9650, %v9650
      %v9683 = vpack.c.bf16 %v9651, %v9651
      %v9684 = vpack.c.bf16 %v9652, %v9652
      %v9685 = vpack.c.bf16 %v9653, %v9653
      %v9686 = vpack.c.bf16 %v9654, %v9654
      %v9687 = vpack.c.bf16 %v9655, %v9655
      %v9688 = vpack.c.bf16 %v9656, %v9656
      %v9689 = vpack.c.bf16 %v9657, %v9657
      %v9690 = vpack.c.bf16 %v9658, %v9658
      %v9691 = vpack.c.bf16 %v9659, %v9659
      %v9692 = vpack.c.bf16 %v9660, %v9660
      %v9693 = vpack.c.bf16 %v9661, %v9661
      %v9694 = vpack.c.bf16 %v9662, %v9662
      %v9695 = vpack.c.bf16 %v9663, %v9663
      %v9696 = vpack.c.bf16 %v9664, %v9664
      %v9697 = vpack.c.bf16 %v9665, %v9665
      %v9698 = vpack.c.bf16 %v9666, %v9666
      %v9699 = vpack.c.bf16 %v9667, %v9667
      %9732 = vrot.lane.b32.xlu0 %v9668, 56
      %v9733 = vpop.permute.xlu0 %9732
      %9734 = vrot.lane.b32.xlu0 %v9669, 56
      %v9735 = vpop.permute.xlu0 %9734
      %9736 = vrot.lane.b32.xlu0 %v9670, 56
      %v9737 = vpop.permute.xlu0 %9736
      %9738 = vrot.lane.b32.xlu0 %v9671, 56
      %v9739 = vpop.permute.xlu0 %9738
      %9740 = vrot.lane.b32.xlu0 %v9672, 56
      %v9741 = vpop.permute.xlu0 %9740
      %9742 = vrot.lane.b32.xlu0 %v9673, 56
      %v9743 = vpop.permute.xlu0 %9742
      %9744 = vrot.lane.b32.xlu0 %v9674, 56
      %v9745 = vpop.permute.xlu0 %9744
      %9746 = vrot.lane.b32.xlu0 %v9675, 56
      %v9747 = vpop.permute.xlu0 %9746
      %9748 = vrot.lane.b32.xlu0 %v9676, 56
      %v9749 = vpop.permute.xlu0 %9748
      %9750 = vrot.lane.b32.xlu0 %v9677, 56
      %v9751 = vpop.permute.xlu0 %9750
      %9752 = vrot.lane.b32.xlu0 %v9678, 56
      %v9753 = vpop.permute.xlu0 %9752
      %9754 = vrot.lane.b32.xlu0 %v9679, 56
      %v9755 = vpop.permute.xlu0 %9754
      %9756 = vrot.lane.b32.xlu0 %v9680, 56
      %v9757 = vpop.permute.xlu0 %9756
      %9758 = vrot.lane.b32.xlu0 %v9681, 56
      %v9759 = vpop.permute.xlu0 %9758
      %9760 = vrot.lane.b32.xlu0 %v9682, 56
      %v9761 = vpop.permute.xlu0 %9760
      %9762 = vrot.lane.b32.xlu0 %v9683, 56
      %v9763 = vpop.permute.xlu0 %9762
      %9764 = vrot.lane.b32.xlu0 %v9684, 56
      %v9765 = vpop.permute.xlu0 %9764
      %9766 = vrot.lane.b32.xlu0 %v9685, 56
      %v9767 = vpop.permute.xlu0 %9766
      %9768 = vrot.lane.b32.xlu0 %v9686, 56
      %v9769 = vpop.permute.xlu0 %9768
      %9770 = vrot.lane.b32.xlu0 %v9687, 56
      %v9771 = vpop.permute.xlu0 %9770
      %9772 = vrot.lane.b32.xlu0 %v9688, 56
      %v9773 = vpop.permute.xlu0 %9772
      %9774 = vrot.lane.b32.xlu0 %v9689, 56
      %v9775 = vpop.permute.xlu0 %9774
      %9776 = vrot.lane.b32.xlu0 %v9690, 56
      %v9777 = vpop.permute.xlu0 %9776
      %9778 = vrot.lane.b32.xlu0 %v9691, 56
      %v9779 = vpop.permute.xlu0 %9778
      %9780 = vrot.lane.b32.xlu0 %v9692, 56
      %v9781 = vpop.permute.xlu0 %9780
      %9782 = vrot.lane.b32.xlu0 %v9693, 56
      %v9783 = vpop.permute.xlu0 %9782
      %9784 = vrot.lane.b32.xlu0 %v9694, 56
      %v9785 = vpop.permute.xlu0 %9784
      %9786 = vrot.lane.b32.xlu0 %v9695, 56
      %v9787 = vpop.permute.xlu0 %9786
      %9788 = vrot.lane.b32.xlu0 %v9696, 56
      %v9789 = vpop.permute.xlu0 %9788
      %9790 = vrot.lane.b32.xlu0 %v9697, 56
      %v9791 = vpop.permute.xlu0 %9790
      %9792 = vrot.lane.b32.xlu0 %v9698, 56
      %v9793 = vpop.permute.xlu0 %9792
      %9794 = vrot.lane.b32.xlu0 %v9699, 56
      %v9795 = vpop.permute.xlu0 %9794
      %9828 = vst.msk [vmem:[#allocation3] sm:$0xf] %vm2257, %v9733
      %9829 = vst.msk [vmem:[#allocation3 + $0x4] sm:$0xf] %vm2257, %v9735
      %9830 = vst.msk [vmem:[#allocation3 + $0x8] sm:$0xf] %vm2257, %v9737
      %9831 = vst.msk [vmem:[#allocation3 + $0xc] sm:$0xf] %vm2257, %v9739
      %9832 = vst.msk [vmem:[#allocation3 + $0x10] sm:$0xf] %vm2257, %v9741
      %9833 = vst.msk [vmem:[#allocation3 + $0x14] sm:$0xf] %vm2257, %v9743
      %9834 = vst.msk [vmem:[#allocation3 + $0x18] sm:$0xf] %vm2257, %v9745
      %9835 = vst.msk [vmem:[#allocation3 + $0x1c] sm:$0xf] %vm2257, %v9747
      %9836 = vst.msk [vmem:[#allocation3 + $0x20] sm:$0xf] %vm2257, %v9749
      %9837 = vst.msk [vmem:[#allocation3 + $0x24] sm:$0xf] %vm2257, %v9751
      %9838 = vst.msk [vmem:[#allocation3 + $0x28] sm:$0xf] %vm2257, %v9753
      %9839 = vst.msk [vmem:[#allocation3 + $0x2c] sm:$0xf] %vm2257, %v9755
      %9840 = vst.msk [vmem:[#allocation3 + $0x30] sm:$0xf] %vm2257, %v9757
      %9841 = vst.msk [vmem:[#allocation3 + $0x34] sm:$0xf] %vm2257, %v9759
      %9842 = vst.msk [vmem:[#allocation3 + $0x38] sm:$0xf] %vm2257, %v9761
      %9843 = vst.msk [vmem:[#allocation3 + $0x3c] sm:$0xf] %vm2257, %v9763
      %9844 = vst.msk [vmem:[#allocation3 + $0x40] sm:$0xf] %vm2257, %v9765
      %9845 = vst.msk [vmem:[#allocation3 + $0x44] sm:$0xf] %vm2257, %v9767
      %9846 = vst.msk [vmem:[#allocation3 + $0x48] sm:$0xf] %vm2257, %v9769
      %9847 = vst.msk [vmem:[#allocation3 + $0x4c] sm:$0xf] %vm2257, %v9771
      %9848 = vst.msk [vmem:[#allocation3 + $0x50] sm:$0xf] %vm2257, %v9773
      %9849 = vst.msk [vmem:[#allocation3 + $0x54] sm:$0xf] %vm2257, %v9775
      %9850 = vst.msk [vmem:[#allocation3 + $0x58] sm:$0xf] %vm2257, %v9777
      %9851 = vst.msk [vmem:[#allocation3 + $0x5c] sm:$0xf] %vm2257, %v9779
      %9852 = vst.msk [vmem:[#allocation3 + $0x60] sm:$0xf] %vm2257, %v9781
      %9853 = vst.msk [vmem:[#allocation3 + $0x64] sm:$0xf] %vm2257, %v9783
      %9854 = vst.msk [vmem:[#allocation3 + $0x68] sm:$0xf] %vm2257, %v9785
      %9855 = vst.msk [vmem:[#allocation3 + $0x6c] sm:$0xf] %vm2257, %v9787
      %9856 = vst.msk [vmem:[#allocation3 + $0x70] sm:$0xf] %vm2257, %v9789
      %9857 = vst.msk [vmem:[#allocation3 + $0x74] sm:$0xf] %vm2257, %v9791
      %9858 = vst.msk [vmem:[#allocation3 + $0x78] sm:$0xf] %vm2257, %v9793
      %9859 = vst.msk [vmem:[#allocation3 + $0x7c] sm:$0xf] %vm2257, %v9795
      %v9860 = vld [vmem:[%s1839 + $0x2] sm:$0xff]
      %v9861 = vld [vmem:[%s1839 + $0xa] sm:$0xff]
      %v9862 = vld [vmem:[%s1839 + $0x1a] sm:$0xff]
      %v9863 = vld [vmem:[%s1839 + $0x22] sm:$0xff]
      %v9864 = vld [vmem:[%s1839 + $0x32] sm:$0xff]
      %v9865 = vld [vmem:[%s1839 + $0x3a] sm:$0xff]
      %v9866 = vld [vmem:[%s1839 + $0x4a] sm:$0xff]
      %v9867 = vld [vmem:[%s1839 + $0x52] sm:$0xff]
      %v9868 = vld [vmem:[%s1839 + $0x62] sm:$0xff]
      %v9869 = vld [vmem:[%s1839 + $0x6a] sm:$0xff]
      %v9870 = vld [vmem:[%s1839 + $0x7a] sm:$0xff]
      %v9871 = vld [vmem:[%s1839 + $0x82] sm:$0xff]
      %v9872 = vld [vmem:[%s1839 + $0x92] sm:$0xff]
      %v9873 = vld [vmem:[%s1839 + $0x9a] sm:$0xff]
      %v9874 = vld [vmem:[%s1839 + $0xaa] sm:$0xff]
      %v9875 = vld [vmem:[%s1839 + $0xb2] sm:$0xff]
      %v9876 = vld [vmem:[%s1839 + $0xc2] sm:$0xff]
      %v9877 = vld [vmem:[%s1839 + $0xca] sm:$0xff]
      %v9878 = vld [vmem:[%s1839 + $0xda] sm:$0xff]
      %v9879 = vld [vmem:[%s1839 + $0xe2] sm:$0xff]
      %v9880 = vld [vmem:[%s1839 + $0xf2] sm:$0xff]
      %v9881 = vld [vmem:[%s1839 + $0xfa] sm:$0xff]
      %v9882 = vld [vmem:[%s1839 + $0x10a] sm:$0xff]
      %v9883 = vld [vmem:[%s1839 + $0x112] sm:$0xff]
      %v9884 = vld [vmem:[%s1839 + $0x122] sm:$0xff]
      %v9885 = vld [vmem:[%s1839 + $0x12a] sm:$0xff]
      %v9886 = vld [vmem:[%s1839 + $0x13a] sm:$0xff]
      %v9887 = vld [vmem:[%s1839 + $0x142] sm:$0xff]
      %v9888 = vld [vmem:[%s1839 + $0x152] sm:$0xff]
      %v9889 = vld [vmem:[%s1839 + $0x15a] sm:$0xff]
      %v9890 = vld [vmem:[%s1839 + $0x16a] sm:$0xff]
      %v9891 = vld [vmem:[%s1839 + $0x172] sm:$0xff]
      %v9892 = vpack.c.bf16 %v9860, %v9860
      %v9893 = vpack.c.bf16 %v9861, %v9861
      %v9894 = vpack.c.bf16 %v9862, %v9862
      %v9895 = vpack.c.bf16 %v9863, %v9863
      %v9896 = vpack.c.bf16 %v9864, %v9864
      %v9897 = vpack.c.bf16 %v9865, %v9865
      %v9898 = vpack.c.bf16 %v9866, %v9866
      %v9899 = vpack.c.bf16 %v9867, %v9867
      %v9900 = vpack.c.bf16 %v9868, %v9868
      %v9901 = vpack.c.bf16 %v9869, %v9869
      %v9902 = vpack.c.bf16 %v9870, %v9870
      %v9903 = vpack.c.bf16 %v9871, %v9871
      %v9904 = vpack.c.bf16 %v9872, %v9872
      %v9905 = vpack.c.bf16 %v9873, %v9873
      %v9906 = vpack.c.bf16 %v9874, %v9874
      %v9907 = vpack.c.bf16 %v9875, %v9875
      %v9908 = vpack.c.bf16 %v9876, %v9876
      %v9909 = vpack.c.bf16 %v9877, %v9877
      %v9910 = vpack.c.bf16 %v9878, %v9878
      %v9911 = vpack.c.bf16 %v9879, %v9879
      %v9912 = vpack.c.bf16 %v9880, %v9880
      %v9913 = vpack.c.bf16 %v9881, %v9881
      %v9914 = vpack.c.bf16 %v9882, %v9882
      %v9915 = vpack.c.bf16 %v9883, %v9883
      %v9916 = vpack.c.bf16 %v9884, %v9884
      %v9917 = vpack.c.bf16 %v9885, %v9885
      %v9918 = vpack.c.bf16 %v9886, %v9886
      %v9919 = vpack.c.bf16 %v9887, %v9887
      %v9920 = vpack.c.bf16 %v9888, %v9888
      %v9921 = vpack.c.bf16 %v9889, %v9889
      %v9922 = vpack.c.bf16 %v9890, %v9890
      %v9923 = vpack.c.bf16 %v9891, %v9891
      %9956 = vrot.lane.b32.xlu0 %v9892, 64
      %v9957 = vpop.permute.xlu0 %9956
      %9958 = vrot.lane.b32.xlu0 %v9893, 64
      %v9959 = vpop.permute.xlu0 %9958
      %9960 = vrot.lane.b32.xlu0 %v9894, 64
      %v9961 = vpop.permute.xlu0 %9960
      %9962 = vrot.lane.b32.xlu0 %v9895, 64
      %v9963 = vpop.permute.xlu0 %9962
      %9964 = vrot.lane.b32.xlu0 %v9896, 64
      %v9965 = vpop.permute.xlu0 %9964
      %9966 = vrot.lane.b32.xlu0 %v9897, 64
      %v9967 = vpop.permute.xlu0 %9966
      %9968 = vrot.lane.b32.xlu0 %v9898, 64
      %v9969 = vpop.permute.xlu0 %9968
      %9970 = vrot.lane.b32.xlu0 %v9899, 64
      %v9971 = vpop.permute.xlu0 %9970
      %9972 = vrot.lane.b32.xlu0 %v9900, 64
      %v9973 = vpop.permute.xlu0 %9972
      %9974 = vrot.lane.b32.xlu0 %v9901, 64
      %v9975 = vpop.permute.xlu0 %9974
      %9976 = vrot.lane.b32.xlu0 %v9902, 64
      %v9977 = vpop.permute.xlu0 %9976
      %9978 = vrot.lane.b32.xlu0 %v9903, 64
      %v9979 = vpop.permute.xlu0 %9978
      %9980 = vrot.lane.b32.xlu0 %v9904, 64
      %v9981 = vpop.permute.xlu0 %9980
      %9982 = vrot.lane.b32.xlu0 %v9905, 64
      %v9983 = vpop.permute.xlu0 %9982
      %9984 = vrot.lane.b32.xlu0 %v9906, 64
      %v9985 = vpop.permute.xlu0 %9984
      %9986 = vrot.lane.b32.xlu0 %v9907, 64
      %v9987 = vpop.permute.xlu0 %9986
      %9988 = vrot.lane.b32.xlu0 %v9908, 64
      %v9989 = vpop.permute.xlu0 %9988
      %9990 = vrot.lane.b32.xlu0 %v9909, 64
      %v9991 = vpop.permute.xlu0 %9990
      %9992 = vrot.lane.b32.xlu0 %v9910, 64
      %v9993 = vpop.permute.xlu0 %9992
      %9994 = vrot.lane.b32.xlu0 %v9911, 64
      %v9995 = vpop.permute.xlu0 %9994
      %9996 = vrot.lane.b32.xlu0 %v9912, 64
      %v9997 = vpop.permute.xlu0 %9996
      %9998 = vrot.lane.b32.xlu0 %v9913, 64
      %v9999 = vpop.permute.xlu0 %9998
      %10000 = vrot.lane.b32.xlu0 %v9914, 64
      %v10001 = vpop.permute.xlu0 %10000
      %10002 = vrot.lane.b32.xlu0 %v9915, 64
      %v10003 = vpop.permute.xlu0 %10002
      %10004 = vrot.lane.b32.xlu0 %v9916, 64
      %v10005 = vpop.permute.xlu0 %10004
      %10006 = vrot.lane.b32.xlu0 %v9917, 64
      %v10007 = vpop.permute.xlu0 %10006
      %10008 = vrot.lane.b32.xlu0 %v9918, 64
      %v10009 = vpop.permute.xlu0 %10008
      %10010 = vrot.lane.b32.xlu0 %v9919, 64
      %v10011 = vpop.permute.xlu0 %10010
      %10012 = vrot.lane.b32.xlu0 %v9920, 64
      %v10013 = vpop.permute.xlu0 %10012
      %10014 = vrot.lane.b32.xlu0 %v9921, 64
      %v10015 = vpop.permute.xlu0 %10014
      %10016 = vrot.lane.b32.xlu0 %v9922, 64
      %v10017 = vpop.permute.xlu0 %10016
      %10018 = vrot.lane.b32.xlu0 %v9923, 64
      %v10019 = vpop.permute.xlu0 %10018
      %10052 = vst.msk [vmem:[#allocation3] sm:$0xf] %vm2482, %v9957
      %10053 = vst.msk [vmem:[#allocation3 + $0x4] sm:$0xf] %vm2482, %v9959
      %10054 = vst.msk [vmem:[#allocation3 + $0x8] sm:$0xf] %vm2482, %v9961
      %10055 = vst.msk [vmem:[#allocation3 + $0xc] sm:$0xf] %vm2482, %v9963
      %10056 = vst.msk [vmem:[#allocation3 + $0x10] sm:$0xf] %vm2482, %v9965
      %10057 = vst.msk [vmem:[#allocation3 + $0x14] sm:$0xf] %vm2482, %v9967
      %10058 = vst.msk [vmem:[#allocation3 + $0x18] sm:$0xf] %vm2482, %v9969
      %10059 = vst.msk [vmem:[#allocation3 + $0x1c] sm:$0xf] %vm2482, %v9971
      %10060 = vst.msk [vmem:[#allocation3 + $0x20] sm:$0xf] %vm2482, %v9973
      %10061 = vst.msk [vmem:[#allocation3 + $0x24] sm:$0xf] %vm2482, %v9975
      %10062 = vst.msk [vmem:[#allocation3 + $0x28] sm:$0xf] %vm2482, %v9977
      %10063 = vst.msk [vmem:[#allocation3 + $0x2c] sm:$0xf] %vm2482, %v9979
      %10064 = vst.msk [vmem:[#allocation3 + $0x30] sm:$0xf] %vm2482, %v9981
      %10065 = vst.msk [vmem:[#allocation3 + $0x34] sm:$0xf] %vm2482, %v9983
      %10066 = vst.msk [vmem:[#allocation3 + $0x38] sm:$0xf] %vm2482, %v9985
      %10067 = vst.msk [vmem:[#allocation3 + $0x3c] sm:$0xf] %vm2482, %v9987
      %10068 = vst.msk [vmem:[#allocation3 + $0x40] sm:$0xf] %vm2482, %v9989
      %10069 = vst.msk [vmem:[#allocation3 + $0x44] sm:$0xf] %vm2482, %v9991
      %10070 = vst.msk [vmem:[#allocation3 + $0x48] sm:$0xf] %vm2482, %v9993
      %10071 = vst.msk [vmem:[#allocation3 + $0x4c] sm:$0xf] %vm2482, %v9995
      %10072 = vst.msk [vmem:[#allocation3 + $0x50] sm:$0xf] %vm2482, %v9997
      %10073 = vst.msk [vmem:[#allocation3 + $0x54] sm:$0xf] %vm2482, %v9999
      %10074 = vst.msk [vmem:[#allocation3 + $0x58] sm:$0xf] %vm2482, %v10001
      %10075 = vst.msk [vmem:[#allocation3 + $0x5c] sm:$0xf] %vm2482, %v10003
      %10076 = vst.msk [vmem:[#allocation3 + $0x60] sm:$0xf] %vm2482, %v10005
      %10077 = vst.msk [vmem:[#allocation3 + $0x64] sm:$0xf] %vm2482, %v10007
      %10078 = vst.msk [vmem:[#allocation3 + $0x68] sm:$0xf] %vm2482, %v10009
      %10079 = vst.msk [vmem:[#allocation3 + $0x6c] sm:$0xf] %vm2482, %v10011
      %10080 = vst.msk [vmem:[#allocation3 + $0x70] sm:$0xf] %vm2482, %v10013
      %10081 = vst.msk [vmem:[#allocation3 + $0x74] sm:$0xf] %vm2482, %v10015
      %10082 = vst.msk [vmem:[#allocation3 + $0x78] sm:$0xf] %vm2482, %v10017
      %10083 = vst.msk [vmem:[#allocation3 + $0x7c] sm:$0xf] %vm2482, %v10019
      %v10084 = vld [vmem:[#allocation3] sm:$0xf]
      %v10085 = vld [vmem:[#allocation3 + $0x4] sm:$0xf]
      %v10086 = vld [vmem:[#allocation3 + $0x8] sm:$0xf]
      %v10087 = vld [vmem:[#allocation3 + $0xc] sm:$0xf]
      %v10088 = vld [vmem:[#allocation3 + $0x10] sm:$0xf]
      %v10089 = vld [vmem:[#allocation3 + $0x14] sm:$0xf]
      %v10090 = vld [vmem:[#allocation3 + $0x18] sm:$0xf]
      %v10091 = vld [vmem:[#allocation3 + $0x1c] sm:$0xf]
      %v10092 = vld [vmem:[#allocation3 + $0x20] sm:$0xf]
      %v10093 = vld [vmem:[#allocation3 + $0x24] sm:$0xf]
      %v10094 = vld [vmem:[#allocation3 + $0x28] sm:$0xf]
      %v10095 = vld [vmem:[#allocation3 + $0x2c] sm:$0xf]
      %v10096 = vld [vmem:[#allocation3 + $0x30] sm:$0xf]
      %v10097 = vld [vmem:[#allocation3 + $0x34] sm:$0xf]
      %v10098 = vld [vmem:[#allocation3 + $0x38] sm:$0xf]
      %v10099 = vld [vmem:[#allocation3 + $0x3c] sm:$0xf]
      %v10100 = vld [vmem:[#allocation3 + $0x40] sm:$0xf]
      %v10101 = vld [vmem:[#allocation3 + $0x44] sm:$0xf]
      %v10102 = vld [vmem:[#allocation3 + $0x48] sm:$0xf]
      %v10103 = vld [vmem:[#allocation3 + $0x4c] sm:$0xf]
      %v10104 = vld [vmem:[#allocation3 + $0x50] sm:$0xf]
      %v10105 = vld [vmem:[#allocation3 + $0x54] sm:$0xf]
      %v10106 = vld [vmem:[#allocation3 + $0x58] sm:$0xf]
      %v10107 = vld [vmem:[#allocation3 + $0x5c] sm:$0xf]
      %v10108 = vld [vmem:[#allocation3 + $0x60] sm:$0xf]
      %v10109 = vld [vmem:[#allocation3 + $0x64] sm:$0xf]
      %v10110 = vld [vmem:[#allocation3 + $0x68] sm:$0xf]
      %v10111 = vld [vmem:[#allocation3 + $0x6c] sm:$0xf]
      %v10112 = vld [vmem:[#allocation3 + $0x70] sm:$0xf]
      %v10113 = vld [vmem:[#allocation3 + $0x74] sm:$0xf]
      %v10114 = vld [vmem:[#allocation3 + $0x78] sm:$0xf]
      %v10115 = vld [vmem:[#allocation3 + $0x7c] sm:$0xf]
      %v10116 = vld [vmem:[%s7] sm:$0xf]
      %v10117 = vld [vmem:[%s7 + $0x4] sm:$0xf]
      %v10118 = vld [vmem:[%s7 + $0x8] sm:$0xf]
      %v10119 = vld [vmem:[%s7 + $0xc] sm:$0xf]
      %v10120 = vld [vmem:[%s7 + $0x10] sm:$0xf]
      %v10121 = vld [vmem:[%s7 + $0x14] sm:$0xf]
      %v10122 = vld [vmem:[%s7 + $0x18] sm:$0xf]
      %v10123 = vld [vmem:[%s7 + $0x1c] sm:$0xf]
      %v10124 = vld [vmem:[%s7 + $0x20] sm:$0xf]
      %v10125 = vld [vmem:[%s8] sm:$0x1]
      %v10127 = vperm.slane %v10125, 0
      %v10161 = vunpack.c.l.b16 %v10084
      %v10162 = vunpack.c.l.b16 %v10085
      %v10163 = vunpack.c.l.b16 %v10086
      %v10164 = vunpack.c.l.b16 %v10087
      %v10165 = vunpack.c.l.b16 %v10088
      %v10166 = vunpack.c.l.b16 %v10089
      %v10167 = vunpack.c.l.b16 %v10090
      %v10168 = vunpack.c.l.b16 %v10091
      %v10169 = vunpack.c.l.b16 %v10092
      %v10170 = vunpack.c.l.b16 %v10093
      %v10171 = vunpack.c.l.b16 %v10094
      %v10172 = vunpack.c.l.b16 %v10095
      %v10173 = vunpack.c.l.b16 %v10096
      %v10174 = vunpack.c.l.b16 %v10097
      %v10175 = vunpack.c.l.b16 %v10098
      %v10176 = vunpack.c.l.b16 %v10099
      %v10177 = vunpack.c.l.b16 %v10100
      %v10178 = vunpack.c.l.b16 %v10101
      %v10179 = vunpack.c.l.b16 %v10102
      %v10180 = vunpack.c.l.b16 %v10103
      %v10181 = vunpack.c.l.b16 %v10104
      %v10182 = vunpack.c.l.b16 %v10105
      %v10183 = vunpack.c.l.b16 %v10106
      %v10184 = vunpack.c.l.b16 %v10107
      %v10185 = vunpack.c.l.b16 %v10108
      %v10186 = vunpack.c.l.b16 %v10109
      %v10187 = vunpack.c.l.b16 %v10110
      %v10188 = vunpack.c.l.b16 %v10111
      %v10189 = vunpack.c.l.b16 %v10112
      %v10190 = vunpack.c.l.b16 %v10113
      %v10191 = vunpack.c.l.b16 %v10114
      %v10192 = vunpack.c.l.b16 %v10115
      %v10193 = vpack.c.b16 %v10162, %v10161
      %v10194 = vpack.c.b16 %v10164, %v10163
      %v10195 = vpack.c.b16 %v10166, %v10165
      %v10196 = vpack.c.b16 %v10168, %v10167
      %v10197 = vpack.c.b16 %v10170, %v10169
      %v10198 = vpack.c.b16 %v10172, %v10171
      %v10199 = vpack.c.b16 %v10174, %v10173
      %v10200 = vpack.c.b16 %v10176, %v10175
      %v10201 = vpack.c.b16 %v10178, %v10177
      %v10202 = vpack.c.b16 %v10180, %v10179
      %v10203 = vpack.c.b16 %v10182, %v10181
      %v10204 = vpack.c.b16 %v10184, %v10183
      %v10205 = vpack.c.b16 %v10186, %v10185
      %v10206 = vpack.c.b16 %v10188, %v10187
      %v10207 = vpack.c.b16 %v10190, %v10189
      %v10208 = vpack.c.b16 %v10192, %v10191
      %v10218 = vunpack.c.l.b16 %v10116
      %v10219 = vunpack.c.l.b16 %v10117
      %v10220 = vunpack.c.l.b16 %v10118
      %v10221 = vunpack.c.l.b16 %v10119
      %v10222 = vunpack.c.l.b16 %v10120
      %v10223 = vunpack.c.l.b16 %v10121
      %v10224 = vunpack.c.l.b16 %v10122
      %v10225 = vunpack.c.l.b16 %v10123
      %v10226 = vunpack.c.l.b16 %v10124
      %v10227 = vpack.c.b16 %v10219, %v10218
      %v10228 = vpack.c.b16 %v10221, %v10220
      %v10229 = vpack.c.b16 %v10223, %v10222
      %v10230 = vpack.c.b16 %v10225, %v10224
      %v10231 = vpack.c.b16 %v10226, %v10226
      %v10237 = vsel %vm2667, %v10193, 0
      %v10240 = vsel %vm2667, %v10194, 0
      %v10243 = vsel %vm2667, %v10195, 0
      %v10246 = vsel %vm2667, %v10196, 0
      %v10249 = vsel %vm2667, %v10197, 0
      %v10252 = vsel %vm2667, %v10198, 0
      %v10255 = vsel %vm2667, %v10199, 0
      %v10258 = vsel %vm2667, %v10200, 0
      %v10261 = vsel %vm2667, %v10201, 0
      %v10264 = vsel %vm2667, %v10202, 0
      %v10267 = vsel %vm2667, %v10203, 0
      %v10270 = vsel %vm2667, %v10204, 0
      %v10273 = vsel %vm2667, %v10205, 0
      %v10276 = vsel %vm2667, %v10206, 0
      %v10279 = vsel %vm2667, %v10207, 0
      %v10282 = vsel %vm2667, %v10208, 0
      %v10285 = vsel %vm2716, %v10231, 0
      %10287 = vmatpush.bf16.msra.mxu0 0
      %10288 = vmatpush.bf16.msra.mxu0 0
      %10289 = vmatpush.bf16.msra.mxu0 0
      %10290 = vmatpush.bf16.msra.mxu0 %v10285
      %10291 = vmatpush.bf16.msra.mxu0 %v10230
      %10292 = vmatpush.bf16.msra.mxu0 %v10229
      %10293 = vmatpush.bf16.msra.mxu0 %v10228
      %10294 = vmatpush.bf16.msra.mxu0 %v10227
      %10295 = vmatmul.bf16.gmra.mxu0 %v10237
      %v10296 = vpop.f32.mrf.mxu0
      %v10297 = vadd.f32 %v10127, %v10296
      %v10298 = vpop.f32.mrf.mxu0
      %v10299 = vadd.f32 %v10127, %v10298
      %10300 = vmatmul.bf16.gmra.mxu0 %v10240
      %v10301 = vpop.f32.mrf.mxu0
      %v10302 = vadd.f32 %v10127, %v10301
      %v10303 = vpop.f32.mrf.mxu0
      %v10304 = vadd.f32 %v10127, %v10303
      %10305 = vmatmul.bf16.gmra.mxu0 %v10243
      %v10306 = vpop.f32.mrf.mxu0
      %v10307 = vadd.f32 %v10127, %v10306
      %v10308 = vpop.f32.mrf.mxu0
      %v10309 = vadd.f32 %v10127, %v10308
      %10310 = vmatmul.bf16.gmra.mxu0 %v10246
      %v10311 = vpop.f32.mrf.mxu0
      %v10312 = vadd.f32 %v10127, %v10311
      %v10313 = vpop.f32.mrf.mxu0
      %v10314 = vadd.f32 %v10127, %v10313
      %10315 = vmatmul.bf16.gmra.mxu0 %v10249
      %v10316 = vpop.f32.mrf.mxu0
      %v10317 = vadd.f32 %v10127, %v10316
      %v10318 = vpop.f32.mrf.mxu0
      %v10319 = vadd.f32 %v10127, %v10318
      %10320 = vmatmul.bf16.gmra.mxu0 %v10252
      %v10321 = vpop.f32.mrf.mxu0
      %v10322 = vadd.f32 %v10127, %v10321
      %v10323 = vpop.f32.mrf.mxu0
      %v10324 = vadd.f32 %v10127, %v10323
      %10325 = vmatmul.bf16.gmra.mxu0 %v10255
      %v10326 = vpop.f32.mrf.mxu0
      %v10327 = vadd.f32 %v10127, %v10326
      %v10328 = vpop.f32.mrf.mxu0
      %v10329 = vadd.f32 %v10127, %v10328
      %10330 = vmatmul.bf16.gmra.mxu0 %v10258
      %v10331 = vpop.f32.mrf.mxu0
      %v10332 = vadd.f32 %v10127, %v10331
      %v10333 = vpop.f32.mrf.mxu0
      %v10334 = vadd.f32 %v10127, %v10333
      %10335 = vmatmul.bf16.gmra.mxu0 %v10261
      %v10336 = vpop.f32.mrf.mxu0
      %v10337 = vadd.f32 %v10127, %v10336
      %v10338 = vpop.f32.mrf.mxu0
      %v10339 = vadd.f32 %v10127, %v10338
      %10340 = vmatmul.bf16.gmra.mxu0 %v10264
      %v10341 = vpop.f32.mrf.mxu0
      %v10342 = vadd.f32 %v10127, %v10341
      %v10343 = vpop.f32.mrf.mxu0
      %v10344 = vadd.f32 %v10127, %v10343
      %10345 = vmatmul.bf16.gmra.mxu0 %v10267
      %v10346 = vpop.f32.mrf.mxu0
      %v10347 = vadd.f32 %v10127, %v10346
      %v10348 = vpop.f32.mrf.mxu0
      %v10349 = vadd.f32 %v10127, %v10348
      %10350 = vmatmul.bf16.gmra.mxu0 %v10270
      %v10351 = vpop.f32.mrf.mxu0
      %v10352 = vadd.f32 %v10127, %v10351
      %v10353 = vpop.f32.mrf.mxu0
      %v10354 = vadd.f32 %v10127, %v10353
      %10355 = vmatmul.bf16.gmra.mxu0 %v10273
      %v10356 = vpop.f32.mrf.mxu0
      %v10357 = vadd.f32 %v10127, %v10356
      %v10358 = vpop.f32.mrf.mxu0
      %v10359 = vadd.f32 %v10127, %v10358
      %10360 = vmatmul.bf16.gmra.mxu0 %v10276
      %v10361 = vpop.f32.mrf.mxu0
      %v10362 = vadd.f32 %v10127, %v10361
      %v10363 = vpop.f32.mrf.mxu0
      %v10364 = vadd.f32 %v10127, %v10363
      %10365 = vmatmul.bf16.gmra.mxu0 %v10279
      %v10366 = vpop.f32.mrf.mxu0
      %v10367 = vadd.f32 %v10127, %v10366
      %v10368 = vpop.f32.mrf.mxu0
      %v10369 = vadd.f32 %v10127, %v10368
      %10370 = vmatmul.bf16.gmra.mxu0 %v10282
      %v10371 = vpop.f32.mrf.mxu0
      %v10372 = vadd.f32 %v10127, %v10371
      %v10373 = vpop.f32.mrf.mxu0
      %v10374 = vadd.f32 %v10127, %v10373
      %10375 = vdwg.mxu0
      %v10376 = vmax.f32 %v10297, 0.0
      %v10377 = vmax.f32 %v10299, 0.0
      %v10378 = vmax.f32 %v10302, 0.0
      %v10379 = vmax.f32 %v10304, 0.0
      %v10380 = vmax.f32 %v10307, 0.0
      %v10381 = vmax.f32 %v10309, 0.0
      %v10382 = vmax.f32 %v10312, 0.0
      %v10383 = vmax.f32 %v10314, 0.0
      %v10384 = vmax.f32 %v10317, 0.0
      %v10385 = vmax.f32 %v10319, 0.0
      %v10386 = vmax.f32 %v10322, 0.0
      %v10387 = vmax.f32 %v10324, 0.0
      %v10388 = vmax.f32 %v10327, 0.0
      %v10389 = vmax.f32 %v10329, 0.0
      %v10390 = vmax.f32 %v10332, 0.0
      %v10391 = vmax.f32 %v10334, 0.0
      %v10392 = vmax.f32 %v10337, 0.0
      %v10393 = vmax.f32 %v10339, 0.0
      %v10394 = vmax.f32 %v10342, 0.0
      %v10395 = vmax.f32 %v10344, 0.0
      %v10396 = vmax.f32 %v10347, 0.0
      %v10397 = vmax.f32 %v10349, 0.0
      %v10398 = vmax.f32 %v10352, 0.0
      %v10399 = vmax.f32 %v10354, 0.0
      %v10400 = vmax.f32 %v10357, 0.0
      %v10401 = vmax.f32 %v10359, 0.0
      %v10402 = vmax.f32 %v10362, 0.0
      %v10403 = vmax.f32 %v10364, 0.0
      %v10404 = vmax.f32 %v10367, 0.0
      %v10405 = vmax.f32 %v10369, 0.0
      %v10406 = vmax.f32 %v10372, 0.0
      %v10407 = vmax.f32 %v10374, 0.0
      %10440 = vrot.lane.b32.xlu0 %v10376, 16
      %v10441 = vpop.permute.xlu0 %10440
      %10442 = vrot.lane.b32.xlu0 %v10377, 16
      %v10443 = vpop.permute.xlu0 %10442
      %10444 = vrot.lane.b32.xlu0 %v10378, 16
      %v10445 = vpop.permute.xlu0 %10444
      %10446 = vrot.lane.b32.xlu0 %v10379, 16
      %v10447 = vpop.permute.xlu0 %10446
      %10448 = vrot.lane.b32.xlu0 %v10380, 16
      %v10449 = vpop.permute.xlu0 %10448
      %10450 = vrot.lane.b32.xlu0 %v10381, 16
      %v10451 = vpop.permute.xlu0 %10450
      %10452 = vrot.lane.b32.xlu0 %v10382, 16
      %v10453 = vpop.permute.xlu0 %10452
      %10454 = vrot.lane.b32.xlu0 %v10383, 16
      %v10455 = vpop.permute.xlu0 %10454
      %10456 = vrot.lane.b32.xlu0 %v10384, 16
      %v10457 = vpop.permute.xlu0 %10456
      %10458 = vrot.lane.b32.xlu0 %v10385, 16
      %v10459 = vpop.permute.xlu0 %10458
      %10460 = vrot.lane.b32.xlu0 %v10386, 16
      %v10461 = vpop.permute.xlu0 %10460
      %10462 = vrot.lane.b32.xlu0 %v10387, 16
      %v10463 = vpop.permute.xlu0 %10462
      %10464 = vrot.lane.b32.xlu0 %v10388, 16
      %v10465 = vpop.permute.xlu0 %10464
      %10466 = vrot.lane.b32.xlu0 %v10389, 16
      %v10467 = vpop.permute.xlu0 %10466
      %10468 = vrot.lane.b32.xlu0 %v10390, 16
      %v10469 = vpop.permute.xlu0 %10468
      %10470 = vrot.lane.b32.xlu0 %v10391, 16
      %v10471 = vpop.permute.xlu0 %10470
      %10472 = vrot.lane.b32.xlu0 %v10392, 16
      %v10473 = vpop.permute.xlu0 %10472
      %10474 = vrot.lane.b32.xlu0 %v10393, 16
      %v10475 = vpop.permute.xlu0 %10474
      %10476 = vrot.lane.b32.xlu0 %v10394, 16
      %v10477 = vpop.permute.xlu0 %10476
      %10478 = vrot.lane.b32.xlu0 %v10395, 16
      %v10479 = vpop.permute.xlu0 %10478
      %10480 = vrot.lane.b32.xlu0 %v10396, 16
      %v10481 = vpop.permute.xlu0 %10480
      %10482 = vrot.lane.b32.xlu0 %v10397, 16
      %v10483 = vpop.permute.xlu0 %10482
      %10484 = vrot.lane.b32.xlu0 %v10398, 16
      %v10485 = vpop.permute.xlu0 %10484
      %10486 = vrot.lane.b32.xlu0 %v10399, 16
      %v10487 = vpop.permute.xlu0 %10486
      %10488 = vrot.lane.b32.xlu0 %v10400, 16
      %v10489 = vpop.permute.xlu0 %10488
      %10490 = vrot.lane.b32.xlu0 %v10401, 16
      %v10491 = vpop.permute.xlu0 %10490
      %10492 = vrot.lane.b32.xlu0 %v10402, 16
      %v10493 = vpop.permute.xlu0 %10492
      %10494 = vrot.lane.b32.xlu0 %v10403, 16
      %v10495 = vpop.permute.xlu0 %10494
      %10496 = vrot.lane.b32.xlu0 %v10404, 16
      %v10497 = vpop.permute.xlu0 %10496
      %10498 = vrot.lane.b32.xlu0 %v10405, 16
      %v10499 = vpop.permute.xlu0 %10498
      %10500 = vrot.lane.b32.xlu0 %v10406, 16
      %v10501 = vpop.permute.xlu0 %10500
      %10502 = vrot.lane.b32.xlu0 %v10407, 16
      %v10503 = vpop.permute.xlu0 %10502
      %10536 = vst.msk [vmem:[#allocation4] sm:$0xff] %vm7971, %v10441
      %10537 = vst.msk [vmem:[#allocation4 + $0x8] sm:$0xff] %vm7971, %v10443
      %10538 = vst.msk [vmem:[#allocation4 + $0x10] sm:$0xff] %vm7971, %v10445
      %10539 = vst.msk [vmem:[#allocation4 + $0x18] sm:$0xff] %vm7971, %v10447
      %10540 = vst.msk [vmem:[#allocation4 + $0x20] sm:$0xff] %vm7971, %v10449
      %10541 = vst.msk [vmem:[#allocation4 + $0x28] sm:$0xff] %vm7971, %v10451
      %10542 = vst.msk [vmem:[#allocation4 + $0x30] sm:$0xff] %vm7971, %v10453
      %10543 = vst.msk [vmem:[#allocation4 + $0x38] sm:$0xff] %vm7971, %v10455
      %10544 = vst.msk [vmem:[#allocation4 + $0x40] sm:$0xff] %vm7971, %v10457
      %10545 = vst.msk [vmem:[#allocation4 + $0x48] sm:$0xff] %vm7971, %v10459
      %10546 = vst.msk [vmem:[#allocation4 + $0x50] sm:$0xff] %vm7971, %v10461
      %10547 = vst.msk [vmem:[#allocation4 + $0x58] sm:$0xff] %vm7971, %v10463
      %10548 = vst.msk [vmem:[#allocation4 + $0x60] sm:$0xff] %vm7971, %v10465
      %10549 = vst.msk [vmem:[#allocation4 + $0x68] sm:$0xff] %vm7971, %v10467
      %10550 = vst.msk [vmem:[#allocation4 + $0x70] sm:$0xff] %vm7971, %v10469
      %10551 = vst.msk [vmem:[#allocation4 + $0x78] sm:$0xff] %vm7971, %v10471
      %10552 = vst.msk [vmem:[#allocation4 + $0x80] sm:$0xff] %vm7971, %v10473
      %10553 = vst.msk [vmem:[#allocation4 + $0x88] sm:$0xff] %vm7971, %v10475
      %10554 = vst.msk [vmem:[#allocation4 + $0x90] sm:$0xff] %vm7971, %v10477
      %10555 = vst.msk [vmem:[#allocation4 + $0x98] sm:$0xff] %vm7971, %v10479
      %10556 = vst.msk [vmem:[#allocation4 + $0xa0] sm:$0xff] %vm7971, %v10481
      %10557 = vst.msk [vmem:[#allocation4 + $0xa8] sm:$0xff] %vm7971, %v10483
      %10558 = vst.msk [vmem:[#allocation4 + $0xb0] sm:$0xff] %vm7971, %v10485
      %10559 = vst.msk [vmem:[#allocation4 + $0xb8] sm:$0xff] %vm7971, %v10487
      %10560 = vst.msk [vmem:[#allocation4 + $0xc0] sm:$0xff] %vm7971, %v10489
      %10561 = vst.msk [vmem:[#allocation4 + $0xc8] sm:$0xff] %vm7971, %v10491
      %10562 = vst.msk [vmem:[#allocation4 + $0xd0] sm:$0xff] %vm7971, %v10493
      %10563 = vst.msk [vmem:[#allocation4 + $0xd8] sm:$0xff] %vm7971, %v10495
      %10564 = vst.msk [vmem:[#allocation4 + $0xe0] sm:$0xff] %vm7971, %v10497
      %10565 = vst.msk [vmem:[#allocation4 + $0xe8] sm:$0xff] %vm7971, %v10499
      %10566 = vst.msk [vmem:[#allocation4 + $0xf0] sm:$0xff] %vm7971, %v10501
      %10567 = vst.msk [vmem:[#allocation4 + $0xf8] sm:$0xff] %vm7971, %v10503
      %v10568 = vld [vmem:[#allocation4] sm:$0xff]
      %v10569 = vld [vmem:[#allocation4 + $0x8] sm:$0xff]
      %v10570 = vld [vmem:[#allocation4 + $0x10] sm:$0xff]
      %v10571 = vld [vmem:[#allocation4 + $0x18] sm:$0xff]
      %v10572 = vld [vmem:[#allocation4 + $0x20] sm:$0xff]
      %v10573 = vld [vmem:[#allocation4 + $0x28] sm:$0xff]
      %v10574 = vld [vmem:[#allocation4 + $0x30] sm:$0xff]
      %v10575 = vld [vmem:[#allocation4 + $0x38] sm:$0xff]
      %v10576 = vld [vmem:[#allocation4 + $0x40] sm:$0xff]
      %v10577 = vld [vmem:[#allocation4 + $0x48] sm:$0xff]
      %v10578 = vld [vmem:[#allocation4 + $0x50] sm:$0xff]
      %v10579 = vld [vmem:[#allocation4 + $0x58] sm:$0xff]
      %v10580 = vld [vmem:[#allocation4 + $0x60] sm:$0xff]
      %v10581 = vld [vmem:[#allocation4 + $0x68] sm:$0xff]
      %v10582 = vld [vmem:[#allocation4 + $0x70] sm:$0xff]
      %v10583 = vld [vmem:[#allocation4 + $0x78] sm:$0xff]
      %v10584 = vld [vmem:[#allocation4 + $0x80] sm:$0xff]
      %v10585 = vld [vmem:[#allocation4 + $0x88] sm:$0xff]
      %v10586 = vld [vmem:[#allocation4 + $0x90] sm:$0xff]
      %v10587 = vld [vmem:[#allocation4 + $0x98] sm:$0xff]
      %v10588 = vld [vmem:[#allocation4 + $0xa0] sm:$0xff]
      %v10589 = vld [vmem:[#allocation4 + $0xa8] sm:$0xff]
      %v10590 = vld [vmem:[#allocation4 + $0xb0] sm:$0xff]
      %v10591 = vld [vmem:[#allocation4 + $0xb8] sm:$0xff]
      %v10592 = vld [vmem:[#allocation4 + $0xc0] sm:$0xff]
      %v10593 = vld [vmem:[#allocation4 + $0xc8] sm:$0xff]
      %v10594 = vld [vmem:[#allocation4 + $0xd0] sm:$0xff]
      %v10595 = vld [vmem:[#allocation4 + $0xd8] sm:$0xff]
      %v10596 = vld [vmem:[#allocation4 + $0xe0] sm:$0xff]
      %v10597 = vld [vmem:[#allocation4 + $0xe8] sm:$0xff]
      %v10598 = vld [vmem:[#allocation4 + $0xf0] sm:$0xff]
      %v10599 = vld [vmem:[#allocation4 + $0xf8] sm:$0xff]
      %v10600 = vsel %vm2841, %v10568, 0.0
      %v10601 = vsel %vm2841, %v10569, 0.0
      %v10602 = vadd.f32 %v10600, %v10601
      %v10603 = vsel %vm2841, %v10570, 0.0
      %v10604 = vadd.f32 %v10602, %v10603
      %v10605 = vsel %vm2841, %v10571, 0.0
      %v10606 = vadd.f32 %v10604, %v10605
      %v10607 = vsel %vm2841, %v10572, 0.0
      %v10608 = vadd.f32 %v10606, %v10607
      %v10609 = vsel %vm2841, %v10573, 0.0
      %v10610 = vadd.f32 %v10608, %v10609
      %v10611 = vsel %vm2841, %v10574, 0.0
      %v10612 = vadd.f32 %v10610, %v10611
      %v10613 = vsel %vm2841, %v10575, 0.0
      %v10614 = vadd.f32 %v10612, %v10613
      %v10615 = vsel %vm2841, %v10576, 0.0
      %v10616 = vadd.f32 %v10614, %v10615
      %v10617 = vsel %vm2841, %v10577, 0.0
      %v10618 = vadd.f32 %v10616, %v10617
      %v10619 = vsel %vm2841, %v10578, 0.0
      %v10620 = vadd.f32 %v10618, %v10619
      %v10621 = vsel %vm2841, %v10579, 0.0
      %v10622 = vadd.f32 %v10620, %v10621
      %v10623 = vsel %vm2841, %v10580, 0.0
      %v10624 = vadd.f32 %v10622, %v10623
      %v10625 = vsel %vm2841, %v10581, 0.0
      %v10626 = vadd.f32 %v10624, %v10625
      %v10627 = vsel %vm2841, %v10582, 0.0
      %v10628 = vadd.f32 %v10626, %v10627
      %v10629 = vsel %vm2841, %v10583, 0.0
      %v10630 = vadd.f32 %v10628, %v10629
      %v10631 = vsel %vm2841, %v10584, 0.0
      %v10632 = vadd.f32 %v10630, %v10631
      %v10633 = vsel %vm2841, %v10585, 0.0
      %v10634 = vadd.f32 %v10632, %v10633
      %v10635 = vsel %vm2841, %v10586, 0.0
      %v10636 = vadd.f32 %v10634, %v10635
      %v10637 = vsel %vm2841, %v10587, 0.0
      %v10638 = vadd.f32 %v10636, %v10637
      %v10639 = vsel %vm2841, %v10588, 0.0
      %v10640 = vadd.f32 %v10638, %v10639
      %v10641 = vsel %vm2841, %v10589, 0.0
      %v10642 = vadd.f32 %v10640, %v10641
      %v10643 = vsel %vm2841, %v10590, 0.0
      %v10644 = vadd.f32 %v10642, %v10643
      %v10645 = vsel %vm2841, %v10591, 0.0
      %v10646 = vadd.f32 %v10644, %v10645
      %v10647 = vsel %vm2841, %v10592, 0.0
      %v10648 = vadd.f32 %v10646, %v10647
      %v10649 = vsel %vm2841, %v10593, 0.0
      %v10650 = vadd.f32 %v10648, %v10649
      %v10651 = vsel %vm2841, %v10594, 0.0
      %v10652 = vadd.f32 %v10650, %v10651
      %v10653 = vsel %vm2841, %v10595, 0.0
      %v10654 = vadd.f32 %v10652, %v10653
      %v10655 = vsel %vm2841, %v10596, 0.0
      %v10656 = vadd.f32 %v10654, %v10655
      %v10657 = vsel %vm2841, %v10597, 0.0
      %v10658 = vadd.f32 %v10656, %v10657
      %v10659 = vsel %vm2841, %v10598, 0.0
      %v10660 = vadd.f32 %v10658, %v10659
      %v10661 = vsel %vm2841, %v10599, 0.0
      %v10662 = vadd.f32 %v10660, %v10661
      %v10663 = vrot.slane %v10662, 4
      %v10664 = vadd.f32 %v10662, %v10663
      %v10665 = vrot.slane %v10664, 2
      %v10666 = vadd.f32 %v10664, %v10665
      %v10667 = vrot.slane %v10666, 1
      %v10668 = vadd.f32 %v10666, %v10667
      %v10669 = vrcp.pop 256.0
      %v10670 = vmul.f32 256.0, %v10669
      %v10671 = vsub.f32 1.0, %v10670
      %v10672 = vmul.f32 %v10669, %v10671
      %v10673 = vadd.f32 %v10669, %v10672
      %vm10674 = vweird.f32 %v10669
      %v10675 = vsel %vm10674, %v10669, %v10673
      %v10676 = vmul.f32 %v10668, %v10675
      %v10677 = vpack.c.bf16 %v10676, %v10676
      %v10678 = vld [vmem:[%s9] sm:$0xf]
      %v10679 = vld [vmem:[%s9 + $0x4] sm:$0xf]
      %v10680 = vld [vmem:[%s9 + $0x8] sm:$0xf]
      %v10681 = vld [vmem:[%s10] sm:$0x1]
      %v10685 = vunpack.c.l.b16 %v10678
      %v10686 = vunpack.c.l.b16 %v10679
      %v10687 = vunpack.c.l.b16 %v10680
      %v10688 = vpack.c.b16 %v10686, %v10685
      %v10689 = vpack.c.b16 %v10687, %v10687
      %v10692 = vsel %vm2841, %v10677, 0
      %v10695 = vsel %vm2716, %v10689, 0
      %10697 = vmatpush.bf16.msra.mxu0 0
      %10698 = vmatpush.bf16.msra.mxu0 0
      %10699 = vmatpush.bf16.msra.mxu0 0
      %10700 = vmatpush.bf16.msra.mxu0 0
      %10701 = vmatpush.bf16.msra.mxu0 0
      %10702 = vmatpush.bf16.msra.mxu0 0
      %10703 = vmatpush.bf16.msra.mxu0 %v10695
      %10704 = vmatpush.bf16.msra.mxu0 %v10688
      %10705 = vmatmul.bf16.gmra.mxu0 %v10692
      %v10706 = vpop.f32.mrf.mxu0
      %v10707 = vadd.f32 %v10681, %v10706
      %v10708 = vpop.f32.mrf.mxu0
      %10709 = vdwg.mxu0
      %v10710 = vmax.f32 %v10707, 0.0
      %v10711 = vpack.c.bf16 %v10710, %v10710
      %v10712 = vld [vmem:[%s11] sm:$0x7]
      %v10713 = vld [vmem:[%s12] sm:$0x1]
      %vm10714 = vcmask 48128
      %v10716 = vsel %vm10714, %v10711, 0
      %vm10718 = vcmask 1042432
      %v10720 = vsel %vm10718, %v10712, 0
      %10722 = vmatpush.bf16.msra.mxu0 0
      %10723 = vmatpush.bf16.msra.mxu0 0
      %10724 = vmatpush.bf16.msra.mxu0 0
      %10725 = vmatpush.bf16.msra.mxu0 0
      %10726 = vmatpush.bf16.msra.mxu0 0
      %10727 = vmatpush.bf16.msra.mxu0 0
      %10728 = vmatpush.bf16.msra.mxu0 0
      %10729 = vmatpush.bf16.msra.mxu0 %v10720
      %10730 = vmatmul.bf16.gmra.mxu0 %v10716
      %v10731 = vpop.f32.mrf.mxu0
      %v10732 = vadd.f32 %v10713, %v10731
      %v10733 = vpop.f32.mrf.mxu0
      %10734 = vdwg.mxu0
      %v10735 = vsub.f32 0.0, %v10732
      %v10736 = vmul.f32 %v10735, 1.442695
      %v10737 = vpow.pop %v10736
      %v10738 = vadd.f32 %v10737, 1.0
      %v10739 = vrcp.pop %v10738
      %v10740 = vmul.f32 %v10738, %v10739
      %v10741 = vsub.f32 1.0, %v10740
      %v10742 = vmul.f32 %v10739, %v10741
      %v10743 = vadd.f32 %v10739, %v10742
      %vm10744 = vweird.f32 %v10738
      %vm10745 = vweird.f32 %v10739
      %vm10746 = vmor %vm10744, %vm10745
      %v10747 = vsel %vm10746, %v10739, %v10743
      %v10748 = vand.u32 2147483647, %v10738
      %vm10749 = vcmp.eq.f32.partialorder %v10748, 8.507059e+37
      %v10750 = vand.u32 %v10738, 2147483648
      %v10751 = vor.u32 1.1754944e-38, %v10750
      %v10752 = vsel %vm10749, %v10751, %v10747
      %v10753 = vmul.f32 1.0, %v10752
      %v10754 = vperm.slane %v10753, 0
      %v10755 = vmul.f32 %v10568, %v10754
      %v10756 = vmul.f32 %v10569, %v10754
      %v10757 = vmul.f32 %v10570, %v10754
      %v10758 = vmul.f32 %v10571, %v10754
      %v10759 = vmul.f32 %v10572, %v10754
      %v10760 = vmul.f32 %v10573, %v10754
      %v10761 = vmul.f32 %v10574, %v10754
      %v10762 = vmul.f32 %v10575, %v10754
      %v10763 = vmul.f32 %v10576, %v10754
      %v10764 = vmul.f32 %v10577, %v10754
      %v10765 = vmul.f32 %v10578, %v10754
      %v10766 = vmul.f32 %v10579, %v10754
      %v10767 = vmul.f32 %v10580, %v10754
      %v10768 = vmul.f32 %v10581, %v10754
      %v10769 = vmul.f32 %v10582, %v10754
      %v10770 = vmul.f32 %v10583, %v10754
      %v10771 = vmul.f32 %v10584, %v10754
      %v10772 = vmul.f32 %v10585, %v10754
      %v10773 = vmul.f32 %v10586, %v10754
      %v10774 = vmul.f32 %v10587, %v10754
      %v10775 = vmul.f32 %v10588, %v10754
      %v10776 = vmul.f32 %v10589, %v10754
      %v10777 = vmul.f32 %v10590, %v10754
      %v10778 = vmul.f32 %v10591, %v10754
      %v10779 = vmul.f32 %v10592, %v10754
      %v10780 = vmul.f32 %v10593, %v10754
      %v10781 = vmul.f32 %v10594, %v10754
      %v10782 = vmul.f32 %v10595, %v10754
      %v10783 = vmul.f32 %v10596, %v10754
      %v10784 = vmul.f32 %v10597, %v10754
      %v10785 = vmul.f32 %v10598, %v10754
      %v10786 = vmul.f32 %v10599, %v10754
      %v10787 = vpack.c.bf16 %v10756, %v10755
      %v10788 = vpack.c.bf16 %v10758, %v10757
      %v10789 = vpack.c.bf16 %v10760, %v10759
      %v10790 = vpack.c.bf16 %v10762, %v10761
      %v10791 = vpack.c.bf16 %v10764, %v10763
      %v10792 = vpack.c.bf16 %v10766, %v10765
      %v10793 = vpack.c.bf16 %v10768, %v10767
      %v10794 = vpack.c.bf16 %v10770, %v10769
      %v10795 = vpack.c.bf16 %v10772, %v10771
      %v10796 = vpack.c.bf16 %v10774, %v10773
      %v10797 = vpack.c.bf16 %v10776, %v10775
      %v10798 = vpack.c.bf16 %v10778, %v10777
      %v10799 = vpack.c.bf16 %v10780, %v10779
      %v10800 = vpack.c.bf16 %v10782, %v10781
      %v10801 = vpack.c.bf16 %v10784, %v10783
      %v10802 = vpack.c.bf16 %v10786, %v10785
      %v10803 = vld [vmem:[%s13] sm:$0xf]
      %v10804 = vld [vmem:[%s13 + $0x4] sm:$0xf]
      %v10805 = vld [vmem:[%s13 + $0x8] sm:$0xf]
      %v10806 = vld [vmem:[%s14] sm:$0x1]
      %v10808 = vperm.slane %v10806, 0
      %v10813 = vunpack.c.l.b16 %v10803
      %v10814 = vunpack.c.l.b16 %v10804
      %v10815 = vunpack.c.l.b16 %v10805
      %v10816 = vpack.c.b16 %v10814, %v10813
      %v10817 = vpack.c.b16 %v10815, %v10815
      %v10820 = vsel %vm2841, %v10787, 0
      %v10823 = vsel %vm2841, %v10788, 0
      %v10826 = vsel %vm2841, %v10789, 0
      %v10829 = vsel %vm2841, %v10790, 0
      %v10832 = vsel %vm2841, %v10791, 0
      %v10835 = vsel %vm2841, %v10792, 0
      %v10838 = vsel %vm2841, %v10793, 0
      %v10841 = vsel %vm2841, %v10794, 0
      %v10844 = vsel %vm2841, %v10795, 0
      %v10847 = vsel %vm2841, %v10796, 0
      %v10850 = vsel %vm2841, %v10797, 0
      %v10853 = vsel %vm2841, %v10798, 0
      %v10856 = vsel %vm2841, %v10799, 0
      %v10859 = vsel %vm2841, %v10800, 0
      %v10862 = vsel %vm2841, %v10801, 0
      %v10865 = vsel %vm2841, %v10802, 0
      %v10868 = vsel %vm2716, %v10817, 0
      %10870 = vmatpush.bf16.msra.mxu0 0
      %10871 = vmatpush.bf16.msra.mxu0 0
      %10872 = vmatpush.bf16.msra.mxu0 0
      %10873 = vmatpush.bf16.msra.mxu0 0
      %10874 = vmatpush.bf16.msra.mxu0 0
      %10875 = vmatpush.bf16.msra.mxu0 0
      %10876 = vmatpush.bf16.msra.mxu0 %v10868
      %10877 = vmatpush.bf16.msra.mxu0 %v10816
      %10878 = vmatmul.bf16.gmra.mxu0 %v10820
      %v10879 = vpop.f32.mrf.mxu0
      %v10880 = vadd.f32 %v10808, %v10879
      %v10881 = vpop.f32.mrf.mxu0
      %v10882 = vadd.f32 %v10808, %v10881
      %10883 = vmatmul.bf16.gmra.mxu0 %v10823
      %v10884 = vpop.f32.mrf.mxu0
      %v10885 = vadd.f32 %v10808, %v10884
      %v10886 = vpop.f32.mrf.mxu0
      %v10887 = vadd.f32 %v10808, %v10886
      %10888 = vmatmul.bf16.gmra.mxu0 %v10826
      %v10889 = vpop.f32.mrf.mxu0
      %v10890 = vadd.f32 %v10808, %v10889
      %v10891 = vpop.f32.mrf.mxu0
      %v10892 = vadd.f32 %v10808, %v10891
      %10893 = vmatmul.bf16.gmra.mxu0 %v10829
      %v10894 = vpop.f32.mrf.mxu0
      %v10895 = vadd.f32 %v10808, %v10894
      %v10896 = vpop.f32.mrf.mxu0
      %v10897 = vadd.f32 %v10808, %v10896
      %10898 = vmatmul.bf16.gmra.mxu0 %v10832
      %v10899 = vpop.f32.mrf.mxu0
      %v10900 = vadd.f32 %v10808, %v10899
      %v10901 = vpop.f32.mrf.mxu0
      %v10902 = vadd.f32 %v10808, %v10901
      %10903 = vmatmul.bf16.gmra.mxu0 %v10835
      %v10904 = vpop.f32.mrf.mxu0
      %v10905 = vadd.f32 %v10808, %v10904
      %v10906 = vpop.f32.mrf.mxu0
      %v10907 = vadd.f32 %v10808, %v10906
      %10908 = vmatmul.bf16.gmra.mxu0 %v10838
      %v10909 = vpop.f32.mrf.mxu0
      %v10910 = vadd.f32 %v10808, %v10909
      %v10911 = vpop.f32.mrf.mxu0
      %v10912 = vadd.f32 %v10808, %v10911
      %10913 = vmatmul.bf16.gmra.mxu0 %v10841
      %v10914 = vpop.f32.mrf.mxu0
      %v10915 = vadd.f32 %v10808, %v10914
      %v10916 = vpop.f32.mrf.mxu0
      %v10917 = vadd.f32 %v10808, %v10916
      %10918 = vmatmul.bf16.gmra.mxu0 %v10844
      %v10919 = vpop.f32.mrf.mxu0
      %v10920 = vadd.f32 %v10808, %v10919
      %v10921 = vpop.f32.mrf.mxu0
      %v10922 = vadd.f32 %v10808, %v10921
      %10923 = vmatmul.bf16.gmra.mxu0 %v10847
      %v10924 = vpop.f32.mrf.mxu0
      %v10925 = vadd.f32 %v10808, %v10924
      %v10926 = vpop.f32.mrf.mxu0
      %v10927 = vadd.f32 %v10808, %v10926
      %10928 = vmatmul.bf16.gmra.mxu0 %v10850
      %v10929 = vpop.f32.mrf.mxu0
      %v10930 = vadd.f32 %v10808, %v10929
      %v10931 = vpop.f32.mrf.mxu0
      %v10932 = vadd.f32 %v10808, %v10931
      %10933 = vmatmul.bf16.gmra.mxu0 %v10853
      %v10934 = vpop.f32.mrf.mxu0
      %v10935 = vadd.f32 %v10808, %v10934
      %v10936 = vpop.f32.mrf.mxu0
      %v10937 = vadd.f32 %v10808, %v10936
      %10938 = vmatmul.bf16.gmra.mxu0 %v10856
      %v10939 = vpop.f32.mrf.mxu0
      %v10940 = vadd.f32 %v10808, %v10939
      %v10941 = vpop.f32.mrf.mxu0
      %v10942 = vadd.f32 %v10808, %v10941
      %10943 = vmatmul.bf16.gmra.mxu0 %v10859
      %v10944 = vpop.f32.mrf.mxu0
      %v10945 = vadd.f32 %v10808, %v10944
      %v10946 = vpop.f32.mrf.mxu0
      %v10947 = vadd.f32 %v10808, %v10946
      %10948 = vmatmul.bf16.gmra.mxu0 %v10862
      %v10949 = vpop.f32.mrf.mxu0
      %v10950 = vadd.f32 %v10808, %v10949
      %v10951 = vpop.f32.mrf.mxu0
      %v10952 = vadd.f32 %v10808, %v10951
      %10953 = vmatmul.bf16.gmra.mxu0 %v10865
      %v10954 = vpop.f32.mrf.mxu0
      %v10955 = vadd.f32 %v10808, %v10954
      %v10956 = vpop.f32.mrf.mxu0
      %v10957 = vadd.f32 %v10808, %v10956
      %10958 = vdwg.mxu0
      %10959 = vst.msk [vmem:[%s494] sm:$0xff] %vm496, %v10880
      %10960 = vst.msk [vmem:[%s494 + $0x8] sm:$0xff] %vm496, %v10882
      %10961 = vst.msk [vmem:[%s494 + $0x10] sm:$0xff] %vm496, %v10885
      %10962 = vst.msk [vmem:[%s494 + $0x18] sm:$0xff] %vm496, %v10887
      %10963 = vst.msk [vmem:[%s494 + $0x20] sm:$0xff] %vm496, %v10890
      %10964 = vst.msk [vmem:[%s494 + $0x28] sm:$0xff] %vm496, %v10892
      %10965 = vst.msk [vmem:[%s494 + $0x30] sm:$0xff] %vm496, %v10895
      %10966 = vst.msk [vmem:[%s494 + $0x38] sm:$0xff] %vm496, %v10897
      %10967 = vst.msk [vmem:[%s494 + $0x40] sm:$0xff] %vm496, %v10900
      %10968 = vst.msk [vmem:[%s494 + $0x48] sm:$0xff] %vm496, %v10902
      %10969 = vst.msk [vmem:[%s494 + $0x50] sm:$0xff] %vm496, %v10905
      %10970 = vst.msk [vmem:[%s494 + $0x58] sm:$0xff] %vm496, %v10907
      %10971 = vst.msk [vmem:[%s494 + $0x60] sm:$0xff] %vm496, %v10910
      %10972 = vst.msk [vmem:[%s494 + $0x68] sm:$0xff] %vm496, %v10912
      %10973 = vst.msk [vmem:[%s494 + $0x70] sm:$0xff] %vm496, %v10915
      %10974 = vst.msk [vmem:[%s494 + $0x78] sm:$0xff] %vm496, %v10917
      %10975 = vst.msk [vmem:[%s494 + $0x80] sm:$0xff] %vm496, %v10920
      %10976 = vst.msk [vmem:[%s494 + $0x88] sm:$0xff] %vm496, %v10922
      %10977 = vst.msk [vmem:[%s494 + $0x90] sm:$0xff] %vm496, %v10925
      %10978 = vst.msk [vmem:[%s494 + $0x98] sm:$0xff] %vm496, %v10927
      %10979 = vst.msk [vmem:[%s494 + $0xa0] sm:$0xff] %vm496, %v10930
      %10980 = vst.msk [vmem:[%s494 + $0xa8] sm:$0xff] %vm496, %v10932
      %10981 = vst.msk [vmem:[%s494 + $0xb0] sm:$0xff] %vm496, %v10935
      %10982 = vst.msk [vmem:[%s494 + $0xb8] sm:$0xff] %vm496, %v10937
      %10983 = vst.msk [vmem:[%s494 + $0xc0] sm:$0xff] %vm496, %v10940
      %10984 = vst.msk [vmem:[%s494 + $0xc8] sm:$0xff] %vm496, %v10942
      %10985 = vst.msk [vmem:[%s494 + $0xd0] sm:$0xff] %vm496, %v10945
      %10986 = vst.msk [vmem:[%s494 + $0xd8] sm:$0xff] %vm496, %v10947
      %10987 = vst.msk [vmem:[%s494 + $0xe0] sm:$0xff] %vm496, %v10950
      %10988 = vst.msk [vmem:[%s494 + $0xe8] sm:$0xff] %vm496, %v10952
      %10989 = vst.msk [vmem:[%s494 + $0xf0] sm:$0xff] %vm496, %v10955
      %10990 = vst.msk [vmem:[%s494 + $0xf8] sm:$0xff] %vm496, %v10957
      %p10991 = scmp.lt.s32.totalorder %s26, 1
      %s10992 = scalar_select %p10991, %s26, 1
      %s10993 = smul.addr %s10992, 32
      %s10994 = smul.addr %s10993, 8
      %s10995 = scalar_lea.vmem %s15, %s10994
      // Predicated region
      $region81: #{dfe_forward.1} parent=79 // pred_check
        %p10996 = pneg %p364
      $region82: #{dfe_forward.1} parent=79 // pred_check_branch
        %10998 = sbr.rel (%p10996) target = $region84
      $region83: #{dfe_forward.1} parent=79 // pred_region
        _
      $region84: #{dfe_forward.1} parent=79 // pred_fallthru
        _
    $region80: #{dfe_forward.1} parent=5 // pred_fallthru
      _
    %p10999 = scmp.le.s32.totalorder 2, %s21
    // Predicated region
    $region85: #{dfe_forward.1} parent=5 // pred_check
      %p11000 = pneg %p10999
    $region86: #{dfe_forward.1} parent=5 // pred_check_branch
      %11002 = sbr.rel (%p11000) target = $region88
    $region87: #{dfe_forward.1} parent=5 // pred_region
      %s11003 = ssub.s32 %s21, 2
      // Predicated region
      $region89: #{dfe_forward.1} parent=87 // pred_check
        %p11004 = pneg %p370
      $region90: #{dfe_forward.1} parent=87 // pred_check_branch
        %11006 = sbr.rel (%p11004) target = $region92
      $region91: #{dfe_forward.1} parent=87 // pred_region
        %p11007 = scmp.lt.s32.totalorder %s27, 1
        %s11008 = scalar_select %p11007, %s27, 1
        %s11009 = smul.addr %s11008, 32
        %s11010 = smul.addr %s11009, 8
        %s11011 = scalar_lea.vmem %s15, %s11010
      $region92: #{dfe_forward.1} parent=87 // pred_fallthru
        _
    $region88: #{dfe_forward.1} parent=5 // pred_fallthru
      _
  $region6: #{dfe_forward.1} parent=0 // loop_footer
    %s25 = sadd.s32 1, %s21
  $region7: #{dfe_forward.1} parent=0 // loop_footer_branch
    %20 = sbr.rel target = $region3
  $region8: #{dfe_forward.1} parent=0 // loop_exit
    _

</llo_original>
